<compile_context>
chip_gen: v6e
topology: v6e:2x2x1
jax: 0.10.0
libtpu: 0.0.40
codegen_flags: <defaults>
</compile_context>

<pallas_src>
import numpy as np

import jax
import jax.numpy as jnp
from jax.experimental import pallas as pl
from jax.experimental.pallas import tpu as pltpu


# --------------------------- hardware introspection --------------------------

def _tpu_generation():
    """Best-effort TPU generation number (0 if unknown)."""
    try:
        kind = jax.devices()[0].device_kind.lower()
    except Exception:
        return 0
    for g in (7, 6, 5, 4, 3):
        if str(g) in kind:
            return g
    return 0


def _vmem_capacity_bytes():
    """Physical VMEM capacity; conservative 64 MiB fallback (v7x-safe)."""
    try:
        info = pltpu.get_tpu_info()
        cap = getattr(info, "vmem_capacity_bytes", None)
        if cap:
            return int(cap)
    except Exception:
        pass
    gen = _tpu_generation()
    if gen == 0 or gen >= 7:
        return 64 * 1024 * 1024
    return 128 * 1024 * 1024


# ------------------------------ Pallas kernel -------------------------------

def _make_conv3x3_kernel(row_tile, W, Wp, Cin, Cout, dil, use_im2col,
                         with_residual):
    """3x3 conv (stride 1, pad=dil) + folded BN + optional residual + ReLU for
    one (row_tile, W) tile of output positions.  The whole padded image is
    resident in x_ref; the tile's halo window is sliced in-kernel."""

    TH = row_tile
    THd = TH + 2 * dil
    pow2 = TH & (-TH)  # largest power-of-two divisor of the tile height

    def kernel(x_ref, w_ref, sc_ref, bs_ref, *rest):
        if with_residual:
            r_ref, o_ref = rest
        else:
            (o_ref,) = rest

        t = pl.program_id(1)
        row0 = pl.multiple_of(t * TH, pow2)
        x = x_ref[pl.ds(row0, THd), :, :]            # (TH+2d, W+2d, Cin) bf16

        if use_im2col:
            # Single MXU matmul per tile: window matrix (TH*W, 9*Cin).
            cols = [x[ky * dil:ky * dil + TH, kx * dil:kx * dil + W, :]
                    for ky in range(3) for kx in range(3)]
            win = jnp.concatenate(cols, axis=-1).reshape(TH * W, 9 * Cin)
            acc = jnp.dot(win, w_ref[...],
                          preferred_element_type=jnp.float32)
        else:
            # Per-tap accumulation: preferred on v7x (MRB accumulates in
            # place) and required when Cin is not lane-aligned.
            w = w_ref[...]
            acc = jnp.zeros((TH * W, Cout), jnp.float32)
            for tap in range(9):
                ky, kx = divmod(tap, 3)
                win = x[ky * dil:ky * dil + TH,
                        kx * dil:kx * dil + W, :].reshape(TH * W, Cin)
                acc = acc + jnp.dot(win, w[tap * Cin:(tap + 1) * Cin, :],
                                    preferred_element_type=jnp.float32)

        y = acc * sc_ref[...] + bs_ref[...]          # folded BN, f32 epilogue
        if with_residual:
            y = y + r_ref[...].astype(jnp.float32)   # bf16 residual, upcast
        o_ref[...] = jnp.maximum(y, 0.0).astype(o_ref.dtype)

    return kernel


# ------------------------------ wrapper / glue -------------------------------

def _pick_row_tile(H, W, Cin, Cout, d, out_itemsize, has_residual, budget):
    """Largest row tile dividing H whose working set fits `budget`; stops
    growing once M = tile*W reaches ~1024 (MXU fill)."""
    Hp, Wp = H + 2 * d, W + 2 * d
    # Resident (double-buffer-allocated) pieces: padded input + weights + BN.
    fixed = 2 * Hp * Wp * Cin * 2 + 2 * 9 * Cin * Cout * 2 + 4 * Cout * 4

    def per_tile(th):
        m = th * W
        b = 2 * m * Cout * out_itemsize              # output tile (dbl-buf)
        if has_residual:
            b += 2 * m * Cout * 2                    # bf16 residual tile
        b += m * 9 * Cin * 2 + m * Cout * 4          # im2col window + f32 acc
        return b

    cands = [th for th in range(1, H + 1)
             if H % th == 0 and (th * W) % 8 == 0]
    if not cands:
        return H
    best = None
    for th in cands:
        if fixed + per_tile(th) > budget:
            break
        best = th
        if th * W >= 1024:
            break
    return best if best is not None else cands[0]


def conv3x3_bn_relu(x_nhwc, w_flat, scale, bias, *, dilation=1, residual=None,
                    out_dtype=jnp.bfloat16, row_tile=None):
    """Fused 3x3 conv (stride 1, pad=dilation, no bias) + folded BN +
    optional residual add + ReLU.  Returns NHWC in `out_dtype`."""
    N, H, W, Cin = x_nhwc.shape
    Cout = w_flat.shape[1]
    d = int(dilation)
    out_itemsize = jnp.dtype(out_dtype).itemsize

    vmem_cap = _vmem_capacity_bytes()
    vmem_limit = min(vmem_cap * 3 // 4, 96 * 1024 * 1024)
    budget = int(vmem_limit * 0.8)

    if row_tile is None:
        row_tile = _pick_row_tile(H, W, Cin, Cout, d, out_itemsize,
                                  residual is not None, budget)
    if H % row_tile != 0 or ((row_tile * W) % 8 != 0 and row_tile != H):
        row_tile = H
    nT = H // row_tile
    Hp, Wp = H + 2 * d, W + 2 * d

    # Halo source: one padded bf16 copy, kept resident in VMEM per batch
    # element (block index constant along the row-tile axis -> no re-DMA).
    xp = jnp.pad(x_nhwc.astype(jnp.bfloat16),
                 ((0, 0), (d, d), (d, d), (0, 0)))

    args = [xp, w_flat, scale, bias]
    in_specs = [
        pl.BlockSpec((None, Hp, Wp, Cin), lambda n, t: (n, 0, 0, 0)),
        pl.BlockSpec((9 * Cin, Cout), lambda n, t: (0, 0)),   # resident weights
        pl.BlockSpec((1, Cout), lambda n, t: (0, 0)),
        pl.BlockSpec((1, Cout), lambda n, t: (0, 0)),
    ]
    bytes_accessed = (xp.size * 2 + w_flat.size * 2
                      + N * H * W * Cout * out_itemsize + 2 * Cout * 4)
    if residual is not None:
        res = residual.reshape(N, H * W, Cout).astype(jnp.bfloat16)
        args.append(res)
        in_specs.append(pl.BlockSpec((None, row_tile * W, Cout),
                                     lambda n, t: (n, t, 0)))
        bytes_accessed += res.size * 2

    gen = _tpu_generation()
    use_im2col = (Cin % 128 == 0) and gen < 7

    kernel = _make_conv3x3_kernel(row_tile, W, Wp, Cin, Cout, d, use_im2col,
                                  residual is not None)

    out = pl.pallas_call(
        kernel,
        grid=(N, nT),
        in_specs=in_specs,
        out_specs=pl.BlockSpec((None, row_tile * W, Cout),
                               lambda n, t: (n, t, 0)),
        out_shape=jax.ShapeDtypeStruct((N, H * W, Cout), out_dtype),
        compiler_params=pltpu.CompilerParams(
            dimension_semantics=("parallel", "parallel"),
            vmem_limit_bytes=int(vmem_limit)),
        cost_estimate=pl.CostEstimate(
            flops=2 * N * H * W * 9 * Cin * Cout,
            transcendentals=0,
            bytes_accessed=int(bytes_accessed)),
    )(*args)
    return out.reshape(N, H, W, Cout)


# ------------------------------ parameter setup ------------------------------

def _fold_bn(gamma, beta, running_mean, running_var, eps=1e-5):
    scale = gamma / jnp.sqrt(running_var + eps)
    bias = beta - running_mean * scale
    return (scale.reshape(1, -1).astype(jnp.float32),
            bias.reshape(1, -1).astype(jnp.float32))


class BasicBlockPallas:
    """Pallas TPU implementation of the DLA BasicBlock forward pass.

    BatchNorm is applied in inference form (running statistics folded into a
    per-channel scale/bias).
    TODO(synk): training-mode BatchNorm (batch statistics) would need a
    cross-tile reduction pass and is not implemented."""

    def __init__(self, inplanes, planes, stride=1, dilation=1, *, key):
        if stride != 1:
            # TODO(synk): stride > 1 needs strided im2col plus an externally
            # supplied downsampled residual; not implemented here.
            raise NotImplementedError("BasicBlockPallas supports stride=1 only")
        self.inplanes = inplanes
        self.planes = planes
        self.dilation = int(dilation)

        ks = jax.random.split(key, 10)
        std1 = (2.0 / (9 * inplanes)) ** 0.5
        std2 = (2.0 / (9 * planes)) ** 0.5
        w1 = std1 * jax.random.normal(ks[0], (3, 3, inplanes, planes),
                                      jnp.float32)
        w2 = std2 * jax.random.normal(ks[1], (3, 3, planes, planes),
                                      jnp.float32)
        # (ky, kx, cin) row order matches the kernel's im2col column order.
        self.w1 = w1.reshape(9 * inplanes, planes).astype(jnp.bfloat16)
        self.w2 = w2.reshape(9 * planes, planes).astype(jnp.bfloat16)

        def bn(kg, kb, km, kv, c):
            gamma = 1.0 + 0.1 * jax.random.normal(kg, (c,), jnp.float32)
            beta = 0.1 * jax.random.normal(kb, (c,), jnp.float32)
            mean = 0.1 * jax.random.normal(km, (c,), jnp.float32)
            var = 0.5 + jax.random.uniform(kv, (c,), jnp.float32)
            return _fold_bn(gamma, beta, mean, var)

        self.s1, self.b1 = bn(ks[2], ks[3], ks[4], ks[5], planes)
        self.s2, self.b2 = bn(ks[6], ks[7], ks[8], ks[9], planes)

    def __call__(self, x_nchw, residual=None, *, row_tile=None):
        x = jnp.transpose(x_nchw, (0, 2, 3, 1))          # NCHW -> NHWC (once)
        res = x if residual is None else jnp.transpose(residual, (0, 2, 3, 1))
        # conv1 intermediate stays bf16 (halves its HBM write + re-read).
        h = conv3x3_bn_relu(x, self.w1, self.s1, self.b1,
                            dilation=self.dilation,
                            out_dtype=jnp.bfloat16, row_tile=row_tile)
        y = conv3x3_bn_relu(h, self.w2, self.s2, self.b2,
                            dilation=self.dilation, residual=res,
                            out_dtype=jnp.float32, row_tile=row_tile)
        return jnp.transpose(y, (0, 3, 1, 2))            # NHWC -> NCHW (once)


# ------------------------------ pure-JAX reference ---------------------------

def _reference_forward(block, x_nchw, residual=None):
    x = jnp.transpose(x_nchw, (0, 2, 3, 1)).astype(jnp.float32)
    res = x if residual is None else \
        jnp.transpose(residual, (0, 2, 3, 1)).astype(jnp.float32)
    d = block.dilation

    def conv(h, w_flat, cin, cout):
        w = w_flat.astype(jnp.float32).reshape(3, 3, cin, cout)
        return jax.lax.conv_general_dilated(
            h, w, window_strides=(1, 1), padding=[(d, d), (d, d)],
            rhs_dilation=(d, d), dimension_numbers=("NHWC", "HWIO", "NHWC"))

    h = jnp.maximum(conv(x, block.w1, block.inplanes, block.planes)
                    * block.s1 + block.b1, 0.0)
    y = jnp.maximum(conv(h, block.w2, block.planes, block.planes)
                    * block.s2 + block.b2 + res, 0.0)
    return jnp.transpose(y, (0, 3, 1, 2))


# ----------------------------------- main ------------------------------------

if __name__ == "__main__":
    key = jax.random.PRNGKey(0)
    kparam, kx = jax.random.split(key)

    # Small but DLA-realistic BasicBlock shape: 128 channels keeps the 128-lane
    # dimension fully dense; H=W=32 with row_tile=16 gives M = 512 per matmul
    # (per review: fills the 256-wide MXU much better than M=128) and a
    # 2-row-tile grid per image, exercising the in-kernel halo slicing.
    N, C, H, W = 2, 128, 32, 32
    block = BasicBlockPallas(C, C, stride=1, dilation=1, key=kparam)
    x = jax.random.normal(kx, (N, C, H, W), jnp.float32)

    fwd = jax.jit(lambda inp: block(inp, row_tile=16))
    out = jax.block_until_ready(fwd(x))
    assert out.shape == (N, C, H, W)

    ref = jax.block_until_ready(_reference_forward(block, x))
    err = float(jnp.max(jnp.abs(out - ref)))
    # Tolerance for bf16 operands + bf16 intermediate vs f32 XLA reference.
    assert np.isfinite(err) and err < 0.3, f"max |out - ref| = {err}"
    print("KERNEL_OK")
</pallas_src>

<mosaic_0001>
module attributes {stable_mosaic.version = 11 : i64} {
  func.func @kernel(%arg0: i32, %arg1: i32, %arg2: memref<1x34x34x128xbf16, #tpu.memory_space<vmem>>, %arg3: memref<1152x128xbf16, #tpu.memory_space<vmem>>, %arg4: memref<1x128xf32, #tpu.memory_space<vmem>>, %arg5: memref<1x128xf32, #tpu.memory_space<vmem>>, %arg6: memref<1x512x128xbf16, #tpu.memory_space<vmem>>) attributes {dimension_semantics = [#tpu.dimension_semantics<parallel>, #tpu.dimension_semantics<parallel>], iteration_bounds = array<i64: 2, 2>, scalar_prefetch = 0 : i64, scratch_operands = 0 : i64, tpu.core_type = #tpu.core_type<tc>, window_params = [{transform_indices = @transform_0, window_bounds = array<i64: 1, 34, 34, 128>}, {pipeline_mode = #tpu.pipeline_mode<synchronous>, transform_indices = @transform_1, window_bounds = array<i64: 1152, 128>}, {pipeline_mode = #tpu.pipeline_mode<synchronous>, transform_indices = @transform_2, window_bounds = array<i64: 1, 128>}, {pipeline_mode = #tpu.pipeline_mode<synchronous>, transform_indices = @transform_3, window_bounds = array<i64: 1, 128>}, {transform_indices = @transform_4, window_bounds = array<i64: 1, 512, 128>}]} {
    %c16_i32 = arith.constant 16 : i32
    %0 = arith.muli %arg1, %c16_i32 : i32
    %1 = tpu.assume_multiple %0, 16 : i32
    %c0 = arith.constant 0 : index
    %2 = arith.index_cast %1 : i32 to index
    %c0_0 = arith.constant 0 : index
    %c0_1 = arith.constant 0 : index
    %3 = vector.load %arg2[%c0, %2, %c0_0, %c0_1] : memref<1x34x34x128xbf16, #tpu.memory_space<vmem>>, vector<1x18x34x128xbf16>
    %4 = vector.shape_cast %3 : vector<1x18x34x128xbf16> to vector<18x34x128xbf16>
    %5 = vector.extract_strided_slice %4 {offsets = [0, 0, 0], sizes = [16, 32, 128], strides = [1, 1, 1]} : vector<18x34x128xbf16> to vector<16x32x128xbf16>
    %6 = vector.extract_strided_slice %4 {offsets = [0, 1, 0], sizes = [16, 32, 128], strides = [1, 1, 1]} : vector<18x34x128xbf16> to vector<16x32x128xbf16>
    %7 = vector.extract_strided_slice %4 {offsets = [0, 2, 0], sizes = [16, 32, 128], strides = [1, 1, 1]} : vector<18x34x128xbf16> to vector<16x32x128xbf16>
    %8 = vector.extract_strided_slice %4 {offsets = [1, 0, 0], sizes = [16, 32, 128], strides = [1, 1, 1]} : vector<18x34x128xbf16> to vector<16x32x128xbf16>
    %9 = vector.extract_strided_slice %4 {offsets = [1, 1, 0], sizes = [16, 32, 128], strides = [1, 1, 1]} : vector<18x34x128xbf16> to vector<16x32x128xbf16>
    %10 = vector.extract_strided_slice %4 {offsets = [1, 2, 0], sizes = [16, 32, 128], strides = [1, 1, 1]} : vector<18x34x128xbf16> to vector<16x32x128xbf16>
    %11 = vector.extract_strided_slice %4 {offsets = [2, 0, 0], sizes = [16, 32, 128], strides = [1, 1, 1]} : vector<18x34x128xbf16> to vector<16x32x128xbf16>
    %12 = vector.extract_strided_slice %4 {offsets = [2, 1, 0], sizes = [16, 32, 128], strides = [1, 1, 1]} : vector<18x34x128xbf16> to vector<16x32x128xbf16>
    %13 = vector.extract_strided_slice %4 {offsets = [2, 2, 0], sizes = [16, 32, 128], strides = [1, 1, 1]} : vector<18x34x128xbf16> to vector<16x32x128xbf16>
    %14 = tpu.concatenate %5, %6, %7, %8, %9, %10, %11, %12, %13 in 2 : vector<16x32x128xbf16>, vector<16x32x128xbf16>, vector<16x32x128xbf16>, vector<16x32x128xbf16>, vector<16x32x128xbf16>, vector<16x32x128xbf16>, vector<16x32x128xbf16>, vector<16x32x128xbf16>, vector<16x32x128xbf16> -> vector<16x32x1152xbf16>
    %15 = vector.shape_cast %14 : vector<16x32x1152xbf16> to vector<512x1152xbf16>
    %c0_2 = arith.constant 0 : index
    %c0_3 = arith.constant 0 : index
    %16 = vector.load %arg3[%c0_2, %c0_3] : memref<1152x128xbf16, #tpu.memory_space<vmem>>, vector<1152x128xbf16>
    %cst = arith.constant dense<0.000000e+00> : vector<512x128xf32>
    %17 = tpu.matmul %15, %16, %cst {dimension_numbers = #tpu.dot_dimension_numbers<[1], [0], [0], [1], [0, 0, 1, 1], [], []>} : vector<512x1152xbf16>, vector<1152x128xbf16>, vector<512x128xf32> -> vector<512x128xf32>
    %c0_4 = arith.constant 0 : index
    %c0_5 = arith.constant 0 : index
    %18 = vector.load %arg4[%c0_4, %c0_5] : memref<1x128xf32, #tpu.memory_space<vmem>>, vector<1x128xf32>
    %19 = vector.broadcast %18 : vector<1x128xf32> to vector<512x128xf32>
    %20 = arith.mulf %17, %19 : vector<512x128xf32>
    %c0_6 = arith.constant 0 : index
    %c0_7 = arith.constant 0 : index
    %21 = vector.load %arg5[%c0_6, %c0_7] : memref<1x128xf32, #tpu.memory_space<vmem>>, vector<1x128xf32>
    %22 = vector.broadcast %21 : vector<1x128xf32> to vector<512x128xf32>
    %23 = arith.addf %20, %22 : vector<512x128xf32>
    %cst_8 = arith.constant 0.000000e+00 : f32
    %24 = vector.broadcast %cst_8 : f32 to vector<512x128xf32>
    %25 = arith.maximumf %23, %24 : vector<512x128xf32>
    %26 = arith.truncf %25 : vector<512x128xf32> to vector<512x128xbf16>
    %c0_9 = arith.constant 0 : index
    %c0_10 = arith.constant 0 : index
    %c0_11 = arith.constant 0 : index
    %27 = vector.load %arg6[%c0_9, %c0_10, %c0_11] : memref<1x512x128xbf16, #tpu.memory_space<vmem>>, vector<1x512x128xbf16>
    %28 = vector.shape_cast %27 : vector<1x512x128xbf16> to vector<512x128xbf16>
    %29 = vector.shape_cast %26 : vector<512x128xbf16> to vector<1x512x128xbf16>
    tpu.vector_store %arg6[%c0_9, %c0_10, %c0_11], %29 {strides = array<i32>} : memref<1x512x128xbf16, #tpu.memory_space<vmem>>, vector<1x512x128xbf16>,
    return
  }
  func.func @transform_0(%arg0: i32, %arg1: i32) -> (i32, i32, i32, i32) {
    %c0_i32 = arith.constant 0 : i32
    %c0_i32_0 = arith.constant 0 : i32
    %c0_i32_1 = arith.constant 0 : i32
    %c0_i32_2 = arith.constant 0 : i32
    return %arg0, %c0_i32, %c0_i32_0, %c0_i32_1 : i32, i32, i32, i32
  }
  func.func @transform_1(%arg0: i32, %arg1: i32) -> (i32, i32) {
    %c0_i32 = arith.constant 0 : i32
    %c0_i32_0 = arith.constant 0 : i32
    %c0_i32_1 = arith.constant 0 : i32
    return %c0_i32, %c0_i32_0 : i32, i32
  }
  func.func @transform_2(%arg0: i32, %arg1: i32) -> (i32, i32) {
    %c0_i32 = arith.constant 0 : i32
    %c0_i32_0 = arith.constant 0 : i32
    %c0_i32_1 = arith.constant 0 : i32
    return %c0_i32, %c0_i32_0 : i32, i32
  }
  func.func @transform_3(%arg0: i32, %arg1: i32) -> (i32, i32) {
    %c0_i32 = arith.constant 0 : i32
    %c0_i32_0 = arith.constant 0 : i32
    %c0_i32_1 = arith.constant 0 : i32
    return %c0_i32, %c0_i32_0 : i32, i32
  }
  func.func @transform_4(%arg0: i32, %arg1: i32) -> (i32, i32, i32) {
    %c0_i32 = arith.constant 0 : i32
    %c0_i32_0 = arith.constant 0 : i32
    return %arg0, %arg1, %c0_i32 : i32, i32, i32
  }
}

module attributes {stable_mosaic.version = 11 : i64} {
  func.func @kernel(%arg0: i32, %arg1: i32, %arg2: memref<1x34x34x128xbf16, #tpu.memory_space<vmem>>, %arg3: memref<1152x128xbf16, #tpu.memory_space<vmem>>, %arg4: memref<1x128xf32, #tpu.memory_space<vmem>>, %arg5: memref<1x128xf32, #tpu.memory_space<vmem>>, %arg6: memref<1x512x128xbf16, #tpu.memory_space<vmem>>, %arg7: memref<1x512x128xf32, #tpu.memory_space<vmem>>) attributes {dimension_semantics = [#tpu.dimension_semantics<parallel>, #tpu.dimension_semantics<parallel>], iteration_bounds = array<i64: 2, 2>, scalar_prefetch = 0 : i64, scratch_operands = 0 : i64, tpu.core_type = #tpu.core_type<tc>, window_params = [{transform_indices = @transform_0, window_bounds = array<i64: 1, 34, 34, 128>}, {pipeline_mode = #tpu.pipeline_mode<synchronous>, transform_indices = @transform_1, window_bounds = array<i64: 1152, 128>}, {pipeline_mode = #tpu.pipeline_mode<synchronous>, transform_indices = @transform_2, window_bounds = array<i64: 1, 128>}, {pipeline_mode = #tpu.pipeline_mode<synchronous>, transform_indices = @transform_3, window_bounds = array<i64: 1, 128>}, {transform_indices = @transform_4, window_bounds = array<i64: 1, 512, 128>}, {transform_indices = @transform_5, window_bounds = array<i64: 1, 512, 128>}]} {
    %c16_i32 = arith.constant 16 : i32
    %0 = arith.muli %arg1, %c16_i32 : i32
    %1 = tpu.assume_multiple %0, 16 : i32
    %c0 = arith.constant 0 : index
    %2 = arith.index_cast %1 : i32 to index
    %c0_0 = arith.constant 0 : index
    %c0_1 = arith.constant 0 : index
    %3 = vector.load %arg2[%c0, %2, %c0_0, %c0_1] : memref<1x34x34x128xbf16, #tpu.memory_space<vmem>>, vector<1x18x34x128xbf16>
    %4 = vector.shape_cast %3 : vector<1x18x34x128xbf16> to vector<18x34x128xbf16>
    %5 = vector.extract_strided_slice %4 {offsets = [0, 0, 0], sizes = [16, 32, 128], strides = [1, 1, 1]} : vector<18x34x128xbf16> to vector<16x32x128xbf16>
    %6 = vector.extract_strided_slice %4 {offsets = [0, 1, 0], sizes = [16, 32, 128], strides = [1, 1, 1]} : vector<18x34x128xbf16> to vector<16x32x128xbf16>
    %7 = vector.extract_strided_slice %4 {offsets = [0, 2, 0], sizes = [16, 32, 128], strides = [1, 1, 1]} : vector<18x34x128xbf16> to vector<16x32x128xbf16>
    %8 = vector.extract_strided_slice %4 {offsets = [1, 0, 0], sizes = [16, 32, 128], strides = [1, 1, 1]} : vector<18x34x128xbf16> to vector<16x32x128xbf16>
    %9 = vector.extract_strided_slice %4 {offsets = [1, 1, 0], sizes = [16, 32, 128], strides = [1, 1, 1]} : vector<18x34x128xbf16> to vector<16x32x128xbf16>
    %10 = vector.extract_strided_slice %4 {offsets = [1, 2, 0], sizes = [16, 32, 128], strides = [1, 1, 1]} : vector<18x34x128xbf16> to vector<16x32x128xbf16>
    %11 = vector.extract_strided_slice %4 {offsets = [2, 0, 0], sizes = [16, 32, 128], strides = [1, 1, 1]} : vector<18x34x128xbf16> to vector<16x32x128xbf16>
    %12 = vector.extract_strided_slice %4 {offsets = [2, 1, 0], sizes = [16, 32, 128], strides = [1, 1, 1]} : vector<18x34x128xbf16> to vector<16x32x128xbf16>
    %13 = vector.extract_strided_slice %4 {offsets = [2, 2, 0], sizes = [16, 32, 128], strides = [1, 1, 1]} : vector<18x34x128xbf16> to vector<16x32x128xbf16>
    %14 = tpu.concatenate %5, %6, %7, %8, %9, %10, %11, %12, %13 in 2 : vector<16x32x128xbf16>, vector<16x32x128xbf16>, vector<16x32x128xbf16>, vector<16x32x128xbf16>, vector<16x32x128xbf16>, vector<16x32x128xbf16>, vector<16x32x128xbf16>, vector<16x32x128xbf16>, vector<16x32x128xbf16> -> vector<16x32x1152xbf16>
    %15 = vector.shape_cast %14 : vector<16x32x1152xbf16> to vector<512x1152xbf16>
    %c0_2 = arith.constant 0 : index
    %c0_3 = arith.constant 0 : index
    %16 = vector.load %arg3[%c0_2, %c0_3] : memref<1152x128xbf16, #tpu.memory_space<vmem>>, vector<1152x128xbf16>
    %cst = arith.constant dense<0.000000e+00> : vector<512x128xf32>
    %17 = tpu.matmul %15, %16, %cst {dimension_numbers = #tpu.dot_dimension_numbers<[1], [0], [0], [1], [0, 0, 1, 1], [], []>} : vector<512x1152xbf16>, vector<1152x128xbf16>, vector<512x128xf32> -> vector<512x128xf32>
    %c0_4 = arith.constant 0 : index
    %c0_5 = arith.constant 0 : index
    %18 = vector.load %arg4[%c0_4, %c0_5] : memref<1x128xf32, #tpu.memory_space<vmem>>, vector<1x128xf32>
    %19 = vector.broadcast %18 : vector<1x128xf32> to vector<512x128xf32>
    %20 = arith.mulf %17, %19 : vector<512x128xf32>
    %c0_6 = arith.constant 0 : index
    %c0_7 = arith.constant 0 : index
    %21 = vector.load %arg5[%c0_6, %c0_7] : memref<1x128xf32, #tpu.memory_space<vmem>>, vector<1x128xf32>
    %22 = vector.broadcast %21 : vector<1x128xf32> to vector<512x128xf32>
    %23 = arith.addf %20, %22 : vector<512x128xf32>
    %c0_8 = arith.constant 0 : index
    %c0_9 = arith.constant 0 : index
    %c0_10 = arith.constant 0 : index
    %24 = vector.load %arg6[%c0_8, %c0_9, %c0_10] : memref<1x512x128xbf16, #tpu.memory_space<vmem>>, vector<1x512x128xbf16>
    %25 = vector.shape_cast %24 : vector<1x512x128xbf16> to vector<512x128xbf16>
    %26 = arith.extf %25 : vector<512x128xbf16> to vector<512x128xf32>
    %27 = arith.addf %23, %26 : vector<512x128xf32>
    %cst_11 = arith.constant 0.000000e+00 : f32
    %28 = vector.broadcast %cst_11 : f32 to vector<512x128xf32>
    %29 = arith.maximumf %27, %28 : vector<512x128xf32>
    %c0_12 = arith.constant 0 : index
    %c0_13 = arith.constant 0 : index
    %c0_14 = arith.constant 0 : index
    %30 = vector.load %arg7[%c0_12, %c0_13, %c0_14] : memref<1x512x128xf32, #tpu.memory_space<vmem>>, vector<1x512x128xf32>
    %31 = vector.shape_cast %30 : vector<1x512x128xf32> to vector<512x128xf32>
    %32 = vector.shape_cast %29 : vector<512x128xf32> to vector<1x512x128xf32>
    tpu.vector_store %arg7[%c0_12, %c0_13, %c0_14], %32 {strides = array<i32>} : memref<1x512x128xf32, #tpu.memory_space<vmem>>, vector<1x512x128xf32>,
    return
  }
  func.func @transform_0(%arg0: i32, %arg1: i32) -> (i32, i32, i32, i32) {
    %c0_i32 = arith.constant 0 : i32
    %c0_i32_0 = arith.constant 0 : i32
    %c0_i32_1 = arith.constant 0 : i32
    %c0_i32_2 = arith.constant 0 : i32
    return %arg0, %c0_i32, %c0_i32_0, %c0_i32_1 : i32, i32, i32, i32
  }
  func.func @transform_1(%arg0: i32, %arg1: i32) -> (i32, i32) {
    %c0_i32 = arith.constant 0 : i32
    %c0_i32_0 = arith.constant 0 : i32
    %c0_i32_1 = arith.constant 0 : i32
    return %c0_i32, %c0_i32_0 : i32, i32
  }
  func.func @transform_2(%arg0: i32, %arg1: i32) -> (i32, i32) {
    %c0_i32 = arith.constant 0 : i32
    %c0_i32_0 = arith.constant 0 : i32
    %c0_i32_1 = arith.constant 0 : i32
    return %c0_i32, %c0_i32_0 : i32, i32
  }
  func.func @transform_3(%arg0: i32, %arg1: i32) -> (i32, i32) {
    %c0_i32 = arith.constant 0 : i32
    %c0_i32_0 = arith.constant 0 : i32
    %c0_i32_1 = arith.constant 0 : i32
    return %c0_i32, %c0_i32_0 : i32, i32
  }
  func.func @transform_4(%arg0: i32, %arg1: i32) -> (i32, i32, i32) {
    %c0_i32 = arith.constant 0 : i32
    %c0_i32_0 = arith.constant 0 : i32
    return %arg0, %arg1, %c0_i32 : i32, i32, i32
  }
  func.func @transform_5(%arg0: i32, %arg1: i32) -> (i32, i32, i32) {
    %c0_i32 = arith.constant 0 : i32
    %c0_i32_0 = arith.constant 0 : i32
    return %arg0, %arg1, %c0_i32 : i32, i32, i32
  }
}

</mosaic_0001>

<llo_original>
// kernel: _lambda_.2
$region0: #{_lambda_.2}
  #allocation0 [shape = 'u32[]', space=smem, size = 0x4, offset = 0x4, fixed_abs, tag = 'smem constant byte address 0x4 - core index']
  #allocation1 [shape = 'u32[144,128]{1,0:T(1,128)}', space=vmem, size = 0x12000, scoped, tag = 'internal scratch']
  %s0 = inlined_call_operand.vmem [shape: bf16[2,34,34,128], index: 0, kind: input, shape index: {}]
  %s1 = inlined_call_operand.vmem [shape: bf16[1152,128], index: 1, kind: input, shape index: {}]
  %s2 = inlined_call_operand.vmem [shape: f32[1,128], index: 2, kind: input, shape index: {}]
  %s3 = inlined_call_operand.vmem [shape: f32[1,128], index: 3, kind: input, shape index: {}]
  %s4 = inlined_call_operand.vmem [shape: bf16[2,1024,128], index: 4, kind: output, shape index: {}]
  %s5 = sld [smem:[#allocation0]]
  $region49: #{_lambda_.2} parent=0
    _
  %s7 = ssub.s32 1, %s5
  %s8 = scalar_select 0, %s7, %s5
  loop: start=0, step=1, limit=6
  $region2: #{_lambda_.2} parent=0 // loop_pre_header
    _
  $region3: #{_lambda_.2} parent=0 // loop_header
    %s10 = sphi 0, %s14
    %p11 = scmp.ge.s32.totalorder %s10, 6
    %s17 = sphi 0, %s29
    %s18 = sphi 0, %s25
    %s19 = sphi 0, %s17
    %s20 = sphi 0, %s18
    %s21 = sphi 0, %s19
    %s22 = sphi 0, %s20
    %s32 = sphi 0, %s34
    %s35 = sphi 0, %s32
    %s36 = sphi 0, %s35
    %s52 = sphi 0, %s36
    %s56 = sphi 0, %s56
    %s58 = sphi 0, %s56
    %s59 = sphi 0, %s58
    %s73 = sphi 0, %s59
    %s77 = sphi 0, %s77
    %s79 = sphi 0, %s77
    %s80 = sphi 0, %s79
    %s94 = sphi 0, %s80
    %s98 = sphi 0, %s98
    %s100 = sphi 0, %s98
    %s101 = sphi 0, %s100
    %s115 = sphi 0, %s101
    %s123 = sphi 0, %s125
    %s126 = sphi 0, %s123
    %s127 = sphi 0, %s126
    %s143 = sphi 0, %s127
  $region4: #{_lambda_.2} parent=0 // loop_header_branch
    %13 = sbr.rel (%p11) target = $region8
  $region5: #{_lambda_.2} parent=0 // loop_body
    %s15 = ssub.s32 %s10, 1
    %s16 = ssub.s32 %s10, 2
    %s23 = sadd.s32 1, %s18
    %p24 = scmp.ge.s32.totalorder %s23, 2
    %s25 = scalar_select %p24, 0, %s23
    %s26 = sadd.s32 1, %s17
    %s27 = scalar_select %p24, %s26, %s17
    %p28 = scmp.ge.s32.totalorder %s27, 2
    %s29 = scalar_select %p28, 0, %s27
    %s30 = ssub.s32 %s17, %s29
    %p31 = scmp.eq.s32.totalorder %s30, 0
    %s33 = sadd.s32 %s32, 1
    %s34 = scalar_select %p31, %s32, %s33
    %p37 = pneg %p31
    %p38 = scmp.eq.s32.totalorder %s10, 3
    %p39 = por %p37, %p38
    %p40 = scmp.ne.s32.totalorder %s32, %s35
    %p41 = scmp.eq.s32.totalorder %s10, 0
    %p42 = por %p40, %p41
    %p43 = scmp.ne.s32.totalorder %s32, %s35
    %p44 = scmp.eq.s32.totalorder %s15, 3
    %p45 = por %p43, %p44
    %p46 = scmp.ne.s32.totalorder %s35, %s36
    %p47 = scmp.eq.s32.totalorder %s15, 0
    %p48 = por %p46, %p47
    %p49 = scmp.ne.s32.totalorder %s35, %s36
    %p50 = scmp.eq.s32.totalorder %s16, 3
    %p51 = por %p49, %p50
    %p53 = scmp.ne.s32.totalorder %s36, %s52
    %p54 = scmp.eq.s32.totalorder %s16, 0
    %p55 = por %p53, %p54
    %s57 = sadd.s32 %s56, 1
    %p60 = scmp.eq.s32.totalorder %s10, 3
    %p61 = scmp.ne.s32.totalorder %s56, %s58
    %p62 = scmp.eq.s32.totalorder %s10, 0
    %p63 = por %p61, %p62
    %p64 = scmp.ne.s32.totalorder %s56, %s58
    %p65 = scmp.eq.s32.totalorder %s15, 3
    %p66 = por %p64, %p65
    %p67 = scmp.ne.s32.totalorder %s58, %s59
    %p68 = scmp.eq.s32.totalorder %s15, 0
    %p69 = por %p67, %p68
    %p70 = scmp.ne.s32.totalorder %s58, %s59
    %p71 = scmp.eq.s32.totalorder %s16, 3
    %p72 = por %p70, %p71
    %p74 = scmp.ne.s32.totalorder %s59, %s73
    %p75 = scmp.eq.s32.totalorder %s16, 0
    %p76 = por %p74, %p75
    %s78 = sadd.s32 %s77, 1
    %p81 = scmp.eq.s32.totalorder %s10, 3
    %p82 = scmp.ne.s32.totalorder %s77, %s79
    %p83 = scmp.eq.s32.totalorder %s10, 0
    %p84 = por %p82, %p83
    %p85 = scmp.ne.s32.totalorder %s77, %s79
    %p86 = scmp.eq.s32.totalorder %s15, 3
    %p87 = por %p85, %p86
    %p88 = scmp.ne.s32.totalorder %s79, %s80
    %p89 = scmp.eq.s32.totalorder %s15, 0
    %p90 = por %p88, %p89
    %p91 = scmp.ne.s32.totalorder %s79, %s80
    %p92 = scmp.eq.s32.totalorder %s16, 3
    %p93 = por %p91, %p92
    %p95 = scmp.ne.s32.totalorder %s80, %s94
    %p96 = scmp.eq.s32.totalorder %s16, 0
    %p97 = por %p95, %p96
    %s99 = sadd.s32 %s98, 1
    %p102 = scmp.eq.s32.totalorder %s10, 3
    %p103 = scmp.ne.s32.totalorder %s98, %s100
    %p104 = scmp.eq.s32.totalorder %s10, 0
    %p105 = por %p103, %p104
    %p106 = scmp.ne.s32.totalorder %s98, %s100
    %p107 = scmp.eq.s32.totalorder %s15, 3
    %p108 = por %p106, %p107
    %p109 = scmp.ne.s32.totalorder %s100, %s101
    %p110 = scmp.eq.s32.totalorder %s15, 0
    %p111 = por %p109, %p110
    %p112 = scmp.ne.s32.totalorder %s100, %s101
    %p113 = scmp.eq.s32.totalorder %s16, 3
    %p114 = por %p112, %p113
    %p116 = scmp.ne.s32.totalorder %s101, %s115
    %p117 = scmp.eq.s32.totalorder %s16, 0
    %p118 = por %p116, %p117
    %s119 = ssub.s32 %s17, %s29
    %s120 = ssub.s32 %s18, %s25
    %s121 = sor.u32 %s119, %s120
    %p122 = scmp.eq.s32.totalorder %s121, 0
    %s124 = sadd.s32 %s123, 1
    %s125 = scalar_select %p122, %s123, %s124
    %p128 = pneg %p122
    %p129 = scmp.eq.s32.totalorder %s10, 3
    %p130 = por %p128, %p129
    %p131 = scmp.ne.s32.totalorder %s123, %s126
    %p132 = scmp.eq.s32.totalorder %s10, 0
    %p133 = por %p131, %p132
    %p134 = scmp.ne.s32.totalorder %s123, %s126
    %p135 = scmp.eq.s32.totalorder %s15, 3
    %p136 = por %p134, %p135
    %p137 = scmp.ne.s32.totalorder %s126, %s127
    %p138 = scmp.eq.s32.totalorder %s15, 0
    %p139 = por %p137, %p138
    %p140 = scmp.ne.s32.totalorder %s126, %s127
    %p141 = scmp.eq.s32.totalorder %s16, 3
    %p142 = por %p140, %p141
    %p144 = scmp.ne.s32.totalorder %s127, %s143
    %p145 = scmp.eq.s32.totalorder %s16, 0
    %p146 = por %p144, %p145
    %p147 = scmp.le.s32.totalorder 1, %s10
    %p148 = scmp.lt.s32.totalorder %s10, 5
    %p149 = pnand %p147, %p148
    %p150 = pneg %p149
    // Predicated region
    $region9: #{_lambda_.2} parent=5 // pred_check
      _
    $region10: #{_lambda_.2} parent=5 // pred_check_branch
      %152 = sbr.rel (%p149) target = $region12
    $region11: #{_lambda_.2} parent=5 // pred_region
      %s153 = ssub.s32 %s10, 1
      // Predicated region
      $region13: #{_lambda_.2} parent=11 // pred_check
        %p154 = pneg %p69
      $region14: #{_lambda_.2} parent=11 // pred_check_branch
        %156 = sbr.rel (%p154) target = $region16
      $region15: #{_lambda_.2} parent=11 // pred_region
        _
      $region16: #{_lambda_.2} parent=11 // pred_fallthru
        _
      // Predicated region
      $region17: #{_lambda_.2} parent=11 // pred_check
        %p157 = pneg %p90
      $region18: #{_lambda_.2} parent=11 // pred_check_branch
        %159 = sbr.rel (%p157) target = $region20
      $region19: #{_lambda_.2} parent=11 // pred_region
        _
      $region20: #{_lambda_.2} parent=11 // pred_fallthru
        _
      // Predicated region
      $region21: #{_lambda_.2} parent=11 // pred_check
        %p160 = pneg %p111
      $region22: #{_lambda_.2} parent=11 // pred_check_branch
        %162 = sbr.rel (%p160) target = $region24
      $region23: #{_lambda_.2} parent=11 // pred_region
        _
      $region24: #{_lambda_.2} parent=11 // pred_fallthru
        _
    $region12: #{_lambda_.2} parent=5 // pred_fallthru
      _
    %p163 = scmp.lt.s32.totalorder %s10, 4
    // Predicated region
    $region25: #{_lambda_.2} parent=5 // pred_check
      %p164 = pneg %p163
    $region26: #{_lambda_.2} parent=5 // pred_check_branch
      %166 = sbr.rel (%p164) target = $region28
    $region27: #{_lambda_.2} parent=5 // pred_region
      // Predicated region
      $region29: #{_lambda_.2} parent=27 // pred_check
        %p167 = pneg %p42
      $region30: #{_lambda_.2} parent=27 // pred_check_branch
        %169 = sbr.rel (%p167) target = $region32
      $region31: #{_lambda_.2} parent=27 // pred_region
        %p170 = scmp.lt.s32.totalorder %s17, 1
        %s171 = scalar_select %p170, %s17, 1
        %s172 = smul.addr %s171, 170
        %s173 = smul.addr %s172, 4
        %s174 = scalar_lea.vmem %s0, %s173
      $region32: #{_lambda_.2} parent=27 // pred_fallthru
        _
    $region28: #{_lambda_.2} parent=5 // pred_fallthru
      _
    %p175 = scmp.le.s32.totalorder 1, %s10
    %p176 = scmp.lt.s32.totalorder %s10, 5
    %p177 = pnand %p175, %p176
    %p178 = pneg %p177
    // Predicated region
    $region33: #{_lambda_.2} parent=5 // pred_check
      _
    $region34: #{_lambda_.2} parent=5 // pred_check_branch
      %180 = sbr.rel (%p177) target = $region36
    $region35: #{_lambda_.2} parent=5 // pred_region
      %s181 = ssub.s32 %s10, 1
      %p182 = scmp.lt.s32.totalorder %s19, 1
      %s183 = scalar_select %p182, %s19, 1
      %s184 = smul.addr %s183, 170
      %s185 = smul.addr %s184, 4
      %s186 = scalar_lea.vmem %s0, %s185
      %p187 = pneg %p48
      %p188 = pneg %p45
      %p189 = pneg %p69
      %p190 = pneg %p66
      %p191 = pneg %p90
      %p192 = pneg %p87
      %p193 = pneg %p111
      %p194 = pneg %p108
      %p195 = pneg %p139
      %p196 = pneg %p136
      %s197 = smul.u32 64, %s20
      %p198 = scmp.lt.s32.totalorder %s19, 1
      %s199 = scalar_select %p198, %s19, 1
      %p200 = scmp.lt.s32.totalorder %s197, 127
      %s201 = scalar_select %p200, %s197, 127
      %s202 = smul.addr %s199, 128
      %s203 = sadd.s32 %s201, %s202
      %s204 = smul.addr %s203, 4
      %s205 = scalar_lea.vmem %s4, %s204
      %p206 = scmp.lt.s32.totalorder %s19, 1
      %s207 = scalar_select %p206, %s19, 1
      %s208 = smul.addr %s207, 170
      %s209 = smul.addr %s208, 4
      %s210 = scalar_lea.vmem %s0, %s209
      %s211 = smul.u32 64, %s20
      %p212 = scmp.lt.s32.totalorder %s19, 1
      %s213 = scalar_select %p212, %s19, 1
      %p214 = scmp.lt.s32.totalorder %s211, 127
      %s215 = scalar_select %p214, %s211, 127
      %s216 = smul.addr %s213, 128
      %s217 = sadd.s32 %s215, %s216
      %s218 = smul.addr %s217, 4
      %s219 = scalar_lea.vmem %s4, %s218
      %s220 = smul.u32 64, %s20
      %s222 = smul.u32 %s20, 16
      %s223 = smul.u32 %s222, 5
      %s224 = smul.addr %s223, 4
      %s225 = scalar_lea.vmem %s210, %s224
      %v226 = vld [vmem:[%s225] sm:$0xf]
      %v227 = vld [vmem:[%s225 + $0x4] sm:$0xf]
      %v228 = vld [vmem:[%s225 + $0x8] sm:$0xf]
      %v229 = vld [vmem:[%s225 + $0xc] sm:$0xf]
      %v230 = vld [vmem:[%s225 + $0x10] sm:$0x1]
      %v231 = vld [vmem:[%s225 + $0x14] sm:$0xf]
      %v232 = vld [vmem:[%s225 + $0x18] sm:$0xf]
      %v233 = vld [vmem:[%s225 + $0x1c] sm:$0xf]
      %v234 = vld [vmem:[%s225 + $0x20] sm:$0xf]
      %v235 = vld [vmem:[%s225 + $0x24] sm:$0x1]
      %v236 = vld [vmem:[%s225 + $0x28] sm:$0xf]
      %v237 = vld [vmem:[%s225 + $0x2c] sm:$0xf]
      %v238 = vld [vmem:[%s225 + $0x30] sm:$0xf]
      %v239 = vld [vmem:[%s225 + $0x34] sm:$0xf]
      %v240 = vld [vmem:[%s225 + $0x38] sm:$0x1]
      %v241 = vld [vmem:[%s225 + $0x3c] sm:$0xf]
      %v242 = vld [vmem:[%s225 + $0x40] sm:$0xf]
      %v243 = vld [vmem:[%s225 + $0x44] sm:$0xf]
      %v244 = vld [vmem:[%s225 + $0x48] sm:$0xf]
      %v245 = vld [vmem:[%s225 + $0x4c] sm:$0x1]
      %v246 = vld [vmem:[%s225 + $0x50] sm:$0xf]
      %v247 = vld [vmem:[%s225 + $0x54] sm:$0xf]
      %v248 = vld [vmem:[%s225 + $0x58] sm:$0xf]
      %v249 = vld [vmem:[%s225 + $0x5c] sm:$0xf]
      %v250 = vld [vmem:[%s225 + $0x60] sm:$0x1]
      %v251 = vld [vmem:[%s225 + $0x64] sm:$0xf]
      %v252 = vld [vmem:[%s225 + $0x68] sm:$0xf]
      %v253 = vld [vmem:[%s225 + $0x6c] sm:$0xf]
      %v254 = vld [vmem:[%s225 + $0x70] sm:$0xf]
      %v255 = vld [vmem:[%s225 + $0x74] sm:$0x1]
      %v256 = vld [vmem:[%s225 + $0x78] sm:$0xf]
      %v257 = vld [vmem:[%s225 + $0x7c] sm:$0xf]
      %v258 = vld [vmem:[%s225 + $0x80] sm:$0xf]
      %v259 = vld [vmem:[%s225 + $0x84] sm:$0xf]
      %v260 = vld [vmem:[%s225 + $0x88] sm:$0x1]
      %v261 = vld [vmem:[%s225 + $0x8c] sm:$0xf]
      %v262 = vld [vmem:[%s225 + $0x90] sm:$0xf]
      %v263 = vld [vmem:[%s225 + $0x94] sm:$0xf]
      %v264 = vld [vmem:[%s225 + $0x98] sm:$0xf]
      %v265 = vld [vmem:[%s225 + $0x9c] sm:$0x1]
      %v266 = vld [vmem:[%s225 + $0xa0] sm:$0xf]
      %v267 = vld [vmem:[%s225 + $0xa4] sm:$0xf]
      %v268 = vld [vmem:[%s225 + $0xa8] sm:$0xf]
      %v269 = vld [vmem:[%s225 + $0xac] sm:$0xf]
      %v270 = vld [vmem:[%s225 + $0xb0] sm:$0x1]
      %v271 = vld [vmem:[%s225 + $0xb4] sm:$0xf]
      %v272 = vld [vmem:[%s225 + $0xb8] sm:$0xf]
      %v273 = vld [vmem:[%s225 + $0xbc] sm:$0xf]
      %v274 = vld [vmem:[%s225 + $0xc0] sm:$0xf]
      %v275 = vld [vmem:[%s225 + $0xc4] sm:$0x1]
      %v276 = vld [vmem:[%s225 + $0xc8] sm:$0xf]
      %v277 = vld [vmem:[%s225 + $0xcc] sm:$0xf]
      %v278 = vld [vmem:[%s225 + $0xd0] sm:$0xf]
      %v279 = vld [vmem:[%s225 + $0xd4] sm:$0xf]
      %v280 = vld [vmem:[%s225 + $0xd8] sm:$0x1]
      %v281 = vld [vmem:[%s225 + $0xdc] sm:$0xf]
      %v282 = vld [vmem:[%s225 + $0xe0] sm:$0xf]
      %v283 = vld [vmem:[%s225 + $0xe4] sm:$0xf]
      %v284 = vld [vmem:[%s225 + $0xe8] sm:$0xf]
      %v285 = vld [vmem:[%s225 + $0xec] sm:$0x1]
      %v286 = vld [vmem:[%s225 + $0xf0] sm:$0xf]
      %v287 = vld [vmem:[%s225 + $0xf4] sm:$0xf]
      %v288 = vld [vmem:[%s225 + $0xf8] sm:$0xf]
      %v289 = vld [vmem:[%s225 + $0xfc] sm:$0xf]
      %v290 = vld [vmem:[%s225 + $0x100] sm:$0x1]
      %v291 = vld [vmem:[%s225 + $0x104] sm:$0xf]
      %v292 = vld [vmem:[%s225 + $0x108] sm:$0xf]
      %v293 = vld [vmem:[%s225 + $0x10c] sm:$0xf]
      %v294 = vld [vmem:[%s225 + $0x110] sm:$0xf]
      %v295 = vld [vmem:[%s225 + $0x114] sm:$0x1]
      %v296 = vld [vmem:[%s225 + $0x118] sm:$0xf]
      %v297 = vld [vmem:[%s225 + $0x11c] sm:$0xf]
      %v298 = vld [vmem:[%s225 + $0x120] sm:$0xf]
      %v299 = vld [vmem:[%s225 + $0x124] sm:$0xf]
      %v300 = vld [vmem:[%s225 + $0x128] sm:$0x1]
      %v301 = vld [vmem:[%s225 + $0x12c] sm:$0xf]
      %v302 = vld [vmem:[%s225 + $0x130] sm:$0xf]
      %v303 = vld [vmem:[%s225 + $0x134] sm:$0xf]
      %v304 = vld [vmem:[%s225 + $0x138] sm:$0xf]
      %v305 = vld [vmem:[%s225 + $0x13c] sm:$0x1]
      %v306 = vld [vmem:[%s225 + $0x140] sm:$0xf]
      %v307 = vld [vmem:[%s225 + $0x144] sm:$0xf]
      %v308 = vld [vmem:[%s225 + $0x148] sm:$0xf]
      %v309 = vld [vmem:[%s225 + $0x14c] sm:$0xf]
      %v310 = vld [vmem:[%s225 + $0x150] sm:$0x1]
      %v311 = vld [vmem:[%s225 + $0x154] sm:$0xf]
      %v312 = vld [vmem:[%s225 + $0x158] sm:$0xf]
      %v313 = vld [vmem:[%s225 + $0x15c] sm:$0xf]
      %v314 = vld [vmem:[%s225 + $0x160] sm:$0xf]
      %v315 = vld [vmem:[%s225 + $0x164] sm:$0x1]
      %v380 = vunpack.c.l.b16 %v226
      %v381 = vunpack.c.l.b16 %v227
      %v382 = vunpack.c.l.b16 %v228
      %v383 = vunpack.c.l.b16 %v229
      %v384 = vunpack.c.l.b16 %v231
      %v385 = vunpack.c.l.b16 %v232
      %v386 = vunpack.c.l.b16 %v233
      %v387 = vunpack.c.l.b16 %v234
      %v388 = vunpack.c.l.b16 %v236
      %v389 = vunpack.c.l.b16 %v237
      %v390 = vunpack.c.l.b16 %v238
      %v391 = vunpack.c.l.b16 %v239
      %v392 = vunpack.c.l.b16 %v241
      %v393 = vunpack.c.l.b16 %v242
      %v394 = vunpack.c.l.b16 %v243
      %v395 = vunpack.c.l.b16 %v244
      %v396 = vunpack.c.l.b16 %v246
      %v397 = vunpack.c.l.b16 %v247
      %v398 = vunpack.c.l.b16 %v248
      %v399 = vunpack.c.l.b16 %v249
      %v400 = vunpack.c.l.b16 %v251
      %v401 = vunpack.c.l.b16 %v252
      %v402 = vunpack.c.l.b16 %v253
      %v403 = vunpack.c.l.b16 %v254
      %v404 = vunpack.c.l.b16 %v256
      %v405 = vunpack.c.l.b16 %v257
      %v406 = vunpack.c.l.b16 %v258
      %v407 = vunpack.c.l.b16 %v259
      %v408 = vunpack.c.l.b16 %v261
      %v409 = vunpack.c.l.b16 %v262
      %v410 = vunpack.c.l.b16 %v263
      %v411 = vunpack.c.l.b16 %v264
      %v412 = vunpack.c.l.b16 %v266
      %v413 = vunpack.c.l.b16 %v267
      %v414 = vunpack.c.l.b16 %v268
      %v415 = vunpack.c.l.b16 %v269
      %v416 = vunpack.c.l.b16 %v271
      %v417 = vunpack.c.l.b16 %v272
      %v418 = vunpack.c.l.b16 %v273
      %v419 = vunpack.c.l.b16 %v274
      %v420 = vunpack.c.l.b16 %v276
      %v421 = vunpack.c.l.b16 %v277
      %v422 = vunpack.c.l.b16 %v278
      %v423 = vunpack.c.l.b16 %v279
      %v424 = vunpack.c.l.b16 %v281
      %v425 = vunpack.c.l.b16 %v282
      %v426 = vunpack.c.l.b16 %v283
      %v427 = vunpack.c.l.b16 %v284
      %v428 = vunpack.c.l.b16 %v286
      %v429 = vunpack.c.l.b16 %v287
      %v430 = vunpack.c.l.b16 %v288
      %v431 = vunpack.c.l.b16 %v289
      %v432 = vunpack.c.l.b16 %v291
      %v433 = vunpack.c.l.b16 %v292
      %v434 = vunpack.c.l.b16 %v293
      %v435 = vunpack.c.l.b16 %v294
      %v436 = vunpack.c.l.b16 %v296
      %v437 = vunpack.c.l.b16 %v297
      %v438 = vunpack.c.l.b16 %v298
      %v439 = vunpack.c.l.b16 %v299
      %v440 = vunpack.c.l.b16 %v301
      %v441 = vunpack.c.l.b16 %v302
      %v442 = vunpack.c.l.b16 %v303
      %v443 = vunpack.c.l.b16 %v304
      %v444 = vpack.c.b16 %v381, %v380
      %v445 = vpack.c.b16 %v383, %v382
      %v446 = vpack.c.b16 %v385, %v384
      %v447 = vpack.c.b16 %v387, %v386
      %v448 = vpack.c.b16 %v389, %v388
      %v449 = vpack.c.b16 %v391, %v390
      %v450 = vpack.c.b16 %v393, %v392
      %v451 = vpack.c.b16 %v395, %v394
      %v452 = vpack.c.b16 %v397, %v396
      %v453 = vpack.c.b16 %v399, %v398
      %v454 = vpack.c.b16 %v401, %v400
      %v455 = vpack.c.b16 %v403, %v402
      %v456 = vpack.c.b16 %v405, %v404
      %v457 = vpack.c.b16 %v407, %v406
      %v458 = vpack.c.b16 %v409, %v408
      %v459 = vpack.c.b16 %v411, %v410
      %v460 = vpack.c.b16 %v413, %v412
      %v461 = vpack.c.b16 %v415, %v414
      %v462 = vpack.c.b16 %v417, %v416
      %v463 = vpack.c.b16 %v419, %v418
      %v464 = vpack.c.b16 %v421, %v420
      %v465 = vpack.c.b16 %v423, %v422
      %v466 = vpack.c.b16 %v425, %v424
      %v467 = vpack.c.b16 %v427, %v426
      %v468 = vpack.c.b16 %v429, %v428
      %v469 = vpack.c.b16 %v431, %v430
      %v470 = vpack.c.b16 %v433, %v432
      %v471 = vpack.c.b16 %v435, %v434
      %v472 = vpack.c.b16 %v437, %v436
      %v473 = vpack.c.b16 %v439, %v438
      %v474 = vpack.c.b16 %v441, %v440
      %v475 = vpack.c.b16 %v443, %v442
      %v524 = vunpack.c.l.b16 %v230
      %v525 = vunpack.c.l.b16 %v235
      %v526 = vunpack.c.l.b16 %v240
      %v527 = vunpack.c.l.b16 %v245
      %v528 = vunpack.c.l.b16 %v250
      %v529 = vunpack.c.l.b16 %v255
      %v530 = vunpack.c.l.b16 %v260
      %v531 = vunpack.c.l.b16 %v265
      %v532 = vunpack.c.l.b16 %v270
      %v533 = vunpack.c.l.b16 %v275
      %v534 = vunpack.c.l.b16 %v280
      %v535 = vunpack.c.l.b16 %v285
      %v536 = vunpack.c.l.b16 %v290
      %v537 = vunpack.c.l.b16 %v295
      %v538 = vunpack.c.l.b16 %v300
      %v539 = vunpack.c.l.b16 %v305
      %v540 = vpack.c.b16 %v524, %v524
      %v541 = vpack.c.b16 %v525, %v525
      %v542 = vpack.c.b16 %v526, %v526
      %v543 = vpack.c.b16 %v527, %v527
      %v544 = vpack.c.b16 %v528, %v528
      %v545 = vpack.c.b16 %v529, %v529
      %v546 = vpack.c.b16 %v530, %v530
      %v547 = vpack.c.b16 %v531, %v531
      %v548 = vpack.c.b16 %v532, %v532
      %v549 = vpack.c.b16 %v533, %v533
      %v550 = vpack.c.b16 %v534, %v534
      %v551 = vpack.c.b16 %v535, %v535
      %v552 = vpack.c.b16 %v536, %v536
      %v553 = vpack.c.b16 %v537, %v537
      %v554 = vpack.c.b16 %v538, %v538
      %v555 = vpack.c.b16 %v539, %v539
      %vm556 = vsmask.f32 7424
      %v558 = vshrl.u32 %v444, 16
      %v560 = vshll.u32 %v444, 16
      %v562 = vrot.slane %v560, 1
      %v563 = vor.u32 %v558, %v562
      %v565 = vshll.u32 %v445, 16
      %v567 = vrot.slane %v565, 1
      %v568 = vsel %vm556, %v563, %v567
      %v569 = vshrl.u32 %v445, 16
      %v571 = vor.u32 %v569, %v567
      %v573 = vshll.u32 %v540, 16
      %v575 = vrot.slane %v573, 1
      %v576 = vsel %vm556, %v571, %v575
      %v578 = vshrl.u32 %v446, 16
      %v580 = vshll.u32 %v446, 16
      %v582 = vrot.slane %v580, 1
      %v583 = vor.u32 %v578, %v582
      %v585 = vshll.u32 %v447, 16
      %v587 = vrot.slane %v585, 1
      %v588 = vsel %vm556, %v583, %v587
      %v589 = vshrl.u32 %v447, 16
      %v591 = vor.u32 %v589, %v587
      %v593 = vshll.u32 %v541, 16
      %v595 = vrot.slane %v593, 1
      %v596 = vsel %vm556, %v591, %v595
      %v598 = vshrl.u32 %v448, 16
      %v600 = vshll.u32 %v448, 16
      %v602 = vrot.slane %v600, 1
      %v603 = vor.u32 %v598, %v602
      %v605 = vshll.u32 %v449, 16
      %v607 = vrot.slane %v605, 1
      %v608 = vsel %vm556, %v603, %v607
      %v609 = vshrl.u32 %v449, 16
      %v611 = vor.u32 %v609, %v607
      %v613 = vshll.u32 %v542, 16
      %v615 = vrot.slane %v613, 1
      %v616 = vsel %vm556, %v611, %v615
      %v618 = vshrl.u32 %v450, 16
      %v620 = vshll.u32 %v450, 16
      %v622 = vrot.slane %v620, 1
      %v623 = vor.u32 %v618, %v622
      %v625 = vshll.u32 %v451, 16
      %v627 = vrot.slane %v625, 1
      %v628 = vsel %vm556, %v623, %v627
      %v629 = vshrl.u32 %v451, 16
      %v631 = vor.u32 %v629, %v627
      %v633 = vshll.u32 %v543, 16
      %v635 = vrot.slane %v633, 1
      %v636 = vsel %vm556, %v631, %v635
      %v638 = vshrl.u32 %v452, 16
      %v640 = vshll.u32 %v452, 16
      %v642 = vrot.slane %v640, 1
      %v643 = vor.u32 %v638, %v642
      %v645 = vshll.u32 %v453, 16
      %v647 = vrot.slane %v645, 1
      %v648 = vsel %vm556, %v643, %v647
      %v649 = vshrl.u32 %v453, 16
      %v651 = vor.u32 %v649, %v647
      %v653 = vshll.u32 %v544, 16
      %v655 = vrot.slane %v653, 1
      %v656 = vsel %vm556, %v651, %v655
      %v658 = vshrl.u32 %v454, 16
      %v660 = vshll.u32 %v454, 16
      %v662 = vrot.slane %v660, 1
      %v663 = vor.u32 %v658, %v662
      %v665 = vshll.u32 %v455, 16
      %v667 = vrot.slane %v665, 1
      %v668 = vsel %vm556, %v663, %v667
      %v669 = vshrl.u32 %v455, 16
      %v671 = vor.u32 %v669, %v667
      %v673 = vshll.u32 %v545, 16
      %v675 = vrot.slane %v673, 1
      %v676 = vsel %vm556, %v671, %v675
      %v678 = vshrl.u32 %v456, 16
      %v680 = vshll.u32 %v456, 16
      %v682 = vrot.slane %v680, 1
      %v683 = vor.u32 %v678, %v682
      %v685 = vshll.u32 %v457, 16
      %v687 = vrot.slane %v685, 1
      %v688 = vsel %vm556, %v683, %v687
      %v689 = vshrl.u32 %v457, 16
      %v691 = vor.u32 %v689, %v687
      %v693 = vshll.u32 %v546, 16
      %v695 = vrot.slane %v693, 1
      %v696 = vsel %vm556, %v691, %v695
      %v698 = vshrl.u32 %v458, 16
      %v700 = vshll.u32 %v458, 16
      %v702 = vrot.slane %v700, 1
      %v703 = vor.u32 %v698, %v702
      %v705 = vshll.u32 %v459, 16
      %v707 = vrot.slane %v705, 1
      %v708 = vsel %vm556, %v703, %v707
      %v709 = vshrl.u32 %v459, 16
      %v711 = vor.u32 %v709, %v707
      %v713 = vshll.u32 %v547, 16
      %v715 = vrot.slane %v713, 1
      %v716 = vsel %vm556, %v711, %v715
      %v718 = vshrl.u32 %v460, 16
      %v720 = vshll.u32 %v460, 16
      %v722 = vrot.slane %v720, 1
      %v723 = vor.u32 %v718, %v722
      %v725 = vshll.u32 %v461, 16
      %v727 = vrot.slane %v725, 1
      %v728 = vsel %vm556, %v723, %v727
      %v729 = vshrl.u32 %v461, 16
      %v731 = vor.u32 %v729, %v727
      %v733 = vshll.u32 %v548, 16
      %v735 = vrot.slane %v733, 1
      %v736 = vsel %vm556, %v731, %v735
      %v738 = vshrl.u32 %v462, 16
      %v740 = vshll.u32 %v462, 16
      %v742 = vrot.slane %v740, 1
      %v743 = vor.u32 %v738, %v742
      %v745 = vshll.u32 %v463, 16
      %v747 = vrot.slane %v745, 1
      %v748 = vsel %vm556, %v743, %v747
      %v749 = vshrl.u32 %v463, 16
      %v751 = vor.u32 %v749, %v747
      %v753 = vshll.u32 %v549, 16
      %v755 = vrot.slane %v753, 1
      %v756 = vsel %vm556, %v751, %v755
      %v758 = vshrl.u32 %v464, 16
      %v760 = vshll.u32 %v464, 16
      %v762 = vrot.slane %v760, 1
      %v763 = vor.u32 %v758, %v762
      %v765 = vshll.u32 %v465, 16
      %v767 = vrot.slane %v765, 1
      %v768 = vsel %vm556, %v763, %v767
      %v769 = vshrl.u32 %v465, 16
      %v771 = vor.u32 %v769, %v767
      %v773 = vshll.u32 %v550, 16
      %v775 = vrot.slane %v773, 1
      %v776 = vsel %vm556, %v771, %v775
      %v778 = vshrl.u32 %v466, 16
      %v780 = vshll.u32 %v466, 16
      %v782 = vrot.slane %v780, 1
      %v783 = vor.u32 %v778, %v782
      %v785 = vshll.u32 %v467, 16
      %v787 = vrot.slane %v785, 1
      %v788 = vsel %vm556, %v783, %v787
      %v789 = vshrl.u32 %v467, 16
      %v791 = vor.u32 %v789, %v787
      %v793 = vshll.u32 %v551, 16
      %v795 = vrot.slane %v793, 1
      %v796 = vsel %vm556, %v791, %v795
      %v798 = vshrl.u32 %v468, 16
      %v800 = vshll.u32 %v468, 16
      %v802 = vrot.slane %v800, 1
      %v803 = vor.u32 %v798, %v802
      %v805 = vshll.u32 %v469, 16
      %v807 = vrot.slane %v805, 1
      %v808 = vsel %vm556, %v803, %v807
      %v809 = vshrl.u32 %v469, 16
      %v811 = vor.u32 %v809, %v807
      %v813 = vshll.u32 %v552, 16
      %v815 = vrot.slane %v813, 1
      %v816 = vsel %vm556, %v811, %v815
      %v818 = vshrl.u32 %v470, 16
      %v820 = vshll.u32 %v470, 16
      %v822 = vrot.slane %v820, 1
      %v823 = vor.u32 %v818, %v822
      %v825 = vshll.u32 %v471, 16
      %v827 = vrot.slane %v825, 1
      %v828 = vsel %vm556, %v823, %v827
      %v829 = vshrl.u32 %v471, 16
      %v831 = vor.u32 %v829, %v827
      %v833 = vshll.u32 %v553, 16
      %v835 = vrot.slane %v833, 1
      %v836 = vsel %vm556, %v831, %v835
      %v838 = vshrl.u32 %v472, 16
      %v840 = vshll.u32 %v472, 16
      %v842 = vrot.slane %v840, 1
      %v843 = vor.u32 %v838, %v842
      %v845 = vshll.u32 %v473, 16
      %v847 = vrot.slane %v845, 1
      %v848 = vsel %vm556, %v843, %v847
      %v849 = vshrl.u32 %v473, 16
      %v851 = vor.u32 %v849, %v847
      %v853 = vshll.u32 %v554, 16
      %v855 = vrot.slane %v853, 1
      %v856 = vsel %vm556, %v851, %v855
      %v858 = vshrl.u32 %v474, 16
      %v860 = vshll.u32 %v474, 16
      %v862 = vrot.slane %v860, 1
      %v863 = vor.u32 %v858, %v862
      %v865 = vshll.u32 %v475, 16
      %v867 = vrot.slane %v865, 1
      %v868 = vsel %vm556, %v863, %v867
      %v869 = vshrl.u32 %v475, 16
      %v871 = vor.u32 %v869, %v867
      %v873 = vshll.u32 %v555, 16
      %v875 = vrot.slane %v873, 1
      %v876 = vsel %vm556, %v871, %v875
      %vm909 = vcmask 1046528
      %v910 = vrot.slane %v444, 1
      %v911 = vrot.slane %v445, 1
      %v912 = vsel %vm909, %v910, %v911
      %v913 = vrot.slane %v540, 1
      %v914 = vsel %vm909, %v911, %v913
      %v915 = vrot.slane %v446, 1
      %v916 = vrot.slane %v447, 1
      %v917 = vsel %vm909, %v915, %v916
      %v918 = vrot.slane %v541, 1
      %v919 = vsel %vm909, %v916, %v918
      %v920 = vrot.slane %v448, 1
      %v921 = vrot.slane %v449, 1
      %v922 = vsel %vm909, %v920, %v921
      %v923 = vrot.slane %v542, 1
      %v924 = vsel %vm909, %v921, %v923
      %v925 = vrot.slane %v450, 1
      %v926 = vrot.slane %v451, 1
      %v927 = vsel %vm909, %v925, %v926
      %v928 = vrot.slane %v543, 1
      %v929 = vsel %vm909, %v926, %v928
      %v930 = vrot.slane %v452, 1
      %v931 = vrot.slane %v453, 1
      %v932 = vsel %vm909, %v930, %v931
      %v933 = vrot.slane %v544, 1
      %v934 = vsel %vm909, %v931, %v933
      %v935 = vrot.slane %v454, 1
      %v936 = vrot.slane %v455, 1
      %v937 = vsel %vm909, %v935, %v936
      %v938 = vrot.slane %v545, 1
      %v939 = vsel %vm909, %v936, %v938
      %v940 = vrot.slane %v456, 1
      %v941 = vrot.slane %v457, 1
      %v942 = vsel %vm909, %v940, %v941
      %v943 = vrot.slane %v546, 1
      %v944 = vsel %vm909, %v941, %v943
      %v945 = vrot.slane %v458, 1
      %v946 = vrot.slane %v459, 1
      %v947 = vsel %vm909, %v945, %v946
      %v948 = vrot.slane %v547, 1
      %v949 = vsel %vm909, %v946, %v948
      %v950 = vrot.slane %v460, 1
      %v951 = vrot.slane %v461, 1
      %v952 = vsel %vm909, %v950, %v951
      %v953 = vrot.slane %v548, 1
      %v954 = vsel %vm909, %v951, %v953
      %v955 = vrot.slane %v462, 1
      %v956 = vrot.slane %v463, 1
      %v957 = vsel %vm909, %v955, %v956
      %v958 = vrot.slane %v549, 1
      %v959 = vsel %vm909, %v956, %v958
      %v960 = vrot.slane %v464, 1
      %v961 = vrot.slane %v465, 1
      %v962 = vsel %vm909, %v960, %v961
      %v963 = vrot.slane %v550, 1
      %v964 = vsel %vm909, %v961, %v963
      %v965 = vrot.slane %v466, 1
      %v966 = vrot.slane %v467, 1
      %v967 = vsel %vm909, %v965, %v966
      %v968 = vrot.slane %v551, 1
      %v969 = vsel %vm909, %v966, %v968
      %v970 = vrot.slane %v468, 1
      %v971 = vrot.slane %v469, 1
      %v972 = vsel %vm909, %v970, %v971
      %v973 = vrot.slane %v552, 1
      %v974 = vsel %vm909, %v971, %v973
      %v975 = vrot.slane %v470, 1
      %v976 = vrot.slane %v471, 1
      %v977 = vsel %vm909, %v975, %v976
      %v978 = vrot.slane %v553, 1
      %v979 = vsel %vm909, %v976, %v978
      %v980 = vrot.slane %v472, 1
      %v981 = vrot.slane %v473, 1
      %v982 = vsel %vm909, %v980, %v981
      %v983 = vrot.slane %v554, 1
      %v984 = vsel %vm909, %v981, %v983
      %v985 = vrot.slane %v474, 1
      %v986 = vrot.slane %v475, 1
      %v987 = vsel %vm909, %v985, %v986
      %v988 = vrot.slane %v555, 1
      %v989 = vsel %vm909, %v986, %v988
      %v1026 = vunpack.c.l.b16 %v306
      %v1027 = vunpack.c.l.b16 %v307
      %v1028 = vunpack.c.l.b16 %v308
      %v1029 = vunpack.c.l.b16 %v309
      %v1030 = vpack.c.b16 %v1027, %v1026
      %v1031 = vpack.c.b16 %v1029, %v1028
      %v1035 = vunpack.c.l.b16 %v310
      %v1036 = vpack.c.b16 %v1035, %v1035
      %v1038 = vshrl.u32 %v1030, 16
      %v1040 = vshll.u32 %v1030, 16
      %v1042 = vrot.slane %v1040, 1
      %v1043 = vor.u32 %v1038, %v1042
      %v1045 = vshll.u32 %v1031, 16
      %v1047 = vrot.slane %v1045, 1
      %v1048 = vsel %vm556, %v1043, %v1047
      %v1049 = vshrl.u32 %v1031, 16
      %v1051 = vor.u32 %v1049, %v1047
      %v1053 = vshll.u32 %v1036, 16
      %v1055 = vrot.slane %v1053, 1
      %v1056 = vsel %vm556, %v1051, %v1055
      %v1059 = vrot.slane %v1030, 1
      %v1060 = vrot.slane %v1031, 1
      %v1061 = vsel %vm909, %v1059, %v1060
      %v1062 = vrot.slane %v1036, 1
      %v1063 = vsel %vm909, %v1060, %v1062
      %v1070 = vunpack.c.l.b16 %v311
      %v1071 = vunpack.c.l.b16 %v312
      %v1072 = vunpack.c.l.b16 %v313
      %v1073 = vunpack.c.l.b16 %v314
      %v1074 = vpack.c.b16 %v1071, %v1070
      %v1075 = vpack.c.b16 %v1073, %v1072
      %v1079 = vunpack.c.l.b16 %v315
      %v1080 = vpack.c.b16 %v1079, %v1079
      %v1082 = vshrl.u32 %v1074, 16
      %v1084 = vshll.u32 %v1074, 16
      %v1086 = vrot.slane %v1084, 1
      %v1087 = vor.u32 %v1082, %v1086
      %v1089 = vshll.u32 %v1075, 16
      %v1091 = vrot.slane %v1089, 1
      %v1092 = vsel %vm556, %v1087, %v1091
      %v1093 = vshrl.u32 %v1075, 16
      %v1095 = vor.u32 %v1093, %v1091
      %v1097 = vshll.u32 %v1080, 16
      %v1099 = vrot.slane %v1097, 1
      %v1100 = vsel %vm556, %v1095, %v1099
      %v1103 = vrot.slane %v1074, 1
      %v1104 = vrot.slane %v1075, 1
      %v1105 = vsel %vm909, %v1103, %v1104
      %v1106 = vrot.slane %v1080, 1
      %v1107 = vsel %vm909, %v1104, %v1106
      %v1110 = vld [vmem:[%s1] sm:$0xf]
      %v1111 = vld [vmem:[%s1 + $0x4] sm:$0xf]
      %v1112 = vld [vmem:[%s1 + $0x8] sm:$0xf]
      %v1113 = vld [vmem:[%s1 + $0xc] sm:$0xf]
      %v1114 = vld [vmem:[%s1 + $0x10] sm:$0xf]
      %v1115 = vld [vmem:[%s1 + $0x14] sm:$0xf]
      %v1116 = vld [vmem:[%s1 + $0x18] sm:$0xf]
      %v1117 = vld [vmem:[%s1 + $0x1c] sm:$0xf]
      %v1118 = vld [vmem:[%s1 + $0x20] sm:$0xf]
      %v1119 = vld [vmem:[%s1 + $0x24] sm:$0xf]
      %v1120 = vld [vmem:[%s1 + $0x28] sm:$0xf]
      %v1121 = vld [vmem:[%s1 + $0x2c] sm:$0xf]
      %v1122 = vld [vmem:[%s1 + $0x30] sm:$0xf]
      %v1123 = vld [vmem:[%s1 + $0x34] sm:$0xf]
      %v1124 = vld [vmem:[%s1 + $0x38] sm:$0xf]
      %v1125 = vld [vmem:[%s1 + $0x3c] sm:$0xf]
      %v1126 = vld [vmem:[%s1 + $0x40] sm:$0xf]
      %v1127 = vld [vmem:[%s1 + $0x44] sm:$0xf]
      %v1128 = vld [vmem:[%s1 + $0x48] sm:$0xf]
      %v1129 = vld [vmem:[%s1 + $0x4c] sm:$0xf]
      %v1130 = vld [vmem:[%s1 + $0x50] sm:$0xf]
      %v1131 = vld [vmem:[%s1 + $0x54] sm:$0xf]
      %v1132 = vld [vmem:[%s1 + $0x58] sm:$0xf]
      %v1133 = vld [vmem:[%s1 + $0x5c] sm:$0xf]
      %v1134 = vld [vmem:[%s1 + $0x60] sm:$0xf]
      %v1135 = vld [vmem:[%s1 + $0x64] sm:$0xf]
      %v1136 = vld [vmem:[%s1 + $0x68] sm:$0xf]
      %v1137 = vld [vmem:[%s1 + $0x6c] sm:$0xf]
      %v1138 = vld [vmem:[%s1 + $0x70] sm:$0xf]
      %v1139 = vld [vmem:[%s1 + $0x74] sm:$0xf]
      %v1140 = vld [vmem:[%s1 + $0x78] sm:$0xf]
      %v1141 = vld [vmem:[%s1 + $0x7c] sm:$0xf]
      %v1142 = vld [vmem:[%s1 + $0x80] sm:$0xf]
      %v1143 = vld [vmem:[%s1 + $0x84] sm:$0xf]
      %v1144 = vld [vmem:[%s1 + $0x88] sm:$0xf]
      %v1145 = vld [vmem:[%s1 + $0x8c] sm:$0xf]
      %v1146 = vld [vmem:[%s1 + $0x90] sm:$0xf]
      %v1147 = vld [vmem:[%s1 + $0x94] sm:$0xf]
      %v1148 = vld [vmem:[%s1 + $0x98] sm:$0xf]
      %v1149 = vld [vmem:[%s1 + $0x9c] sm:$0xf]
      %v1150 = vld [vmem:[%s1 + $0xa0] sm:$0xf]
      %v1151 = vld [vmem:[%s1 + $0xa4] sm:$0xf]
      %v1152 = vld [vmem:[%s1 + $0xa8] sm:$0xf]
      %v1153 = vld [vmem:[%s1 + $0xac] sm:$0xf]
      %v1154 = vld [vmem:[%s1 + $0xb0] sm:$0xf]
      %v1155 = vld [vmem:[%s1 + $0xb4] sm:$0xf]
      %v1156 = vld [vmem:[%s1 + $0xb8] sm:$0xf]
      %v1157 = vld [vmem:[%s1 + $0xbc] sm:$0xf]
      %v1158 = vld [vmem:[%s1 + $0xc0] sm:$0xf]
      %v1159 = vld [vmem:[%s1 + $0xc4] sm:$0xf]
      %v1160 = vld [vmem:[%s1 + $0xc8] sm:$0xf]
      %v1161 = vld [vmem:[%s1 + $0xcc] sm:$0xf]
      %v1162 = vld [vmem:[%s1 + $0xd0] sm:$0xf]
      %v1163 = vld [vmem:[%s1 + $0xd4] sm:$0xf]
      %v1164 = vld [vmem:[%s1 + $0xd8] sm:$0xf]
      %v1165 = vld [vmem:[%s1 + $0xdc] sm:$0xf]
      %v1166 = vld [vmem:[%s1 + $0xe0] sm:$0xf]
      %v1167 = vld [vmem:[%s1 + $0xe4] sm:$0xf]
      %v1168 = vld [vmem:[%s1 + $0xe8] sm:$0xf]
      %v1169 = vld [vmem:[%s1 + $0xec] sm:$0xf]
      %v1170 = vld [vmem:[%s1 + $0xf0] sm:$0xf]
      %v1171 = vld [vmem:[%s1 + $0xf4] sm:$0xf]
      %v1172 = vld [vmem:[%s1 + $0xf8] sm:$0xf]
      %v1173 = vld [vmem:[%s1 + $0xfc] sm:$0xf]
      %v1174 = vld [vmem:[%s1 + $0x100] sm:$0xf]
      %v1175 = vld [vmem:[%s1 + $0x104] sm:$0xf]
      %v1176 = vld [vmem:[%s1 + $0x108] sm:$0xf]
      %v1177 = vld [vmem:[%s1 + $0x10c] sm:$0xf]
      %v1178 = vld [vmem:[%s1 + $0x110] sm:$0xf]
      %v1179 = vld [vmem:[%s1 + $0x114] sm:$0xf]
      %v1180 = vld [vmem:[%s1 + $0x118] sm:$0xf]
      %v1181 = vld [vmem:[%s1 + $0x11c] sm:$0xf]
      %v1182 = vld [vmem:[%s1 + $0x120] sm:$0xf]
      %v1183 = vld [vmem:[%s1 + $0x124] sm:$0xf]
      %v1184 = vld [vmem:[%s1 + $0x128] sm:$0xf]
      %v1185 = vld [vmem:[%s1 + $0x12c] sm:$0xf]
      %v1186 = vld [vmem:[%s1 + $0x130] sm:$0xf]
      %v1187 = vld [vmem:[%s1 + $0x134] sm:$0xf]
      %v1188 = vld [vmem:[%s1 + $0x138] sm:$0xf]
      %v1189 = vld [vmem:[%s1 + $0x13c] sm:$0xf]
      %v1190 = vld [vmem:[%s1 + $0x140] sm:$0xf]
      %v1191 = vld [vmem:[%s1 + $0x144] sm:$0xf]
      %v1192 = vld [vmem:[%s1 + $0x148] sm:$0xf]
      %v1193 = vld [vmem:[%s1 + $0x14c] sm:$0xf]
      %v1194 = vld [vmem:[%s1 + $0x150] sm:$0xf]
      %v1195 = vld [vmem:[%s1 + $0x154] sm:$0xf]
      %v1196 = vld [vmem:[%s1 + $0x158] sm:$0xf]
      %v1197 = vld [vmem:[%s1 + $0x15c] sm:$0xf]
      %v1198 = vld [vmem:[%s1 + $0x160] sm:$0xf]
      %v1199 = vld [vmem:[%s1 + $0x164] sm:$0xf]
      %v1200 = vld [vmem:[%s1 + $0x168] sm:$0xf]
      %v1201 = vld [vmem:[%s1 + $0x16c] sm:$0xf]
      %v1202 = vld [vmem:[%s1 + $0x170] sm:$0xf]
      %v1203 = vld [vmem:[%s1 + $0x174] sm:$0xf]
      %v1204 = vld [vmem:[%s1 + $0x178] sm:$0xf]
      %v1205 = vld [vmem:[%s1 + $0x17c] sm:$0xf]
      %v1206 = vld [vmem:[%s1 + $0x180] sm:$0xf]
      %v1207 = vld [vmem:[%s1 + $0x184] sm:$0xf]
      %v1208 = vld [vmem:[%s1 + $0x188] sm:$0xf]
      %v1209 = vld [vmem:[%s1 + $0x18c] sm:$0xf]
      %v1210 = vld [vmem:[%s1 + $0x190] sm:$0xf]
      %v1211 = vld [vmem:[%s1 + $0x194] sm:$0xf]
      %v1212 = vld [vmem:[%s1 + $0x198] sm:$0xf]
      %v1213 = vld [vmem:[%s1 + $0x19c] sm:$0xf]
      %v1214 = vld [vmem:[%s1 + $0x1a0] sm:$0xf]
      %v1215 = vld [vmem:[%s1 + $0x1a4] sm:$0xf]
      %v1216 = vld [vmem:[%s1 + $0x1a8] sm:$0xf]
      %v1217 = vld [vmem:[%s1 + $0x1ac] sm:$0xf]
      %v1218 = vld [vmem:[%s1 + $0x1b0] sm:$0xf]
      %v1219 = vld [vmem:[%s1 + $0x1b4] sm:$0xf]
      %v1220 = vld [vmem:[%s1 + $0x1b8] sm:$0xf]
      %v1221 = vld [vmem:[%s1 + $0x1bc] sm:$0xf]
      %v1222 = vld [vmem:[%s1 + $0x1c0] sm:$0xf]
      %v1223 = vld [vmem:[%s1 + $0x1c4] sm:$0xf]
      %v1224 = vld [vmem:[%s1 + $0x1c8] sm:$0xf]
      %v1225 = vld [vmem:[%s1 + $0x1cc] sm:$0xf]
      %v1226 = vld [vmem:[%s1 + $0x1d0] sm:$0xf]
      %v1227 = vld [vmem:[%s1 + $0x1d4] sm:$0xf]
      %v1228 = vld [vmem:[%s1 + $0x1d8] sm:$0xf]
      %v1229 = vld [vmem:[%s1 + $0x1dc] sm:$0xf]
      %v1230 = vld [vmem:[%s1 + $0x1e0] sm:$0xf]
      %v1231 = vld [vmem:[%s1 + $0x1e4] sm:$0xf]
      %v1232 = vld [vmem:[%s1 + $0x1e8] sm:$0xf]
      %v1233 = vld [vmem:[%s1 + $0x1ec] sm:$0xf]
      %v1234 = vld [vmem:[%s1 + $0x1f0] sm:$0xf]
      %v1235 = vld [vmem:[%s1 + $0x1f4] sm:$0xf]
      %v1236 = vld [vmem:[%s1 + $0x1f8] sm:$0xf]
      %v1237 = vld [vmem:[%s1 + $0x1fc] sm:$0xf]
      %v1238 = vld [vmem:[%s1 + $0x200] sm:$0xf]
      %v1239 = vld [vmem:[%s1 + $0x204] sm:$0xf]
      %v1240 = vld [vmem:[%s1 + $0x208] sm:$0xf]
      %v1241 = vld [vmem:[%s1 + $0x20c] sm:$0xf]
      %v1242 = vld [vmem:[%s1 + $0x210] sm:$0xf]
      %v1243 = vld [vmem:[%s1 + $0x214] sm:$0xf]
      %v1244 = vld [vmem:[%s1 + $0x218] sm:$0xf]
      %v1245 = vld [vmem:[%s1 + $0x21c] sm:$0xf]
      %v1246 = vld [vmem:[%s1 + $0x220] sm:$0xf]
      %v1247 = vld [vmem:[%s1 + $0x224] sm:$0xf]
      %v1248 = vld [vmem:[%s1 + $0x228] sm:$0xf]
      %v1249 = vld [vmem:[%s1 + $0x22c] sm:$0xf]
      %v1250 = vld [vmem:[%s1 + $0x230] sm:$0xf]
      %v1251 = vld [vmem:[%s1 + $0x234] sm:$0xf]
      %v1252 = vld [vmem:[%s1 + $0x238] sm:$0xf]
      %v1253 = vld [vmem:[%s1 + $0x23c] sm:$0xf]
      %v1398 = vunpack.c.l.b16 %v1110
      %v1399 = vunpack.c.l.b16 %v1111
      %v1400 = vunpack.c.l.b16 %v1112
      %v1401 = vunpack.c.l.b16 %v1113
      %v1402 = vunpack.c.l.b16 %v1114
      %v1403 = vunpack.c.l.b16 %v1115
      %v1404 = vunpack.c.l.b16 %v1116
      %v1405 = vunpack.c.l.b16 %v1117
      %v1406 = vunpack.c.l.b16 %v1118
      %v1407 = vunpack.c.l.b16 %v1119
      %v1408 = vunpack.c.l.b16 %v1120
      %v1409 = vunpack.c.l.b16 %v1121
      %v1410 = vunpack.c.l.b16 %v1122
      %v1411 = vunpack.c.l.b16 %v1123
      %v1412 = vunpack.c.l.b16 %v1124
      %v1413 = vunpack.c.l.b16 %v1125
      %v1414 = vunpack.c.l.b16 %v1126
      %v1415 = vunpack.c.l.b16 %v1127
      %v1416 = vunpack.c.l.b16 %v1128
      %v1417 = vunpack.c.l.b16 %v1129
      %v1418 = vunpack.c.l.b16 %v1130
      %v1419 = vunpack.c.l.b16 %v1131
      %v1420 = vunpack.c.l.b16 %v1132
      %v1421 = vunpack.c.l.b16 %v1133
      %v1422 = vunpack.c.l.b16 %v1134
      %v1423 = vunpack.c.l.b16 %v1135
      %v1424 = vunpack.c.l.b16 %v1136
      %v1425 = vunpack.c.l.b16 %v1137
      %v1426 = vunpack.c.l.b16 %v1138
      %v1427 = vunpack.c.l.b16 %v1139
      %v1428 = vunpack.c.l.b16 %v1140
      %v1429 = vunpack.c.l.b16 %v1141
      %v1430 = vunpack.c.l.b16 %v1142
      %v1431 = vunpack.c.l.b16 %v1143
      %v1432 = vunpack.c.l.b16 %v1144
      %v1433 = vunpack.c.l.b16 %v1145
      %v1434 = vunpack.c.l.b16 %v1146
      %v1435 = vunpack.c.l.b16 %v1147
      %v1436 = vunpack.c.l.b16 %v1148
      %v1437 = vunpack.c.l.b16 %v1149
      %v1438 = vunpack.c.l.b16 %v1150
      %v1439 = vunpack.c.l.b16 %v1151
      %v1440 = vunpack.c.l.b16 %v1152
      %v1441 = vunpack.c.l.b16 %v1153
      %v1442 = vunpack.c.l.b16 %v1154
      %v1443 = vunpack.c.l.b16 %v1155
      %v1444 = vunpack.c.l.b16 %v1156
      %v1445 = vunpack.c.l.b16 %v1157
      %v1446 = vunpack.c.l.b16 %v1158
      %v1447 = vunpack.c.l.b16 %v1159
      %v1448 = vunpack.c.l.b16 %v1160
      %v1449 = vunpack.c.l.b16 %v1161
      %v1450 = vunpack.c.l.b16 %v1162
      %v1451 = vunpack.c.l.b16 %v1163
      %v1452 = vunpack.c.l.b16 %v1164
      %v1453 = vunpack.c.l.b16 %v1165
      %v1454 = vunpack.c.l.b16 %v1166
      %v1455 = vunpack.c.l.b16 %v1167
      %v1456 = vunpack.c.l.b16 %v1168
      %v1457 = vunpack.c.l.b16 %v1169
      %v1458 = vunpack.c.l.b16 %v1170
      %v1459 = vunpack.c.l.b16 %v1171
      %v1460 = vunpack.c.l.b16 %v1172
      %v1461 = vunpack.c.l.b16 %v1173
      %v1462 = vunpack.c.l.b16 %v1174
      %v1463 = vunpack.c.l.b16 %v1175
      %v1464 = vunpack.c.l.b16 %v1176
      %v1465 = vunpack.c.l.b16 %v1177
      %v1466 = vunpack.c.l.b16 %v1178
      %v1467 = vunpack.c.l.b16 %v1179
      %v1468 = vunpack.c.l.b16 %v1180
      %v1469 = vunpack.c.l.b16 %v1181
      %v1470 = vunpack.c.l.b16 %v1182
      %v1471 = vunpack.c.l.b16 %v1183
      %v1472 = vunpack.c.l.b16 %v1184
      %v1473 = vunpack.c.l.b16 %v1185
      %v1474 = vunpack.c.l.b16 %v1186
      %v1475 = vunpack.c.l.b16 %v1187
      %v1476 = vunpack.c.l.b16 %v1188
      %v1477 = vunpack.c.l.b16 %v1189
      %v1478 = vunpack.c.l.b16 %v1190
      %v1479 = vunpack.c.l.b16 %v1191
      %v1480 = vunpack.c.l.b16 %v1192
      %v1481 = vunpack.c.l.b16 %v1193
      %v1482 = vunpack.c.l.b16 %v1194
      %v1483 = vunpack.c.l.b16 %v1195
      %v1484 = vunpack.c.l.b16 %v1196
      %v1485 = vunpack.c.l.b16 %v1197
      %v1486 = vunpack.c.l.b16 %v1198
      %v1487 = vunpack.c.l.b16 %v1199
      %v1488 = vunpack.c.l.b16 %v1200
      %v1489 = vunpack.c.l.b16 %v1201
      %v1490 = vunpack.c.l.b16 %v1202
      %v1491 = vunpack.c.l.b16 %v1203
      %v1492 = vunpack.c.l.b16 %v1204
      %v1493 = vunpack.c.l.b16 %v1205
      %v1494 = vunpack.c.l.b16 %v1206
      %v1495 = vunpack.c.l.b16 %v1207
      %v1496 = vunpack.c.l.b16 %v1208
      %v1497 = vunpack.c.l.b16 %v1209
      %v1498 = vunpack.c.l.b16 %v1210
      %v1499 = vunpack.c.l.b16 %v1211
      %v1500 = vunpack.c.l.b16 %v1212
      %v1501 = vunpack.c.l.b16 %v1213
      %v1502 = vunpack.c.l.b16 %v1214
      %v1503 = vunpack.c.l.b16 %v1215
      %v1504 = vunpack.c.l.b16 %v1216
      %v1505 = vunpack.c.l.b16 %v1217
      %v1506 = vunpack.c.l.b16 %v1218
      %v1507 = vunpack.c.l.b16 %v1219
      %v1508 = vunpack.c.l.b16 %v1220
      %v1509 = vunpack.c.l.b16 %v1221
      %v1510 = vunpack.c.l.b16 %v1222
      %v1511 = vunpack.c.l.b16 %v1223
      %v1512 = vunpack.c.l.b16 %v1224
      %v1513 = vunpack.c.l.b16 %v1225
      %v1514 = vunpack.c.l.b16 %v1226
      %v1515 = vunpack.c.l.b16 %v1227
      %v1516 = vunpack.c.l.b16 %v1228
      %v1517 = vunpack.c.l.b16 %v1229
      %v1518 = vunpack.c.l.b16 %v1230
      %v1519 = vunpack.c.l.b16 %v1231
      %v1520 = vunpack.c.l.b16 %v1232
      %v1521 = vunpack.c.l.b16 %v1233
      %v1522 = vunpack.c.l.b16 %v1234
      %v1523 = vunpack.c.l.b16 %v1235
      %v1524 = vunpack.c.l.b16 %v1236
      %v1525 = vunpack.c.l.b16 %v1237
      %v1526 = vunpack.c.l.b16 %v1238
      %v1527 = vunpack.c.l.b16 %v1239
      %v1528 = vunpack.c.l.b16 %v1240
      %v1529 = vunpack.c.l.b16 %v1241
      %v1530 = vunpack.c.l.b16 %v1242
      %v1531 = vunpack.c.l.b16 %v1243
      %v1532 = vunpack.c.l.b16 %v1244
      %v1533 = vunpack.c.l.b16 %v1245
      %v1534 = vunpack.c.l.b16 %v1246
      %v1535 = vunpack.c.l.b16 %v1247
      %v1536 = vunpack.c.l.b16 %v1248
      %v1537 = vunpack.c.l.b16 %v1249
      %v1538 = vunpack.c.l.b16 %v1250
      %v1539 = vunpack.c.l.b16 %v1251
      %v1540 = vunpack.c.l.b16 %v1252
      %v1541 = vunpack.c.l.b16 %v1253
      %v1542 = vpack.c.b16 %v1399, %v1398
      %v1543 = vpack.c.b16 %v1401, %v1400
      %v1544 = vpack.c.b16 %v1403, %v1402
      %v1545 = vpack.c.b16 %v1405, %v1404
      %v1546 = vpack.c.b16 %v1407, %v1406
      %v1547 = vpack.c.b16 %v1409, %v1408
      %v1548 = vpack.c.b16 %v1411, %v1410
      %v1549 = vpack.c.b16 %v1413, %v1412
      %v1550 = vpack.c.b16 %v1415, %v1414
      %v1551 = vpack.c.b16 %v1417, %v1416
      %v1552 = vpack.c.b16 %v1419, %v1418
      %v1553 = vpack.c.b16 %v1421, %v1420
      %v1554 = vpack.c.b16 %v1423, %v1422
      %v1555 = vpack.c.b16 %v1425, %v1424
      %v1556 = vpack.c.b16 %v1427, %v1426
      %v1557 = vpack.c.b16 %v1429, %v1428
      %v1558 = vpack.c.b16 %v1431, %v1430
      %v1559 = vpack.c.b16 %v1433, %v1432
      %v1560 = vpack.c.b16 %v1435, %v1434
      %v1561 = vpack.c.b16 %v1437, %v1436
      %v1562 = vpack.c.b16 %v1439, %v1438
      %v1563 = vpack.c.b16 %v1441, %v1440
      %v1564 = vpack.c.b16 %v1443, %v1442
      %v1565 = vpack.c.b16 %v1445, %v1444
      %v1566 = vpack.c.b16 %v1447, %v1446
      %v1567 = vpack.c.b16 %v1449, %v1448
      %v1568 = vpack.c.b16 %v1451, %v1450
      %v1569 = vpack.c.b16 %v1453, %v1452
      %v1570 = vpack.c.b16 %v1455, %v1454
      %v1571 = vpack.c.b16 %v1457, %v1456
      %v1572 = vpack.c.b16 %v1459, %v1458
      %v1573 = vpack.c.b16 %v1461, %v1460
      %v1574 = vpack.c.b16 %v1463, %v1462
      %v1575 = vpack.c.b16 %v1465, %v1464
      %v1576 = vpack.c.b16 %v1467, %v1466
      %v1577 = vpack.c.b16 %v1469, %v1468
      %v1578 = vpack.c.b16 %v1471, %v1470
      %v1579 = vpack.c.b16 %v1473, %v1472
      %v1580 = vpack.c.b16 %v1475, %v1474
      %v1581 = vpack.c.b16 %v1477, %v1476
      %v1582 = vpack.c.b16 %v1479, %v1478
      %v1583 = vpack.c.b16 %v1481, %v1480
      %v1584 = vpack.c.b16 %v1483, %v1482
      %v1585 = vpack.c.b16 %v1485, %v1484
      %v1586 = vpack.c.b16 %v1487, %v1486
      %v1587 = vpack.c.b16 %v1489, %v1488
      %v1588 = vpack.c.b16 %v1491, %v1490
      %v1589 = vpack.c.b16 %v1493, %v1492
      %v1590 = vpack.c.b16 %v1495, %v1494
      %v1591 = vpack.c.b16 %v1497, %v1496
      %v1592 = vpack.c.b16 %v1499, %v1498
      %v1593 = vpack.c.b16 %v1501, %v1500
      %v1594 = vpack.c.b16 %v1503, %v1502
      %v1595 = vpack.c.b16 %v1505, %v1504
      %v1596 = vpack.c.b16 %v1507, %v1506
      %v1597 = vpack.c.b16 %v1509, %v1508
      %v1598 = vpack.c.b16 %v1511, %v1510
      %v1599 = vpack.c.b16 %v1513, %v1512
      %v1600 = vpack.c.b16 %v1515, %v1514
      %v1601 = vpack.c.b16 %v1517, %v1516
      %v1602 = vpack.c.b16 %v1519, %v1518
      %v1603 = vpack.c.b16 %v1521, %v1520
      %v1604 = vpack.c.b16 %v1523, %v1522
      %v1605 = vpack.c.b16 %v1525, %v1524
      %v1606 = vpack.c.b16 %v1527, %v1526
      %v1607 = vpack.c.b16 %v1529, %v1528
      %v1608 = vpack.c.b16 %v1531, %v1530
      %v1609 = vpack.c.b16 %v1533, %v1532
      %v1610 = vpack.c.b16 %v1535, %v1534
      %v1611 = vpack.c.b16 %v1537, %v1536
      %v1612 = vpack.c.b16 %v1539, %v1538
      %v1613 = vpack.c.b16 %v1541, %v1540
      %1686 = vmatprep.subr.bf16.mxu0 0
      %1687 = vmatpush1.bf16.msra.mxu0 %v1549
      %1688 = vmatprep.subr.bf16.mxu0 0
      %1689 = vmatpush1.bf16.msra.mxu0 %v1548
      %1690 = vmatprep.subr.bf16.mxu0 0
      %1691 = vmatpush1.bf16.msra.mxu0 %v1547
      %1692 = vmatprep.subr.bf16.mxu0 0
      %1693 = vmatpush1.bf16.msra.mxu0 %v1546
      %1694 = vmatprep.subr.bf16.mxu0 0
      %1695 = vmatpush1.bf16.msra.mxu0 %v1545
      %1696 = vmatprep.subr.bf16.mxu0 0
      %1697 = vmatpush1.bf16.msra.mxu0 %v1544
      %1698 = vmatprep.subr.bf16.mxu0 0
      %1699 = vmatpush1.bf16.msra.mxu0 %v1543
      %1700 = vmatprep.subr.bf16.mxu0 0
      %1701 = vmatpush1.bf16.msra.mxu0 %v1542
      %1702 = vmatprep.subr.bf16.mxu0 0
      %1703 = vmatpush2.bf16.msra.mxu0 %v1557
      %1704 = vmatprep.subr.bf16.mxu0 0
      %1705 = vmatpush2.bf16.msra.mxu0 %v1556
      %1706 = vmatprep.subr.bf16.mxu0 0
      %1707 = vmatpush2.bf16.msra.mxu0 %v1555
      %1708 = vmatprep.subr.bf16.mxu0 0
      %1709 = vmatpush2.bf16.msra.mxu0 %v1554
      %1710 = vmatprep.subr.bf16.mxu0 0
      %1711 = vmatpush2.bf16.msra.mxu0 %v1553
      %1712 = vmatprep.subr.bf16.mxu0 0
      %1713 = vmatpush2.bf16.msra.mxu0 %v1552
      %1714 = vmatprep.subr.bf16.mxu0 0
      %1715 = vmatpush2.bf16.msra.mxu0 %v1551
      %1716 = vmatprep.subr.bf16.mxu0 0
      %1717 = vmatpush2.bf16.msra.mxu0 %v1550
      %1718 = vmatprep.mubr.bf16.mxu0 %v568
      %1719 = vmatmul.mubr.bf16.gmra.mxu0 %v444
      %v1720 = vpop.f32.mrf.mxu0
      %v1721 = vadd.f32 0.0, %v1720
      %v1722 = vpop.f32.mrf.mxu0
      %v1723 = vpop.f32.mrf.mxu0
      %v1724 = vadd.f32 0.0, %v1723
      %v1725 = vpop.f32.mrf.mxu0
      %1726 = vmatprep.mubr.bf16.mxu0 %v576
      %1727 = vmatmul.mubr.bf16.gmra.mxu0 %v445
      %v1728 = vpop.f32.mrf.mxu0
      %v1729 = vadd.f32 0.0, %v1728
      %v1730 = vpop.f32.mrf.mxu0
      %v1731 = vpop.f32.mrf.mxu0
      %v1732 = vadd.f32 0.0, %v1731
      %v1733 = vpop.f32.mrf.mxu0
      %1734 = vmatprep.mubr.bf16.mxu0 %v588
      %1735 = vmatmul.mubr.bf16.gmra.mxu0 %v446
      %v1736 = vpop.f32.mrf.mxu0
      %v1737 = vadd.f32 0.0, %v1736
      %v1738 = vpop.f32.mrf.mxu0
      %v1739 = vpop.f32.mrf.mxu0
      %v1740 = vadd.f32 0.0, %v1739
      %v1741 = vpop.f32.mrf.mxu0
      %1742 = vmatprep.mubr.bf16.mxu0 %v596
      %1743 = vmatmul.mubr.bf16.gmra.mxu0 %v447
      %v1744 = vpop.f32.mrf.mxu0
      %v1745 = vadd.f32 0.0, %v1744
      %v1746 = vpop.f32.mrf.mxu0
      %v1747 = vpop.f32.mrf.mxu0
      %v1748 = vadd.f32 0.0, %v1747
      %v1749 = vpop.f32.mrf.mxu0
      %1750 = vmatprep.mubr.bf16.mxu0 %v608
      %1751 = vmatmul.mubr.bf16.gmra.mxu0 %v448
      %v1752 = vpop.f32.mrf.mxu0
      %v1753 = vadd.f32 0.0, %v1752
      %v1754 = vpop.f32.mrf.mxu0
      %v1755 = vpop.f32.mrf.mxu0
      %v1756 = vadd.f32 0.0, %v1755
      %v1757 = vpop.f32.mrf.mxu0
      %1758 = vmatprep.mubr.bf16.mxu0 %v616
      %1759 = vmatmul.mubr.bf16.gmra.mxu0 %v449
      %v1760 = vpop.f32.mrf.mxu0
      %v1761 = vadd.f32 0.0, %v1760
      %v1762 = vpop.f32.mrf.mxu0
      %v1763 = vpop.f32.mrf.mxu0
      %v1764 = vadd.f32 0.0, %v1763
      %v1765 = vpop.f32.mrf.mxu0
      %1766 = vmatprep.mubr.bf16.mxu0 %v628
      %1767 = vmatmul.mubr.bf16.gmra.mxu0 %v450
      %v1768 = vpop.f32.mrf.mxu0
      %v1769 = vadd.f32 0.0, %v1768
      %v1770 = vpop.f32.mrf.mxu0
      %v1771 = vpop.f32.mrf.mxu0
      %v1772 = vadd.f32 0.0, %v1771
      %v1773 = vpop.f32.mrf.mxu0
      %1774 = vmatprep.mubr.bf16.mxu0 %v636
      %1775 = vmatmul.mubr.bf16.gmra.mxu0 %v451
      %v1776 = vpop.f32.mrf.mxu0
      %v1777 = vadd.f32 0.0, %v1776
      %v1778 = vpop.f32.mrf.mxu0
      %v1779 = vpop.f32.mrf.mxu0
      %v1780 = vadd.f32 0.0, %v1779
      %v1781 = vpop.f32.mrf.mxu0
      %1782 = vmatprep.mubr.bf16.mxu0 %v648
      %1783 = vmatmul.mubr.bf16.gmra.mxu0 %v452
      %v1784 = vpop.f32.mrf.mxu0
      %v1785 = vadd.f32 0.0, %v1784
      %v1786 = vpop.f32.mrf.mxu0
      %v1787 = vpop.f32.mrf.mxu0
      %v1788 = vadd.f32 0.0, %v1787
      %v1789 = vpop.f32.mrf.mxu0
      %1790 = vmatprep.mubr.bf16.mxu0 %v656
      %1791 = vmatmul.mubr.bf16.gmra.mxu0 %v453
      %v1792 = vpop.f32.mrf.mxu0
      %v1793 = vadd.f32 0.0, %v1792
      %v1794 = vpop.f32.mrf.mxu0
      %v1795 = vpop.f32.mrf.mxu0
      %v1796 = vadd.f32 0.0, %v1795
      %v1797 = vpop.f32.mrf.mxu0
      %1798 = vmatprep.mubr.bf16.mxu0 %v668
      %1799 = vmatmul.mubr.bf16.gmra.mxu0 %v454
      %v1800 = vpop.f32.mrf.mxu0
      %v1801 = vadd.f32 0.0, %v1800
      %v1802 = vpop.f32.mrf.mxu0
      %v1803 = vpop.f32.mrf.mxu0
      %v1804 = vadd.f32 0.0, %v1803
      %v1805 = vpop.f32.mrf.mxu0
      %1806 = vmatprep.mubr.bf16.mxu0 %v676
      %1807 = vmatmul.mubr.bf16.gmra.mxu0 %v455
      %v1808 = vpop.f32.mrf.mxu0
      %v1809 = vadd.f32 0.0, %v1808
      %v1810 = vpop.f32.mrf.mxu0
      %v1811 = vpop.f32.mrf.mxu0
      %v1812 = vadd.f32 0.0, %v1811
      %v1813 = vpop.f32.mrf.mxu0
      %1814 = vmatprep.mubr.bf16.mxu0 %v688
      %1815 = vmatmul.mubr.bf16.gmra.mxu0 %v456
      %v1816 = vpop.f32.mrf.mxu0
      %v1817 = vadd.f32 0.0, %v1816
      %v1818 = vpop.f32.mrf.mxu0
      %v1819 = vpop.f32.mrf.mxu0
      %v1820 = vadd.f32 0.0, %v1819
      %v1821 = vpop.f32.mrf.mxu0
      %1822 = vmatprep.mubr.bf16.mxu0 %v696
      %1823 = vmatmul.mubr.bf16.gmra.mxu0 %v457
      %v1824 = vpop.f32.mrf.mxu0
      %v1825 = vadd.f32 0.0, %v1824
      %v1826 = vpop.f32.mrf.mxu0
      %v1827 = vpop.f32.mrf.mxu0
      %v1828 = vadd.f32 0.0, %v1827
      %v1829 = vpop.f32.mrf.mxu0
      %1830 = vmatprep.mubr.bf16.mxu0 %v708
      %1831 = vmatmul.mubr.bf16.gmra.mxu0 %v458
      %v1832 = vpop.f32.mrf.mxu0
      %v1833 = vadd.f32 0.0, %v1832
      %v1834 = vpop.f32.mrf.mxu0
      %v1835 = vpop.f32.mrf.mxu0
      %v1836 = vadd.f32 0.0, %v1835
      %v1837 = vpop.f32.mrf.mxu0
      %1838 = vmatprep.mubr.bf16.mxu0 %v716
      %1839 = vmatmul.mubr.bf16.gmra.mxu0 %v459
      %v1840 = vpop.f32.mrf.mxu0
      %v1841 = vadd.f32 0.0, %v1840
      %v1842 = vpop.f32.mrf.mxu0
      %v1843 = vpop.f32.mrf.mxu0
      %v1844 = vadd.f32 0.0, %v1843
      %v1845 = vpop.f32.mrf.mxu0
      %1846 = vmatprep.mubr.bf16.mxu0 %v728
      %1847 = vmatmul.mubr.bf16.gmra.mxu0 %v460
      %v1848 = vpop.f32.mrf.mxu0
      %v1849 = vadd.f32 0.0, %v1848
      %v1850 = vpop.f32.mrf.mxu0
      %v1851 = vpop.f32.mrf.mxu0
      %v1852 = vadd.f32 0.0, %v1851
      %v1853 = vpop.f32.mrf.mxu0
      %1854 = vmatprep.mubr.bf16.mxu0 %v736
      %1855 = vmatmul.mubr.bf16.gmra.mxu0 %v461
      %v1856 = vpop.f32.mrf.mxu0
      %v1857 = vadd.f32 0.0, %v1856
      %v1858 = vpop.f32.mrf.mxu0
      %v1859 = vpop.f32.mrf.mxu0
      %v1860 = vadd.f32 0.0, %v1859
      %v1861 = vpop.f32.mrf.mxu0
      %1862 = vmatprep.mubr.bf16.mxu0 %v748
      %1863 = vmatmul.mubr.bf16.gmra.mxu0 %v462
      %v1864 = vpop.f32.mrf.mxu0
      %v1865 = vadd.f32 0.0, %v1864
      %v1866 = vpop.f32.mrf.mxu0
      %v1867 = vpop.f32.mrf.mxu0
      %v1868 = vadd.f32 0.0, %v1867
      %v1869 = vpop.f32.mrf.mxu0
      %1870 = vmatprep.mubr.bf16.mxu0 %v756
      %1871 = vmatmul.mubr.bf16.gmra.mxu0 %v463
      %v1872 = vpop.f32.mrf.mxu0
      %v1873 = vadd.f32 0.0, %v1872
      %v1874 = vpop.f32.mrf.mxu0
      %v1875 = vpop.f32.mrf.mxu0
      %v1876 = vadd.f32 0.0, %v1875
      %v1877 = vpop.f32.mrf.mxu0
      %1878 = vmatprep.mubr.bf16.mxu0 %v768
      %1879 = vmatmul.mubr.bf16.gmra.mxu0 %v464
      %v1880 = vpop.f32.mrf.mxu0
      %v1881 = vadd.f32 0.0, %v1880
      %v1882 = vpop.f32.mrf.mxu0
      %v1883 = vpop.f32.mrf.mxu0
      %v1884 = vadd.f32 0.0, %v1883
      %v1885 = vpop.f32.mrf.mxu0
      %1886 = vmatprep.mubr.bf16.mxu0 %v776
      %1887 = vmatmul.mubr.bf16.gmra.mxu0 %v465
      %v1888 = vpop.f32.mrf.mxu0
      %v1889 = vadd.f32 0.0, %v1888
      %v1890 = vpop.f32.mrf.mxu0
      %v1891 = vpop.f32.mrf.mxu0
      %v1892 = vadd.f32 0.0, %v1891
      %v1893 = vpop.f32.mrf.mxu0
      %1894 = vmatprep.mubr.bf16.mxu0 %v788
      %1895 = vmatmul.mubr.bf16.gmra.mxu0 %v466
      %v1896 = vpop.f32.mrf.mxu0
      %v1897 = vadd.f32 0.0, %v1896
      %v1898 = vpop.f32.mrf.mxu0
      %v1899 = vpop.f32.mrf.mxu0
      %v1900 = vadd.f32 0.0, %v1899
      %v1901 = vpop.f32.mrf.mxu0
      %1902 = vmatprep.mubr.bf16.mxu0 %v796
      %1903 = vmatmul.mubr.bf16.gmra.mxu0 %v467
      %v1904 = vpop.f32.mrf.mxu0
      %v1905 = vadd.f32 0.0, %v1904
      %v1906 = vpop.f32.mrf.mxu0
      %v1907 = vpop.f32.mrf.mxu0
      %v1908 = vadd.f32 0.0, %v1907
      %v1909 = vpop.f32.mrf.mxu0
      %1910 = vmatprep.mubr.bf16.mxu0 %v808
      %1911 = vmatmul.mubr.bf16.gmra.mxu0 %v468
      %v1912 = vpop.f32.mrf.mxu0
      %v1913 = vadd.f32 0.0, %v1912
      %v1914 = vpop.f32.mrf.mxu0
      %v1915 = vpop.f32.mrf.mxu0
      %v1916 = vadd.f32 0.0, %v1915
      %v1917 = vpop.f32.mrf.mxu0
      %1918 = vmatprep.mubr.bf16.mxu0 %v816
      %1919 = vmatmul.mubr.bf16.gmra.mxu0 %v469
      %v1920 = vpop.f32.mrf.mxu0
      %v1921 = vadd.f32 0.0, %v1920
      %v1922 = vpop.f32.mrf.mxu0
      %v1923 = vpop.f32.mrf.mxu0
      %v1924 = vadd.f32 0.0, %v1923
      %v1925 = vpop.f32.mrf.mxu0
      %1926 = vmatprep.mubr.bf16.mxu0 %v828
      %1927 = vmatmul.mubr.bf16.gmra.mxu0 %v470
      %v1928 = vpop.f32.mrf.mxu0
      %v1929 = vadd.f32 0.0, %v1928
      %v1930 = vpop.f32.mrf.mxu0
      %v1931 = vpop.f32.mrf.mxu0
      %v1932 = vadd.f32 0.0, %v1931
      %v1933 = vpop.f32.mrf.mxu0
      %1934 = vmatprep.mubr.bf16.mxu0 %v836
      %1935 = vmatmul.mubr.bf16.gmra.mxu0 %v471
      %v1936 = vpop.f32.mrf.mxu0
      %v1937 = vadd.f32 0.0, %v1936
      %v1938 = vpop.f32.mrf.mxu0
      %v1939 = vpop.f32.mrf.mxu0
      %v1940 = vadd.f32 0.0, %v1939
      %v1941 = vpop.f32.mrf.mxu0
      %1942 = vmatprep.mubr.bf16.mxu0 %v848
      %1943 = vmatmul.mubr.bf16.gmra.mxu0 %v472
      %v1944 = vpop.f32.mrf.mxu0
      %v1945 = vadd.f32 0.0, %v1944
      %v1946 = vpop.f32.mrf.mxu0
      %v1947 = vpop.f32.mrf.mxu0
      %v1948 = vadd.f32 0.0, %v1947
      %v1949 = vpop.f32.mrf.mxu0
      %1950 = vmatprep.mubr.bf16.mxu0 %v856
      %1951 = vmatmul.mubr.bf16.gmra.mxu0 %v473
      %v1952 = vpop.f32.mrf.mxu0
      %v1953 = vadd.f32 0.0, %v1952
      %v1954 = vpop.f32.mrf.mxu0
      %v1955 = vpop.f32.mrf.mxu0
      %v1956 = vadd.f32 0.0, %v1955
      %v1957 = vpop.f32.mrf.mxu0
      %1958 = vmatprep.mubr.bf16.mxu0 %v868
      %1959 = vmatmul.mubr.bf16.gmra.mxu0 %v474
      %v1960 = vpop.f32.mrf.mxu0
      %v1961 = vadd.f32 0.0, %v1960
      %v1962 = vpop.f32.mrf.mxu0
      %v1963 = vpop.f32.mrf.mxu0
      %v1964 = vadd.f32 0.0, %v1963
      %v1965 = vpop.f32.mrf.mxu0
      %1966 = vmatprep.mubr.bf16.mxu0 %v876
      %1967 = vmatmul.mubr.bf16.gmra.mxu0 %v475
      %v1968 = vpop.f32.mrf.mxu0
      %v1969 = vadd.f32 0.0, %v1968
      %v1970 = vpop.f32.mrf.mxu0
      %v1971 = vpop.f32.mrf.mxu0
      %v1972 = vadd.f32 0.0, %v1971
      %v1973 = vpop.f32.mrf.mxu0
      %1974 = vdwg.mxu0
      %1975 = vmatprep.subr.bf16.mxu0 0
      %1976 = vmatpush1.bf16.msra.mxu0 %v1565
      %1977 = vmatprep.subr.bf16.mxu0 0
      %1978 = vmatpush1.bf16.msra.mxu0 %v1564
      %1979 = vmatprep.subr.bf16.mxu0 0
      %1980 = vmatpush1.bf16.msra.mxu0 %v1563
      %1981 = vmatprep.subr.bf16.mxu0 0
      %1982 = vmatpush1.bf16.msra.mxu0 %v1562
      %1983 = vmatprep.subr.bf16.mxu0 0
      %1984 = vmatpush1.bf16.msra.mxu0 %v1561
      %1985 = vmatprep.subr.bf16.mxu0 0
      %1986 = vmatpush1.bf16.msra.mxu0 %v1560
      %1987 = vmatprep.subr.bf16.mxu0 0
      %1988 = vmatpush1.bf16.msra.mxu0 %v1559
      %1989 = vmatprep.subr.bf16.mxu0 0
      %1990 = vmatpush1.bf16.msra.mxu0 %v1558
      %1991 = vmatprep.subr.bf16.mxu0 0
      %1992 = vmatpush2.bf16.msra.mxu0 %v1573
      %1993 = vmatprep.subr.bf16.mxu0 0
      %1994 = vmatpush2.bf16.msra.mxu0 %v1572
      %1995 = vmatprep.subr.bf16.mxu0 0
      %1996 = vmatpush2.bf16.msra.mxu0 %v1571
      %1997 = vmatprep.subr.bf16.mxu0 0
      %1998 = vmatpush2.bf16.msra.mxu0 %v1570
      %1999 = vmatprep.subr.bf16.mxu0 0
      %2000 = vmatpush2.bf16.msra.mxu0 %v1569
      %2001 = vmatprep.subr.bf16.mxu0 0
      %2002 = vmatpush2.bf16.msra.mxu0 %v1568
      %2003 = vmatprep.subr.bf16.mxu0 0
      %2004 = vmatpush2.bf16.msra.mxu0 %v1567
      %2005 = vmatprep.subr.bf16.mxu0 0
      %2006 = vmatpush2.bf16.msra.mxu0 %v1566
      %2007 = vmatprep.mubr.bf16.mxu0 %v446
      %2008 = vmatmul.mubr.bf16.gmra.mxu0 %v912
      %v2009 = vpop.f32.mrf.mxu0
      %v2010 = vadd.f32 %v1721, %v2009
      %v2011 = vpop.f32.mrf.mxu0
      %v2012 = vpop.f32.mrf.mxu0
      %v2013 = vadd.f32 %v1724, %v2012
      %v2014 = vpop.f32.mrf.mxu0
      %2015 = vmatprep.mubr.bf16.mxu0 %v447
      %2016 = vmatmul.mubr.bf16.gmra.mxu0 %v914
      %v2017 = vpop.f32.mrf.mxu0
      %v2018 = vadd.f32 %v1729, %v2017
      %v2019 = vpop.f32.mrf.mxu0
      %v2020 = vpop.f32.mrf.mxu0
      %v2021 = vadd.f32 %v1732, %v2020
      %v2022 = vpop.f32.mrf.mxu0
      %2023 = vmatprep.mubr.bf16.mxu0 %v448
      %2024 = vmatmul.mubr.bf16.gmra.mxu0 %v917
      %v2025 = vpop.f32.mrf.mxu0
      %v2026 = vadd.f32 %v1737, %v2025
      %v2027 = vpop.f32.mrf.mxu0
      %v2028 = vpop.f32.mrf.mxu0
      %v2029 = vadd.f32 %v1740, %v2028
      %v2030 = vpop.f32.mrf.mxu0
      %2031 = vmatprep.mubr.bf16.mxu0 %v449
      %2032 = vmatmul.mubr.bf16.gmra.mxu0 %v919
      %v2033 = vpop.f32.mrf.mxu0
      %v2034 = vadd.f32 %v1745, %v2033
      %v2035 = vpop.f32.mrf.mxu0
      %v2036 = vpop.f32.mrf.mxu0
      %v2037 = vadd.f32 %v1748, %v2036
      %v2038 = vpop.f32.mrf.mxu0
      %2039 = vmatprep.mubr.bf16.mxu0 %v450
      %2040 = vmatmul.mubr.bf16.gmra.mxu0 %v922
      %v2041 = vpop.f32.mrf.mxu0
      %v2042 = vadd.f32 %v1753, %v2041
      %v2043 = vpop.f32.mrf.mxu0
      %v2044 = vpop.f32.mrf.mxu0
      %v2045 = vadd.f32 %v1756, %v2044
      %v2046 = vpop.f32.mrf.mxu0
      %2047 = vmatprep.mubr.bf16.mxu0 %v451
      %2048 = vmatmul.mubr.bf16.gmra.mxu0 %v924
      %v2049 = vpop.f32.mrf.mxu0
      %v2050 = vadd.f32 %v1761, %v2049
      %v2051 = vpop.f32.mrf.mxu0
      %v2052 = vpop.f32.mrf.mxu0
      %v2053 = vadd.f32 %v1764, %v2052
      %v2054 = vpop.f32.mrf.mxu0
      %2055 = vmatprep.mubr.bf16.mxu0 %v452
      %2056 = vmatmul.mubr.bf16.gmra.mxu0 %v927
      %v2057 = vpop.f32.mrf.mxu0
      %v2058 = vadd.f32 %v1769, %v2057
      %v2059 = vpop.f32.mrf.mxu0
      %v2060 = vpop.f32.mrf.mxu0
      %v2061 = vadd.f32 %v1772, %v2060
      %v2062 = vpop.f32.mrf.mxu0
      %2063 = vmatprep.mubr.bf16.mxu0 %v453
      %2064 = vmatmul.mubr.bf16.gmra.mxu0 %v929
      %v2065 = vpop.f32.mrf.mxu0
      %v2066 = vadd.f32 %v1777, %v2065
      %v2067 = vpop.f32.mrf.mxu0
      %v2068 = vpop.f32.mrf.mxu0
      %v2069 = vadd.f32 %v1780, %v2068
      %v2070 = vpop.f32.mrf.mxu0
      %2071 = vmatprep.mubr.bf16.mxu0 %v454
      %2072 = vmatmul.mubr.bf16.gmra.mxu0 %v932
      %v2073 = vpop.f32.mrf.mxu0
      %v2074 = vadd.f32 %v1785, %v2073
      %v2075 = vpop.f32.mrf.mxu0
      %v2076 = vpop.f32.mrf.mxu0
      %v2077 = vadd.f32 %v1788, %v2076
      %v2078 = vpop.f32.mrf.mxu0
      %2079 = vmatprep.mubr.bf16.mxu0 %v455
      %2080 = vmatmul.mubr.bf16.gmra.mxu0 %v934
      %v2081 = vpop.f32.mrf.mxu0
      %v2082 = vadd.f32 %v1793, %v2081
      %v2083 = vpop.f32.mrf.mxu0
      %v2084 = vpop.f32.mrf.mxu0
      %v2085 = vadd.f32 %v1796, %v2084
      %v2086 = vpop.f32.mrf.mxu0
      %2087 = vmatprep.mubr.bf16.mxu0 %v456
      %2088 = vmatmul.mubr.bf16.gmra.mxu0 %v937
      %v2089 = vpop.f32.mrf.mxu0
      %v2090 = vadd.f32 %v1801, %v2089
      %v2091 = vpop.f32.mrf.mxu0
      %v2092 = vpop.f32.mrf.mxu0
      %v2093 = vadd.f32 %v1804, %v2092
      %v2094 = vpop.f32.mrf.mxu0
      %2095 = vmatprep.mubr.bf16.mxu0 %v457
      %2096 = vmatmul.mubr.bf16.gmra.mxu0 %v939
      %v2097 = vpop.f32.mrf.mxu0
      %v2098 = vadd.f32 %v1809, %v2097
      %v2099 = vpop.f32.mrf.mxu0
      %v2100 = vpop.f32.mrf.mxu0
      %v2101 = vadd.f32 %v1812, %v2100
      %v2102 = vpop.f32.mrf.mxu0
      %2103 = vmatprep.mubr.bf16.mxu0 %v458
      %2104 = vmatmul.mubr.bf16.gmra.mxu0 %v942
      %v2105 = vpop.f32.mrf.mxu0
      %v2106 = vadd.f32 %v1817, %v2105
      %v2107 = vpop.f32.mrf.mxu0
      %v2108 = vpop.f32.mrf.mxu0
      %v2109 = vadd.f32 %v1820, %v2108
      %v2110 = vpop.f32.mrf.mxu0
      %2111 = vmatprep.mubr.bf16.mxu0 %v459
      %2112 = vmatmul.mubr.bf16.gmra.mxu0 %v944
      %v2113 = vpop.f32.mrf.mxu0
      %v2114 = vadd.f32 %v1825, %v2113
      %v2115 = vpop.f32.mrf.mxu0
      %v2116 = vpop.f32.mrf.mxu0
      %v2117 = vadd.f32 %v1828, %v2116
      %v2118 = vpop.f32.mrf.mxu0
      %2119 = vmatprep.mubr.bf16.mxu0 %v460
      %2120 = vmatmul.mubr.bf16.gmra.mxu0 %v947
      %v2121 = vpop.f32.mrf.mxu0
      %v2122 = vadd.f32 %v1833, %v2121
      %v2123 = vpop.f32.mrf.mxu0
      %v2124 = vpop.f32.mrf.mxu0
      %v2125 = vadd.f32 %v1836, %v2124
      %v2126 = vpop.f32.mrf.mxu0
      %2127 = vmatprep.mubr.bf16.mxu0 %v461
      %2128 = vmatmul.mubr.bf16.gmra.mxu0 %v949
      %v2129 = vpop.f32.mrf.mxu0
      %v2130 = vadd.f32 %v1841, %v2129
      %v2131 = vpop.f32.mrf.mxu0
      %v2132 = vpop.f32.mrf.mxu0
      %v2133 = vadd.f32 %v1844, %v2132
      %v2134 = vpop.f32.mrf.mxu0
      %2135 = vmatprep.mubr.bf16.mxu0 %v462
      %2136 = vmatmul.mubr.bf16.gmra.mxu0 %v952
      %v2137 = vpop.f32.mrf.mxu0
      %v2138 = vadd.f32 %v1849, %v2137
      %v2139 = vpop.f32.mrf.mxu0
      %v2140 = vpop.f32.mrf.mxu0
      %v2141 = vadd.f32 %v1852, %v2140
      %v2142 = vpop.f32.mrf.mxu0
      %2143 = vmatprep.mubr.bf16.mxu0 %v463
      %2144 = vmatmul.mubr.bf16.gmra.mxu0 %v954
      %v2145 = vpop.f32.mrf.mxu0
      %v2146 = vadd.f32 %v1857, %v2145
      %v2147 = vpop.f32.mrf.mxu0
      %v2148 = vpop.f32.mrf.mxu0
      %v2149 = vadd.f32 %v1860, %v2148
      %v2150 = vpop.f32.mrf.mxu0
      %2151 = vmatprep.mubr.bf16.mxu0 %v464
      %2152 = vmatmul.mubr.bf16.gmra.mxu0 %v957
      %v2153 = vpop.f32.mrf.mxu0
      %v2154 = vadd.f32 %v1865, %v2153
      %v2155 = vpop.f32.mrf.mxu0
      %v2156 = vpop.f32.mrf.mxu0
      %v2157 = vadd.f32 %v1868, %v2156
      %v2158 = vpop.f32.mrf.mxu0
      %2159 = vmatprep.mubr.bf16.mxu0 %v465
      %2160 = vmatmul.mubr.bf16.gmra.mxu0 %v959
      %v2161 = vpop.f32.mrf.mxu0
      %v2162 = vadd.f32 %v1873, %v2161
      %v2163 = vpop.f32.mrf.mxu0
      %v2164 = vpop.f32.mrf.mxu0
      %v2165 = vadd.f32 %v1876, %v2164
      %v2166 = vpop.f32.mrf.mxu0
      %2167 = vmatprep.mubr.bf16.mxu0 %v466
      %2168 = vmatmul.mubr.bf16.gmra.mxu0 %v962
      %v2169 = vpop.f32.mrf.mxu0
      %v2170 = vadd.f32 %v1881, %v2169
      %v2171 = vpop.f32.mrf.mxu0
      %v2172 = vpop.f32.mrf.mxu0
      %v2173 = vadd.f32 %v1884, %v2172
      %v2174 = vpop.f32.mrf.mxu0
      %2175 = vmatprep.mubr.bf16.mxu0 %v467
      %2176 = vmatmul.mubr.bf16.gmra.mxu0 %v964
      %v2177 = vpop.f32.mrf.mxu0
      %v2178 = vadd.f32 %v1889, %v2177
      %v2179 = vpop.f32.mrf.mxu0
      %v2180 = vpop.f32.mrf.mxu0
      %v2181 = vadd.f32 %v1892, %v2180
      %v2182 = vpop.f32.mrf.mxu0
      %2183 = vmatprep.mubr.bf16.mxu0 %v468
      %2184 = vmatmul.mubr.bf16.gmra.mxu0 %v967
      %v2185 = vpop.f32.mrf.mxu0
      %v2186 = vadd.f32 %v1897, %v2185
      %v2187 = vpop.f32.mrf.mxu0
      %v2188 = vpop.f32.mrf.mxu0
      %v2189 = vadd.f32 %v1900, %v2188
      %v2190 = vpop.f32.mrf.mxu0
      %2191 = vmatprep.mubr.bf16.mxu0 %v469
      %2192 = vmatmul.mubr.bf16.gmra.mxu0 %v969
      %v2193 = vpop.f32.mrf.mxu0
      %v2194 = vadd.f32 %v1905, %v2193
      %v2195 = vpop.f32.mrf.mxu0
      %v2196 = vpop.f32.mrf.mxu0
      %v2197 = vadd.f32 %v1908, %v2196
      %v2198 = vpop.f32.mrf.mxu0
      %2199 = vmatprep.mubr.bf16.mxu0 %v470
      %2200 = vmatmul.mubr.bf16.gmra.mxu0 %v972
      %v2201 = vpop.f32.mrf.mxu0
      %v2202 = vadd.f32 %v1913, %v2201
      %v2203 = vpop.f32.mrf.mxu0
      %v2204 = vpop.f32.mrf.mxu0
      %v2205 = vadd.f32 %v1916, %v2204
      %v2206 = vpop.f32.mrf.mxu0
      %2207 = vmatprep.mubr.bf16.mxu0 %v471
      %2208 = vmatmul.mubr.bf16.gmra.mxu0 %v974
      %v2209 = vpop.f32.mrf.mxu0
      %v2210 = vadd.f32 %v1921, %v2209
      %v2211 = vpop.f32.mrf.mxu0
      %v2212 = vpop.f32.mrf.mxu0
      %v2213 = vadd.f32 %v1924, %v2212
      %v2214 = vpop.f32.mrf.mxu0
      %2215 = vmatprep.mubr.bf16.mxu0 %v472
      %2216 = vmatmul.mubr.bf16.gmra.mxu0 %v977
      %v2217 = vpop.f32.mrf.mxu0
      %v2218 = vadd.f32 %v1929, %v2217
      %v2219 = vpop.f32.mrf.mxu0
      %v2220 = vpop.f32.mrf.mxu0
      %v2221 = vadd.f32 %v1932, %v2220
      %v2222 = vpop.f32.mrf.mxu0
      %2223 = vmatprep.mubr.bf16.mxu0 %v473
      %2224 = vmatmul.mubr.bf16.gmra.mxu0 %v979
      %v2225 = vpop.f32.mrf.mxu0
      %v2226 = vadd.f32 %v1937, %v2225
      %v2227 = vpop.f32.mrf.mxu0
      %v2228 = vpop.f32.mrf.mxu0
      %v2229 = vadd.f32 %v1940, %v2228
      %v2230 = vpop.f32.mrf.mxu0
      %2231 = vmatprep.mubr.bf16.mxu0 %v474
      %2232 = vmatmul.mubr.bf16.gmra.mxu0 %v982
      %v2233 = vpop.f32.mrf.mxu0
      %v2234 = vadd.f32 %v1945, %v2233
      %v2235 = vpop.f32.mrf.mxu0
      %v2236 = vpop.f32.mrf.mxu0
      %v2237 = vadd.f32 %v1948, %v2236
      %v2238 = vpop.f32.mrf.mxu0
      %2239 = vmatprep.mubr.bf16.mxu0 %v475
      %2240 = vmatmul.mubr.bf16.gmra.mxu0 %v984
      %v2241 = vpop.f32.mrf.mxu0
      %v2242 = vadd.f32 %v1953, %v2241
      %v2243 = vpop.f32.mrf.mxu0
      %v2244 = vpop.f32.mrf.mxu0
      %v2245 = vadd.f32 %v1956, %v2244
      %v2246 = vpop.f32.mrf.mxu0
      %2247 = vmatprep.mubr.bf16.mxu0 %v1030
      %2248 = vmatmul.mubr.bf16.gmra.mxu0 %v987
      %v2249 = vpop.f32.mrf.mxu0
      %v2250 = vadd.f32 %v1961, %v2249
      %v2251 = vpop.f32.mrf.mxu0
      %v2252 = vpop.f32.mrf.mxu0
      %v2253 = vadd.f32 %v1964, %v2252
      %v2254 = vpop.f32.mrf.mxu0
      %2255 = vmatprep.mubr.bf16.mxu0 %v1031
      %2256 = vmatmul.mubr.bf16.gmra.mxu0 %v989
      %v2257 = vpop.f32.mrf.mxu0
      %v2258 = vadd.f32 %v1969, %v2257
      %v2259 = vpop.f32.mrf.mxu0
      %v2260 = vpop.f32.mrf.mxu0
      %v2261 = vadd.f32 %v1972, %v2260
      %v2262 = vpop.f32.mrf.mxu0
      %2263 = vdwg.mxu0
      %2264 = vmatprep.subr.bf16.mxu0 0
      %2265 = vmatpush1.bf16.msra.mxu0 %v1581
      %2266 = vmatprep.subr.bf16.mxu0 0
      %2267 = vmatpush1.bf16.msra.mxu0 %v1580
      %2268 = vmatprep.subr.bf16.mxu0 0
      %2269 = vmatpush1.bf16.msra.mxu0 %v1579
      %2270 = vmatprep.subr.bf16.mxu0 0
      %2271 = vmatpush1.bf16.msra.mxu0 %v1578
      %2272 = vmatprep.subr.bf16.mxu0 0
      %2273 = vmatpush1.bf16.msra.mxu0 %v1577
      %2274 = vmatprep.subr.bf16.mxu0 0
      %2275 = vmatpush1.bf16.msra.mxu0 %v1576
      %2276 = vmatprep.subr.bf16.mxu0 0
      %2277 = vmatpush1.bf16.msra.mxu0 %v1575
      %2278 = vmatprep.subr.bf16.mxu0 0
      %2279 = vmatpush1.bf16.msra.mxu0 %v1574
      %2280 = vmatprep.subr.bf16.mxu0 0
      %2281 = vmatpush2.bf16.msra.mxu0 %v1589
      %2282 = vmatprep.subr.bf16.mxu0 0
      %2283 = vmatpush2.bf16.msra.mxu0 %v1588
      %2284 = vmatprep.subr.bf16.mxu0 0
      %2285 = vmatpush2.bf16.msra.mxu0 %v1587
      %2286 = vmatprep.subr.bf16.mxu0 0
      %2287 = vmatpush2.bf16.msra.mxu0 %v1586
      %2288 = vmatprep.subr.bf16.mxu0 0
      %2289 = vmatpush2.bf16.msra.mxu0 %v1585
      %2290 = vmatprep.subr.bf16.mxu0 0
      %2291 = vmatpush2.bf16.msra.mxu0 %v1584
      %2292 = vmatprep.subr.bf16.mxu0 0
      %2293 = vmatpush2.bf16.msra.mxu0 %v1583
      %2294 = vmatprep.subr.bf16.mxu0 0
      %2295 = vmatpush2.bf16.msra.mxu0 %v1582
      %2296 = vmatprep.mubr.bf16.mxu0 %v917
      %2297 = vmatmul.mubr.bf16.gmra.mxu0 %v588
      %v2298 = vpop.f32.mrf.mxu0
      %v2299 = vadd.f32 %v2010, %v2298
      %v2300 = vpop.f32.mrf.mxu0
      %v2301 = vpop.f32.mrf.mxu0
      %v2302 = vadd.f32 %v2013, %v2301
      %v2303 = vpop.f32.mrf.mxu0
      %2304 = vmatprep.mubr.bf16.mxu0 %v919
      %2305 = vmatmul.mubr.bf16.gmra.mxu0 %v596
      %v2306 = vpop.f32.mrf.mxu0
      %v2307 = vadd.f32 %v2018, %v2306
      %v2308 = vpop.f32.mrf.mxu0
      %v2309 = vpop.f32.mrf.mxu0
      %v2310 = vadd.f32 %v2021, %v2309
      %v2311 = vpop.f32.mrf.mxu0
      %2312 = vmatprep.mubr.bf16.mxu0 %v922
      %2313 = vmatmul.mubr.bf16.gmra.mxu0 %v608
      %v2314 = vpop.f32.mrf.mxu0
      %v2315 = vadd.f32 %v2026, %v2314
      %v2316 = vpop.f32.mrf.mxu0
      %v2317 = vpop.f32.mrf.mxu0
      %v2318 = vadd.f32 %v2029, %v2317
      %v2319 = vpop.f32.mrf.mxu0
      %2320 = vmatprep.mubr.bf16.mxu0 %v924
      %2321 = vmatmul.mubr.bf16.gmra.mxu0 %v616
      %v2322 = vpop.f32.mrf.mxu0
      %v2323 = vadd.f32 %v2034, %v2322
      %v2324 = vpop.f32.mrf.mxu0
      %v2325 = vpop.f32.mrf.mxu0
      %v2326 = vadd.f32 %v2037, %v2325
      %v2327 = vpop.f32.mrf.mxu0
      %2328 = vmatprep.mubr.bf16.mxu0 %v927
      %2329 = vmatmul.mubr.bf16.gmra.mxu0 %v628
      %v2330 = vpop.f32.mrf.mxu0
      %v2331 = vadd.f32 %v2042, %v2330
      %v2332 = vpop.f32.mrf.mxu0
      %v2333 = vpop.f32.mrf.mxu0
      %v2334 = vadd.f32 %v2045, %v2333
      %v2335 = vpop.f32.mrf.mxu0
      %2336 = vmatprep.mubr.bf16.mxu0 %v929
      %2337 = vmatmul.mubr.bf16.gmra.mxu0 %v636
      %v2338 = vpop.f32.mrf.mxu0
      %v2339 = vadd.f32 %v2050, %v2338
      %v2340 = vpop.f32.mrf.mxu0
      %v2341 = vpop.f32.mrf.mxu0
      %v2342 = vadd.f32 %v2053, %v2341
      %v2343 = vpop.f32.mrf.mxu0
      %2344 = vmatprep.mubr.bf16.mxu0 %v932
      %2345 = vmatmul.mubr.bf16.gmra.mxu0 %v648
      %v2346 = vpop.f32.mrf.mxu0
      %v2347 = vadd.f32 %v2058, %v2346
      %v2348 = vpop.f32.mrf.mxu0
      %v2349 = vpop.f32.mrf.mxu0
      %v2350 = vadd.f32 %v2061, %v2349
      %v2351 = vpop.f32.mrf.mxu0
      %2352 = vmatprep.mubr.bf16.mxu0 %v934
      %2353 = vmatmul.mubr.bf16.gmra.mxu0 %v656
      %v2354 = vpop.f32.mrf.mxu0
      %v2355 = vadd.f32 %v2066, %v2354
      %v2356 = vpop.f32.mrf.mxu0
      %v2357 = vpop.f32.mrf.mxu0
      %v2358 = vadd.f32 %v2069, %v2357
      %v2359 = vpop.f32.mrf.mxu0
      %2360 = vmatprep.mubr.bf16.mxu0 %v937
      %2361 = vmatmul.mubr.bf16.gmra.mxu0 %v668
      %v2362 = vpop.f32.mrf.mxu0
      %v2363 = vadd.f32 %v2074, %v2362
      %v2364 = vpop.f32.mrf.mxu0
      %v2365 = vpop.f32.mrf.mxu0
      %v2366 = vadd.f32 %v2077, %v2365
      %v2367 = vpop.f32.mrf.mxu0
      %2368 = vmatprep.mubr.bf16.mxu0 %v939
      %2369 = vmatmul.mubr.bf16.gmra.mxu0 %v676
      %v2370 = vpop.f32.mrf.mxu0
      %v2371 = vadd.f32 %v2082, %v2370
      %v2372 = vpop.f32.mrf.mxu0
      %v2373 = vpop.f32.mrf.mxu0
      %v2374 = vadd.f32 %v2085, %v2373
      %v2375 = vpop.f32.mrf.mxu0
      %2376 = vmatprep.mubr.bf16.mxu0 %v942
      %2377 = vmatmul.mubr.bf16.gmra.mxu0 %v688
      %v2378 = vpop.f32.mrf.mxu0
      %v2379 = vadd.f32 %v2090, %v2378
      %v2380 = vpop.f32.mrf.mxu0
      %v2381 = vpop.f32.mrf.mxu0
      %v2382 = vadd.f32 %v2093, %v2381
      %v2383 = vpop.f32.mrf.mxu0
      %2384 = vmatprep.mubr.bf16.mxu0 %v944
      %2385 = vmatmul.mubr.bf16.gmra.mxu0 %v696
      %v2386 = vpop.f32.mrf.mxu0
      %v2387 = vadd.f32 %v2098, %v2386
      %v2388 = vpop.f32.mrf.mxu0
      %v2389 = vpop.f32.mrf.mxu0
      %v2390 = vadd.f32 %v2101, %v2389
      %v2391 = vpop.f32.mrf.mxu0
      %2392 = vmatprep.mubr.bf16.mxu0 %v947
      %2393 = vmatmul.mubr.bf16.gmra.mxu0 %v708
      %v2394 = vpop.f32.mrf.mxu0
      %v2395 = vadd.f32 %v2106, %v2394
      %v2396 = vpop.f32.mrf.mxu0
      %v2397 = vpop.f32.mrf.mxu0
      %v2398 = vadd.f32 %v2109, %v2397
      %v2399 = vpop.f32.mrf.mxu0
      %2400 = vmatprep.mubr.bf16.mxu0 %v949
      %2401 = vmatmul.mubr.bf16.gmra.mxu0 %v716
      %v2402 = vpop.f32.mrf.mxu0
      %v2403 = vadd.f32 %v2114, %v2402
      %v2404 = vpop.f32.mrf.mxu0
      %v2405 = vpop.f32.mrf.mxu0
      %v2406 = vadd.f32 %v2117, %v2405
      %v2407 = vpop.f32.mrf.mxu0
      %2408 = vmatprep.mubr.bf16.mxu0 %v952
      %2409 = vmatmul.mubr.bf16.gmra.mxu0 %v728
      %v2410 = vpop.f32.mrf.mxu0
      %v2411 = vadd.f32 %v2122, %v2410
      %v2412 = vpop.f32.mrf.mxu0
      %v2413 = vpop.f32.mrf.mxu0
      %v2414 = vadd.f32 %v2125, %v2413
      %v2415 = vpop.f32.mrf.mxu0
      %2416 = vmatprep.mubr.bf16.mxu0 %v954
      %2417 = vmatmul.mubr.bf16.gmra.mxu0 %v736
      %v2418 = vpop.f32.mrf.mxu0
      %v2419 = vadd.f32 %v2130, %v2418
      %v2420 = vpop.f32.mrf.mxu0
      %v2421 = vpop.f32.mrf.mxu0
      %v2422 = vadd.f32 %v2133, %v2421
      %v2423 = vpop.f32.mrf.mxu0
      %2424 = vmatprep.mubr.bf16.mxu0 %v957
      %2425 = vmatmul.mubr.bf16.gmra.mxu0 %v748
      %v2426 = vpop.f32.mrf.mxu0
      %v2427 = vadd.f32 %v2138, %v2426
      %v2428 = vpop.f32.mrf.mxu0
      %v2429 = vpop.f32.mrf.mxu0
      %v2430 = vadd.f32 %v2141, %v2429
      %v2431 = vpop.f32.mrf.mxu0
      %2432 = vmatprep.mubr.bf16.mxu0 %v959
      %2433 = vmatmul.mubr.bf16.gmra.mxu0 %v756
      %v2434 = vpop.f32.mrf.mxu0
      %v2435 = vadd.f32 %v2146, %v2434
      %v2436 = vpop.f32.mrf.mxu0
      %v2437 = vpop.f32.mrf.mxu0
      %v2438 = vadd.f32 %v2149, %v2437
      %v2439 = vpop.f32.mrf.mxu0
      %2440 = vmatprep.mubr.bf16.mxu0 %v962
      %2441 = vmatmul.mubr.bf16.gmra.mxu0 %v768
      %v2442 = vpop.f32.mrf.mxu0
      %v2443 = vadd.f32 %v2154, %v2442
      %v2444 = vpop.f32.mrf.mxu0
      %v2445 = vpop.f32.mrf.mxu0
      %v2446 = vadd.f32 %v2157, %v2445
      %v2447 = vpop.f32.mrf.mxu0
      %2448 = vmatprep.mubr.bf16.mxu0 %v964
      %2449 = vmatmul.mubr.bf16.gmra.mxu0 %v776
      %v2450 = vpop.f32.mrf.mxu0
      %v2451 = vadd.f32 %v2162, %v2450
      %v2452 = vpop.f32.mrf.mxu0
      %v2453 = vpop.f32.mrf.mxu0
      %v2454 = vadd.f32 %v2165, %v2453
      %v2455 = vpop.f32.mrf.mxu0
      %2456 = vmatprep.mubr.bf16.mxu0 %v967
      %2457 = vmatmul.mubr.bf16.gmra.mxu0 %v788
      %v2458 = vpop.f32.mrf.mxu0
      %v2459 = vadd.f32 %v2170, %v2458
      %v2460 = vpop.f32.mrf.mxu0
      %v2461 = vpop.f32.mrf.mxu0
      %v2462 = vadd.f32 %v2173, %v2461
      %v2463 = vpop.f32.mrf.mxu0
      %2464 = vmatprep.mubr.bf16.mxu0 %v969
      %2465 = vmatmul.mubr.bf16.gmra.mxu0 %v796
      %v2466 = vpop.f32.mrf.mxu0
      %v2467 = vadd.f32 %v2178, %v2466
      %v2468 = vpop.f32.mrf.mxu0
      %v2469 = vpop.f32.mrf.mxu0
      %v2470 = vadd.f32 %v2181, %v2469
      %v2471 = vpop.f32.mrf.mxu0
      %2472 = vmatprep.mubr.bf16.mxu0 %v972
      %2473 = vmatmul.mubr.bf16.gmra.mxu0 %v808
      %v2474 = vpop.f32.mrf.mxu0
      %v2475 = vadd.f32 %v2186, %v2474
      %v2476 = vpop.f32.mrf.mxu0
      %v2477 = vpop.f32.mrf.mxu0
      %v2478 = vadd.f32 %v2189, %v2477
      %v2479 = vpop.f32.mrf.mxu0
      %2480 = vmatprep.mubr.bf16.mxu0 %v974
      %2481 = vmatmul.mubr.bf16.gmra.mxu0 %v816
      %v2482 = vpop.f32.mrf.mxu0
      %v2483 = vadd.f32 %v2194, %v2482
      %v2484 = vpop.f32.mrf.mxu0
      %v2485 = vpop.f32.mrf.mxu0
      %v2486 = vadd.f32 %v2197, %v2485
      %v2487 = vpop.f32.mrf.mxu0
      %2488 = vmatprep.mubr.bf16.mxu0 %v977
      %2489 = vmatmul.mubr.bf16.gmra.mxu0 %v828
      %v2490 = vpop.f32.mrf.mxu0
      %v2491 = vadd.f32 %v2202, %v2490
      %v2492 = vpop.f32.mrf.mxu0
      %v2493 = vpop.f32.mrf.mxu0
      %v2494 = vadd.f32 %v2205, %v2493
      %v2495 = vpop.f32.mrf.mxu0
      %2496 = vmatprep.mubr.bf16.mxu0 %v979
      %2497 = vmatmul.mubr.bf16.gmra.mxu0 %v836
      %v2498 = vpop.f32.mrf.mxu0
      %v2499 = vadd.f32 %v2210, %v2498
      %v2500 = vpop.f32.mrf.mxu0
      %v2501 = vpop.f32.mrf.mxu0
      %v2502 = vadd.f32 %v2213, %v2501
      %v2503 = vpop.f32.mrf.mxu0
      %2504 = vmatprep.mubr.bf16.mxu0 %v982
      %2505 = vmatmul.mubr.bf16.gmra.mxu0 %v848
      %v2506 = vpop.f32.mrf.mxu0
      %v2507 = vadd.f32 %v2218, %v2506
      %v2508 = vpop.f32.mrf.mxu0
      %v2509 = vpop.f32.mrf.mxu0
      %v2510 = vadd.f32 %v2221, %v2509
      %v2511 = vpop.f32.mrf.mxu0
      %2512 = vmatprep.mubr.bf16.mxu0 %v984
      %2513 = vmatmul.mubr.bf16.gmra.mxu0 %v856
      %v2514 = vpop.f32.mrf.mxu0
      %v2515 = vadd.f32 %v2226, %v2514
      %v2516 = vpop.f32.mrf.mxu0
      %v2517 = vpop.f32.mrf.mxu0
      %v2518 = vadd.f32 %v2229, %v2517
      %v2519 = vpop.f32.mrf.mxu0
      %2520 = vmatprep.mubr.bf16.mxu0 %v987
      %2521 = vmatmul.mubr.bf16.gmra.mxu0 %v868
      %v2522 = vpop.f32.mrf.mxu0
      %v2523 = vadd.f32 %v2234, %v2522
      %v2524 = vpop.f32.mrf.mxu0
      %v2525 = vpop.f32.mrf.mxu0
      %v2526 = vadd.f32 %v2237, %v2525
      %v2527 = vpop.f32.mrf.mxu0
      %2528 = vmatprep.mubr.bf16.mxu0 %v989
      %2529 = vmatmul.mubr.bf16.gmra.mxu0 %v876
      %v2530 = vpop.f32.mrf.mxu0
      %v2531 = vadd.f32 %v2242, %v2530
      %v2532 = vpop.f32.mrf.mxu0
      %v2533 = vpop.f32.mrf.mxu0
      %v2534 = vadd.f32 %v2245, %v2533
      %v2535 = vpop.f32.mrf.mxu0
      %2536 = vmatprep.mubr.bf16.mxu0 %v1061
      %2537 = vmatmul.mubr.bf16.gmra.mxu0 %v1048
      %v2538 = vpop.f32.mrf.mxu0
      %v2539 = vadd.f32 %v2250, %v2538
      %v2540 = vpop.f32.mrf.mxu0
      %v2541 = vpop.f32.mrf.mxu0
      %v2542 = vadd.f32 %v2253, %v2541
      %v2543 = vpop.f32.mrf.mxu0
      %2544 = vmatprep.mubr.bf16.mxu0 %v1063
      %2545 = vmatmul.mubr.bf16.gmra.mxu0 %v1056
      %v2546 = vpop.f32.mrf.mxu0
      %v2547 = vadd.f32 %v2258, %v2546
      %v2548 = vpop.f32.mrf.mxu0
      %v2549 = vpop.f32.mrf.mxu0
      %v2550 = vadd.f32 %v2261, %v2549
      %v2551 = vpop.f32.mrf.mxu0
      %2552 = vdwg.mxu0
      %2553 = vmatprep.subr.bf16.mxu0 0
      %2554 = vmatpush1.bf16.msra.mxu0 %v1597
      %2555 = vmatprep.subr.bf16.mxu0 0
      %2556 = vmatpush1.bf16.msra.mxu0 %v1596
      %2557 = vmatprep.subr.bf16.mxu0 0
      %2558 = vmatpush1.bf16.msra.mxu0 %v1595
      %2559 = vmatprep.subr.bf16.mxu0 0
      %2560 = vmatpush1.bf16.msra.mxu0 %v1594
      %2561 = vmatprep.subr.bf16.mxu0 0
      %2562 = vmatpush1.bf16.msra.mxu0 %v1593
      %2563 = vmatprep.subr.bf16.mxu0 0
      %2564 = vmatpush1.bf16.msra.mxu0 %v1592
      %2565 = vmatprep.subr.bf16.mxu0 0
      %2566 = vmatpush1.bf16.msra.mxu0 %v1591
      %2567 = vmatprep.subr.bf16.mxu0 0
      %2568 = vmatpush1.bf16.msra.mxu0 %v1590
      %2569 = vmatprep.subr.bf16.mxu0 0
      %2570 = vmatpush2.bf16.msra.mxu0 %v1605
      %2571 = vmatprep.subr.bf16.mxu0 0
      %2572 = vmatpush2.bf16.msra.mxu0 %v1604
      %2573 = vmatprep.subr.bf16.mxu0 0
      %2574 = vmatpush2.bf16.msra.mxu0 %v1603
      %2575 = vmatprep.subr.bf16.mxu0 0
      %2576 = vmatpush2.bf16.msra.mxu0 %v1602
      %2577 = vmatprep.subr.bf16.mxu0 0
      %2578 = vmatpush2.bf16.msra.mxu0 %v1601
      %2579 = vmatprep.subr.bf16.mxu0 0
      %2580 = vmatpush2.bf16.msra.mxu0 %v1600
      %2581 = vmatprep.subr.bf16.mxu0 0
      %2582 = vmatpush2.bf16.msra.mxu0 %v1599
      %2583 = vmatprep.subr.bf16.mxu0 0
      %2584 = vmatpush2.bf16.msra.mxu0 %v1598
      %2585 = vmatprep.mubr.bf16.mxu0 %v608
      %2586 = vmatmul.mubr.bf16.gmra.mxu0 %v448
      %v2587 = vpop.f32.mrf.mxu0
      %v2588 = vadd.f32 %v2299, %v2587
      %v2589 = vpop.f32.mrf.mxu0
      %v2590 = vpop.f32.mrf.mxu0
      %v2591 = vadd.f32 %v2302, %v2590
      %v2592 = vpop.f32.mrf.mxu0
      %2593 = vmatprep.mubr.bf16.mxu0 %v616
      %2594 = vmatmul.mubr.bf16.gmra.mxu0 %v449
      %v2595 = vpop.f32.mrf.mxu0
      %v2596 = vadd.f32 %v2307, %v2595
      %v2597 = vpop.f32.mrf.mxu0
      %v2598 = vpop.f32.mrf.mxu0
      %v2599 = vadd.f32 %v2310, %v2598
      %v2600 = vpop.f32.mrf.mxu0
      %2601 = vmatprep.mubr.bf16.mxu0 %v628
      %2602 = vmatmul.mubr.bf16.gmra.mxu0 %v450
      %v2603 = vpop.f32.mrf.mxu0
      %v2604 = vadd.f32 %v2315, %v2603
      %v2605 = vpop.f32.mrf.mxu0
      %v2606 = vpop.f32.mrf.mxu0
      %v2607 = vadd.f32 %v2318, %v2606
      %v2608 = vpop.f32.mrf.mxu0
      %2609 = vmatprep.mubr.bf16.mxu0 %v636
      %2610 = vmatmul.mubr.bf16.gmra.mxu0 %v451
      %v2611 = vpop.f32.mrf.mxu0
      %v2612 = vadd.f32 %v2323, %v2611
      %v2613 = vpop.f32.mrf.mxu0
      %v2614 = vpop.f32.mrf.mxu0
      %v2615 = vadd.f32 %v2326, %v2614
      %v2616 = vpop.f32.mrf.mxu0
      %2617 = vmatprep.mubr.bf16.mxu0 %v648
      %2618 = vmatmul.mubr.bf16.gmra.mxu0 %v452
      %v2619 = vpop.f32.mrf.mxu0
      %v2620 = vadd.f32 %v2331, %v2619
      %v2621 = vpop.f32.mrf.mxu0
      %v2622 = vpop.f32.mrf.mxu0
      %v2623 = vadd.f32 %v2334, %v2622
      %v2624 = vpop.f32.mrf.mxu0
      %2625 = vmatprep.mubr.bf16.mxu0 %v656
      %2626 = vmatmul.mubr.bf16.gmra.mxu0 %v453
      %v2627 = vpop.f32.mrf.mxu0
      %v2628 = vadd.f32 %v2339, %v2627
      %v2629 = vpop.f32.mrf.mxu0
      %v2630 = vpop.f32.mrf.mxu0
      %v2631 = vadd.f32 %v2342, %v2630
      %v2632 = vpop.f32.mrf.mxu0
      %2633 = vmatprep.mubr.bf16.mxu0 %v668
      %2634 = vmatmul.mubr.bf16.gmra.mxu0 %v454
      %v2635 = vpop.f32.mrf.mxu0
      %v2636 = vadd.f32 %v2347, %v2635
      %v2637 = vpop.f32.mrf.mxu0
      %v2638 = vpop.f32.mrf.mxu0
      %v2639 = vadd.f32 %v2350, %v2638
      %v2640 = vpop.f32.mrf.mxu0
      %2641 = vmatprep.mubr.bf16.mxu0 %v676
      %2642 = vmatmul.mubr.bf16.gmra.mxu0 %v455
      %v2643 = vpop.f32.mrf.mxu0
      %v2644 = vadd.f32 %v2355, %v2643
      %v2645 = vpop.f32.mrf.mxu0
      %v2646 = vpop.f32.mrf.mxu0
      %v2647 = vadd.f32 %v2358, %v2646
      %v2648 = vpop.f32.mrf.mxu0
      %2649 = vmatprep.mubr.bf16.mxu0 %v688
      %2650 = vmatmul.mubr.bf16.gmra.mxu0 %v456
      %v2651 = vpop.f32.mrf.mxu0
      %v2652 = vadd.f32 %v2363, %v2651
      %v2653 = vpop.f32.mrf.mxu0
      %v2654 = vpop.f32.mrf.mxu0
      %v2655 = vadd.f32 %v2366, %v2654
      %v2656 = vpop.f32.mrf.mxu0
      %2657 = vmatprep.mubr.bf16.mxu0 %v696
      %2658 = vmatmul.mubr.bf16.gmra.mxu0 %v457
      %v2659 = vpop.f32.mrf.mxu0
      %v2660 = vadd.f32 %v2371, %v2659
      %v2661 = vpop.f32.mrf.mxu0
      %v2662 = vpop.f32.mrf.mxu0
      %v2663 = vadd.f32 %v2374, %v2662
      %v2664 = vpop.f32.mrf.mxu0
      %2665 = vmatprep.mubr.bf16.mxu0 %v708
      %2666 = vmatmul.mubr.bf16.gmra.mxu0 %v458
      %v2667 = vpop.f32.mrf.mxu0
      %v2668 = vadd.f32 %v2379, %v2667
      %v2669 = vpop.f32.mrf.mxu0
      %v2670 = vpop.f32.mrf.mxu0
      %v2671 = vadd.f32 %v2382, %v2670
      %v2672 = vpop.f32.mrf.mxu0
      %2673 = vmatprep.mubr.bf16.mxu0 %v716
      %2674 = vmatmul.mubr.bf16.gmra.mxu0 %v459
      %v2675 = vpop.f32.mrf.mxu0
      %v2676 = vadd.f32 %v2387, %v2675
      %v2677 = vpop.f32.mrf.mxu0
      %v2678 = vpop.f32.mrf.mxu0
      %v2679 = vadd.f32 %v2390, %v2678
      %v2680 = vpop.f32.mrf.mxu0
      %2681 = vmatprep.mubr.bf16.mxu0 %v728
      %2682 = vmatmul.mubr.bf16.gmra.mxu0 %v460
      %v2683 = vpop.f32.mrf.mxu0
      %v2684 = vadd.f32 %v2395, %v2683
      %v2685 = vpop.f32.mrf.mxu0
      %v2686 = vpop.f32.mrf.mxu0
      %v2687 = vadd.f32 %v2398, %v2686
      %v2688 = vpop.f32.mrf.mxu0
      %2689 = vmatprep.mubr.bf16.mxu0 %v736
      %2690 = vmatmul.mubr.bf16.gmra.mxu0 %v461
      %v2691 = vpop.f32.mrf.mxu0
      %v2692 = vadd.f32 %v2403, %v2691
      %v2693 = vpop.f32.mrf.mxu0
      %v2694 = vpop.f32.mrf.mxu0
      %v2695 = vadd.f32 %v2406, %v2694
      %v2696 = vpop.f32.mrf.mxu0
      %2697 = vmatprep.mubr.bf16.mxu0 %v748
      %2698 = vmatmul.mubr.bf16.gmra.mxu0 %v462
      %v2699 = vpop.f32.mrf.mxu0
      %v2700 = vadd.f32 %v2411, %v2699
      %v2701 = vpop.f32.mrf.mxu0
      %v2702 = vpop.f32.mrf.mxu0
      %v2703 = vadd.f32 %v2414, %v2702
      %v2704 = vpop.f32.mrf.mxu0
      %2705 = vmatprep.mubr.bf16.mxu0 %v756
      %2706 = vmatmul.mubr.bf16.gmra.mxu0 %v463
      %v2707 = vpop.f32.mrf.mxu0
      %v2708 = vadd.f32 %v2419, %v2707
      %v2709 = vpop.f32.mrf.mxu0
      %v2710 = vpop.f32.mrf.mxu0
      %v2711 = vadd.f32 %v2422, %v2710
      %v2712 = vpop.f32.mrf.mxu0
      %2713 = vmatprep.mubr.bf16.mxu0 %v768
      %2714 = vmatmul.mubr.bf16.gmra.mxu0 %v464
      %v2715 = vpop.f32.mrf.mxu0
      %v2716 = vadd.f32 %v2427, %v2715
      %v2717 = vpop.f32.mrf.mxu0
      %v2718 = vpop.f32.mrf.mxu0
      %v2719 = vadd.f32 %v2430, %v2718
      %v2720 = vpop.f32.mrf.mxu0
      %2721 = vmatprep.mubr.bf16.mxu0 %v776
      %2722 = vmatmul.mubr.bf16.gmra.mxu0 %v465
      %v2723 = vpop.f32.mrf.mxu0
      %v2724 = vadd.f32 %v2435, %v2723
      %v2725 = vpop.f32.mrf.mxu0
      %v2726 = vpop.f32.mrf.mxu0
      %v2727 = vadd.f32 %v2438, %v2726
      %v2728 = vpop.f32.mrf.mxu0
      %2729 = vmatprep.mubr.bf16.mxu0 %v788
      %2730 = vmatmul.mubr.bf16.gmra.mxu0 %v466
      %v2731 = vpop.f32.mrf.mxu0
      %v2732 = vadd.f32 %v2443, %v2731
      %v2733 = vpop.f32.mrf.mxu0
      %v2734 = vpop.f32.mrf.mxu0
      %v2735 = vadd.f32 %v2446, %v2734
      %v2736 = vpop.f32.mrf.mxu0
      %2737 = vmatprep.mubr.bf16.mxu0 %v796
      %2738 = vmatmul.mubr.bf16.gmra.mxu0 %v467
      %v2739 = vpop.f32.mrf.mxu0
      %v2740 = vadd.f32 %v2451, %v2739
      %v2741 = vpop.f32.mrf.mxu0
      %v2742 = vpop.f32.mrf.mxu0
      %v2743 = vadd.f32 %v2454, %v2742
      %v2744 = vpop.f32.mrf.mxu0
      %2745 = vmatprep.mubr.bf16.mxu0 %v808
      %2746 = vmatmul.mubr.bf16.gmra.mxu0 %v468
      %v2747 = vpop.f32.mrf.mxu0
      %v2748 = vadd.f32 %v2459, %v2747
      %v2749 = vpop.f32.mrf.mxu0
      %v2750 = vpop.f32.mrf.mxu0
      %v2751 = vadd.f32 %v2462, %v2750
      %v2752 = vpop.f32.mrf.mxu0
      %2753 = vmatprep.mubr.bf16.mxu0 %v816
      %2754 = vmatmul.mubr.bf16.gmra.mxu0 %v469
      %v2755 = vpop.f32.mrf.mxu0
      %v2756 = vadd.f32 %v2467, %v2755
      %v2757 = vpop.f32.mrf.mxu0
      %v2758 = vpop.f32.mrf.mxu0
      %v2759 = vadd.f32 %v2470, %v2758
      %v2760 = vpop.f32.mrf.mxu0
      %2761 = vmatprep.mubr.bf16.mxu0 %v828
      %2762 = vmatmul.mubr.bf16.gmra.mxu0 %v470
      %v2763 = vpop.f32.mrf.mxu0
      %v2764 = vadd.f32 %v2475, %v2763
      %v2765 = vpop.f32.mrf.mxu0
      %v2766 = vpop.f32.mrf.mxu0
      %v2767 = vadd.f32 %v2478, %v2766
      %v2768 = vpop.f32.mrf.mxu0
      %2769 = vmatprep.mubr.bf16.mxu0 %v836
      %2770 = vmatmul.mubr.bf16.gmra.mxu0 %v471
      %v2771 = vpop.f32.mrf.mxu0
      %v2772 = vadd.f32 %v2483, %v2771
      %v2773 = vpop.f32.mrf.mxu0
      %v2774 = vpop.f32.mrf.mxu0
      %v2775 = vadd.f32 %v2486, %v2774
      %v2776 = vpop.f32.mrf.mxu0
      %2777 = vmatprep.mubr.bf16.mxu0 %v848
      %2778 = vmatmul.mubr.bf16.gmra.mxu0 %v472
      %v2779 = vpop.f32.mrf.mxu0
      %v2780 = vadd.f32 %v2491, %v2779
      %v2781 = vpop.f32.mrf.mxu0
      %v2782 = vpop.f32.mrf.mxu0
      %v2783 = vadd.f32 %v2494, %v2782
      %v2784 = vpop.f32.mrf.mxu0
      %2785 = vmatprep.mubr.bf16.mxu0 %v856
      %2786 = vmatmul.mubr.bf16.gmra.mxu0 %v473
      %v2787 = vpop.f32.mrf.mxu0
      %v2788 = vadd.f32 %v2499, %v2787
      %v2789 = vpop.f32.mrf.mxu0
      %v2790 = vpop.f32.mrf.mxu0
      %v2791 = vadd.f32 %v2502, %v2790
      %v2792 = vpop.f32.mrf.mxu0
      %2793 = vmatprep.mubr.bf16.mxu0 %v868
      %2794 = vmatmul.mubr.bf16.gmra.mxu0 %v474
      %v2795 = vpop.f32.mrf.mxu0
      %v2796 = vadd.f32 %v2507, %v2795
      %v2797 = vpop.f32.mrf.mxu0
      %v2798 = vpop.f32.mrf.mxu0
      %v2799 = vadd.f32 %v2510, %v2798
      %v2800 = vpop.f32.mrf.mxu0
      %2801 = vmatprep.mubr.bf16.mxu0 %v876
      %2802 = vmatmul.mubr.bf16.gmra.mxu0 %v475
      %v2803 = vpop.f32.mrf.mxu0
      %v2804 = vadd.f32 %v2515, %v2803
      %v2805 = vpop.f32.mrf.mxu0
      %v2806 = vpop.f32.mrf.mxu0
      %v2807 = vadd.f32 %v2518, %v2806
      %v2808 = vpop.f32.mrf.mxu0
      %2809 = vmatprep.mubr.bf16.mxu0 %v1048
      %2810 = vmatmul.mubr.bf16.gmra.mxu0 %v1030
      %v2811 = vpop.f32.mrf.mxu0
      %v2812 = vadd.f32 %v2523, %v2811
      %v2813 = vpop.f32.mrf.mxu0
      %v2814 = vpop.f32.mrf.mxu0
      %v2815 = vadd.f32 %v2526, %v2814
      %v2816 = vpop.f32.mrf.mxu0
      %2817 = vmatprep.mubr.bf16.mxu0 %v1056
      %2818 = vmatmul.mubr.bf16.gmra.mxu0 %v1031
      %v2819 = vpop.f32.mrf.mxu0
      %v2820 = vadd.f32 %v2531, %v2819
      %v2821 = vpop.f32.mrf.mxu0
      %v2822 = vpop.f32.mrf.mxu0
      %v2823 = vadd.f32 %v2534, %v2822
      %v2824 = vpop.f32.mrf.mxu0
      %2825 = vmatprep.mubr.bf16.mxu0 %v1092
      %2826 = vmatmul.mubr.bf16.gmra.mxu0 %v1074
      %v2827 = vpop.f32.mrf.mxu0
      %v2828 = vadd.f32 %v2539, %v2827
      %v2829 = vpop.f32.mrf.mxu0
      %v2830 = vpop.f32.mrf.mxu0
      %v2831 = vadd.f32 %v2542, %v2830
      %v2832 = vpop.f32.mrf.mxu0
      %2833 = vmatprep.mubr.bf16.mxu0 %v1100
      %2834 = vmatmul.mubr.bf16.gmra.mxu0 %v1075
      %v2835 = vpop.f32.mrf.mxu0
      %v2836 = vadd.f32 %v2547, %v2835
      %v2837 = vpop.f32.mrf.mxu0
      %v2838 = vpop.f32.mrf.mxu0
      %v2839 = vadd.f32 %v2550, %v2838
      %v2840 = vpop.f32.mrf.mxu0
      %2841 = vdwg.mxu0
      %2842 = vmatprep.subr.bf16.mxu0 0
      %2843 = vmatpush1.bf16.msra.mxu0 %v1613
      %2844 = vmatprep.subr.bf16.mxu0 0
      %2845 = vmatpush1.bf16.msra.mxu0 %v1612
      %2846 = vmatprep.subr.bf16.mxu0 0
      %2847 = vmatpush1.bf16.msra.mxu0 %v1611
      %2848 = vmatprep.subr.bf16.mxu0 0
      %2849 = vmatpush1.bf16.msra.mxu0 %v1610
      %2850 = vmatprep.subr.bf16.mxu0 0
      %2851 = vmatpush1.bf16.msra.mxu0 %v1609
      %2852 = vmatprep.subr.bf16.mxu0 0
      %2853 = vmatpush1.bf16.msra.mxu0 %v1608
      %2854 = vmatprep.subr.bf16.mxu0 0
      %2855 = vmatpush1.bf16.msra.mxu0 %v1607
      %2856 = vmatprep.subr.bf16.mxu0 0
      %2857 = vmatpush1.bf16.msra.mxu0 %v1606
      %2858 = vmatprep.subr.bf16.mxu0 0
      %2859 = vmatpush2.bf16.msra.mxu0 0
      %2860 = vmatprep.subr.bf16.mxu0 0
      %2861 = vmatpush2.bf16.msra.mxu0 0
      %2862 = vmatprep.subr.bf16.mxu0 0
      %2863 = vmatpush2.bf16.msra.mxu0 0
      %2864 = vmatprep.subr.bf16.mxu0 0
      %2865 = vmatpush2.bf16.msra.mxu0 0
      %2866 = vmatprep.subr.bf16.mxu0 0
      %2867 = vmatpush2.bf16.msra.mxu0 0
      %2868 = vmatprep.subr.bf16.mxu0 0
      %2869 = vmatpush2.bf16.msra.mxu0 0
      %2870 = vmatprep.subr.bf16.mxu0 0
      %2871 = vmatpush2.bf16.msra.mxu0 0
      %2872 = vmatprep.subr.bf16.mxu0 0
      %2873 = vmatpush2.bf16.msra.mxu0 0
      %2874 = vmatprep.mubr.bf16.mxu0 0
      %2875 = vmatmul.mubr.bf16.gmra.mxu0 %v922
      %v2876 = vpop.f32.mrf.mxu0
      %v2877 = vadd.f32 %v2588, %v2876
      %v2878 = vpop.f32.mrf.mxu0
      %v2879 = vpop.f32.mrf.mxu0
      %v2880 = vadd.f32 %v2591, %v2879
      %v2881 = vpop.f32.mrf.mxu0
      %2882 = vmatprep.mubr.bf16.mxu0 0
      %2883 = vmatmul.mubr.bf16.gmra.mxu0 %v924
      %v2884 = vpop.f32.mrf.mxu0
      %v2885 = vadd.f32 %v2596, %v2884
      %v2886 = vpop.f32.mrf.mxu0
      %v2887 = vpop.f32.mrf.mxu0
      %v2888 = vadd.f32 %v2599, %v2887
      %v2889 = vpop.f32.mrf.mxu0
      %2890 = vmatprep.mubr.bf16.mxu0 0
      %2891 = vmatmul.mubr.bf16.gmra.mxu0 %v927
      %v2892 = vpop.f32.mrf.mxu0
      %v2893 = vadd.f32 %v2604, %v2892
      %v2894 = vpop.f32.mrf.mxu0
      %v2895 = vpop.f32.mrf.mxu0
      %v2896 = vadd.f32 %v2607, %v2895
      %v2897 = vpop.f32.mrf.mxu0
      %2898 = vmatprep.mubr.bf16.mxu0 0
      %2899 = vmatmul.mubr.bf16.gmra.mxu0 %v929
      %v2900 = vpop.f32.mrf.mxu0
      %v2901 = vadd.f32 %v2612, %v2900
      %v2902 = vpop.f32.mrf.mxu0
      %v2903 = vpop.f32.mrf.mxu0
      %v2904 = vadd.f32 %v2615, %v2903
      %v2905 = vpop.f32.mrf.mxu0
      %2906 = vmatprep.mubr.bf16.mxu0 0
      %2907 = vmatmul.mubr.bf16.gmra.mxu0 %v932
      %v2908 = vpop.f32.mrf.mxu0
      %v2909 = vadd.f32 %v2620, %v2908
      %v2910 = vpop.f32.mrf.mxu0
      %v2911 = vpop.f32.mrf.mxu0
      %v2912 = vadd.f32 %v2623, %v2911
      %v2913 = vpop.f32.mrf.mxu0
      %2914 = vmatprep.mubr.bf16.mxu0 0
      %2915 = vmatmul.mubr.bf16.gmra.mxu0 %v934
      %v2916 = vpop.f32.mrf.mxu0
      %v2917 = vadd.f32 %v2628, %v2916
      %v2918 = vpop.f32.mrf.mxu0
      %v2919 = vpop.f32.mrf.mxu0
      %v2920 = vadd.f32 %v2631, %v2919
      %v2921 = vpop.f32.mrf.mxu0
      %2922 = vmatprep.mubr.bf16.mxu0 0
      %2923 = vmatmul.mubr.bf16.gmra.mxu0 %v937
      %v2924 = vpop.f32.mrf.mxu0
      %v2925 = vadd.f32 %v2636, %v2924
      %v2926 = vpop.f32.mrf.mxu0
      %v2927 = vpop.f32.mrf.mxu0
      %v2928 = vadd.f32 %v2639, %v2927
      %v2929 = vpop.f32.mrf.mxu0
      %2930 = vmatprep.mubr.bf16.mxu0 0
      %2931 = vmatmul.mubr.bf16.gmra.mxu0 %v939
      %v2932 = vpop.f32.mrf.mxu0
      %v2933 = vadd.f32 %v2644, %v2932
      %v2934 = vpop.f32.mrf.mxu0
      %v2935 = vpop.f32.mrf.mxu0
      %v2936 = vadd.f32 %v2647, %v2935
      %v2937 = vpop.f32.mrf.mxu0
      %2938 = vmatprep.mubr.bf16.mxu0 0
      %2939 = vmatmul.mubr.bf16.gmra.mxu0 %v942
      %v2940 = vpop.f32.mrf.mxu0
      %v2941 = vadd.f32 %v2652, %v2940
      %v2942 = vpop.f32.mrf.mxu0
      %v2943 = vpop.f32.mrf.mxu0
      %v2944 = vadd.f32 %v2655, %v2943
      %v2945 = vpop.f32.mrf.mxu0
      %2946 = vmatprep.mubr.bf16.mxu0 0
      %2947 = vmatmul.mubr.bf16.gmra.mxu0 %v944
      %v2948 = vpop.f32.mrf.mxu0
      %v2949 = vadd.f32 %v2660, %v2948
      %v2950 = vpop.f32.mrf.mxu0
      %v2951 = vpop.f32.mrf.mxu0
      %v2952 = vadd.f32 %v2663, %v2951
      %v2953 = vpop.f32.mrf.mxu0
      %2954 = vmatprep.mubr.bf16.mxu0 0
      %2955 = vmatmul.mubr.bf16.gmra.mxu0 %v947
      %v2956 = vpop.f32.mrf.mxu0
      %v2957 = vadd.f32 %v2668, %v2956
      %v2958 = vpop.f32.mrf.mxu0
      %v2959 = vpop.f32.mrf.mxu0
      %v2960 = vadd.f32 %v2671, %v2959
      %v2961 = vpop.f32.mrf.mxu0
      %2962 = vmatprep.mubr.bf16.mxu0 0
      %2963 = vmatmul.mubr.bf16.gmra.mxu0 %v949
      %v2964 = vpop.f32.mrf.mxu0
      %v2965 = vadd.f32 %v2676, %v2964
      %v2966 = vpop.f32.mrf.mxu0
      %v2967 = vpop.f32.mrf.mxu0
      %v2968 = vadd.f32 %v2679, %v2967
      %v2969 = vpop.f32.mrf.mxu0
      %2970 = vmatprep.mubr.bf16.mxu0 0
      %2971 = vmatmul.mubr.bf16.gmra.mxu0 %v952
      %v2972 = vpop.f32.mrf.mxu0
      %v2973 = vadd.f32 %v2684, %v2972
      %v2974 = vpop.f32.mrf.mxu0
      %v2975 = vpop.f32.mrf.mxu0
      %v2976 = vadd.f32 %v2687, %v2975
      %v2977 = vpop.f32.mrf.mxu0
      %2978 = vmatprep.mubr.bf16.mxu0 0
      %2979 = vmatmul.mubr.bf16.gmra.mxu0 %v954
      %v2980 = vpop.f32.mrf.mxu0
      %v2981 = vadd.f32 %v2692, %v2980
      %v2982 = vpop.f32.mrf.mxu0
      %v2983 = vpop.f32.mrf.mxu0
      %v2984 = vadd.f32 %v2695, %v2983
      %v2985 = vpop.f32.mrf.mxu0
      %2986 = vmatprep.mubr.bf16.mxu0 0
      %2987 = vmatmul.mubr.bf16.gmra.mxu0 %v957
      %v2988 = vpop.f32.mrf.mxu0
      %v2989 = vadd.f32 %v2700, %v2988
      %v2990 = vpop.f32.mrf.mxu0
      %v2991 = vpop.f32.mrf.mxu0
      %v2992 = vadd.f32 %v2703, %v2991
      %v2993 = vpop.f32.mrf.mxu0
      %2994 = vmatprep.mubr.bf16.mxu0 0
      %2995 = vmatmul.mubr.bf16.gmra.mxu0 %v959
      %v2996 = vpop.f32.mrf.mxu0
      %v2997 = vadd.f32 %v2708, %v2996
      %v2998 = vpop.f32.mrf.mxu0
      %v2999 = vpop.f32.mrf.mxu0
      %v3000 = vadd.f32 %v2711, %v2999
      %v3001 = vpop.f32.mrf.mxu0
      %3002 = vmatprep.mubr.bf16.mxu0 0
      %3003 = vmatmul.mubr.bf16.gmra.mxu0 %v962
      %v3004 = vpop.f32.mrf.mxu0
      %v3005 = vadd.f32 %v2716, %v3004
      %v3006 = vpop.f32.mrf.mxu0
      %v3007 = vpop.f32.mrf.mxu0
      %v3008 = vadd.f32 %v2719, %v3007
      %v3009 = vpop.f32.mrf.mxu0
      %3010 = vmatprep.mubr.bf16.mxu0 0
      %3011 = vmatmul.mubr.bf16.gmra.mxu0 %v964
      %v3012 = vpop.f32.mrf.mxu0
      %v3013 = vadd.f32 %v2724, %v3012
      %v3014 = vpop.f32.mrf.mxu0
      %v3015 = vpop.f32.mrf.mxu0
      %v3016 = vadd.f32 %v2727, %v3015
      %v3017 = vpop.f32.mrf.mxu0
      %3018 = vmatprep.mubr.bf16.mxu0 0
      %3019 = vmatmul.mubr.bf16.gmra.mxu0 %v967
      %v3020 = vpop.f32.mrf.mxu0
      %v3021 = vadd.f32 %v2732, %v3020
      %v3022 = vpop.f32.mrf.mxu0
      %v3023 = vpop.f32.mrf.mxu0
      %v3024 = vadd.f32 %v2735, %v3023
      %v3025 = vpop.f32.mrf.mxu0
      %3026 = vmatprep.mubr.bf16.mxu0 0
      %3027 = vmatmul.mubr.bf16.gmra.mxu0 %v969
      %v3028 = vpop.f32.mrf.mxu0
      %v3029 = vadd.f32 %v2740, %v3028
      %v3030 = vpop.f32.mrf.mxu0
      %v3031 = vpop.f32.mrf.mxu0
      %v3032 = vadd.f32 %v2743, %v3031
      %v3033 = vpop.f32.mrf.mxu0
      %3034 = vmatprep.mubr.bf16.mxu0 0
      %3035 = vmatmul.mubr.bf16.gmra.mxu0 %v972
      %v3036 = vpop.f32.mrf.mxu0
      %v3037 = vadd.f32 %v2748, %v3036
      %v3038 = vpop.f32.mrf.mxu0
      %v3039 = vpop.f32.mrf.mxu0
      %v3040 = vadd.f32 %v2751, %v3039
      %v3041 = vpop.f32.mrf.mxu0
      %3042 = vmatprep.mubr.bf16.mxu0 0
      %3043 = vmatmul.mubr.bf16.gmra.mxu0 %v974
      %v3044 = vpop.f32.mrf.mxu0
      %v3045 = vadd.f32 %v2756, %v3044
      %v3046 = vpop.f32.mrf.mxu0
      %v3047 = vpop.f32.mrf.mxu0
      %v3048 = vadd.f32 %v2759, %v3047
      %v3049 = vpop.f32.mrf.mxu0
      %3050 = vmatprep.mubr.bf16.mxu0 0
      %3051 = vmatmul.mubr.bf16.gmra.mxu0 %v977
      %v3052 = vpop.f32.mrf.mxu0
      %v3053 = vadd.f32 %v2764, %v3052
      %v3054 = vpop.f32.mrf.mxu0
      %v3055 = vpop.f32.mrf.mxu0
      %v3056 = vadd.f32 %v2767, %v3055
      %v3057 = vpop.f32.mrf.mxu0
      %3058 = vmatprep.mubr.bf16.mxu0 0
      %3059 = vmatmul.mubr.bf16.gmra.mxu0 %v979
      %v3060 = vpop.f32.mrf.mxu0
      %v3061 = vadd.f32 %v2772, %v3060
      %v3062 = vpop.f32.mrf.mxu0
      %v3063 = vpop.f32.mrf.mxu0
      %v3064 = vadd.f32 %v2775, %v3063
      %v3065 = vpop.f32.mrf.mxu0
      %3066 = vmatprep.mubr.bf16.mxu0 0
      %3067 = vmatmul.mubr.bf16.gmra.mxu0 %v982
      %v3068 = vpop.f32.mrf.mxu0
      %v3069 = vadd.f32 %v2780, %v3068
      %v3070 = vpop.f32.mrf.mxu0
      %v3071 = vpop.f32.mrf.mxu0
      %v3072 = vadd.f32 %v2783, %v3071
      %v3073 = vpop.f32.mrf.mxu0
      %3074 = vmatprep.mubr.bf16.mxu0 0
      %3075 = vmatmul.mubr.bf16.gmra.mxu0 %v984
      %v3076 = vpop.f32.mrf.mxu0
      %v3077 = vadd.f32 %v2788, %v3076
      %v3078 = vpop.f32.mrf.mxu0
      %v3079 = vpop.f32.mrf.mxu0
      %v3080 = vadd.f32 %v2791, %v3079
      %v3081 = vpop.f32.mrf.mxu0
      %3082 = vmatprep.mubr.bf16.mxu0 0
      %3083 = vmatmul.mubr.bf16.gmra.mxu0 %v987
      %v3084 = vpop.f32.mrf.mxu0
      %v3085 = vadd.f32 %v2796, %v3084
      %v3086 = vpop.f32.mrf.mxu0
      %v3087 = vpop.f32.mrf.mxu0
      %v3088 = vadd.f32 %v2799, %v3087
      %v3089 = vpop.f32.mrf.mxu0
      %3090 = vmatprep.mubr.bf16.mxu0 0
      %3091 = vmatmul.mubr.bf16.gmra.mxu0 %v989
      %v3092 = vpop.f32.mrf.mxu0
      %v3093 = vadd.f32 %v2804, %v3092
      %v3094 = vpop.f32.mrf.mxu0
      %v3095 = vpop.f32.mrf.mxu0
      %v3096 = vadd.f32 %v2807, %v3095
      %v3097 = vpop.f32.mrf.mxu0
      %3098 = vmatprep.mubr.bf16.mxu0 0
      %3099 = vmatmul.mubr.bf16.gmra.mxu0 %v1061
      %v3100 = vpop.f32.mrf.mxu0
      %v3101 = vadd.f32 %v2812, %v3100
      %v3102 = vpop.f32.mrf.mxu0
      %v3103 = vpop.f32.mrf.mxu0
      %v3104 = vadd.f32 %v2815, %v3103
      %v3105 = vpop.f32.mrf.mxu0
      %3106 = vmatprep.mubr.bf16.mxu0 0
      %3107 = vmatmul.mubr.bf16.gmra.mxu0 %v1063
      %v3108 = vpop.f32.mrf.mxu0
      %v3109 = vadd.f32 %v2820, %v3108
      %v3110 = vpop.f32.mrf.mxu0
      %v3111 = vpop.f32.mrf.mxu0
      %v3112 = vadd.f32 %v2823, %v3111
      %v3113 = vpop.f32.mrf.mxu0
      %3114 = vmatprep.mubr.bf16.mxu0 0
      %3115 = vmatmul.mubr.bf16.gmra.mxu0 %v1105
      %v3116 = vpop.f32.mrf.mxu0
      %v3117 = vadd.f32 %v2828, %v3116
      %v3118 = vpop.f32.mrf.mxu0
      %v3119 = vpop.f32.mrf.mxu0
      %v3120 = vadd.f32 %v2831, %v3119
      %v3121 = vpop.f32.mrf.mxu0
      %3122 = vmatprep.mubr.bf16.mxu0 0
      %3123 = vmatmul.mubr.bf16.gmra.mxu0 %v1107
      %v3124 = vpop.f32.mrf.mxu0
      %v3125 = vadd.f32 %v2836, %v3124
      %v3126 = vpop.f32.mrf.mxu0
      %v3127 = vpop.f32.mrf.mxu0
      %v3128 = vadd.f32 %v2839, %v3127
      %v3129 = vpop.f32.mrf.mxu0
      %3130 = vdwg.mxu0
      %v3131 = vld [vmem:[%s2] sm:$0x1]
      %v3133 = vlaneseq
      %v3134 = vshrl.u32 %v3133, 7
      %v3135 = vsub.s32 0, %v3134
      %v3136 = vrot.slane %v3131, %v3135
      %v3138 = vmul.f32 %v2877, %v3136
      %v3139 = vmul.f32 %v2880, %v3136
      %v3140 = vmul.f32 %v2885, %v3136
      %v3141 = vmul.f32 %v2888, %v3136
      %v3142 = vmul.f32 %v2893, %v3136
      %v3143 = vmul.f32 %v2896, %v3136
      %v3144 = vmul.f32 %v2901, %v3136
      %v3145 = vmul.f32 %v2904, %v3136
      %v3146 = vmul.f32 %v2909, %v3136
      %v3147 = vmul.f32 %v2912, %v3136
      %v3148 = vmul.f32 %v2917, %v3136
      %v3149 = vmul.f32 %v2920, %v3136
      %v3150 = vmul.f32 %v2925, %v3136
      %v3151 = vmul.f32 %v2928, %v3136
      %v3152 = vmul.f32 %v2933, %v3136
      %v3153 = vmul.f32 %v2936, %v3136
      %v3154 = vmul.f32 %v2941, %v3136
      %v3155 = vmul.f32 %v2944, %v3136
      %v3156 = vmul.f32 %v2949, %v3136
      %v3157 = vmul.f32 %v2952, %v3136
      %v3158 = vmul.f32 %v2957, %v3136
      %v3159 = vmul.f32 %v2960, %v3136
      %v3160 = vmul.f32 %v2965, %v3136
      %v3161 = vmul.f32 %v2968, %v3136
      %v3162 = vmul.f32 %v2973, %v3136
      %v3163 = vmul.f32 %v2976, %v3136
      %v3164 = vmul.f32 %v2981, %v3136
      %v3165 = vmul.f32 %v2984, %v3136
      %v3166 = vmul.f32 %v2989, %v3136
      %v3167 = vmul.f32 %v2992, %v3136
      %v3168 = vmul.f32 %v2997, %v3136
      %v3169 = vmul.f32 %v3000, %v3136
      %v3170 = vmul.f32 %v3005, %v3136
      %v3171 = vmul.f32 %v3008, %v3136
      %v3172 = vmul.f32 %v3013, %v3136
      %v3173 = vmul.f32 %v3016, %v3136
      %v3174 = vmul.f32 %v3021, %v3136
      %v3175 = vmul.f32 %v3024, %v3136
      %v3176 = vmul.f32 %v3029, %v3136
      %v3177 = vmul.f32 %v3032, %v3136
      %v3178 = vmul.f32 %v3037, %v3136
      %v3179 = vmul.f32 %v3040, %v3136
      %v3180 = vmul.f32 %v3045, %v3136
      %v3181 = vmul.f32 %v3048, %v3136
      %v3182 = vmul.f32 %v3053, %v3136
      %v3183 = vmul.f32 %v3056, %v3136
      %v3184 = vmul.f32 %v3061, %v3136
      %v3185 = vmul.f32 %v3064, %v3136
      %v3186 = vmul.f32 %v3069, %v3136
      %v3187 = vmul.f32 %v3072, %v3136
      %v3188 = vmul.f32 %v3077, %v3136
      %v3189 = vmul.f32 %v3080, %v3136
      %v3190 = vmul.f32 %v3085, %v3136
      %v3191 = vmul.f32 %v3088, %v3136
      %v3192 = vmul.f32 %v3093, %v3136
      %v3193 = vmul.f32 %v3096, %v3136
      %v3194 = vmul.f32 %v3101, %v3136
      %v3195 = vmul.f32 %v3104, %v3136
      %v3196 = vmul.f32 %v3109, %v3136
      %v3197 = vmul.f32 %v3112, %v3136
      %v3198 = vmul.f32 %v3117, %v3136
      %v3199 = vmul.f32 %v3120, %v3136
      %v3200 = vmul.f32 %v3125, %v3136
      %v3201 = vmul.f32 %v3128, %v3136
      %v3202 = vld [vmem:[%s3] sm:$0x1]
      %v3204 = vlaneseq
      %v3205 = vshrl.u32 %v3204, 7
      %v3206 = vsub.s32 0, %v3205
      %v3207 = vrot.slane %v3202, %v3206
      %v3209 = vadd.f32 %v3138, %v3207
      %v3210 = vadd.f32 %v3139, %v3207
      %v3211 = vadd.f32 %v3140, %v3207
      %v3212 = vadd.f32 %v3141, %v3207
      %v3213 = vadd.f32 %v3142, %v3207
      %v3214 = vadd.f32 %v3143, %v3207
      %v3215 = vadd.f32 %v3144, %v3207
      %v3216 = vadd.f32 %v3145, %v3207
      %v3217 = vadd.f32 %v3146, %v3207
      %v3218 = vadd.f32 %v3147, %v3207
      %v3219 = vadd.f32 %v3148, %v3207
      %v3220 = vadd.f32 %v3149, %v3207
      %v3221 = vadd.f32 %v3150, %v3207
      %v3222 = vadd.f32 %v3151, %v3207
      %v3223 = vadd.f32 %v3152, %v3207
      %v3224 = vadd.f32 %v3153, %v3207
      %v3225 = vadd.f32 %v3154, %v3207
      %v3226 = vadd.f32 %v3155, %v3207
      %v3227 = vadd.f32 %v3156, %v3207
      %v3228 = vadd.f32 %v3157, %v3207
      %v3229 = vadd.f32 %v3158, %v3207
      %v3230 = vadd.f32 %v3159, %v3207
      %v3231 = vadd.f32 %v3160, %v3207
      %v3232 = vadd.f32 %v3161, %v3207
      %v3233 = vadd.f32 %v3162, %v3207
      %v3234 = vadd.f32 %v3163, %v3207
      %v3235 = vadd.f32 %v3164, %v3207
      %v3236 = vadd.f32 %v3165, %v3207
      %v3237 = vadd.f32 %v3166, %v3207
      %v3238 = vadd.f32 %v3167, %v3207
      %v3239 = vadd.f32 %v3168, %v3207
      %v3240 = vadd.f32 %v3169, %v3207
      %v3241 = vadd.f32 %v3170, %v3207
      %v3242 = vadd.f32 %v3171, %v3207
      %v3243 = vadd.f32 %v3172, %v3207
      %v3244 = vadd.f32 %v3173, %v3207
      %v3245 = vadd.f32 %v3174, %v3207
      %v3246 = vadd.f32 %v3175, %v3207
      %v3247 = vadd.f32 %v3176, %v3207
      %v3248 = vadd.f32 %v3177, %v3207
      %v3249 = vadd.f32 %v3178, %v3207
      %v3250 = vadd.f32 %v3179, %v3207
      %v3251 = vadd.f32 %v3180, %v3207
      %v3252 = vadd.f32 %v3181, %v3207
      %v3253 = vadd.f32 %v3182, %v3207
      %v3254 = vadd.f32 %v3183, %v3207
      %v3255 = vadd.f32 %v3184, %v3207
      %v3256 = vadd.f32 %v3185, %v3207
      %v3257 = vadd.f32 %v3186, %v3207
      %v3258 = vadd.f32 %v3187, %v3207
      %v3259 = vadd.f32 %v3188, %v3207
      %v3260 = vadd.f32 %v3189, %v3207
      %v3261 = vadd.f32 %v3190, %v3207
      %v3262 = vadd.f32 %v3191, %v3207
      %v3263 = vadd.f32 %v3192, %v3207
      %v3264 = vadd.f32 %v3193, %v3207
      %v3265 = vadd.f32 %v3194, %v3207
      %v3266 = vadd.f32 %v3195, %v3207
      %v3267 = vadd.f32 %v3196, %v3207
      %v3268 = vadd.f32 %v3197, %v3207
      %v3269 = vadd.f32 %v3198, %v3207
      %v3270 = vadd.f32 %v3199, %v3207
      %v3271 = vadd.f32 %v3200, %v3207
      %v3272 = vadd.f32 %v3201, %v3207
      %v3273 = vmax.f32 %v3209, 0.0
      %v3274 = vmax.f32 %v3210, 0.0
      %v3275 = vmax.f32 %v3211, 0.0
      %v3276 = vmax.f32 %v3212, 0.0
      %v3277 = vmax.f32 %v3213, 0.0
      %v3278 = vmax.f32 %v3214, 0.0
      %v3279 = vmax.f32 %v3215, 0.0
      %v3280 = vmax.f32 %v3216, 0.0
      %v3281 = vmax.f32 %v3217, 0.0
      %v3282 = vmax.f32 %v3218, 0.0
      %v3283 = vmax.f32 %v3219, 0.0
      %v3284 = vmax.f32 %v3220, 0.0
      %v3285 = vmax.f32 %v3221, 0.0
      %v3286 = vmax.f32 %v3222, 0.0
      %v3287 = vmax.f32 %v3223, 0.0
      %v3288 = vmax.f32 %v3224, 0.0
      %v3289 = vmax.f32 %v3225, 0.0
      %v3290 = vmax.f32 %v3226, 0.0
      %v3291 = vmax.f32 %v3227, 0.0
      %v3292 = vmax.f32 %v3228, 0.0
      %v3293 = vmax.f32 %v3229, 0.0
      %v3294 = vmax.f32 %v3230, 0.0
      %v3295 = vmax.f32 %v3231, 0.0
      %v3296 = vmax.f32 %v3232, 0.0
      %v3297 = vmax.f32 %v3233, 0.0
      %v3298 = vmax.f32 %v3234, 0.0
      %v3299 = vmax.f32 %v3235, 0.0
      %v3300 = vmax.f32 %v3236, 0.0
      %v3301 = vmax.f32 %v3237, 0.0
      %v3302 = vmax.f32 %v3238, 0.0
      %v3303 = vmax.f32 %v3239, 0.0
      %v3304 = vmax.f32 %v3240, 0.0
      %v3305 = vmax.f32 %v3241, 0.0
      %v3306 = vmax.f32 %v3242, 0.0
      %v3307 = vmax.f32 %v3243, 0.0
      %v3308 = vmax.f32 %v3244, 0.0
      %v3309 = vmax.f32 %v3245, 0.0
      %v3310 = vmax.f32 %v3246, 0.0
      %v3311 = vmax.f32 %v3247, 0.0
      %v3312 = vmax.f32 %v3248, 0.0
      %v3313 = vmax.f32 %v3249, 0.0
      %v3314 = vmax.f32 %v3250, 0.0
      %v3315 = vmax.f32 %v3251, 0.0
      %v3316 = vmax.f32 %v3252, 0.0
      %v3317 = vmax.f32 %v3253, 0.0
      %v3318 = vmax.f32 %v3254, 0.0
      %v3319 = vmax.f32 %v3255, 0.0
      %v3320 = vmax.f32 %v3256, 0.0
      %v3321 = vmax.f32 %v3257, 0.0
      %v3322 = vmax.f32 %v3258, 0.0
      %v3323 = vmax.f32 %v3259, 0.0
      %v3324 = vmax.f32 %v3260, 0.0
      %v3325 = vmax.f32 %v3261, 0.0
      %v3326 = vmax.f32 %v3262, 0.0
      %v3327 = vmax.f32 %v3263, 0.0
      %v3328 = vmax.f32 %v3264, 0.0
      %v3329 = vmax.f32 %v3265, 0.0
      %v3330 = vmax.f32 %v3266, 0.0
      %v3331 = vmax.f32 %v3267, 0.0
      %v3332 = vmax.f32 %v3268, 0.0
      %v3333 = vmax.f32 %v3269, 0.0
      %v3334 = vmax.f32 %v3270, 0.0
      %v3335 = vmax.f32 %v3271, 0.0
      %v3336 = vmax.f32 %v3272, 0.0
      %v3337 = vpack.c.bf16 %v3274, %v3273
      %v3338 = vpack.c.bf16 %v3276, %v3275
      %v3339 = vpack.c.bf16 %v3278, %v3277
      %v3340 = vpack.c.bf16 %v3280, %v3279
      %v3341 = vpack.c.bf16 %v3282, %v3281
      %v3342 = vpack.c.bf16 %v3284, %v3283
      %v3343 = vpack.c.bf16 %v3286, %v3285
      %v3344 = vpack.c.bf16 %v3288, %v3287
      %v3345 = vpack.c.bf16 %v3290, %v3289
      %v3346 = vpack.c.bf16 %v3292, %v3291
      %v3347 = vpack.c.bf16 %v3294, %v3293
      %v3348 = vpack.c.bf16 %v3296, %v3295
      %v3349 = vpack.c.bf16 %v3298, %v3297
      %v3350 = vpack.c.bf16 %v3300, %v3299
      %v3351 = vpack.c.bf16 %v3302, %v3301
      %v3352 = vpack.c.bf16 %v3304, %v3303
      %v3353 = vpack.c.bf16 %v3306, %v3305
      %v3354 = vpack.c.bf16 %v3308, %v3307
      %v3355 = vpack.c.bf16 %v3310, %v3309
      %v3356 = vpack.c.bf16 %v3312, %v3311
      %v3357 = vpack.c.bf16 %v3314, %v3313
      %v3358 = vpack.c.bf16 %v3316, %v3315
      %v3359 = vpack.c.bf16 %v3318, %v3317
      %v3360 = vpack.c.bf16 %v3320, %v3319
      %v3361 = vpack.c.bf16 %v3322, %v3321
      %v3362 = vpack.c.bf16 %v3324, %v3323
      %v3363 = vpack.c.bf16 %v3326, %v3325
      %v3364 = vpack.c.bf16 %v3328, %v3327
      %v3365 = vpack.c.bf16 %v3330, %v3329
      %v3366 = vpack.c.bf16 %v3332, %v3331
      %v3367 = vpack.c.bf16 %v3334, %v3333
      %v3368 = vpack.c.bf16 %v3336, %v3335
      %v3401 = vunpack.c.l.b16 %v3337
      %v3402 = vunpack.c.h.b16 %v3337
      %v3403 = vunpack.c.l.b16 %v3338
      %v3404 = vunpack.c.h.b16 %v3338
      %v3405 = vunpack.c.l.b16 %v3339
      %v3406 = vunpack.c.h.b16 %v3339
      %v3407 = vunpack.c.l.b16 %v3340
      %v3408 = vunpack.c.h.b16 %v3340
      %v3409 = vunpack.c.l.b16 %v3341
      %v3410 = vunpack.c.h.b16 %v3341
      %v3411 = vunpack.c.l.b16 %v3342
      %v3412 = vunpack.c.h.b16 %v3342
      %v3413 = vunpack.c.l.b16 %v3343
      %v3414 = vunpack.c.h.b16 %v3343
      %v3415 = vunpack.c.l.b16 %v3344
      %v3416 = vunpack.c.h.b16 %v3344
      %v3417 = vunpack.c.l.b16 %v3345
      %v3418 = vunpack.c.h.b16 %v3345
      %v3419 = vunpack.c.l.b16 %v3346
      %v3420 = vunpack.c.h.b16 %v3346
      %v3421 = vunpack.c.l.b16 %v3347
      %v3422 = vunpack.c.h.b16 %v3347
      %v3423 = vunpack.c.l.b16 %v3348
      %v3424 = vunpack.c.h.b16 %v3348
      %v3425 = vunpack.c.l.b16 %v3349
      %v3426 = vunpack.c.h.b16 %v3349
      %v3427 = vunpack.c.l.b16 %v3350
      %v3428 = vunpack.c.h.b16 %v3350
      %v3429 = vunpack.c.l.b16 %v3351
      %v3430 = vunpack.c.h.b16 %v3351
      %v3431 = vunpack.c.l.b16 %v3352
      %v3432 = vunpack.c.h.b16 %v3352
      %v3433 = vunpack.c.l.b16 %v3353
      %v3434 = vunpack.c.h.b16 %v3353
      %v3435 = vunpack.c.l.b16 %v3354
      %v3436 = vunpack.c.h.b16 %v3354
      %v3437 = vunpack.c.l.b16 %v3355
      %v3438 = vunpack.c.h.b16 %v3355
      %v3439 = vunpack.c.l.b16 %v3356
      %v3440 = vunpack.c.h.b16 %v3356
      %v3441 = vunpack.c.l.b16 %v3357
      %v3442 = vunpack.c.h.b16 %v3357
      %v3443 = vunpack.c.l.b16 %v3358
      %v3444 = vunpack.c.h.b16 %v3358
      %v3445 = vunpack.c.l.b16 %v3359
      %v3446 = vunpack.c.h.b16 %v3359
      %v3447 = vunpack.c.l.b16 %v3360
      %v3448 = vunpack.c.h.b16 %v3360
      %v3449 = vunpack.c.l.b16 %v3361
      %v3450 = vunpack.c.h.b16 %v3361
      %v3451 = vunpack.c.l.b16 %v3362
      %v3452 = vunpack.c.h.b16 %v3362
      %v3453 = vunpack.c.l.b16 %v3363
      %v3454 = vunpack.c.h.b16 %v3363
      %v3455 = vunpack.c.l.b16 %v3364
      %v3456 = vunpack.c.h.b16 %v3364
      %v3457 = vunpack.c.l.b16 %v3365
      %v3458 = vunpack.c.h.b16 %v3365
      %v3459 = vunpack.c.l.b16 %v3366
      %v3460 = vunpack.c.h.b16 %v3366
      %v3461 = vunpack.c.l.b16 %v3367
      %v3462 = vunpack.c.h.b16 %v3367
      %v3463 = vunpack.c.l.b16 %v3368
      %v3464 = vunpack.c.h.b16 %v3368
      %v3465 = vpack.c.b16 %v3401, %v3401
      %v3466 = vpack.c.b16 %v3402, %v3402
      %v3467 = vpack.c.b16 %v3403, %v3403
      %v3468 = vpack.c.b16 %v3404, %v3404
      %v3469 = vpack.c.b16 %v3405, %v3405
      %v3470 = vpack.c.b16 %v3406, %v3406
      %v3471 = vpack.c.b16 %v3407, %v3407
      %v3472 = vpack.c.b16 %v3408, %v3408
      %v3473 = vpack.c.b16 %v3409, %v3409
      %v3474 = vpack.c.b16 %v3410, %v3410
      %v3475 = vpack.c.b16 %v3411, %v3411
      %v3476 = vpack.c.b16 %v3412, %v3412
      %v3477 = vpack.c.b16 %v3413, %v3413
      %v3478 = vpack.c.b16 %v3414, %v3414
      %v3479 = vpack.c.b16 %v3415, %v3415
      %v3480 = vpack.c.b16 %v3416, %v3416
      %v3481 = vpack.c.b16 %v3417, %v3417
      %v3482 = vpack.c.b16 %v3418, %v3418
      %v3483 = vpack.c.b16 %v3419, %v3419
      %v3484 = vpack.c.b16 %v3420, %v3420
      %v3485 = vpack.c.b16 %v3421, %v3421
      %v3486 = vpack.c.b16 %v3422, %v3422
      %v3487 = vpack.c.b16 %v3423, %v3423
      %v3488 = vpack.c.b16 %v3424, %v3424
      %v3489 = vpack.c.b16 %v3425, %v3425
      %v3490 = vpack.c.b16 %v3426, %v3426
      %v3491 = vpack.c.b16 %v3427, %v3427
      %v3492 = vpack.c.b16 %v3428, %v3428
      %v3493 = vpack.c.b16 %v3429, %v3429
      %v3494 = vpack.c.b16 %v3430, %v3430
      %v3495 = vpack.c.b16 %v3431, %v3431
      %v3496 = vpack.c.b16 %v3432, %v3432
      %v3497 = vpack.c.b16 %v3433, %v3433
      %v3498 = vpack.c.b16 %v3434, %v3434
      %v3499 = vpack.c.b16 %v3435, %v3435
      %v3500 = vpack.c.b16 %v3436, %v3436
      %v3501 = vpack.c.b16 %v3437, %v3437
      %v3502 = vpack.c.b16 %v3438, %v3438
      %v3503 = vpack.c.b16 %v3439, %v3439
      %v3504 = vpack.c.b16 %v3440, %v3440
      %v3505 = vpack.c.b16 %v3441, %v3441
      %v3506 = vpack.c.b16 %v3442, %v3442
      %v3507 = vpack.c.b16 %v3443, %v3443
      %v3508 = vpack.c.b16 %v3444, %v3444
      %v3509 = vpack.c.b16 %v3445, %v3445
      %v3510 = vpack.c.b16 %v3446, %v3446
      %v3511 = vpack.c.b16 %v3447, %v3447
      %v3512 = vpack.c.b16 %v3448, %v3448
      %v3513 = vpack.c.b16 %v3449, %v3449
      %v3514 = vpack.c.b16 %v3450, %v3450
      %v3515 = vpack.c.b16 %v3451, %v3451
      %v3516 = vpack.c.b16 %v3452, %v3452
      %v3517 = vpack.c.b16 %v3453, %v3453
      %v3518 = vpack.c.b16 %v3454, %v3454
      %v3519 = vpack.c.b16 %v3455, %v3455
      %v3520 = vpack.c.b16 %v3456, %v3456
      %v3521 = vpack.c.b16 %v3457, %v3457
      %v3522 = vpack.c.b16 %v3458, %v3458
      %v3523 = vpack.c.b16 %v3459, %v3459
      %v3524 = vpack.c.b16 %v3460, %v3460
      %v3525 = vpack.c.b16 %v3461, %v3461
      %v3526 = vpack.c.b16 %v3462, %v3462
      %v3527 = vpack.c.b16 %v3463, %v3463
      %v3528 = vpack.c.b16 %v3464, %v3464
      %3593 = vst [vmem:[%s219] sm:$0xf] %v3465
      %3594 = vst [vmem:[%s219 + $0x4] sm:$0xf] %v3466
      %3595 = vst [vmem:[%s219 + $0x8] sm:$0xf] %v3467
      %3596 = vst [vmem:[%s219 + $0xc] sm:$0xf] %v3468
      %3597 = vst [vmem:[%s219 + $0x10] sm:$0xf] %v3469
      %3598 = vst [vmem:[%s219 + $0x14] sm:$0xf] %v3470
      %3599 = vst [vmem:[%s219 + $0x18] sm:$0xf] %v3471
      %3600 = vst [vmem:[%s219 + $0x1c] sm:$0xf] %v3472
      %3601 = vst [vmem:[%s219 + $0x20] sm:$0xf] %v3473
      %3602 = vst [vmem:[%s219 + $0x24] sm:$0xf] %v3474
      %3603 = vst [vmem:[%s219 + $0x28] sm:$0xf] %v3475
      %3604 = vst [vmem:[%s219 + $0x2c] sm:$0xf] %v3476
      %3605 = vst [vmem:[%s219 + $0x30] sm:$0xf] %v3477
      %3606 = vst [vmem:[%s219 + $0x34] sm:$0xf] %v3478
      %3607 = vst [vmem:[%s219 + $0x38] sm:$0xf] %v3479
      %3608 = vst [vmem:[%s219 + $0x3c] sm:$0xf] %v3480
      %3609 = vst [vmem:[%s219 + $0x40] sm:$0xf] %v3481
      %3610 = vst [vmem:[%s219 + $0x44] sm:$0xf] %v3482
      %3611 = vst [vmem:[%s219 + $0x48] sm:$0xf] %v3483
      %3612 = vst [vmem:[%s219 + $0x4c] sm:$0xf] %v3484
      %3613 = vst [vmem:[%s219 + $0x50] sm:$0xf] %v3485
      %3614 = vst [vmem:[%s219 + $0x54] sm:$0xf] %v3486
      %3615 = vst [vmem:[%s219 + $0x58] sm:$0xf] %v3487
      %3616 = vst [vmem:[%s219 + $0x5c] sm:$0xf] %v3488
      %3617 = vst [vmem:[%s219 + $0x60] sm:$0xf] %v3489
      %3618 = vst [vmem:[%s219 + $0x64] sm:$0xf] %v3490
      %3619 = vst [vmem:[%s219 + $0x68] sm:$0xf] %v3491
      %3620 = vst [vmem:[%s219 + $0x6c] sm:$0xf] %v3492
      %3621 = vst [vmem:[%s219 + $0x70] sm:$0xf] %v3493
      %3622 = vst [vmem:[%s219 + $0x74] sm:$0xf] %v3494
      %3623 = vst [vmem:[%s219 + $0x78] sm:$0xf] %v3495
      %3624 = vst [vmem:[%s219 + $0x7c] sm:$0xf] %v3496
      %3625 = vst [vmem:[%s219 + $0x80] sm:$0xf] %v3497
      %3626 = vst [vmem:[%s219 + $0x84] sm:$0xf] %v3498
      %3627 = vst [vmem:[%s219 + $0x88] sm:$0xf] %v3499
      %3628 = vst [vmem:[%s219 + $0x8c] sm:$0xf] %v3500
      %3629 = vst [vmem:[%s219 + $0x90] sm:$0xf] %v3501
      %3630 = vst [vmem:[%s219 + $0x94] sm:$0xf] %v3502
      %3631 = vst [vmem:[%s219 + $0x98] sm:$0xf] %v3503
      %3632 = vst [vmem:[%s219 + $0x9c] sm:$0xf] %v3504
      %3633 = vst [vmem:[%s219 + $0xa0] sm:$0xf] %v3505
      %3634 = vst [vmem:[%s219 + $0xa4] sm:$0xf] %v3506
      %3635 = vst [vmem:[%s219 + $0xa8] sm:$0xf] %v3507
      %3636 = vst [vmem:[%s219 + $0xac] sm:$0xf] %v3508
      %3637 = vst [vmem:[%s219 + $0xb0] sm:$0xf] %v3509
      %3638 = vst [vmem:[%s219 + $0xb4] sm:$0xf] %v3510
      %3639 = vst [vmem:[%s219 + $0xb8] sm:$0xf] %v3511
      %3640 = vst [vmem:[%s219 + $0xbc] sm:$0xf] %v3512
      %3641 = vst [vmem:[%s219 + $0xc0] sm:$0xf] %v3513
      %3642 = vst [vmem:[%s219 + $0xc4] sm:$0xf] %v3514
      %3643 = vst [vmem:[%s219 + $0xc8] sm:$0xf] %v3515
      %3644 = vst [vmem:[%s219 + $0xcc] sm:$0xf] %v3516
      %3645 = vst [vmem:[%s219 + $0xd0] sm:$0xf] %v3517
      %3646 = vst [vmem:[%s219 + $0xd4] sm:$0xf] %v3518
      %3647 = vst [vmem:[%s219 + $0xd8] sm:$0xf] %v3519
      %3648 = vst [vmem:[%s219 + $0xdc] sm:$0xf] %v3520
      %3649 = vst [vmem:[%s219 + $0xe0] sm:$0xf] %v3521
      %3650 = vst [vmem:[%s219 + $0xe4] sm:$0xf] %v3522
      %3651 = vst [vmem:[%s219 + $0xe8] sm:$0xf] %v3523
      %3652 = vst [vmem:[%s219 + $0xec] sm:$0xf] %v3524
      %3653 = vst [vmem:[%s219 + $0xf0] sm:$0xf] %v3525
      %3654 = vst [vmem:[%s219 + $0xf4] sm:$0xf] %v3526
      %3655 = vst [vmem:[%s219 + $0xf8] sm:$0xf] %v3527
      %3656 = vst [vmem:[%s219 + $0xfc] sm:$0xf] %v3528
      %s3657 = smul.u32 64, %s20
      %p3658 = scmp.lt.s32.totalorder %s19, 1
      %s3659 = scalar_select %p3658, %s19, 1
      %p3660 = scmp.lt.s32.totalorder %s3657, 127
      %s3661 = scalar_select %p3660, %s3657, 127
      %s3662 = smul.addr %s3659, 128
      %s3663 = sadd.s32 %s3661, %s3662
      %s3664 = smul.addr %s3663, 4
      %s3665 = scalar_lea.vmem %s4, %s3664
      // Predicated region
      $region37: #{_lambda_.2} parent=35 // pred_check
        %p3666 = pneg %p136
      $region38: #{_lambda_.2} parent=35 // pred_check_branch
        %3668 = sbr.rel (%p3666) target = $region40
      $region39: #{_lambda_.2} parent=35 // pred_region
        %s3669 = smul.u32 64, %s20
      $region40: #{_lambda_.2} parent=35 // pred_fallthru
        _
    $region36: #{_lambda_.2} parent=5 // pred_fallthru
      _
    %p3670 = scmp.le.s32.totalorder 2, %s10
    // Predicated region
    $region41: #{_lambda_.2} parent=5 // pred_check
      %p3671 = pneg %p3670
    $region42: #{_lambda_.2} parent=5 // pred_check_branch
      %3673 = sbr.rel (%p3671) target = $region44
    $region43: #{_lambda_.2} parent=5 // pred_region
      %s3674 = ssub.s32 %s10, 2
      // Predicated region
      $region45: #{_lambda_.2} parent=43 // pred_check
        %p3675 = pneg %p142
      $region46: #{_lambda_.2} parent=43 // pred_check_branch
        %3677 = sbr.rel (%p3675) target = $region48
      $region47: #{_lambda_.2} parent=43 // pred_region
        %s3678 = smul.u32 64, %s22
        %p3679 = scmp.lt.s32.totalorder %s21, 1
        %s3680 = scalar_select %p3679, %s21, 1
        %p3681 = scmp.lt.s32.totalorder %s3678, 127
        %s3682 = scalar_select %p3681, %s3678, 127
        %s3683 = smul.addr %s3680, 128
        %s3684 = sadd.s32 %s3682, %s3683
        %s3685 = smul.addr %s3684, 4
        %s3686 = scalar_lea.vmem %s4, %s3685
      $region48: #{_lambda_.2} parent=43 // pred_fallthru
        _
    $region44: #{_lambda_.2} parent=5 // pred_fallthru
      _
  $region6: #{_lambda_.2} parent=0 // loop_footer
    %s14 = sadd.s32 1, %s10
  $region7: #{_lambda_.2} parent=0 // loop_footer_branch
    %9 = sbr.rel target = $region3
  $region8: #{_lambda_.2} parent=0 // loop_exit
    _

// kernel: _lambda_.3
$region0: #{_lambda_.3}
  #allocation0 [shape = 'u32[]', space=smem, size = 0x4, offset = 0x4, fixed_abs, tag = 'smem constant byte address 0x4 - core index']
  #allocation1 [shape = 'u32[144,128]{1,0:T(1,128)}', space=vmem, size = 0x12000, scoped, tag = 'internal scratch']
  %s0 = inlined_call_operand.vmem [shape: bf16[2,34,34,128], index: 0, kind: input, shape index: {}]
  %s1 = inlined_call_operand.vmem [shape: bf16[1152,128], index: 1, kind: input, shape index: {}]
  %s2 = inlined_call_operand.vmem [shape: f32[1,128], index: 2, kind: input, shape index: {}]
  %s3 = inlined_call_operand.vmem [shape: f32[1,128], index: 3, kind: input, shape index: {}]
  %s4 = inlined_call_operand.vmem [shape: bf16[2,1024,128], index: 4, kind: input, shape index: {}]
  %s5 = inlined_call_operand.hbm [shape: f32[2,1024,128], index: 5, kind: output, shape index: {}]
  %s6 = sld [smem:[#allocation0]]
  $region53: #{_lambda_.3} parent=0
    _
  %s8 = ssub.s32 1, %s6
  %s9 = scalar_select 0, %s8, %s6
  $region1: #{_lambda_.3} parent=0
    #allocation2 [shape = 'u8[524288]{0}', space=vmem, size = 0x80000, scoped, tag = 'output window, operand 0']
    #allocation3 [shape = 's32[2]{0}', space=sflag, size = 0x8, scoped, tag = 'scoped memory for _lambda_.3']
    %10 = vsyncpa [#allocation3], 0
    %s11 = scalar_lea.sflag [#allocation3], 1
    %12 = vsyncpa %s11, 0
    loop: start=0, step=1, limit=6
    $region2: #{_lambda_.3} parent=1 // loop_pre_header
      _
    $region3: #{_lambda_.3} parent=1 // loop_header
      %s14 = sphi 0, %s18
      %p15 = scmp.ge.s32.totalorder %s14, 6
      %s21 = sphi 0, %s33
      %s22 = sphi 0, %s29
      %s23 = sphi 0, %s21
      %s24 = sphi 0, %s22
      %s25 = sphi 0, %s23
      %s26 = sphi 0, %s24
      %s36 = sphi 0, %s38
      %s39 = sphi 0, %s36
      %s40 = sphi 0, %s39
      %s56 = sphi 0, %s40
      %s60 = sphi 0, %s60
      %s62 = sphi 0, %s60
      %s63 = sphi 0, %s62
      %s77 = sphi 0, %s63
      %s81 = sphi 0, %s81
      %s83 = sphi 0, %s81
      %s84 = sphi 0, %s83
      %s98 = sphi 0, %s84
      %s102 = sphi 0, %s102
      %s104 = sphi 0, %s102
      %s105 = sphi 0, %s104
      %s119 = sphi 0, %s105
      %s127 = sphi 0, %s129
      %s130 = sphi 0, %s127
      %s131 = sphi 0, %s130
      %s147 = sphi 0, %s131
      %s155 = sphi 0, %s157
      %s158 = sphi 0, %s155
      %s159 = sphi 0, %s158
      %s175 = sphi 0, %s159
    $region4: #{_lambda_.3} parent=1 // loop_header_branch
      %17 = sbr.rel (%p15) target = $region8
    $region5: #{_lambda_.3} parent=1 // loop_body
      %s19 = ssub.s32 %s14, 1
      %s20 = ssub.s32 %s14, 2
      %s27 = sadd.s32 1, %s22
      %p28 = scmp.ge.s32.totalorder %s27, 2
      %s29 = scalar_select %p28, 0, %s27
      %s30 = sadd.s32 1, %s21
      %s31 = scalar_select %p28, %s30, %s21
      %p32 = scmp.ge.s32.totalorder %s31, 2
      %s33 = scalar_select %p32, 0, %s31
      %s34 = ssub.s32 %s21, %s33
      %p35 = scmp.eq.s32.totalorder %s34, 0
      %s37 = sadd.s32 %s36, 1
      %s38 = scalar_select %p35, %s36, %s37
      %p41 = pneg %p35
      %p42 = scmp.eq.s32.totalorder %s14, 3
      %p43 = por %p41, %p42
      %p44 = scmp.ne.s32.totalorder %s36, %s39
      %p45 = scmp.eq.s32.totalorder %s14, 0
      %p46 = por %p44, %p45
      %p47 = scmp.ne.s32.totalorder %s36, %s39
      %p48 = scmp.eq.s32.totalorder %s19, 3
      %p49 = por %p47, %p48
      %p50 = scmp.ne.s32.totalorder %s39, %s40
      %p51 = scmp.eq.s32.totalorder %s19, 0
      %p52 = por %p50, %p51
      %p53 = scmp.ne.s32.totalorder %s39, %s40
      %p54 = scmp.eq.s32.totalorder %s20, 3
      %p55 = por %p53, %p54
      %p57 = scmp.ne.s32.totalorder %s40, %s56
      %p58 = scmp.eq.s32.totalorder %s20, 0
      %p59 = por %p57, %p58
      %s61 = sadd.s32 %s60, 1
      %p64 = scmp.eq.s32.totalorder %s14, 3
      %p65 = scmp.ne.s32.totalorder %s60, %s62
      %p66 = scmp.eq.s32.totalorder %s14, 0
      %p67 = por %p65, %p66
      %p68 = scmp.ne.s32.totalorder %s60, %s62
      %p69 = scmp.eq.s32.totalorder %s19, 3
      %p70 = por %p68, %p69
      %p71 = scmp.ne.s32.totalorder %s62, %s63
      %p72 = scmp.eq.s32.totalorder %s19, 0
      %p73 = por %p71, %p72
      %p74 = scmp.ne.s32.totalorder %s62, %s63
      %p75 = scmp.eq.s32.totalorder %s20, 3
      %p76 = por %p74, %p75
      %p78 = scmp.ne.s32.totalorder %s63, %s77
      %p79 = scmp.eq.s32.totalorder %s20, 0
      %p80 = por %p78, %p79
      %s82 = sadd.s32 %s81, 1
      %p85 = scmp.eq.s32.totalorder %s14, 3
      %p86 = scmp.ne.s32.totalorder %s81, %s83
      %p87 = scmp.eq.s32.totalorder %s14, 0
      %p88 = por %p86, %p87
      %p89 = scmp.ne.s32.totalorder %s81, %s83
      %p90 = scmp.eq.s32.totalorder %s19, 3
      %p91 = por %p89, %p90
      %p92 = scmp.ne.s32.totalorder %s83, %s84
      %p93 = scmp.eq.s32.totalorder %s19, 0
      %p94 = por %p92, %p93
      %p95 = scmp.ne.s32.totalorder %s83, %s84
      %p96 = scmp.eq.s32.totalorder %s20, 3
      %p97 = por %p95, %p96
      %p99 = scmp.ne.s32.totalorder %s84, %s98
      %p100 = scmp.eq.s32.totalorder %s20, 0
      %p101 = por %p99, %p100
      %s103 = sadd.s32 %s102, 1
      %p106 = scmp.eq.s32.totalorder %s14, 3
      %p107 = scmp.ne.s32.totalorder %s102, %s104
      %p108 = scmp.eq.s32.totalorder %s14, 0
      %p109 = por %p107, %p108
      %p110 = scmp.ne.s32.totalorder %s102, %s104
      %p111 = scmp.eq.s32.totalorder %s19, 3
      %p112 = por %p110, %p111
      %p113 = scmp.ne.s32.totalorder %s104, %s105
      %p114 = scmp.eq.s32.totalorder %s19, 0
      %p115 = por %p113, %p114
      %p116 = scmp.ne.s32.totalorder %s104, %s105
      %p117 = scmp.eq.s32.totalorder %s20, 3
      %p118 = por %p116, %p117
      %p120 = scmp.ne.s32.totalorder %s105, %s119
      %p121 = scmp.eq.s32.totalorder %s20, 0
      %p122 = por %p120, %p121
      %s123 = ssub.s32 %s21, %s33
      %s124 = ssub.s32 %s22, %s29
      %s125 = sor.u32 %s123, %s124
      %p126 = scmp.eq.s32.totalorder %s125, 0
      %s128 = sadd.s32 %s127, 1
      %s129 = scalar_select %p126, %s127, %s128
      %p132 = pneg %p126
      %p133 = scmp.eq.s32.totalorder %s14, 3
      %p134 = por %p132, %p133
      %p135 = scmp.ne.s32.totalorder %s127, %s130
      %p136 = scmp.eq.s32.totalorder %s14, 0
      %p137 = por %p135, %p136
      %p138 = scmp.ne.s32.totalorder %s127, %s130
      %p139 = scmp.eq.s32.totalorder %s19, 3
      %p140 = por %p138, %p139
      %p141 = scmp.ne.s32.totalorder %s130, %s131
      %p142 = scmp.eq.s32.totalorder %s19, 0
      %p143 = por %p141, %p142
      %p144 = scmp.ne.s32.totalorder %s130, %s131
      %p145 = scmp.eq.s32.totalorder %s20, 3
      %p146 = por %p144, %p145
      %p148 = scmp.ne.s32.totalorder %s131, %s147
      %p149 = scmp.eq.s32.totalorder %s20, 0
      %p150 = por %p148, %p149
      %s151 = ssub.s32 %s21, %s33
      %s152 = ssub.s32 %s22, %s29
      %s153 = sor.u32 %s151, %s152
      %p154 = scmp.eq.s32.totalorder %s153, 0
      %s156 = sadd.s32 %s155, 1
      %s157 = scalar_select %p154, %s155, %s156
      %p160 = pneg %p154
      %p161 = scmp.eq.s32.totalorder %s14, 3
      %p162 = por %p160, %p161
      %p163 = scmp.ne.s32.totalorder %s155, %s158
      %p164 = scmp.eq.s32.totalorder %s14, 0
      %p165 = por %p163, %p164
      %p166 = scmp.ne.s32.totalorder %s155, %s158
      %p167 = scmp.eq.s32.totalorder %s19, 3
      %p168 = por %p166, %p167
      %p169 = scmp.ne.s32.totalorder %s158, %s159
      %p170 = scmp.eq.s32.totalorder %s19, 0
      %p171 = por %p169, %p170
      %p172 = scmp.ne.s32.totalorder %s158, %s159
      %p173 = scmp.eq.s32.totalorder %s20, 3
      %p174 = por %p172, %p173
      %p176 = scmp.ne.s32.totalorder %s159, %s175
      %p177 = scmp.eq.s32.totalorder %s20, 0
      %p178 = por %p176, %p177
      %p179 = scmp.le.s32.totalorder 1, %s14
      %p180 = scmp.lt.s32.totalorder %s14, 5
      %p181 = pnand %p179, %p180
      %p182 = pneg %p181
      // Predicated region
      $region9: #{_lambda_.3} parent=5 // pred_check
        _
      $region10: #{_lambda_.3} parent=5 // pred_check_branch
        %184 = sbr.rel (%p181) target = $region12
      $region11: #{_lambda_.3} parent=5 // pred_region
        %s185 = ssub.s32 %s14, 1
        // Predicated region
        $region13: #{_lambda_.3} parent=11 // pred_check
          %p186 = pneg %p73
        $region14: #{_lambda_.3} parent=11 // pred_check_branch
          %188 = sbr.rel (%p186) target = $region16
        $region15: #{_lambda_.3} parent=11 // pred_region
          _
        $region16: #{_lambda_.3} parent=11 // pred_fallthru
          _
        // Predicated region
        $region17: #{_lambda_.3} parent=11 // pred_check
          %p189 = pneg %p94
        $region18: #{_lambda_.3} parent=11 // pred_check_branch
          %191 = sbr.rel (%p189) target = $region20
        $region19: #{_lambda_.3} parent=11 // pred_region
          _
        $region20: #{_lambda_.3} parent=11 // pred_fallthru
          _
        // Predicated region
        $region21: #{_lambda_.3} parent=11 // pred_check
          %p192 = pneg %p115
        $region22: #{_lambda_.3} parent=11 // pred_check_branch
          %194 = sbr.rel (%p192) target = $region24
        $region23: #{_lambda_.3} parent=11 // pred_region
          _
        $region24: #{_lambda_.3} parent=11 // pred_fallthru
          _
      $region12: #{_lambda_.3} parent=5 // pred_fallthru
        _
      %p195 = scmp.lt.s32.totalorder %s14, 4
      // Predicated region
      $region25: #{_lambda_.3} parent=5 // pred_check
        %p196 = pneg %p195
      $region26: #{_lambda_.3} parent=5 // pred_check_branch
        %198 = sbr.rel (%p196) target = $region28
      $region27: #{_lambda_.3} parent=5 // pred_region
        // Predicated region
        $region29: #{_lambda_.3} parent=27 // pred_check
          %p199 = pneg %p46
        $region30: #{_lambda_.3} parent=27 // pred_check_branch
          %201 = sbr.rel (%p199) target = $region32
        $region31: #{_lambda_.3} parent=27 // pred_region
          %p202 = scmp.lt.s32.totalorder %s21, 1
          %s203 = scalar_select %p202, %s21, 1
          %s204 = smul.addr %s203, 170
          %s205 = smul.addr %s204, 4
          %s206 = scalar_lea.vmem %s0, %s205
        $region32: #{_lambda_.3} parent=27 // pred_fallthru
          _
        // Predicated region
        $region33: #{_lambda_.3} parent=27 // pred_check
          %p207 = pneg %p137
        $region34: #{_lambda_.3} parent=27 // pred_check_branch
          %209 = sbr.rel (%p207) target = $region36
        $region35: #{_lambda_.3} parent=27 // pred_region
          %s210 = smul.u32 64, %s22
          %p211 = scmp.lt.s32.totalorder %s21, 1
          %s212 = scalar_select %p211, %s21, 1
          %p213 = scmp.lt.s32.totalorder %s210, 127
          %s214 = scalar_select %p213, %s210, 127
          %s215 = smul.addr %s212, 128
          %s216 = sadd.s32 %s214, %s215
          %s217 = smul.addr %s216, 4
          %s218 = scalar_lea.vmem %s4, %s217
          %s219 = smul.u32 64, %s22
        $region36: #{_lambda_.3} parent=27 // pred_fallthru
          _
      $region28: #{_lambda_.3} parent=5 // pred_fallthru
        _
      %p220 = scmp.le.s32.totalorder 1, %s14
      %p221 = scmp.lt.s32.totalorder %s14, 5
      %p222 = pnand %p220, %p221
      %p223 = pneg %p222
      // Predicated region
      $region37: #{_lambda_.3} parent=5 // pred_check
        _
      $region38: #{_lambda_.3} parent=5 // pred_check_branch
        %225 = sbr.rel (%p222) target = $region40
      $region39: #{_lambda_.3} parent=5 // pred_region
        %s226 = ssub.s32 %s14, 1
        %p227 = scmp.lt.s32.totalorder %s23, 1
        %s228 = scalar_select %p227, %s23, 1
        %s229 = smul.addr %s228, 170
        %s230 = smul.addr %s229, 4
        %s231 = scalar_lea.vmem %s0, %s230
        %p232 = pneg %p52
        %p233 = pneg %p49
        %p234 = pneg %p73
        %p235 = pneg %p70
        %p236 = pneg %p94
        %p237 = pneg %p91
        %p238 = pneg %p115
        %p239 = pneg %p112
        %s240 = smul.u32 64, %s24
        %p241 = scmp.lt.s32.totalorder %s23, 1
        %s242 = scalar_select %p241, %s23, 1
        %p243 = scmp.lt.s32.totalorder %s240, 127
        %s244 = scalar_select %p243, %s240, 127
        %s245 = smul.addr %s242, 128
        %s246 = sadd.s32 %s244, %s245
        %s247 = smul.addr %s246, 4
        %s248 = scalar_lea.vmem %s4, %s247
        %p249 = pneg %p143
        %p250 = pneg %p140
        %p251 = pneg %p171
        %p252 = pneg %p168
        %s253 = sand.u32 %s158, 1
        %s254 = scalar_lea.sflag [#allocation3], %s253
        %s255 = sand.u32 %s158, 1
        %s256 = smul.addr %s255, 512
        %s257 = scalar_lea.vmem [#allocation2], %s256
        %p258 = scmp.lt.s32.totalorder %s23, 1
        %s259 = scalar_select %p258, %s23, 1
        %s260 = smul.addr %s259, 170
        %s261 = smul.addr %s260, 4
        %s262 = scalar_lea.vmem %s0, %s261
        %s263 = smul.u32 64, %s24
        %p264 = scmp.lt.s32.totalorder %s23, 1
        %s265 = scalar_select %p264, %s23, 1
        %p266 = scmp.lt.s32.totalorder %s263, 127
        %s267 = scalar_select %p266, %s263, 127
        %s268 = smul.addr %s265, 128
        %s269 = sadd.s32 %s267, %s268
        %s270 = smul.addr %s269, 4
        %s271 = scalar_lea.vmem %s4, %s270
        %s272 = smul.u32 64, %s24
        %s273 = smul.u32 64, %s24
        %s275 = smul.u32 %s24, 16
        %s276 = smul.u32 %s275, 5
        %s277 = smul.addr %s276, 4
        %s278 = scalar_lea.vmem %s262, %s277
        %v279 = vld [vmem:[%s278] sm:$0xf]
        %v280 = vld [vmem:[%s278 + $0x4] sm:$0xf]
        %v281 = vld [vmem:[%s278 + $0x8] sm:$0xf]
        %v282 = vld [vmem:[%s278 + $0xc] sm:$0xf]
        %v283 = vld [vmem:[%s278 + $0x10] sm:$0x1]
        %v284 = vld [vmem:[%s278 + $0x14] sm:$0xf]
        %v285 = vld [vmem:[%s278 + $0x18] sm:$0xf]
        %v286 = vld [vmem:[%s278 + $0x1c] sm:$0xf]
        %v287 = vld [vmem:[%s278 + $0x20] sm:$0xf]
        %v288 = vld [vmem:[%s278 + $0x24] sm:$0x1]
        %v289 = vld [vmem:[%s278 + $0x28] sm:$0xf]
        %v290 = vld [vmem:[%s278 + $0x2c] sm:$0xf]
        %v291 = vld [vmem:[%s278 + $0x30] sm:$0xf]
        %v292 = vld [vmem:[%s278 + $0x34] sm:$0xf]
        %v293 = vld [vmem:[%s278 + $0x38] sm:$0x1]
        %v294 = vld [vmem:[%s278 + $0x3c] sm:$0xf]
        %v295 = vld [vmem:[%s278 + $0x40] sm:$0xf]
        %v296 = vld [vmem:[%s278 + $0x44] sm:$0xf]
        %v297 = vld [vmem:[%s278 + $0x48] sm:$0xf]
        %v298 = vld [vmem:[%s278 + $0x4c] sm:$0x1]
        %v299 = vld [vmem:[%s278 + $0x50] sm:$0xf]
        %v300 = vld [vmem:[%s278 + $0x54] sm:$0xf]
        %v301 = vld [vmem:[%s278 + $0x58] sm:$0xf]
        %v302 = vld [vmem:[%s278 + $0x5c] sm:$0xf]
        %v303 = vld [vmem:[%s278 + $0x60] sm:$0x1]
        %v304 = vld [vmem:[%s278 + $0x64] sm:$0xf]
        %v305 = vld [vmem:[%s278 + $0x68] sm:$0xf]
        %v306 = vld [vmem:[%s278 + $0x6c] sm:$0xf]
        %v307 = vld [vmem:[%s278 + $0x70] sm:$0xf]
        %v308 = vld [vmem:[%s278 + $0x74] sm:$0x1]
        %v309 = vld [vmem:[%s278 + $0x78] sm:$0xf]
        %v310 = vld [vmem:[%s278 + $0x7c] sm:$0xf]
        %v311 = vld [vmem:[%s278 + $0x80] sm:$0xf]
        %v312 = vld [vmem:[%s278 + $0x84] sm:$0xf]
        %v313 = vld [vmem:[%s278 + $0x88] sm:$0x1]
        %v314 = vld [vmem:[%s278 + $0x8c] sm:$0xf]
        %v315 = vld [vmem:[%s278 + $0x90] sm:$0xf]
        %v316 = vld [vmem:[%s278 + $0x94] sm:$0xf]
        %v317 = vld [vmem:[%s278 + $0x98] sm:$0xf]
        %v318 = vld [vmem:[%s278 + $0x9c] sm:$0x1]
        %v319 = vld [vmem:[%s278 + $0xa0] sm:$0xf]
        %v320 = vld [vmem:[%s278 + $0xa4] sm:$0xf]
        %v321 = vld [vmem:[%s278 + $0xa8] sm:$0xf]
        %v322 = vld [vmem:[%s278 + $0xac] sm:$0xf]
        %v323 = vld [vmem:[%s278 + $0xb0] sm:$0x1]
        %v324 = vld [vmem:[%s278 + $0xb4] sm:$0xf]
        %v325 = vld [vmem:[%s278 + $0xb8] sm:$0xf]
        %v326 = vld [vmem:[%s278 + $0xbc] sm:$0xf]
        %v327 = vld [vmem:[%s278 + $0xc0] sm:$0xf]
        %v328 = vld [vmem:[%s278 + $0xc4] sm:$0x1]
        %v329 = vld [vmem:[%s278 + $0xc8] sm:$0xf]
        %v330 = vld [vmem:[%s278 + $0xcc] sm:$0xf]
        %v331 = vld [vmem:[%s278 + $0xd0] sm:$0xf]
        %v332 = vld [vmem:[%s278 + $0xd4] sm:$0xf]
        %v333 = vld [vmem:[%s278 + $0xd8] sm:$0x1]
        %v334 = vld [vmem:[%s278 + $0xdc] sm:$0xf]
        %v335 = vld [vmem:[%s278 + $0xe0] sm:$0xf]
        %v336 = vld [vmem:[%s278 + $0xe4] sm:$0xf]
        %v337 = vld [vmem:[%s278 + $0xe8] sm:$0xf]
        %v338 = vld [vmem:[%s278 + $0xec] sm:$0x1]
        %v339 = vld [vmem:[%s278 + $0xf0] sm:$0xf]
        %v340 = vld [vmem:[%s278 + $0xf4] sm:$0xf]
        %v341 = vld [vmem:[%s278 + $0xf8] sm:$0xf]
        %v342 = vld [vmem:[%s278 + $0xfc] sm:$0xf]
        %v343 = vld [vmem:[%s278 + $0x100] sm:$0x1]
        %v344 = vld [vmem:[%s278 + $0x104] sm:$0xf]
        %v345 = vld [vmem:[%s278 + $0x108] sm:$0xf]
        %v346 = vld [vmem:[%s278 + $0x10c] sm:$0xf]
        %v347 = vld [vmem:[%s278 + $0x110] sm:$0xf]
        %v348 = vld [vmem:[%s278 + $0x114] sm:$0x1]
        %v349 = vld [vmem:[%s278 + $0x118] sm:$0xf]
        %v350 = vld [vmem:[%s278 + $0x11c] sm:$0xf]
        %v351 = vld [vmem:[%s278 + $0x120] sm:$0xf]
        %v352 = vld [vmem:[%s278 + $0x124] sm:$0xf]
        %v353 = vld [vmem:[%s278 + $0x128] sm:$0x1]
        %v354 = vld [vmem:[%s278 + $0x12c] sm:$0xf]
        %v355 = vld [vmem:[%s278 + $0x130] sm:$0xf]
        %v356 = vld [vmem:[%s278 + $0x134] sm:$0xf]
        %v357 = vld [vmem:[%s278 + $0x138] sm:$0xf]
        %v358 = vld [vmem:[%s278 + $0x13c] sm:$0x1]
        %v359 = vld [vmem:[%s278 + $0x140] sm:$0xf]
        %v360 = vld [vmem:[%s278 + $0x144] sm:$0xf]
        %v361 = vld [vmem:[%s278 + $0x148] sm:$0xf]
        %v362 = vld [vmem:[%s278 + $0x14c] sm:$0xf]
        %v363 = vld [vmem:[%s278 + $0x150] sm:$0x1]
        %v364 = vld [vmem:[%s278 + $0x154] sm:$0xf]
        %v365 = vld [vmem:[%s278 + $0x158] sm:$0xf]
        %v366 = vld [vmem:[%s278 + $0x15c] sm:$0xf]
        %v367 = vld [vmem:[%s278 + $0x160] sm:$0xf]
        %v368 = vld [vmem:[%s278 + $0x164] sm:$0x1]
        %v433 = vunpack.c.l.b16 %v279
        %v434 = vunpack.c.l.b16 %v280
        %v435 = vunpack.c.l.b16 %v281
        %v436 = vunpack.c.l.b16 %v282
        %v437 = vunpack.c.l.b16 %v284
        %v438 = vunpack.c.l.b16 %v285
        %v439 = vunpack.c.l.b16 %v286
        %v440 = vunpack.c.l.b16 %v287
        %v441 = vunpack.c.l.b16 %v289
        %v442 = vunpack.c.l.b16 %v290
        %v443 = vunpack.c.l.b16 %v291
        %v444 = vunpack.c.l.b16 %v292
        %v445 = vunpack.c.l.b16 %v294
        %v446 = vunpack.c.l.b16 %v295
        %v447 = vunpack.c.l.b16 %v296
        %v448 = vunpack.c.l.b16 %v297
        %v449 = vunpack.c.l.b16 %v299
        %v450 = vunpack.c.l.b16 %v300
        %v451 = vunpack.c.l.b16 %v301
        %v452 = vunpack.c.l.b16 %v302
        %v453 = vunpack.c.l.b16 %v304
        %v454 = vunpack.c.l.b16 %v305
        %v455 = vunpack.c.l.b16 %v306
        %v456 = vunpack.c.l.b16 %v307
        %v457 = vunpack.c.l.b16 %v309
        %v458 = vunpack.c.l.b16 %v310
        %v459 = vunpack.c.l.b16 %v311
        %v460 = vunpack.c.l.b16 %v312
        %v461 = vunpack.c.l.b16 %v314
        %v462 = vunpack.c.l.b16 %v315
        %v463 = vunpack.c.l.b16 %v316
        %v464 = vunpack.c.l.b16 %v317
        %v465 = vunpack.c.l.b16 %v319
        %v466 = vunpack.c.l.b16 %v320
        %v467 = vunpack.c.l.b16 %v321
        %v468 = vunpack.c.l.b16 %v322
        %v469 = vunpack.c.l.b16 %v324
        %v470 = vunpack.c.l.b16 %v325
        %v471 = vunpack.c.l.b16 %v326
        %v472 = vunpack.c.l.b16 %v327
        %v473 = vunpack.c.l.b16 %v329
        %v474 = vunpack.c.l.b16 %v330
        %v475 = vunpack.c.l.b16 %v331
        %v476 = vunpack.c.l.b16 %v332
        %v477 = vunpack.c.l.b16 %v334
        %v478 = vunpack.c.l.b16 %v335
        %v479 = vunpack.c.l.b16 %v336
        %v480 = vunpack.c.l.b16 %v337
        %v481 = vunpack.c.l.b16 %v339
        %v482 = vunpack.c.l.b16 %v340
        %v483 = vunpack.c.l.b16 %v341
        %v484 = vunpack.c.l.b16 %v342
        %v485 = vunpack.c.l.b16 %v344
        %v486 = vunpack.c.l.b16 %v345
        %v487 = vunpack.c.l.b16 %v346
        %v488 = vunpack.c.l.b16 %v347
        %v489 = vunpack.c.l.b16 %v349
        %v490 = vunpack.c.l.b16 %v350
        %v491 = vunpack.c.l.b16 %v351
        %v492 = vunpack.c.l.b16 %v352
        %v493 = vunpack.c.l.b16 %v354
        %v494 = vunpack.c.l.b16 %v355
        %v495 = vunpack.c.l.b16 %v356
        %v496 = vunpack.c.l.b16 %v357
        %v497 = vpack.c.b16 %v434, %v433
        %v498 = vpack.c.b16 %v436, %v435
        %v499 = vpack.c.b16 %v438, %v437
        %v500 = vpack.c.b16 %v440, %v439
        %v501 = vpack.c.b16 %v442, %v441
        %v502 = vpack.c.b16 %v444, %v443
        %v503 = vpack.c.b16 %v446, %v445
        %v504 = vpack.c.b16 %v448, %v447
        %v505 = vpack.c.b16 %v450, %v449
        %v506 = vpack.c.b16 %v452, %v451
        %v507 = vpack.c.b16 %v454, %v453
        %v508 = vpack.c.b16 %v456, %v455
        %v509 = vpack.c.b16 %v458, %v457
        %v510 = vpack.c.b16 %v460, %v459
        %v511 = vpack.c.b16 %v462, %v461
        %v512 = vpack.c.b16 %v464, %v463
        %v513 = vpack.c.b16 %v466, %v465
        %v514 = vpack.c.b16 %v468, %v467
        %v515 = vpack.c.b16 %v470, %v469
        %v516 = vpack.c.b16 %v472, %v471
        %v517 = vpack.c.b16 %v474, %v473
        %v518 = vpack.c.b16 %v476, %v475
        %v519 = vpack.c.b16 %v478, %v477
        %v520 = vpack.c.b16 %v480, %v479
        %v521 = vpack.c.b16 %v482, %v481
        %v522 = vpack.c.b16 %v484, %v483
        %v523 = vpack.c.b16 %v486, %v485
        %v524 = vpack.c.b16 %v488, %v487
        %v525 = vpack.c.b16 %v490, %v489
        %v526 = vpack.c.b16 %v492, %v491
        %v527 = vpack.c.b16 %v494, %v493
        %v528 = vpack.c.b16 %v496, %v495
        %v577 = vunpack.c.l.b16 %v283
        %v578 = vunpack.c.l.b16 %v288
        %v579 = vunpack.c.l.b16 %v293
        %v580 = vunpack.c.l.b16 %v298
        %v581 = vunpack.c.l.b16 %v303
        %v582 = vunpack.c.l.b16 %v308
        %v583 = vunpack.c.l.b16 %v313
        %v584 = vunpack.c.l.b16 %v318
        %v585 = vunpack.c.l.b16 %v323
        %v586 = vunpack.c.l.b16 %v328
        %v587 = vunpack.c.l.b16 %v333
        %v588 = vunpack.c.l.b16 %v338
        %v589 = vunpack.c.l.b16 %v343
        %v590 = vunpack.c.l.b16 %v348
        %v591 = vunpack.c.l.b16 %v353
        %v592 = vunpack.c.l.b16 %v358
        %v593 = vpack.c.b16 %v577, %v577
        %v594 = vpack.c.b16 %v578, %v578
        %v595 = vpack.c.b16 %v579, %v579
        %v596 = vpack.c.b16 %v580, %v580
        %v597 = vpack.c.b16 %v581, %v581
        %v598 = vpack.c.b16 %v582, %v582
        %v599 = vpack.c.b16 %v583, %v583
        %v600 = vpack.c.b16 %v584, %v584
        %v601 = vpack.c.b16 %v585, %v585
        %v602 = vpack.c.b16 %v586, %v586
        %v603 = vpack.c.b16 %v587, %v587
        %v604 = vpack.c.b16 %v588, %v588
        %v605 = vpack.c.b16 %v589, %v589
        %v606 = vpack.c.b16 %v590, %v590
        %v607 = vpack.c.b16 %v591, %v591
        %v608 = vpack.c.b16 %v592, %v592
        %vm609 = vsmask.f32 7424
        %v611 = vshrl.u32 %v497, 16
        %v613 = vshll.u32 %v497, 16
        %v615 = vrot.slane %v613, 1
        %v616 = vor.u32 %v611, %v615
        %v618 = vshll.u32 %v498, 16
        %v620 = vrot.slane %v618, 1
        %v621 = vsel %vm609, %v616, %v620
        %v622 = vshrl.u32 %v498, 16
        %v624 = vor.u32 %v622, %v620
        %v626 = vshll.u32 %v593, 16
        %v628 = vrot.slane %v626, 1
        %v629 = vsel %vm609, %v624, %v628
        %v631 = vshrl.u32 %v499, 16
        %v633 = vshll.u32 %v499, 16
        %v635 = vrot.slane %v633, 1
        %v636 = vor.u32 %v631, %v635
        %v638 = vshll.u32 %v500, 16
        %v640 = vrot.slane %v638, 1
        %v641 = vsel %vm609, %v636, %v640
        %v642 = vshrl.u32 %v500, 16
        %v644 = vor.u32 %v642, %v640
        %v646 = vshll.u32 %v594, 16
        %v648 = vrot.slane %v646, 1
        %v649 = vsel %vm609, %v644, %v648
        %v651 = vshrl.u32 %v501, 16
        %v653 = vshll.u32 %v501, 16
        %v655 = vrot.slane %v653, 1
        %v656 = vor.u32 %v651, %v655
        %v658 = vshll.u32 %v502, 16
        %v660 = vrot.slane %v658, 1
        %v661 = vsel %vm609, %v656, %v660
        %v662 = vshrl.u32 %v502, 16
        %v664 = vor.u32 %v662, %v660
        %v666 = vshll.u32 %v595, 16
        %v668 = vrot.slane %v666, 1
        %v669 = vsel %vm609, %v664, %v668
        %v671 = vshrl.u32 %v503, 16
        %v673 = vshll.u32 %v503, 16
        %v675 = vrot.slane %v673, 1
        %v676 = vor.u32 %v671, %v675
        %v678 = vshll.u32 %v504, 16
        %v680 = vrot.slane %v678, 1
        %v681 = vsel %vm609, %v676, %v680
        %v682 = vshrl.u32 %v504, 16
        %v684 = vor.u32 %v682, %v680
        %v686 = vshll.u32 %v596, 16
        %v688 = vrot.slane %v686, 1
        %v689 = vsel %vm609, %v684, %v688
        %v691 = vshrl.u32 %v505, 16
        %v693 = vshll.u32 %v505, 16
        %v695 = vrot.slane %v693, 1
        %v696 = vor.u32 %v691, %v695
        %v698 = vshll.u32 %v506, 16
        %v700 = vrot.slane %v698, 1
        %v701 = vsel %vm609, %v696, %v700
        %v702 = vshrl.u32 %v506, 16
        %v704 = vor.u32 %v702, %v700
        %v706 = vshll.u32 %v597, 16
        %v708 = vrot.slane %v706, 1
        %v709 = vsel %vm609, %v704, %v708
        %v711 = vshrl.u32 %v507, 16
        %v713 = vshll.u32 %v507, 16
        %v715 = vrot.slane %v713, 1
        %v716 = vor.u32 %v711, %v715
        %v718 = vshll.u32 %v508, 16
        %v720 = vrot.slane %v718, 1
        %v721 = vsel %vm609, %v716, %v720
        %v722 = vshrl.u32 %v508, 16
        %v724 = vor.u32 %v722, %v720
        %v726 = vshll.u32 %v598, 16
        %v728 = vrot.slane %v726, 1
        %v729 = vsel %vm609, %v724, %v728
        %v731 = vshrl.u32 %v509, 16
        %v733 = vshll.u32 %v509, 16
        %v735 = vrot.slane %v733, 1
        %v736 = vor.u32 %v731, %v735
        %v738 = vshll.u32 %v510, 16
        %v740 = vrot.slane %v738, 1
        %v741 = vsel %vm609, %v736, %v740
        %v742 = vshrl.u32 %v510, 16
        %v744 = vor.u32 %v742, %v740
        %v746 = vshll.u32 %v599, 16
        %v748 = vrot.slane %v746, 1
        %v749 = vsel %vm609, %v744, %v748
        %v751 = vshrl.u32 %v511, 16
        %v753 = vshll.u32 %v511, 16
        %v755 = vrot.slane %v753, 1
        %v756 = vor.u32 %v751, %v755
        %v758 = vshll.u32 %v512, 16
        %v760 = vrot.slane %v758, 1
        %v761 = vsel %vm609, %v756, %v760
        %v762 = vshrl.u32 %v512, 16
        %v764 = vor.u32 %v762, %v760
        %v766 = vshll.u32 %v600, 16
        %v768 = vrot.slane %v766, 1
        %v769 = vsel %vm609, %v764, %v768
        %v771 = vshrl.u32 %v513, 16
        %v773 = vshll.u32 %v513, 16
        %v775 = vrot.slane %v773, 1
        %v776 = vor.u32 %v771, %v775
        %v778 = vshll.u32 %v514, 16
        %v780 = vrot.slane %v778, 1
        %v781 = vsel %vm609, %v776, %v780
        %v782 = vshrl.u32 %v514, 16
        %v784 = vor.u32 %v782, %v780
        %v786 = vshll.u32 %v601, 16
        %v788 = vrot.slane %v786, 1
        %v789 = vsel %vm609, %v784, %v788
        %v791 = vshrl.u32 %v515, 16
        %v793 = vshll.u32 %v515, 16
        %v795 = vrot.slane %v793, 1
        %v796 = vor.u32 %v791, %v795
        %v798 = vshll.u32 %v516, 16
        %v800 = vrot.slane %v798, 1
        %v801 = vsel %vm609, %v796, %v800
        %v802 = vshrl.u32 %v516, 16
        %v804 = vor.u32 %v802, %v800
        %v806 = vshll.u32 %v602, 16
        %v808 = vrot.slane %v806, 1
        %v809 = vsel %vm609, %v804, %v808
        %v811 = vshrl.u32 %v517, 16
        %v813 = vshll.u32 %v517, 16
        %v815 = vrot.slane %v813, 1
        %v816 = vor.u32 %v811, %v815
        %v818 = vshll.u32 %v518, 16
        %v820 = vrot.slane %v818, 1
        %v821 = vsel %vm609, %v816, %v820
        %v822 = vshrl.u32 %v518, 16
        %v824 = vor.u32 %v822, %v820
        %v826 = vshll.u32 %v603, 16
        %v828 = vrot.slane %v826, 1
        %v829 = vsel %vm609, %v824, %v828
        %v831 = vshrl.u32 %v519, 16
        %v833 = vshll.u32 %v519, 16
        %v835 = vrot.slane %v833, 1
        %v836 = vor.u32 %v831, %v835
        %v838 = vshll.u32 %v520, 16
        %v840 = vrot.slane %v838, 1
        %v841 = vsel %vm609, %v836, %v840
        %v842 = vshrl.u32 %v520, 16
        %v844 = vor.u32 %v842, %v840
        %v846 = vshll.u32 %v604, 16
        %v848 = vrot.slane %v846, 1
        %v849 = vsel %vm609, %v844, %v848
        %v851 = vshrl.u32 %v521, 16
        %v853 = vshll.u32 %v521, 16
        %v855 = vrot.slane %v853, 1
        %v856 = vor.u32 %v851, %v855
        %v858 = vshll.u32 %v522, 16
        %v860 = vrot.slane %v858, 1
        %v861 = vsel %vm609, %v856, %v860
        %v862 = vshrl.u32 %v522, 16
        %v864 = vor.u32 %v862, %v860
        %v866 = vshll.u32 %v605, 16
        %v868 = vrot.slane %v866, 1
        %v869 = vsel %vm609, %v864, %v868
        %v871 = vshrl.u32 %v523, 16
        %v873 = vshll.u32 %v523, 16
        %v875 = vrot.slane %v873, 1
        %v876 = vor.u32 %v871, %v875
        %v878 = vshll.u32 %v524, 16
        %v880 = vrot.slane %v878, 1
        %v881 = vsel %vm609, %v876, %v880
        %v882 = vshrl.u32 %v524, 16
        %v884 = vor.u32 %v882, %v880
        %v886 = vshll.u32 %v606, 16
        %v888 = vrot.slane %v886, 1
        %v889 = vsel %vm609, %v884, %v888
        %v891 = vshrl.u32 %v525, 16
        %v893 = vshll.u32 %v525, 16
        %v895 = vrot.slane %v893, 1
        %v896 = vor.u32 %v891, %v895
        %v898 = vshll.u32 %v526, 16
        %v900 = vrot.slane %v898, 1
        %v901 = vsel %vm609, %v896, %v900
        %v902 = vshrl.u32 %v526, 16
        %v904 = vor.u32 %v902, %v900
        %v906 = vshll.u32 %v607, 16
        %v908 = vrot.slane %v906, 1
        %v909 = vsel %vm609, %v904, %v908
        %v911 = vshrl.u32 %v527, 16
        %v913 = vshll.u32 %v527, 16
        %v915 = vrot.slane %v913, 1
        %v916 = vor.u32 %v911, %v915
        %v918 = vshll.u32 %v528, 16
        %v920 = vrot.slane %v918, 1
        %v921 = vsel %vm609, %v916, %v920
        %v922 = vshrl.u32 %v528, 16
        %v924 = vor.u32 %v922, %v920
        %v926 = vshll.u32 %v608, 16
        %v928 = vrot.slane %v926, 1
        %v929 = vsel %vm609, %v924, %v928
        %vm962 = vcmask 1046528
        %v963 = vrot.slane %v497, 1
        %v964 = vrot.slane %v498, 1
        %v965 = vsel %vm962, %v963, %v964
        %v966 = vrot.slane %v593, 1
        %v967 = vsel %vm962, %v964, %v966
        %v968 = vrot.slane %v499, 1
        %v969 = vrot.slane %v500, 1
        %v970 = vsel %vm962, %v968, %v969
        %v971 = vrot.slane %v594, 1
        %v972 = vsel %vm962, %v969, %v971
        %v973 = vrot.slane %v501, 1
        %v974 = vrot.slane %v502, 1
        %v975 = vsel %vm962, %v973, %v974
        %v976 = vrot.slane %v595, 1
        %v977 = vsel %vm962, %v974, %v976
        %v978 = vrot.slane %v503, 1
        %v979 = vrot.slane %v504, 1
        %v980 = vsel %vm962, %v978, %v979
        %v981 = vrot.slane %v596, 1
        %v982 = vsel %vm962, %v979, %v981
        %v983 = vrot.slane %v505, 1
        %v984 = vrot.slane %v506, 1
        %v985 = vsel %vm962, %v983, %v984
        %v986 = vrot.slane %v597, 1
        %v987 = vsel %vm962, %v984, %v986
        %v988 = vrot.slane %v507, 1
        %v989 = vrot.slane %v508, 1
        %v990 = vsel %vm962, %v988, %v989
        %v991 = vrot.slane %v598, 1
        %v992 = vsel %vm962, %v989, %v991
        %v993 = vrot.slane %v509, 1
        %v994 = vrot.slane %v510, 1
        %v995 = vsel %vm962, %v993, %v994
        %v996 = vrot.slane %v599, 1
        %v997 = vsel %vm962, %v994, %v996
        %v998 = vrot.slane %v511, 1
        %v999 = vrot.slane %v512, 1
        %v1000 = vsel %vm962, %v998, %v999
        %v1001 = vrot.slane %v600, 1
        %v1002 = vsel %vm962, %v999, %v1001
        %v1003 = vrot.slane %v513, 1
        %v1004 = vrot.slane %v514, 1
        %v1005 = vsel %vm962, %v1003, %v1004
        %v1006 = vrot.slane %v601, 1
        %v1007 = vsel %vm962, %v1004, %v1006
        %v1008 = vrot.slane %v515, 1
        %v1009 = vrot.slane %v516, 1
        %v1010 = vsel %vm962, %v1008, %v1009
        %v1011 = vrot.slane %v602, 1
        %v1012 = vsel %vm962, %v1009, %v1011
        %v1013 = vrot.slane %v517, 1
        %v1014 = vrot.slane %v518, 1
        %v1015 = vsel %vm962, %v1013, %v1014
        %v1016 = vrot.slane %v603, 1
        %v1017 = vsel %vm962, %v1014, %v1016
        %v1018 = vrot.slane %v519, 1
        %v1019 = vrot.slane %v520, 1
        %v1020 = vsel %vm962, %v1018, %v1019
        %v1021 = vrot.slane %v604, 1
        %v1022 = vsel %vm962, %v1019, %v1021
        %v1023 = vrot.slane %v521, 1
        %v1024 = vrot.slane %v522, 1
        %v1025 = vsel %vm962, %v1023, %v1024
        %v1026 = vrot.slane %v605, 1
        %v1027 = vsel %vm962, %v1024, %v1026
        %v1028 = vrot.slane %v523, 1
        %v1029 = vrot.slane %v524, 1
        %v1030 = vsel %vm962, %v1028, %v1029
        %v1031 = vrot.slane %v606, 1
        %v1032 = vsel %vm962, %v1029, %v1031
        %v1033 = vrot.slane %v525, 1
        %v1034 = vrot.slane %v526, 1
        %v1035 = vsel %vm962, %v1033, %v1034
        %v1036 = vrot.slane %v607, 1
        %v1037 = vsel %vm962, %v1034, %v1036
        %v1038 = vrot.slane %v527, 1
        %v1039 = vrot.slane %v528, 1
        %v1040 = vsel %vm962, %v1038, %v1039
        %v1041 = vrot.slane %v608, 1
        %v1042 = vsel %vm962, %v1039, %v1041
        %v1079 = vunpack.c.l.b16 %v359
        %v1080 = vunpack.c.l.b16 %v360
        %v1081 = vunpack.c.l.b16 %v361
        %v1082 = vunpack.c.l.b16 %v362
        %v1083 = vpack.c.b16 %v1080, %v1079
        %v1084 = vpack.c.b16 %v1082, %v1081
        %v1088 = vunpack.c.l.b16 %v363
        %v1089 = vpack.c.b16 %v1088, %v1088
        %v1091 = vshrl.u32 %v1083, 16
        %v1093 = vshll.u32 %v1083, 16
        %v1095 = vrot.slane %v1093, 1
        %v1096 = vor.u32 %v1091, %v1095
        %v1098 = vshll.u32 %v1084, 16
        %v1100 = vrot.slane %v1098, 1
        %v1101 = vsel %vm609, %v1096, %v1100
        %v1102 = vshrl.u32 %v1084, 16
        %v1104 = vor.u32 %v1102, %v1100
        %v1106 = vshll.u32 %v1089, 16
        %v1108 = vrot.slane %v1106, 1
        %v1109 = vsel %vm609, %v1104, %v1108
        %v1112 = vrot.slane %v1083, 1
        %v1113 = vrot.slane %v1084, 1
        %v1114 = vsel %vm962, %v1112, %v1113
        %v1115 = vrot.slane %v1089, 1
        %v1116 = vsel %vm962, %v1113, %v1115
        %v1123 = vunpack.c.l.b16 %v364
        %v1124 = vunpack.c.l.b16 %v365
        %v1125 = vunpack.c.l.b16 %v366
        %v1126 = vunpack.c.l.b16 %v367
        %v1127 = vpack.c.b16 %v1124, %v1123
        %v1128 = vpack.c.b16 %v1126, %v1125
        %v1132 = vunpack.c.l.b16 %v368
        %v1133 = vpack.c.b16 %v1132, %v1132
        %v1135 = vshrl.u32 %v1127, 16
        %v1137 = vshll.u32 %v1127, 16
        %v1139 = vrot.slane %v1137, 1
        %v1140 = vor.u32 %v1135, %v1139
        %v1142 = vshll.u32 %v1128, 16
        %v1144 = vrot.slane %v1142, 1
        %v1145 = vsel %vm609, %v1140, %v1144
        %v1146 = vshrl.u32 %v1128, 16
        %v1148 = vor.u32 %v1146, %v1144
        %v1150 = vshll.u32 %v1133, 16
        %v1152 = vrot.slane %v1150, 1
        %v1153 = vsel %vm609, %v1148, %v1152
        %v1156 = vrot.slane %v1127, 1
        %v1157 = vrot.slane %v1128, 1
        %v1158 = vsel %vm962, %v1156, %v1157
        %v1159 = vrot.slane %v1133, 1
        %v1160 = vsel %vm962, %v1157, %v1159
        %v1163 = vld [vmem:[%s1] sm:$0xf]
        %v1164 = vld [vmem:[%s1 + $0x4] sm:$0xf]
        %v1165 = vld [vmem:[%s1 + $0x8] sm:$0xf]
        %v1166 = vld [vmem:[%s1 + $0xc] sm:$0xf]
        %v1167 = vld [vmem:[%s1 + $0x10] sm:$0xf]
        %v1168 = vld [vmem:[%s1 + $0x14] sm:$0xf]
        %v1169 = vld [vmem:[%s1 + $0x18] sm:$0xf]
        %v1170 = vld [vmem:[%s1 + $0x1c] sm:$0xf]
        %v1171 = vld [vmem:[%s1 + $0x20] sm:$0xf]
        %v1172 = vld [vmem:[%s1 + $0x24] sm:$0xf]
        %v1173 = vld [vmem:[%s1 + $0x28] sm:$0xf]
        %v1174 = vld [vmem:[%s1 + $0x2c] sm:$0xf]
        %v1175 = vld [vmem:[%s1 + $0x30] sm:$0xf]
        %v1176 = vld [vmem:[%s1 + $0x34] sm:$0xf]
        %v1177 = vld [vmem:[%s1 + $0x38] sm:$0xf]
        %v1178 = vld [vmem:[%s1 + $0x3c] sm:$0xf]
        %v1179 = vld [vmem:[%s1 + $0x40] sm:$0xf]
        %v1180 = vld [vmem:[%s1 + $0x44] sm:$0xf]
        %v1181 = vld [vmem:[%s1 + $0x48] sm:$0xf]
        %v1182 = vld [vmem:[%s1 + $0x4c] sm:$0xf]
        %v1183 = vld [vmem:[%s1 + $0x50] sm:$0xf]
        %v1184 = vld [vmem:[%s1 + $0x54] sm:$0xf]
        %v1185 = vld [vmem:[%s1 + $0x58] sm:$0xf]
        %v1186 = vld [vmem:[%s1 + $0x5c] sm:$0xf]
        %v1187 = vld [vmem:[%s1 + $0x60] sm:$0xf]
        %v1188 = vld [vmem:[%s1 + $0x64] sm:$0xf]
        %v1189 = vld [vmem:[%s1 + $0x68] sm:$0xf]
        %v1190 = vld [vmem:[%s1 + $0x6c] sm:$0xf]
        %v1191 = vld [vmem:[%s1 + $0x70] sm:$0xf]
        %v1192 = vld [vmem:[%s1 + $0x74] sm:$0xf]
        %v1193 = vld [vmem:[%s1 + $0x78] sm:$0xf]
        %v1194 = vld [vmem:[%s1 + $0x7c] sm:$0xf]
        %v1195 = vld [vmem:[%s1 + $0x80] sm:$0xf]
        %v1196 = vld [vmem:[%s1 + $0x84] sm:$0xf]
        %v1197 = vld [vmem:[%s1 + $0x88] sm:$0xf]
        %v1198 = vld [vmem:[%s1 + $0x8c] sm:$0xf]
        %v1199 = vld [vmem:[%s1 + $0x90] sm:$0xf]
        %v1200 = vld [vmem:[%s1 + $0x94] sm:$0xf]
        %v1201 = vld [vmem:[%s1 + $0x98] sm:$0xf]
        %v1202 = vld [vmem:[%s1 + $0x9c] sm:$0xf]
        %v1203 = vld [vmem:[%s1 + $0xa0] sm:$0xf]
        %v1204 = vld [vmem:[%s1 + $0xa4] sm:$0xf]
        %v1205 = vld [vmem:[%s1 + $0xa8] sm:$0xf]
        %v1206 = vld [vmem:[%s1 + $0xac] sm:$0xf]
        %v1207 = vld [vmem:[%s1 + $0xb0] sm:$0xf]
        %v1208 = vld [vmem:[%s1 + $0xb4] sm:$0xf]
        %v1209 = vld [vmem:[%s1 + $0xb8] sm:$0xf]
        %v1210 = vld [vmem:[%s1 + $0xbc] sm:$0xf]
        %v1211 = vld [vmem:[%s1 + $0xc0] sm:$0xf]
        %v1212 = vld [vmem:[%s1 + $0xc4] sm:$0xf]
        %v1213 = vld [vmem:[%s1 + $0xc8] sm:$0xf]
        %v1214 = vld [vmem:[%s1 + $0xcc] sm:$0xf]
        %v1215 = vld [vmem:[%s1 + $0xd0] sm:$0xf]
        %v1216 = vld [vmem:[%s1 + $0xd4] sm:$0xf]
        %v1217 = vld [vmem:[%s1 + $0xd8] sm:$0xf]
        %v1218 = vld [vmem:[%s1 + $0xdc] sm:$0xf]
        %v1219 = vld [vmem:[%s1 + $0xe0] sm:$0xf]
        %v1220 = vld [vmem:[%s1 + $0xe4] sm:$0xf]
        %v1221 = vld [vmem:[%s1 + $0xe8] sm:$0xf]
        %v1222 = vld [vmem:[%s1 + $0xec] sm:$0xf]
        %v1223 = vld [vmem:[%s1 + $0xf0] sm:$0xf]
        %v1224 = vld [vmem:[%s1 + $0xf4] sm:$0xf]
        %v1225 = vld [vmem:[%s1 + $0xf8] sm:$0xf]
        %v1226 = vld [vmem:[%s1 + $0xfc] sm:$0xf]
        %v1227 = vld [vmem:[%s1 + $0x100] sm:$0xf]
        %v1228 = vld [vmem:[%s1 + $0x104] sm:$0xf]
        %v1229 = vld [vmem:[%s1 + $0x108] sm:$0xf]
        %v1230 = vld [vmem:[%s1 + $0x10c] sm:$0xf]
        %v1231 = vld [vmem:[%s1 + $0x110] sm:$0xf]
        %v1232 = vld [vmem:[%s1 + $0x114] sm:$0xf]
        %v1233 = vld [vmem:[%s1 + $0x118] sm:$0xf]
        %v1234 = vld [vmem:[%s1 + $0x11c] sm:$0xf]
        %v1235 = vld [vmem:[%s1 + $0x120] sm:$0xf]
        %v1236 = vld [vmem:[%s1 + $0x124] sm:$0xf]
        %v1237 = vld [vmem:[%s1 + $0x128] sm:$0xf]
        %v1238 = vld [vmem:[%s1 + $0x12c] sm:$0xf]
        %v1239 = vld [vmem:[%s1 + $0x130] sm:$0xf]
        %v1240 = vld [vmem:[%s1 + $0x134] sm:$0xf]
        %v1241 = vld [vmem:[%s1 + $0x138] sm:$0xf]
        %v1242 = vld [vmem:[%s1 + $0x13c] sm:$0xf]
        %v1243 = vld [vmem:[%s1 + $0x140] sm:$0xf]
        %v1244 = vld [vmem:[%s1 + $0x144] sm:$0xf]
        %v1245 = vld [vmem:[%s1 + $0x148] sm:$0xf]
        %v1246 = vld [vmem:[%s1 + $0x14c] sm:$0xf]
        %v1247 = vld [vmem:[%s1 + $0x150] sm:$0xf]
        %v1248 = vld [vmem:[%s1 + $0x154] sm:$0xf]
        %v1249 = vld [vmem:[%s1 + $0x158] sm:$0xf]
        %v1250 = vld [vmem:[%s1 + $0x15c] sm:$0xf]
        %v1251 = vld [vmem:[%s1 + $0x160] sm:$0xf]
        %v1252 = vld [vmem:[%s1 + $0x164] sm:$0xf]
        %v1253 = vld [vmem:[%s1 + $0x168] sm:$0xf]
        %v1254 = vld [vmem:[%s1 + $0x16c] sm:$0xf]
        %v1255 = vld [vmem:[%s1 + $0x170] sm:$0xf]
        %v1256 = vld [vmem:[%s1 + $0x174] sm:$0xf]
        %v1257 = vld [vmem:[%s1 + $0x178] sm:$0xf]
        %v1258 = vld [vmem:[%s1 + $0x17c] sm:$0xf]
        %v1259 = vld [vmem:[%s1 + $0x180] sm:$0xf]
        %v1260 = vld [vmem:[%s1 + $0x184] sm:$0xf]
        %v1261 = vld [vmem:[%s1 + $0x188] sm:$0xf]
        %v1262 = vld [vmem:[%s1 + $0x18c] sm:$0xf]
        %v1263 = vld [vmem:[%s1 + $0x190] sm:$0xf]
        %v1264 = vld [vmem:[%s1 + $0x194] sm:$0xf]
        %v1265 = vld [vmem:[%s1 + $0x198] sm:$0xf]
        %v1266 = vld [vmem:[%s1 + $0x19c] sm:$0xf]
        %v1267 = vld [vmem:[%s1 + $0x1a0] sm:$0xf]
        %v1268 = vld [vmem:[%s1 + $0x1a4] sm:$0xf]
        %v1269 = vld [vmem:[%s1 + $0x1a8] sm:$0xf]
        %v1270 = vld [vmem:[%s1 + $0x1ac] sm:$0xf]
        %v1271 = vld [vmem:[%s1 + $0x1b0] sm:$0xf]
        %v1272 = vld [vmem:[%s1 + $0x1b4] sm:$0xf]
        %v1273 = vld [vmem:[%s1 + $0x1b8] sm:$0xf]
        %v1274 = vld [vmem:[%s1 + $0x1bc] sm:$0xf]
        %v1275 = vld [vmem:[%s1 + $0x1c0] sm:$0xf]
        %v1276 = vld [vmem:[%s1 + $0x1c4] sm:$0xf]
        %v1277 = vld [vmem:[%s1 + $0x1c8] sm:$0xf]
        %v1278 = vld [vmem:[%s1 + $0x1cc] sm:$0xf]
        %v1279 = vld [vmem:[%s1 + $0x1d0] sm:$0xf]
        %v1280 = vld [vmem:[%s1 + $0x1d4] sm:$0xf]
        %v1281 = vld [vmem:[%s1 + $0x1d8] sm:$0xf]
        %v1282 = vld [vmem:[%s1 + $0x1dc] sm:$0xf]
        %v1283 = vld [vmem:[%s1 + $0x1e0] sm:$0xf]
        %v1284 = vld [vmem:[%s1 + $0x1e4] sm:$0xf]
        %v1285 = vld [vmem:[%s1 + $0x1e8] sm:$0xf]
        %v1286 = vld [vmem:[%s1 + $0x1ec] sm:$0xf]
        %v1287 = vld [vmem:[%s1 + $0x1f0] sm:$0xf]
        %v1288 = vld [vmem:[%s1 + $0x1f4] sm:$0xf]
        %v1289 = vld [vmem:[%s1 + $0x1f8] sm:$0xf]
        %v1290 = vld [vmem:[%s1 + $0x1fc] sm:$0xf]
        %v1291 = vld [vmem:[%s1 + $0x200] sm:$0xf]
        %v1292 = vld [vmem:[%s1 + $0x204] sm:$0xf]
        %v1293 = vld [vmem:[%s1 + $0x208] sm:$0xf]
        %v1294 = vld [vmem:[%s1 + $0x20c] sm:$0xf]
        %v1295 = vld [vmem:[%s1 + $0x210] sm:$0xf]
        %v1296 = vld [vmem:[%s1 + $0x214] sm:$0xf]
        %v1297 = vld [vmem:[%s1 + $0x218] sm:$0xf]
        %v1298 = vld [vmem:[%s1 + $0x21c] sm:$0xf]
        %v1299 = vld [vmem:[%s1 + $0x220] sm:$0xf]
        %v1300 = vld [vmem:[%s1 + $0x224] sm:$0xf]
        %v1301 = vld [vmem:[%s1 + $0x228] sm:$0xf]
        %v1302 = vld [vmem:[%s1 + $0x22c] sm:$0xf]
        %v1303 = vld [vmem:[%s1 + $0x230] sm:$0xf]
        %v1304 = vld [vmem:[%s1 + $0x234] sm:$0xf]
        %v1305 = vld [vmem:[%s1 + $0x238] sm:$0xf]
        %v1306 = vld [vmem:[%s1 + $0x23c] sm:$0xf]
        %v1451 = vunpack.c.l.b16 %v1163
        %v1452 = vunpack.c.l.b16 %v1164
        %v1453 = vunpack.c.l.b16 %v1165
        %v1454 = vunpack.c.l.b16 %v1166
        %v1455 = vunpack.c.l.b16 %v1167
        %v1456 = vunpack.c.l.b16 %v1168
        %v1457 = vunpack.c.l.b16 %v1169
        %v1458 = vunpack.c.l.b16 %v1170
        %v1459 = vunpack.c.l.b16 %v1171
        %v1460 = vunpack.c.l.b16 %v1172
        %v1461 = vunpack.c.l.b16 %v1173
        %v1462 = vunpack.c.l.b16 %v1174
        %v1463 = vunpack.c.l.b16 %v1175
        %v1464 = vunpack.c.l.b16 %v1176
        %v1465 = vunpack.c.l.b16 %v1177
        %v1466 = vunpack.c.l.b16 %v1178
        %v1467 = vunpack.c.l.b16 %v1179
        %v1468 = vunpack.c.l.b16 %v1180
        %v1469 = vunpack.c.l.b16 %v1181
        %v1470 = vunpack.c.l.b16 %v1182
        %v1471 = vunpack.c.l.b16 %v1183
        %v1472 = vunpack.c.l.b16 %v1184
        %v1473 = vunpack.c.l.b16 %v1185
        %v1474 = vunpack.c.l.b16 %v1186
        %v1475 = vunpack.c.l.b16 %v1187
        %v1476 = vunpack.c.l.b16 %v1188
        %v1477 = vunpack.c.l.b16 %v1189
        %v1478 = vunpack.c.l.b16 %v1190
        %v1479 = vunpack.c.l.b16 %v1191
        %v1480 = vunpack.c.l.b16 %v1192
        %v1481 = vunpack.c.l.b16 %v1193
        %v1482 = vunpack.c.l.b16 %v1194
        %v1483 = vunpack.c.l.b16 %v1195
        %v1484 = vunpack.c.l.b16 %v1196
        %v1485 = vunpack.c.l.b16 %v1197
        %v1486 = vunpack.c.l.b16 %v1198
        %v1487 = vunpack.c.l.b16 %v1199
        %v1488 = vunpack.c.l.b16 %v1200
        %v1489 = vunpack.c.l.b16 %v1201
        %v1490 = vunpack.c.l.b16 %v1202
        %v1491 = vunpack.c.l.b16 %v1203
        %v1492 = vunpack.c.l.b16 %v1204
        %v1493 = vunpack.c.l.b16 %v1205
        %v1494 = vunpack.c.l.b16 %v1206
        %v1495 = vunpack.c.l.b16 %v1207
        %v1496 = vunpack.c.l.b16 %v1208
        %v1497 = vunpack.c.l.b16 %v1209
        %v1498 = vunpack.c.l.b16 %v1210
        %v1499 = vunpack.c.l.b16 %v1211
        %v1500 = vunpack.c.l.b16 %v1212
        %v1501 = vunpack.c.l.b16 %v1213
        %v1502 = vunpack.c.l.b16 %v1214
        %v1503 = vunpack.c.l.b16 %v1215
        %v1504 = vunpack.c.l.b16 %v1216
        %v1505 = vunpack.c.l.b16 %v1217
        %v1506 = vunpack.c.l.b16 %v1218
        %v1507 = vunpack.c.l.b16 %v1219
        %v1508 = vunpack.c.l.b16 %v1220
        %v1509 = vunpack.c.l.b16 %v1221
        %v1510 = vunpack.c.l.b16 %v1222
        %v1511 = vunpack.c.l.b16 %v1223
        %v1512 = vunpack.c.l.b16 %v1224
        %v1513 = vunpack.c.l.b16 %v1225
        %v1514 = vunpack.c.l.b16 %v1226
        %v1515 = vunpack.c.l.b16 %v1227
        %v1516 = vunpack.c.l.b16 %v1228
        %v1517 = vunpack.c.l.b16 %v1229
        %v1518 = vunpack.c.l.b16 %v1230
        %v1519 = vunpack.c.l.b16 %v1231
        %v1520 = vunpack.c.l.b16 %v1232
        %v1521 = vunpack.c.l.b16 %v1233
        %v1522 = vunpack.c.l.b16 %v1234
        %v1523 = vunpack.c.l.b16 %v1235
        %v1524 = vunpack.c.l.b16 %v1236
        %v1525 = vunpack.c.l.b16 %v1237
        %v1526 = vunpack.c.l.b16 %v1238
        %v1527 = vunpack.c.l.b16 %v1239
        %v1528 = vunpack.c.l.b16 %v1240
        %v1529 = vunpack.c.l.b16 %v1241
        %v1530 = vunpack.c.l.b16 %v1242
        %v1531 = vunpack.c.l.b16 %v1243
        %v1532 = vunpack.c.l.b16 %v1244
        %v1533 = vunpack.c.l.b16 %v1245
        %v1534 = vunpack.c.l.b16 %v1246
        %v1535 = vunpack.c.l.b16 %v1247
        %v1536 = vunpack.c.l.b16 %v1248
        %v1537 = vunpack.c.l.b16 %v1249
        %v1538 = vunpack.c.l.b16 %v1250
        %v1539 = vunpack.c.l.b16 %v1251
        %v1540 = vunpack.c.l.b16 %v1252
        %v1541 = vunpack.c.l.b16 %v1253
        %v1542 = vunpack.c.l.b16 %v1254
        %v1543 = vunpack.c.l.b16 %v1255
        %v1544 = vunpack.c.l.b16 %v1256
        %v1545 = vunpack.c.l.b16 %v1257
        %v1546 = vunpack.c.l.b16 %v1258
        %v1547 = vunpack.c.l.b16 %v1259
        %v1548 = vunpack.c.l.b16 %v1260
        %v1549 = vunpack.c.l.b16 %v1261
        %v1550 = vunpack.c.l.b16 %v1262
        %v1551 = vunpack.c.l.b16 %v1263
        %v1552 = vunpack.c.l.b16 %v1264
        %v1553 = vunpack.c.l.b16 %v1265
        %v1554 = vunpack.c.l.b16 %v1266
        %v1555 = vunpack.c.l.b16 %v1267
        %v1556 = vunpack.c.l.b16 %v1268
        %v1557 = vunpack.c.l.b16 %v1269
        %v1558 = vunpack.c.l.b16 %v1270
        %v1559 = vunpack.c.l.b16 %v1271
        %v1560 = vunpack.c.l.b16 %v1272
        %v1561 = vunpack.c.l.b16 %v1273
        %v1562 = vunpack.c.l.b16 %v1274
        %v1563 = vunpack.c.l.b16 %v1275
        %v1564 = vunpack.c.l.b16 %v1276
        %v1565 = vunpack.c.l.b16 %v1277
        %v1566 = vunpack.c.l.b16 %v1278
        %v1567 = vunpack.c.l.b16 %v1279
        %v1568 = vunpack.c.l.b16 %v1280
        %v1569 = vunpack.c.l.b16 %v1281
        %v1570 = vunpack.c.l.b16 %v1282
        %v1571 = vunpack.c.l.b16 %v1283
        %v1572 = vunpack.c.l.b16 %v1284
        %v1573 = vunpack.c.l.b16 %v1285
        %v1574 = vunpack.c.l.b16 %v1286
        %v1575 = vunpack.c.l.b16 %v1287
        %v1576 = vunpack.c.l.b16 %v1288
        %v1577 = vunpack.c.l.b16 %v1289
        %v1578 = vunpack.c.l.b16 %v1290
        %v1579 = vunpack.c.l.b16 %v1291
        %v1580 = vunpack.c.l.b16 %v1292
        %v1581 = vunpack.c.l.b16 %v1293
        %v1582 = vunpack.c.l.b16 %v1294
        %v1583 = vunpack.c.l.b16 %v1295
        %v1584 = vunpack.c.l.b16 %v1296
        %v1585 = vunpack.c.l.b16 %v1297
        %v1586 = vunpack.c.l.b16 %v1298
        %v1587 = vunpack.c.l.b16 %v1299
        %v1588 = vunpack.c.l.b16 %v1300
        %v1589 = vunpack.c.l.b16 %v1301
        %v1590 = vunpack.c.l.b16 %v1302
        %v1591 = vunpack.c.l.b16 %v1303
        %v1592 = vunpack.c.l.b16 %v1304
        %v1593 = vunpack.c.l.b16 %v1305
        %v1594 = vunpack.c.l.b16 %v1306
        %v1595 = vpack.c.b16 %v1452, %v1451
        %v1596 = vpack.c.b16 %v1454, %v1453
        %v1597 = vpack.c.b16 %v1456, %v1455
        %v1598 = vpack.c.b16 %v1458, %v1457
        %v1599 = vpack.c.b16 %v1460, %v1459
        %v1600 = vpack.c.b16 %v1462, %v1461
        %v1601 = vpack.c.b16 %v1464, %v1463
        %v1602 = vpack.c.b16 %v1466, %v1465
        %v1603 = vpack.c.b16 %v1468, %v1467
        %v1604 = vpack.c.b16 %v1470, %v1469
        %v1605 = vpack.c.b16 %v1472, %v1471
        %v1606 = vpack.c.b16 %v1474, %v1473
        %v1607 = vpack.c.b16 %v1476, %v1475
        %v1608 = vpack.c.b16 %v1478, %v1477
        %v1609 = vpack.c.b16 %v1480, %v1479
        %v1610 = vpack.c.b16 %v1482, %v1481
        %v1611 = vpack.c.b16 %v1484, %v1483
        %v1612 = vpack.c.b16 %v1486, %v1485
        %v1613 = vpack.c.b16 %v1488, %v1487
        %v1614 = vpack.c.b16 %v1490, %v1489
        %v1615 = vpack.c.b16 %v1492, %v1491
        %v1616 = vpack.c.b16 %v1494, %v1493
        %v1617 = vpack.c.b16 %v1496, %v1495
        %v1618 = vpack.c.b16 %v1498, %v1497
        %v1619 = vpack.c.b16 %v1500, %v1499
        %v1620 = vpack.c.b16 %v1502, %v1501
        %v1621 = vpack.c.b16 %v1504, %v1503
        %v1622 = vpack.c.b16 %v1506, %v1505
        %v1623 = vpack.c.b16 %v1508, %v1507
        %v1624 = vpack.c.b16 %v1510, %v1509
        %v1625 = vpack.c.b16 %v1512, %v1511
        %v1626 = vpack.c.b16 %v1514, %v1513
        %v1627 = vpack.c.b16 %v1516, %v1515
        %v1628 = vpack.c.b16 %v1518, %v1517
        %v1629 = vpack.c.b16 %v1520, %v1519
        %v1630 = vpack.c.b16 %v1522, %v1521
        %v1631 = vpack.c.b16 %v1524, %v1523
        %v1632 = vpack.c.b16 %v1526, %v1525
        %v1633 = vpack.c.b16 %v1528, %v1527
        %v1634 = vpack.c.b16 %v1530, %v1529
        %v1635 = vpack.c.b16 %v1532, %v1531
        %v1636 = vpack.c.b16 %v1534, %v1533
        %v1637 = vpack.c.b16 %v1536, %v1535
        %v1638 = vpack.c.b16 %v1538, %v1537
        %v1639 = vpack.c.b16 %v1540, %v1539
        %v1640 = vpack.c.b16 %v1542, %v1541
        %v1641 = vpack.c.b16 %v1544, %v1543
        %v1642 = vpack.c.b16 %v1546, %v1545
        %v1643 = vpack.c.b16 %v1548, %v1547
        %v1644 = vpack.c.b16 %v1550, %v1549
        %v1645 = vpack.c.b16 %v1552, %v1551
        %v1646 = vpack.c.b16 %v1554, %v1553
        %v1647 = vpack.c.b16 %v1556, %v1555
        %v1648 = vpack.c.b16 %v1558, %v1557
        %v1649 = vpack.c.b16 %v1560, %v1559
        %v1650 = vpack.c.b16 %v1562, %v1561
        %v1651 = vpack.c.b16 %v1564, %v1563
        %v1652 = vpack.c.b16 %v1566, %v1565
        %v1653 = vpack.c.b16 %v1568, %v1567
        %v1654 = vpack.c.b16 %v1570, %v1569
        %v1655 = vpack.c.b16 %v1572, %v1571
        %v1656 = vpack.c.b16 %v1574, %v1573
        %v1657 = vpack.c.b16 %v1576, %v1575
        %v1658 = vpack.c.b16 %v1578, %v1577
        %v1659 = vpack.c.b16 %v1580, %v1579
        %v1660 = vpack.c.b16 %v1582, %v1581
        %v1661 = vpack.c.b16 %v1584, %v1583
        %v1662 = vpack.c.b16 %v1586, %v1585
        %v1663 = vpack.c.b16 %v1588, %v1587
        %v1664 = vpack.c.b16 %v1590, %v1589
        %v1665 = vpack.c.b16 %v1592, %v1591
        %v1666 = vpack.c.b16 %v1594, %v1593
        %1739 = vmatprep.subr.bf16.mxu0 0
        %1740 = vmatpush1.bf16.msra.mxu0 %v1602
        %1741 = vmatprep.subr.bf16.mxu0 0
        %1742 = vmatpush1.bf16.msra.mxu0 %v1601
        %1743 = vmatprep.subr.bf16.mxu0 0
        %1744 = vmatpush1.bf16.msra.mxu0 %v1600
        %1745 = vmatprep.subr.bf16.mxu0 0
        %1746 = vmatpush1.bf16.msra.mxu0 %v1599
        %1747 = vmatprep.subr.bf16.mxu0 0
        %1748 = vmatpush1.bf16.msra.mxu0 %v1598
        %1749 = vmatprep.subr.bf16.mxu0 0
        %1750 = vmatpush1.bf16.msra.mxu0 %v1597
        %1751 = vmatprep.subr.bf16.mxu0 0
        %1752 = vmatpush1.bf16.msra.mxu0 %v1596
        %1753 = vmatprep.subr.bf16.mxu0 0
        %1754 = vmatpush1.bf16.msra.mxu0 %v1595
        %1755 = vmatprep.subr.bf16.mxu0 0
        %1756 = vmatpush2.bf16.msra.mxu0 %v1610
        %1757 = vmatprep.subr.bf16.mxu0 0
        %1758 = vmatpush2.bf16.msra.mxu0 %v1609
        %1759 = vmatprep.subr.bf16.mxu0 0
        %1760 = vmatpush2.bf16.msra.mxu0 %v1608
        %1761 = vmatprep.subr.bf16.mxu0 0
        %1762 = vmatpush2.bf16.msra.mxu0 %v1607
        %1763 = vmatprep.subr.bf16.mxu0 0
        %1764 = vmatpush2.bf16.msra.mxu0 %v1606
        %1765 = vmatprep.subr.bf16.mxu0 0
        %1766 = vmatpush2.bf16.msra.mxu0 %v1605
        %1767 = vmatprep.subr.bf16.mxu0 0
        %1768 = vmatpush2.bf16.msra.mxu0 %v1604
        %1769 = vmatprep.subr.bf16.mxu0 0
        %1770 = vmatpush2.bf16.msra.mxu0 %v1603
        %1771 = vmatprep.mubr.bf16.mxu0 %v621
        %1772 = vmatmul.mubr.bf16.gmra.mxu0 %v497
        %v1773 = vpop.f32.mrf.mxu0
        %v1774 = vadd.f32 0.0, %v1773
        %v1775 = vpop.f32.mrf.mxu0
        %v1776 = vpop.f32.mrf.mxu0
        %v1777 = vadd.f32 0.0, %v1776
        %v1778 = vpop.f32.mrf.mxu0
        %1779 = vmatprep.mubr.bf16.mxu0 %v629
        %1780 = vmatmul.mubr.bf16.gmra.mxu0 %v498
        %v1781 = vpop.f32.mrf.mxu0
        %v1782 = vadd.f32 0.0, %v1781
        %v1783 = vpop.f32.mrf.mxu0
        %v1784 = vpop.f32.mrf.mxu0
        %v1785 = vadd.f32 0.0, %v1784
        %v1786 = vpop.f32.mrf.mxu0
        %1787 = vmatprep.mubr.bf16.mxu0 %v641
        %1788 = vmatmul.mubr.bf16.gmra.mxu0 %v499
        %v1789 = vpop.f32.mrf.mxu0
        %v1790 = vadd.f32 0.0, %v1789
        %v1791 = vpop.f32.mrf.mxu0
        %v1792 = vpop.f32.mrf.mxu0
        %v1793 = vadd.f32 0.0, %v1792
        %v1794 = vpop.f32.mrf.mxu0
        %1795 = vmatprep.mubr.bf16.mxu0 %v649
        %1796 = vmatmul.mubr.bf16.gmra.mxu0 %v500
        %v1797 = vpop.f32.mrf.mxu0
        %v1798 = vadd.f32 0.0, %v1797
        %v1799 = vpop.f32.mrf.mxu0
        %v1800 = vpop.f32.mrf.mxu0
        %v1801 = vadd.f32 0.0, %v1800
        %v1802 = vpop.f32.mrf.mxu0
        %1803 = vmatprep.mubr.bf16.mxu0 %v661
        %1804 = vmatmul.mubr.bf16.gmra.mxu0 %v501
        %v1805 = vpop.f32.mrf.mxu0
        %v1806 = vadd.f32 0.0, %v1805
        %v1807 = vpop.f32.mrf.mxu0
        %v1808 = vpop.f32.mrf.mxu0
        %v1809 = vadd.f32 0.0, %v1808
        %v1810 = vpop.f32.mrf.mxu0
        %1811 = vmatprep.mubr.bf16.mxu0 %v669
        %1812 = vmatmul.mubr.bf16.gmra.mxu0 %v502
        %v1813 = vpop.f32.mrf.mxu0
        %v1814 = vadd.f32 0.0, %v1813
        %v1815 = vpop.f32.mrf.mxu0
        %v1816 = vpop.f32.mrf.mxu0
        %v1817 = vadd.f32 0.0, %v1816
        %v1818 = vpop.f32.mrf.mxu0
        %1819 = vmatprep.mubr.bf16.mxu0 %v681
        %1820 = vmatmul.mubr.bf16.gmra.mxu0 %v503
        %v1821 = vpop.f32.mrf.mxu0
        %v1822 = vadd.f32 0.0, %v1821
        %v1823 = vpop.f32.mrf.mxu0
        %v1824 = vpop.f32.mrf.mxu0
        %v1825 = vadd.f32 0.0, %v1824
        %v1826 = vpop.f32.mrf.mxu0
        %1827 = vmatprep.mubr.bf16.mxu0 %v689
        %1828 = vmatmul.mubr.bf16.gmra.mxu0 %v504
        %v1829 = vpop.f32.mrf.mxu0
        %v1830 = vadd.f32 0.0, %v1829
        %v1831 = vpop.f32.mrf.mxu0
        %v1832 = vpop.f32.mrf.mxu0
        %v1833 = vadd.f32 0.0, %v1832
        %v1834 = vpop.f32.mrf.mxu0
        %1835 = vmatprep.mubr.bf16.mxu0 %v701
        %1836 = vmatmul.mubr.bf16.gmra.mxu0 %v505
        %v1837 = vpop.f32.mrf.mxu0
        %v1838 = vadd.f32 0.0, %v1837
        %v1839 = vpop.f32.mrf.mxu0
        %v1840 = vpop.f32.mrf.mxu0
        %v1841 = vadd.f32 0.0, %v1840
        %v1842 = vpop.f32.mrf.mxu0
        %1843 = vmatprep.mubr.bf16.mxu0 %v709
        %1844 = vmatmul.mubr.bf16.gmra.mxu0 %v506
        %v1845 = vpop.f32.mrf.mxu0
        %v1846 = vadd.f32 0.0, %v1845
        %v1847 = vpop.f32.mrf.mxu0
        %v1848 = vpop.f32.mrf.mxu0
        %v1849 = vadd.f32 0.0, %v1848
        %v1850 = vpop.f32.mrf.mxu0
        %1851 = vmatprep.mubr.bf16.mxu0 %v721
        %1852 = vmatmul.mubr.bf16.gmra.mxu0 %v507
        %v1853 = vpop.f32.mrf.mxu0
        %v1854 = vadd.f32 0.0, %v1853
        %v1855 = vpop.f32.mrf.mxu0
        %v1856 = vpop.f32.mrf.mxu0
        %v1857 = vadd.f32 0.0, %v1856
        %v1858 = vpop.f32.mrf.mxu0
        %1859 = vmatprep.mubr.bf16.mxu0 %v729
        %1860 = vmatmul.mubr.bf16.gmra.mxu0 %v508
        %v1861 = vpop.f32.mrf.mxu0
        %v1862 = vadd.f32 0.0, %v1861
        %v1863 = vpop.f32.mrf.mxu0
        %v1864 = vpop.f32.mrf.mxu0
        %v1865 = vadd.f32 0.0, %v1864
        %v1866 = vpop.f32.mrf.mxu0
        %1867 = vmatprep.mubr.bf16.mxu0 %v741
        %1868 = vmatmul.mubr.bf16.gmra.mxu0 %v509
        %v1869 = vpop.f32.mrf.mxu0
        %v1870 = vadd.f32 0.0, %v1869
        %v1871 = vpop.f32.mrf.mxu0
        %v1872 = vpop.f32.mrf.mxu0
        %v1873 = vadd.f32 0.0, %v1872
        %v1874 = vpop.f32.mrf.mxu0
        %1875 = vmatprep.mubr.bf16.mxu0 %v749
        %1876 = vmatmul.mubr.bf16.gmra.mxu0 %v510
        %v1877 = vpop.f32.mrf.mxu0
        %v1878 = vadd.f32 0.0, %v1877
        %v1879 = vpop.f32.mrf.mxu0
        %v1880 = vpop.f32.mrf.mxu0
        %v1881 = vadd.f32 0.0, %v1880
        %v1882 = vpop.f32.mrf.mxu0
        %1883 = vmatprep.mubr.bf16.mxu0 %v761
        %1884 = vmatmul.mubr.bf16.gmra.mxu0 %v511
        %v1885 = vpop.f32.mrf.mxu0
        %v1886 = vadd.f32 0.0, %v1885
        %v1887 = vpop.f32.mrf.mxu0
        %v1888 = vpop.f32.mrf.mxu0
        %v1889 = vadd.f32 0.0, %v1888
        %v1890 = vpop.f32.mrf.mxu0
        %1891 = vmatprep.mubr.bf16.mxu0 %v769
        %1892 = vmatmul.mubr.bf16.gmra.mxu0 %v512
        %v1893 = vpop.f32.mrf.mxu0
        %v1894 = vadd.f32 0.0, %v1893
        %v1895 = vpop.f32.mrf.mxu0
        %v1896 = vpop.f32.mrf.mxu0
        %v1897 = vadd.f32 0.0, %v1896
        %v1898 = vpop.f32.mrf.mxu0
        %1899 = vmatprep.mubr.bf16.mxu0 %v781
        %1900 = vmatmul.mubr.bf16.gmra.mxu0 %v513
        %v1901 = vpop.f32.mrf.mxu0
        %v1902 = vadd.f32 0.0, %v1901
        %v1903 = vpop.f32.mrf.mxu0
        %v1904 = vpop.f32.mrf.mxu0
        %v1905 = vadd.f32 0.0, %v1904
        %v1906 = vpop.f32.mrf.mxu0
        %1907 = vmatprep.mubr.bf16.mxu0 %v789
        %1908 = vmatmul.mubr.bf16.gmra.mxu0 %v514
        %v1909 = vpop.f32.mrf.mxu0
        %v1910 = vadd.f32 0.0, %v1909
        %v1911 = vpop.f32.mrf.mxu0
        %v1912 = vpop.f32.mrf.mxu0
        %v1913 = vadd.f32 0.0, %v1912
        %v1914 = vpop.f32.mrf.mxu0
        %1915 = vmatprep.mubr.bf16.mxu0 %v801
        %1916 = vmatmul.mubr.bf16.gmra.mxu0 %v515
        %v1917 = vpop.f32.mrf.mxu0
        %v1918 = vadd.f32 0.0, %v1917
        %v1919 = vpop.f32.mrf.mxu0
        %v1920 = vpop.f32.mrf.mxu0
        %v1921 = vadd.f32 0.0, %v1920
        %v1922 = vpop.f32.mrf.mxu0
        %1923 = vmatprep.mubr.bf16.mxu0 %v809
        %1924 = vmatmul.mubr.bf16.gmra.mxu0 %v516
        %v1925 = vpop.f32.mrf.mxu0
        %v1926 = vadd.f32 0.0, %v1925
        %v1927 = vpop.f32.mrf.mxu0
        %v1928 = vpop.f32.mrf.mxu0
        %v1929 = vadd.f32 0.0, %v1928
        %v1930 = vpop.f32.mrf.mxu0
        %1931 = vmatprep.mubr.bf16.mxu0 %v821
        %1932 = vmatmul.mubr.bf16.gmra.mxu0 %v517
        %v1933 = vpop.f32.mrf.mxu0
        %v1934 = vadd.f32 0.0, %v1933
        %v1935 = vpop.f32.mrf.mxu0
        %v1936 = vpop.f32.mrf.mxu0
        %v1937 = vadd.f32 0.0, %v1936
        %v1938 = vpop.f32.mrf.mxu0
        %1939 = vmatprep.mubr.bf16.mxu0 %v829
        %1940 = vmatmul.mubr.bf16.gmra.mxu0 %v518
        %v1941 = vpop.f32.mrf.mxu0
        %v1942 = vadd.f32 0.0, %v1941
        %v1943 = vpop.f32.mrf.mxu0
        %v1944 = vpop.f32.mrf.mxu0
        %v1945 = vadd.f32 0.0, %v1944
        %v1946 = vpop.f32.mrf.mxu0
        %1947 = vmatprep.mubr.bf16.mxu0 %v841
        %1948 = vmatmul.mubr.bf16.gmra.mxu0 %v519
        %v1949 = vpop.f32.mrf.mxu0
        %v1950 = vadd.f32 0.0, %v1949
        %v1951 = vpop.f32.mrf.mxu0
        %v1952 = vpop.f32.mrf.mxu0
        %v1953 = vadd.f32 0.0, %v1952
        %v1954 = vpop.f32.mrf.mxu0
        %1955 = vmatprep.mubr.bf16.mxu0 %v849
        %1956 = vmatmul.mubr.bf16.gmra.mxu0 %v520
        %v1957 = vpop.f32.mrf.mxu0
        %v1958 = vadd.f32 0.0, %v1957
        %v1959 = vpop.f32.mrf.mxu0
        %v1960 = vpop.f32.mrf.mxu0
        %v1961 = vadd.f32 0.0, %v1960
        %v1962 = vpop.f32.mrf.mxu0
        %1963 = vmatprep.mubr.bf16.mxu0 %v861
        %1964 = vmatmul.mubr.bf16.gmra.mxu0 %v521
        %v1965 = vpop.f32.mrf.mxu0
        %v1966 = vadd.f32 0.0, %v1965
        %v1967 = vpop.f32.mrf.mxu0
        %v1968 = vpop.f32.mrf.mxu0
        %v1969 = vadd.f32 0.0, %v1968
        %v1970 = vpop.f32.mrf.mxu0
        %1971 = vmatprep.mubr.bf16.mxu0 %v869
        %1972 = vmatmul.mubr.bf16.gmra.mxu0 %v522
        %v1973 = vpop.f32.mrf.mxu0
        %v1974 = vadd.f32 0.0, %v1973
        %v1975 = vpop.f32.mrf.mxu0
        %v1976 = vpop.f32.mrf.mxu0
        %v1977 = vadd.f32 0.0, %v1976
        %v1978 = vpop.f32.mrf.mxu0
        %1979 = vmatprep.mubr.bf16.mxu0 %v881
        %1980 = vmatmul.mubr.bf16.gmra.mxu0 %v523
        %v1981 = vpop.f32.mrf.mxu0
        %v1982 = vadd.f32 0.0, %v1981
        %v1983 = vpop.f32.mrf.mxu0
        %v1984 = vpop.f32.mrf.mxu0
        %v1985 = vadd.f32 0.0, %v1984
        %v1986 = vpop.f32.mrf.mxu0
        %1987 = vmatprep.mubr.bf16.mxu0 %v889
        %1988 = vmatmul.mubr.bf16.gmra.mxu0 %v524
        %v1989 = vpop.f32.mrf.mxu0
        %v1990 = vadd.f32 0.0, %v1989
        %v1991 = vpop.f32.mrf.mxu0
        %v1992 = vpop.f32.mrf.mxu0
        %v1993 = vadd.f32 0.0, %v1992
        %v1994 = vpop.f32.mrf.mxu0
        %1995 = vmatprep.mubr.bf16.mxu0 %v901
        %1996 = vmatmul.mubr.bf16.gmra.mxu0 %v525
        %v1997 = vpop.f32.mrf.mxu0
        %v1998 = vadd.f32 0.0, %v1997
        %v1999 = vpop.f32.mrf.mxu0
        %v2000 = vpop.f32.mrf.mxu0
        %v2001 = vadd.f32 0.0, %v2000
        %v2002 = vpop.f32.mrf.mxu0
        %2003 = vmatprep.mubr.bf16.mxu0 %v909
        %2004 = vmatmul.mubr.bf16.gmra.mxu0 %v526
        %v2005 = vpop.f32.mrf.mxu0
        %v2006 = vadd.f32 0.0, %v2005
        %v2007 = vpop.f32.mrf.mxu0
        %v2008 = vpop.f32.mrf.mxu0
        %v2009 = vadd.f32 0.0, %v2008
        %v2010 = vpop.f32.mrf.mxu0
        %2011 = vmatprep.mubr.bf16.mxu0 %v921
        %2012 = vmatmul.mubr.bf16.gmra.mxu0 %v527
        %v2013 = vpop.f32.mrf.mxu0
        %v2014 = vadd.f32 0.0, %v2013
        %v2015 = vpop.f32.mrf.mxu0
        %v2016 = vpop.f32.mrf.mxu0
        %v2017 = vadd.f32 0.0, %v2016
        %v2018 = vpop.f32.mrf.mxu0
        %2019 = vmatprep.mubr.bf16.mxu0 %v929
        %2020 = vmatmul.mubr.bf16.gmra.mxu0 %v528
        %v2021 = vpop.f32.mrf.mxu0
        %v2022 = vadd.f32 0.0, %v2021
        %v2023 = vpop.f32.mrf.mxu0
        %v2024 = vpop.f32.mrf.mxu0
        %v2025 = vadd.f32 0.0, %v2024
        %v2026 = vpop.f32.mrf.mxu0
        %2027 = vdwg.mxu0
        %2028 = vmatprep.subr.bf16.mxu0 0
        %2029 = vmatpush1.bf16.msra.mxu0 %v1618
        %2030 = vmatprep.subr.bf16.mxu0 0
        %2031 = vmatpush1.bf16.msra.mxu0 %v1617
        %2032 = vmatprep.subr.bf16.mxu0 0
        %2033 = vmatpush1.bf16.msra.mxu0 %v1616
        %2034 = vmatprep.subr.bf16.mxu0 0
        %2035 = vmatpush1.bf16.msra.mxu0 %v1615
        %2036 = vmatprep.subr.bf16.mxu0 0
        %2037 = vmatpush1.bf16.msra.mxu0 %v1614
        %2038 = vmatprep.subr.bf16.mxu0 0
        %2039 = vmatpush1.bf16.msra.mxu0 %v1613
        %2040 = vmatprep.subr.bf16.mxu0 0
        %2041 = vmatpush1.bf16.msra.mxu0 %v1612
        %2042 = vmatprep.subr.bf16.mxu0 0
        %2043 = vmatpush1.bf16.msra.mxu0 %v1611
        %2044 = vmatprep.subr.bf16.mxu0 0
        %2045 = vmatpush2.bf16.msra.mxu0 %v1626
        %2046 = vmatprep.subr.bf16.mxu0 0
        %2047 = vmatpush2.bf16.msra.mxu0 %v1625
        %2048 = vmatprep.subr.bf16.mxu0 0
        %2049 = vmatpush2.bf16.msra.mxu0 %v1624
        %2050 = vmatprep.subr.bf16.mxu0 0
        %2051 = vmatpush2.bf16.msra.mxu0 %v1623
        %2052 = vmatprep.subr.bf16.mxu0 0
        %2053 = vmatpush2.bf16.msra.mxu0 %v1622
        %2054 = vmatprep.subr.bf16.mxu0 0
        %2055 = vmatpush2.bf16.msra.mxu0 %v1621
        %2056 = vmatprep.subr.bf16.mxu0 0
        %2057 = vmatpush2.bf16.msra.mxu0 %v1620
        %2058 = vmatprep.subr.bf16.mxu0 0
        %2059 = vmatpush2.bf16.msra.mxu0 %v1619
        %2060 = vmatprep.mubr.bf16.mxu0 %v499
        %2061 = vmatmul.mubr.bf16.gmra.mxu0 %v965
        %v2062 = vpop.f32.mrf.mxu0
        %v2063 = vadd.f32 %v1774, %v2062
        %v2064 = vpop.f32.mrf.mxu0
        %v2065 = vpop.f32.mrf.mxu0
        %v2066 = vadd.f32 %v1777, %v2065
        %v2067 = vpop.f32.mrf.mxu0
        %2068 = vmatprep.mubr.bf16.mxu0 %v500
        %2069 = vmatmul.mubr.bf16.gmra.mxu0 %v967
        %v2070 = vpop.f32.mrf.mxu0
        %v2071 = vadd.f32 %v1782, %v2070
        %v2072 = vpop.f32.mrf.mxu0
        %v2073 = vpop.f32.mrf.mxu0
        %v2074 = vadd.f32 %v1785, %v2073
        %v2075 = vpop.f32.mrf.mxu0
        %2076 = vmatprep.mubr.bf16.mxu0 %v501
        %2077 = vmatmul.mubr.bf16.gmra.mxu0 %v970
        %v2078 = vpop.f32.mrf.mxu0
        %v2079 = vadd.f32 %v1790, %v2078
        %v2080 = vpop.f32.mrf.mxu0
        %v2081 = vpop.f32.mrf.mxu0
        %v2082 = vadd.f32 %v1793, %v2081
        %v2083 = vpop.f32.mrf.mxu0
        %2084 = vmatprep.mubr.bf16.mxu0 %v502
        %2085 = vmatmul.mubr.bf16.gmra.mxu0 %v972
        %v2086 = vpop.f32.mrf.mxu0
        %v2087 = vadd.f32 %v1798, %v2086
        %v2088 = vpop.f32.mrf.mxu0
        %v2089 = vpop.f32.mrf.mxu0
        %v2090 = vadd.f32 %v1801, %v2089
        %v2091 = vpop.f32.mrf.mxu0
        %2092 = vmatprep.mubr.bf16.mxu0 %v503
        %2093 = vmatmul.mubr.bf16.gmra.mxu0 %v975
        %v2094 = vpop.f32.mrf.mxu0
        %v2095 = vadd.f32 %v1806, %v2094
        %v2096 = vpop.f32.mrf.mxu0
        %v2097 = vpop.f32.mrf.mxu0
        %v2098 = vadd.f32 %v1809, %v2097
        %v2099 = vpop.f32.mrf.mxu0
        %2100 = vmatprep.mubr.bf16.mxu0 %v504
        %2101 = vmatmul.mubr.bf16.gmra.mxu0 %v977
        %v2102 = vpop.f32.mrf.mxu0
        %v2103 = vadd.f32 %v1814, %v2102
        %v2104 = vpop.f32.mrf.mxu0
        %v2105 = vpop.f32.mrf.mxu0
        %v2106 = vadd.f32 %v1817, %v2105
        %v2107 = vpop.f32.mrf.mxu0
        %2108 = vmatprep.mubr.bf16.mxu0 %v505
        %2109 = vmatmul.mubr.bf16.gmra.mxu0 %v980
        %v2110 = vpop.f32.mrf.mxu0
        %v2111 = vadd.f32 %v1822, %v2110
        %v2112 = vpop.f32.mrf.mxu0
        %v2113 = vpop.f32.mrf.mxu0
        %v2114 = vadd.f32 %v1825, %v2113
        %v2115 = vpop.f32.mrf.mxu0
        %2116 = vmatprep.mubr.bf16.mxu0 %v506
        %2117 = vmatmul.mubr.bf16.gmra.mxu0 %v982
        %v2118 = vpop.f32.mrf.mxu0
        %v2119 = vadd.f32 %v1830, %v2118
        %v2120 = vpop.f32.mrf.mxu0
        %v2121 = vpop.f32.mrf.mxu0
        %v2122 = vadd.f32 %v1833, %v2121
        %v2123 = vpop.f32.mrf.mxu0
        %2124 = vmatprep.mubr.bf16.mxu0 %v507
        %2125 = vmatmul.mubr.bf16.gmra.mxu0 %v985
        %v2126 = vpop.f32.mrf.mxu0
        %v2127 = vadd.f32 %v1838, %v2126
        %v2128 = vpop.f32.mrf.mxu0
        %v2129 = vpop.f32.mrf.mxu0
        %v2130 = vadd.f32 %v1841, %v2129
        %v2131 = vpop.f32.mrf.mxu0
        %2132 = vmatprep.mubr.bf16.mxu0 %v508
        %2133 = vmatmul.mubr.bf16.gmra.mxu0 %v987
        %v2134 = vpop.f32.mrf.mxu0
        %v2135 = vadd.f32 %v1846, %v2134
        %v2136 = vpop.f32.mrf.mxu0
        %v2137 = vpop.f32.mrf.mxu0
        %v2138 = vadd.f32 %v1849, %v2137
        %v2139 = vpop.f32.mrf.mxu0
        %2140 = vmatprep.mubr.bf16.mxu0 %v509
        %2141 = vmatmul.mubr.bf16.gmra.mxu0 %v990
        %v2142 = vpop.f32.mrf.mxu0
        %v2143 = vadd.f32 %v1854, %v2142
        %v2144 = vpop.f32.mrf.mxu0
        %v2145 = vpop.f32.mrf.mxu0
        %v2146 = vadd.f32 %v1857, %v2145
        %v2147 = vpop.f32.mrf.mxu0
        %2148 = vmatprep.mubr.bf16.mxu0 %v510
        %2149 = vmatmul.mubr.bf16.gmra.mxu0 %v992
        %v2150 = vpop.f32.mrf.mxu0
        %v2151 = vadd.f32 %v1862, %v2150
        %v2152 = vpop.f32.mrf.mxu0
        %v2153 = vpop.f32.mrf.mxu0
        %v2154 = vadd.f32 %v1865, %v2153
        %v2155 = vpop.f32.mrf.mxu0
        %2156 = vmatprep.mubr.bf16.mxu0 %v511
        %2157 = vmatmul.mubr.bf16.gmra.mxu0 %v995
        %v2158 = vpop.f32.mrf.mxu0
        %v2159 = vadd.f32 %v1870, %v2158
        %v2160 = vpop.f32.mrf.mxu0
        %v2161 = vpop.f32.mrf.mxu0
        %v2162 = vadd.f32 %v1873, %v2161
        %v2163 = vpop.f32.mrf.mxu0
        %2164 = vmatprep.mubr.bf16.mxu0 %v512
        %2165 = vmatmul.mubr.bf16.gmra.mxu0 %v997
        %v2166 = vpop.f32.mrf.mxu0
        %v2167 = vadd.f32 %v1878, %v2166
        %v2168 = vpop.f32.mrf.mxu0
        %v2169 = vpop.f32.mrf.mxu0
        %v2170 = vadd.f32 %v1881, %v2169
        %v2171 = vpop.f32.mrf.mxu0
        %2172 = vmatprep.mubr.bf16.mxu0 %v513
        %2173 = vmatmul.mubr.bf16.gmra.mxu0 %v1000
        %v2174 = vpop.f32.mrf.mxu0
        %v2175 = vadd.f32 %v1886, %v2174
        %v2176 = vpop.f32.mrf.mxu0
        %v2177 = vpop.f32.mrf.mxu0
        %v2178 = vadd.f32 %v1889, %v2177
        %v2179 = vpop.f32.mrf.mxu0
        %2180 = vmatprep.mubr.bf16.mxu0 %v514
        %2181 = vmatmul.mubr.bf16.gmra.mxu0 %v1002
        %v2182 = vpop.f32.mrf.mxu0
        %v2183 = vadd.f32 %v1894, %v2182
        %v2184 = vpop.f32.mrf.mxu0
        %v2185 = vpop.f32.mrf.mxu0
        %v2186 = vadd.f32 %v1897, %v2185
        %v2187 = vpop.f32.mrf.mxu0
        %2188 = vmatprep.mubr.bf16.mxu0 %v515
        %2189 = vmatmul.mubr.bf16.gmra.mxu0 %v1005
        %v2190 = vpop.f32.mrf.mxu0
        %v2191 = vadd.f32 %v1902, %v2190
        %v2192 = vpop.f32.mrf.mxu0
        %v2193 = vpop.f32.mrf.mxu0
        %v2194 = vadd.f32 %v1905, %v2193
        %v2195 = vpop.f32.mrf.mxu0
        %2196 = vmatprep.mubr.bf16.mxu0 %v516
        %2197 = vmatmul.mubr.bf16.gmra.mxu0 %v1007
        %v2198 = vpop.f32.mrf.mxu0
        %v2199 = vadd.f32 %v1910, %v2198
        %v2200 = vpop.f32.mrf.mxu0
        %v2201 = vpop.f32.mrf.mxu0
        %v2202 = vadd.f32 %v1913, %v2201
        %v2203 = vpop.f32.mrf.mxu0
        %2204 = vmatprep.mubr.bf16.mxu0 %v517
        %2205 = vmatmul.mubr.bf16.gmra.mxu0 %v1010
        %v2206 = vpop.f32.mrf.mxu0
        %v2207 = vadd.f32 %v1918, %v2206
        %v2208 = vpop.f32.mrf.mxu0
        %v2209 = vpop.f32.mrf.mxu0
        %v2210 = vadd.f32 %v1921, %v2209
        %v2211 = vpop.f32.mrf.mxu0
        %2212 = vmatprep.mubr.bf16.mxu0 %v518
        %2213 = vmatmul.mubr.bf16.gmra.mxu0 %v1012
        %v2214 = vpop.f32.mrf.mxu0
        %v2215 = vadd.f32 %v1926, %v2214
        %v2216 = vpop.f32.mrf.mxu0
        %v2217 = vpop.f32.mrf.mxu0
        %v2218 = vadd.f32 %v1929, %v2217
        %v2219 = vpop.f32.mrf.mxu0
        %2220 = vmatprep.mubr.bf16.mxu0 %v519
        %2221 = vmatmul.mubr.bf16.gmra.mxu0 %v1015
        %v2222 = vpop.f32.mrf.mxu0
        %v2223 = vadd.f32 %v1934, %v2222
        %v2224 = vpop.f32.mrf.mxu0
        %v2225 = vpop.f32.mrf.mxu0
        %v2226 = vadd.f32 %v1937, %v2225
        %v2227 = vpop.f32.mrf.mxu0
        %2228 = vmatprep.mubr.bf16.mxu0 %v520
        %2229 = vmatmul.mubr.bf16.gmra.mxu0 %v1017
        %v2230 = vpop.f32.mrf.mxu0
        %v2231 = vadd.f32 %v1942, %v2230
        %v2232 = vpop.f32.mrf.mxu0
        %v2233 = vpop.f32.mrf.mxu0
        %v2234 = vadd.f32 %v1945, %v2233
        %v2235 = vpop.f32.mrf.mxu0
        %2236 = vmatprep.mubr.bf16.mxu0 %v521
        %2237 = vmatmul.mubr.bf16.gmra.mxu0 %v1020
        %v2238 = vpop.f32.mrf.mxu0
        %v2239 = vadd.f32 %v1950, %v2238
        %v2240 = vpop.f32.mrf.mxu0
        %v2241 = vpop.f32.mrf.mxu0
        %v2242 = vadd.f32 %v1953, %v2241
        %v2243 = vpop.f32.mrf.mxu0
        %2244 = vmatprep.mubr.bf16.mxu0 %v522
        %2245 = vmatmul.mubr.bf16.gmra.mxu0 %v1022
        %v2246 = vpop.f32.mrf.mxu0
        %v2247 = vadd.f32 %v1958, %v2246
        %v2248 = vpop.f32.mrf.mxu0
        %v2249 = vpop.f32.mrf.mxu0
        %v2250 = vadd.f32 %v1961, %v2249
        %v2251 = vpop.f32.mrf.mxu0
        %2252 = vmatprep.mubr.bf16.mxu0 %v523
        %2253 = vmatmul.mubr.bf16.gmra.mxu0 %v1025
        %v2254 = vpop.f32.mrf.mxu0
        %v2255 = vadd.f32 %v1966, %v2254
        %v2256 = vpop.f32.mrf.mxu0
        %v2257 = vpop.f32.mrf.mxu0
        %v2258 = vadd.f32 %v1969, %v2257
        %v2259 = vpop.f32.mrf.mxu0
        %2260 = vmatprep.mubr.bf16.mxu0 %v524
        %2261 = vmatmul.mubr.bf16.gmra.mxu0 %v1027
        %v2262 = vpop.f32.mrf.mxu0
        %v2263 = vadd.f32 %v1974, %v2262
        %v2264 = vpop.f32.mrf.mxu0
        %v2265 = vpop.f32.mrf.mxu0
        %v2266 = vadd.f32 %v1977, %v2265
        %v2267 = vpop.f32.mrf.mxu0
        %2268 = vmatprep.mubr.bf16.mxu0 %v525
        %2269 = vmatmul.mubr.bf16.gmra.mxu0 %v1030
        %v2270 = vpop.f32.mrf.mxu0
        %v2271 = vadd.f32 %v1982, %v2270
        %v2272 = vpop.f32.mrf.mxu0
        %v2273 = vpop.f32.mrf.mxu0
        %v2274 = vadd.f32 %v1985, %v2273
        %v2275 = vpop.f32.mrf.mxu0
        %2276 = vmatprep.mubr.bf16.mxu0 %v526
        %2277 = vmatmul.mubr.bf16.gmra.mxu0 %v1032
        %v2278 = vpop.f32.mrf.mxu0
        %v2279 = vadd.f32 %v1990, %v2278
        %v2280 = vpop.f32.mrf.mxu0
        %v2281 = vpop.f32.mrf.mxu0
        %v2282 = vadd.f32 %v1993, %v2281
        %v2283 = vpop.f32.mrf.mxu0
        %2284 = vmatprep.mubr.bf16.mxu0 %v527
        %2285 = vmatmul.mubr.bf16.gmra.mxu0 %v1035
        %v2286 = vpop.f32.mrf.mxu0
        %v2287 = vadd.f32 %v1998, %v2286
        %v2288 = vpop.f32.mrf.mxu0
        %v2289 = vpop.f32.mrf.mxu0
        %v2290 = vadd.f32 %v2001, %v2289
        %v2291 = vpop.f32.mrf.mxu0
        %2292 = vmatprep.mubr.bf16.mxu0 %v528
        %2293 = vmatmul.mubr.bf16.gmra.mxu0 %v1037
        %v2294 = vpop.f32.mrf.mxu0
        %v2295 = vadd.f32 %v2006, %v2294
        %v2296 = vpop.f32.mrf.mxu0
        %v2297 = vpop.f32.mrf.mxu0
        %v2298 = vadd.f32 %v2009, %v2297
        %v2299 = vpop.f32.mrf.mxu0
        %2300 = vmatprep.mubr.bf16.mxu0 %v1083
        %2301 = vmatmul.mubr.bf16.gmra.mxu0 %v1040
        %v2302 = vpop.f32.mrf.mxu0
        %v2303 = vadd.f32 %v2014, %v2302
        %v2304 = vpop.f32.mrf.mxu0
        %v2305 = vpop.f32.mrf.mxu0
        %v2306 = vadd.f32 %v2017, %v2305
        %v2307 = vpop.f32.mrf.mxu0
        %2308 = vmatprep.mubr.bf16.mxu0 %v1084
        %2309 = vmatmul.mubr.bf16.gmra.mxu0 %v1042
        %v2310 = vpop.f32.mrf.mxu0
        %v2311 = vadd.f32 %v2022, %v2310
        %v2312 = vpop.f32.mrf.mxu0
        %v2313 = vpop.f32.mrf.mxu0
        %v2314 = vadd.f32 %v2025, %v2313
        %v2315 = vpop.f32.mrf.mxu0
        %2316 = vdwg.mxu0
        %2317 = vmatprep.subr.bf16.mxu0 0
        %2318 = vmatpush1.bf16.msra.mxu0 %v1634
        %2319 = vmatprep.subr.bf16.mxu0 0
        %2320 = vmatpush1.bf16.msra.mxu0 %v1633
        %2321 = vmatprep.subr.bf16.mxu0 0
        %2322 = vmatpush1.bf16.msra.mxu0 %v1632
        %2323 = vmatprep.subr.bf16.mxu0 0
        %2324 = vmatpush1.bf16.msra.mxu0 %v1631
        %2325 = vmatprep.subr.bf16.mxu0 0
        %2326 = vmatpush1.bf16.msra.mxu0 %v1630
        %2327 = vmatprep.subr.bf16.mxu0 0
        %2328 = vmatpush1.bf16.msra.mxu0 %v1629
        %2329 = vmatprep.subr.bf16.mxu0 0
        %2330 = vmatpush1.bf16.msra.mxu0 %v1628
        %2331 = vmatprep.subr.bf16.mxu0 0
        %2332 = vmatpush1.bf16.msra.mxu0 %v1627
        %2333 = vmatprep.subr.bf16.mxu0 0
        %2334 = vmatpush2.bf16.msra.mxu0 %v1642
        %2335 = vmatprep.subr.bf16.mxu0 0
        %2336 = vmatpush2.bf16.msra.mxu0 %v1641
        %2337 = vmatprep.subr.bf16.mxu0 0
        %2338 = vmatpush2.bf16.msra.mxu0 %v1640
        %2339 = vmatprep.subr.bf16.mxu0 0
        %2340 = vmatpush2.bf16.msra.mxu0 %v1639
        %2341 = vmatprep.subr.bf16.mxu0 0
        %2342 = vmatpush2.bf16.msra.mxu0 %v1638
        %2343 = vmatprep.subr.bf16.mxu0 0
        %2344 = vmatpush2.bf16.msra.mxu0 %v1637
        %2345 = vmatprep.subr.bf16.mxu0 0
        %2346 = vmatpush2.bf16.msra.mxu0 %v1636
        %2347 = vmatprep.subr.bf16.mxu0 0
        %2348 = vmatpush2.bf16.msra.mxu0 %v1635
        %2349 = vmatprep.mubr.bf16.mxu0 %v970
        %2350 = vmatmul.mubr.bf16.gmra.mxu0 %v641
        %v2351 = vpop.f32.mrf.mxu0
        %v2352 = vadd.f32 %v2063, %v2351
        %v2353 = vpop.f32.mrf.mxu0
        %v2354 = vpop.f32.mrf.mxu0
        %v2355 = vadd.f32 %v2066, %v2354
        %v2356 = vpop.f32.mrf.mxu0
        %2357 = vmatprep.mubr.bf16.mxu0 %v972
        %2358 = vmatmul.mubr.bf16.gmra.mxu0 %v649
        %v2359 = vpop.f32.mrf.mxu0
        %v2360 = vadd.f32 %v2071, %v2359
        %v2361 = vpop.f32.mrf.mxu0
        %v2362 = vpop.f32.mrf.mxu0
        %v2363 = vadd.f32 %v2074, %v2362
        %v2364 = vpop.f32.mrf.mxu0
        %2365 = vmatprep.mubr.bf16.mxu0 %v975
        %2366 = vmatmul.mubr.bf16.gmra.mxu0 %v661
        %v2367 = vpop.f32.mrf.mxu0
        %v2368 = vadd.f32 %v2079, %v2367
        %v2369 = vpop.f32.mrf.mxu0
        %v2370 = vpop.f32.mrf.mxu0
        %v2371 = vadd.f32 %v2082, %v2370
        %v2372 = vpop.f32.mrf.mxu0
        %2373 = vmatprep.mubr.bf16.mxu0 %v977
        %2374 = vmatmul.mubr.bf16.gmra.mxu0 %v669
        %v2375 = vpop.f32.mrf.mxu0
        %v2376 = vadd.f32 %v2087, %v2375
        %v2377 = vpop.f32.mrf.mxu0
        %v2378 = vpop.f32.mrf.mxu0
        %v2379 = vadd.f32 %v2090, %v2378
        %v2380 = vpop.f32.mrf.mxu0
        %2381 = vmatprep.mubr.bf16.mxu0 %v980
        %2382 = vmatmul.mubr.bf16.gmra.mxu0 %v681
        %v2383 = vpop.f32.mrf.mxu0
        %v2384 = vadd.f32 %v2095, %v2383
        %v2385 = vpop.f32.mrf.mxu0
        %v2386 = vpop.f32.mrf.mxu0
        %v2387 = vadd.f32 %v2098, %v2386
        %v2388 = vpop.f32.mrf.mxu0
        %2389 = vmatprep.mubr.bf16.mxu0 %v982
        %2390 = vmatmul.mubr.bf16.gmra.mxu0 %v689
        %v2391 = vpop.f32.mrf.mxu0
        %v2392 = vadd.f32 %v2103, %v2391
        %v2393 = vpop.f32.mrf.mxu0
        %v2394 = vpop.f32.mrf.mxu0
        %v2395 = vadd.f32 %v2106, %v2394
        %v2396 = vpop.f32.mrf.mxu0
        %2397 = vmatprep.mubr.bf16.mxu0 %v985
        %2398 = vmatmul.mubr.bf16.gmra.mxu0 %v701
        %v2399 = vpop.f32.mrf.mxu0
        %v2400 = vadd.f32 %v2111, %v2399
        %v2401 = vpop.f32.mrf.mxu0
        %v2402 = vpop.f32.mrf.mxu0
        %v2403 = vadd.f32 %v2114, %v2402
        %v2404 = vpop.f32.mrf.mxu0
        %2405 = vmatprep.mubr.bf16.mxu0 %v987
        %2406 = vmatmul.mubr.bf16.gmra.mxu0 %v709
        %v2407 = vpop.f32.mrf.mxu0
        %v2408 = vadd.f32 %v2119, %v2407
        %v2409 = vpop.f32.mrf.mxu0
        %v2410 = vpop.f32.mrf.mxu0
        %v2411 = vadd.f32 %v2122, %v2410
        %v2412 = vpop.f32.mrf.mxu0
        %2413 = vmatprep.mubr.bf16.mxu0 %v990
        %2414 = vmatmul.mubr.bf16.gmra.mxu0 %v721
        %v2415 = vpop.f32.mrf.mxu0
        %v2416 = vadd.f32 %v2127, %v2415
        %v2417 = vpop.f32.mrf.mxu0
        %v2418 = vpop.f32.mrf.mxu0
        %v2419 = vadd.f32 %v2130, %v2418
        %v2420 = vpop.f32.mrf.mxu0
        %2421 = vmatprep.mubr.bf16.mxu0 %v992
        %2422 = vmatmul.mubr.bf16.gmra.mxu0 %v729
        %v2423 = vpop.f32.mrf.mxu0
        %v2424 = vadd.f32 %v2135, %v2423
        %v2425 = vpop.f32.mrf.mxu0
        %v2426 = vpop.f32.mrf.mxu0
        %v2427 = vadd.f32 %v2138, %v2426
        %v2428 = vpop.f32.mrf.mxu0
        %2429 = vmatprep.mubr.bf16.mxu0 %v995
        %2430 = vmatmul.mubr.bf16.gmra.mxu0 %v741
        %v2431 = vpop.f32.mrf.mxu0
        %v2432 = vadd.f32 %v2143, %v2431
        %v2433 = vpop.f32.mrf.mxu0
        %v2434 = vpop.f32.mrf.mxu0
        %v2435 = vadd.f32 %v2146, %v2434
        %v2436 = vpop.f32.mrf.mxu0
        %2437 = vmatprep.mubr.bf16.mxu0 %v997
        %2438 = vmatmul.mubr.bf16.gmra.mxu0 %v749
        %v2439 = vpop.f32.mrf.mxu0
        %v2440 = vadd.f32 %v2151, %v2439
        %v2441 = vpop.f32.mrf.mxu0
        %v2442 = vpop.f32.mrf.mxu0
        %v2443 = vadd.f32 %v2154, %v2442
        %v2444 = vpop.f32.mrf.mxu0
        %2445 = vmatprep.mubr.bf16.mxu0 %v1000
        %2446 = vmatmul.mubr.bf16.gmra.mxu0 %v761
        %v2447 = vpop.f32.mrf.mxu0
        %v2448 = vadd.f32 %v2159, %v2447
        %v2449 = vpop.f32.mrf.mxu0
        %v2450 = vpop.f32.mrf.mxu0
        %v2451 = vadd.f32 %v2162, %v2450
        %v2452 = vpop.f32.mrf.mxu0
        %2453 = vmatprep.mubr.bf16.mxu0 %v1002
        %2454 = vmatmul.mubr.bf16.gmra.mxu0 %v769
        %v2455 = vpop.f32.mrf.mxu0
        %v2456 = vadd.f32 %v2167, %v2455
        %v2457 = vpop.f32.mrf.mxu0
        %v2458 = vpop.f32.mrf.mxu0
        %v2459 = vadd.f32 %v2170, %v2458
        %v2460 = vpop.f32.mrf.mxu0
        %2461 = vmatprep.mubr.bf16.mxu0 %v1005
        %2462 = vmatmul.mubr.bf16.gmra.mxu0 %v781
        %v2463 = vpop.f32.mrf.mxu0
        %v2464 = vadd.f32 %v2175, %v2463
        %v2465 = vpop.f32.mrf.mxu0
        %v2466 = vpop.f32.mrf.mxu0
        %v2467 = vadd.f32 %v2178, %v2466
        %v2468 = vpop.f32.mrf.mxu0
        %2469 = vmatprep.mubr.bf16.mxu0 %v1007
        %2470 = vmatmul.mubr.bf16.gmra.mxu0 %v789
        %v2471 = vpop.f32.mrf.mxu0
        %v2472 = vadd.f32 %v2183, %v2471
        %v2473 = vpop.f32.mrf.mxu0
        %v2474 = vpop.f32.mrf.mxu0
        %v2475 = vadd.f32 %v2186, %v2474
        %v2476 = vpop.f32.mrf.mxu0
        %2477 = vmatprep.mubr.bf16.mxu0 %v1010
        %2478 = vmatmul.mubr.bf16.gmra.mxu0 %v801
        %v2479 = vpop.f32.mrf.mxu0
        %v2480 = vadd.f32 %v2191, %v2479
        %v2481 = vpop.f32.mrf.mxu0
        %v2482 = vpop.f32.mrf.mxu0
        %v2483 = vadd.f32 %v2194, %v2482
        %v2484 = vpop.f32.mrf.mxu0
        %2485 = vmatprep.mubr.bf16.mxu0 %v1012
        %2486 = vmatmul.mubr.bf16.gmra.mxu0 %v809
        %v2487 = vpop.f32.mrf.mxu0
        %v2488 = vadd.f32 %v2199, %v2487
        %v2489 = vpop.f32.mrf.mxu0
        %v2490 = vpop.f32.mrf.mxu0
        %v2491 = vadd.f32 %v2202, %v2490
        %v2492 = vpop.f32.mrf.mxu0
        %2493 = vmatprep.mubr.bf16.mxu0 %v1015
        %2494 = vmatmul.mubr.bf16.gmra.mxu0 %v821
        %v2495 = vpop.f32.mrf.mxu0
        %v2496 = vadd.f32 %v2207, %v2495
        %v2497 = vpop.f32.mrf.mxu0
        %v2498 = vpop.f32.mrf.mxu0
        %v2499 = vadd.f32 %v2210, %v2498
        %v2500 = vpop.f32.mrf.mxu0
        %2501 = vmatprep.mubr.bf16.mxu0 %v1017
        %2502 = vmatmul.mubr.bf16.gmra.mxu0 %v829
        %v2503 = vpop.f32.mrf.mxu0
        %v2504 = vadd.f32 %v2215, %v2503
        %v2505 = vpop.f32.mrf.mxu0
        %v2506 = vpop.f32.mrf.mxu0
        %v2507 = vadd.f32 %v2218, %v2506
        %v2508 = vpop.f32.mrf.mxu0
        %2509 = vmatprep.mubr.bf16.mxu0 %v1020
        %2510 = vmatmul.mubr.bf16.gmra.mxu0 %v841
        %v2511 = vpop.f32.mrf.mxu0
        %v2512 = vadd.f32 %v2223, %v2511
        %v2513 = vpop.f32.mrf.mxu0
        %v2514 = vpop.f32.mrf.mxu0
        %v2515 = vadd.f32 %v2226, %v2514
        %v2516 = vpop.f32.mrf.mxu0
        %2517 = vmatprep.mubr.bf16.mxu0 %v1022
        %2518 = vmatmul.mubr.bf16.gmra.mxu0 %v849
        %v2519 = vpop.f32.mrf.mxu0
        %v2520 = vadd.f32 %v2231, %v2519
        %v2521 = vpop.f32.mrf.mxu0
        %v2522 = vpop.f32.mrf.mxu0
        %v2523 = vadd.f32 %v2234, %v2522
        %v2524 = vpop.f32.mrf.mxu0
        %2525 = vmatprep.mubr.bf16.mxu0 %v1025
        %2526 = vmatmul.mubr.bf16.gmra.mxu0 %v861
        %v2527 = vpop.f32.mrf.mxu0
        %v2528 = vadd.f32 %v2239, %v2527
        %v2529 = vpop.f32.mrf.mxu0
        %v2530 = vpop.f32.mrf.mxu0
        %v2531 = vadd.f32 %v2242, %v2530
        %v2532 = vpop.f32.mrf.mxu0
        %2533 = vmatprep.mubr.bf16.mxu0 %v1027
        %2534 = vmatmul.mubr.bf16.gmra.mxu0 %v869
        %v2535 = vpop.f32.mrf.mxu0
        %v2536 = vadd.f32 %v2247, %v2535
        %v2537 = vpop.f32.mrf.mxu0
        %v2538 = vpop.f32.mrf.mxu0
        %v2539 = vadd.f32 %v2250, %v2538
        %v2540 = vpop.f32.mrf.mxu0
        %2541 = vmatprep.mubr.bf16.mxu0 %v1030
        %2542 = vmatmul.mubr.bf16.gmra.mxu0 %v881
        %v2543 = vpop.f32.mrf.mxu0
        %v2544 = vadd.f32 %v2255, %v2543
        %v2545 = vpop.f32.mrf.mxu0
        %v2546 = vpop.f32.mrf.mxu0
        %v2547 = vadd.f32 %v2258, %v2546
        %v2548 = vpop.f32.mrf.mxu0
        %2549 = vmatprep.mubr.bf16.mxu0 %v1032
        %2550 = vmatmul.mubr.bf16.gmra.mxu0 %v889
        %v2551 = vpop.f32.mrf.mxu0
        %v2552 = vadd.f32 %v2263, %v2551
        %v2553 = vpop.f32.mrf.mxu0
        %v2554 = vpop.f32.mrf.mxu0
        %v2555 = vadd.f32 %v2266, %v2554
        %v2556 = vpop.f32.mrf.mxu0
        %2557 = vmatprep.mubr.bf16.mxu0 %v1035
        %2558 = vmatmul.mubr.bf16.gmra.mxu0 %v901
        %v2559 = vpop.f32.mrf.mxu0
        %v2560 = vadd.f32 %v2271, %v2559
        %v2561 = vpop.f32.mrf.mxu0
        %v2562 = vpop.f32.mrf.mxu0
        %v2563 = vadd.f32 %v2274, %v2562
        %v2564 = vpop.f32.mrf.mxu0
        %2565 = vmatprep.mubr.bf16.mxu0 %v1037
        %2566 = vmatmul.mubr.bf16.gmra.mxu0 %v909
        %v2567 = vpop.f32.mrf.mxu0
        %v2568 = vadd.f32 %v2279, %v2567
        %v2569 = vpop.f32.mrf.mxu0
        %v2570 = vpop.f32.mrf.mxu0
        %v2571 = vadd.f32 %v2282, %v2570
        %v2572 = vpop.f32.mrf.mxu0
        %2573 = vmatprep.mubr.bf16.mxu0 %v1040
        %2574 = vmatmul.mubr.bf16.gmra.mxu0 %v921
        %v2575 = vpop.f32.mrf.mxu0
        %v2576 = vadd.f32 %v2287, %v2575
        %v2577 = vpop.f32.mrf.mxu0
        %v2578 = vpop.f32.mrf.mxu0
        %v2579 = vadd.f32 %v2290, %v2578
        %v2580 = vpop.f32.mrf.mxu0
        %2581 = vmatprep.mubr.bf16.mxu0 %v1042
        %2582 = vmatmul.mubr.bf16.gmra.mxu0 %v929
        %v2583 = vpop.f32.mrf.mxu0
        %v2584 = vadd.f32 %v2295, %v2583
        %v2585 = vpop.f32.mrf.mxu0
        %v2586 = vpop.f32.mrf.mxu0
        %v2587 = vadd.f32 %v2298, %v2586
        %v2588 = vpop.f32.mrf.mxu0
        %2589 = vmatprep.mubr.bf16.mxu0 %v1114
        %2590 = vmatmul.mubr.bf16.gmra.mxu0 %v1101
        %v2591 = vpop.f32.mrf.mxu0
        %v2592 = vadd.f32 %v2303, %v2591
        %v2593 = vpop.f32.mrf.mxu0
        %v2594 = vpop.f32.mrf.mxu0
        %v2595 = vadd.f32 %v2306, %v2594
        %v2596 = vpop.f32.mrf.mxu0
        %2597 = vmatprep.mubr.bf16.mxu0 %v1116
        %2598 = vmatmul.mubr.bf16.gmra.mxu0 %v1109
        %v2599 = vpop.f32.mrf.mxu0
        %v2600 = vadd.f32 %v2311, %v2599
        %v2601 = vpop.f32.mrf.mxu0
        %v2602 = vpop.f32.mrf.mxu0
        %v2603 = vadd.f32 %v2314, %v2602
        %v2604 = vpop.f32.mrf.mxu0
        %2605 = vdwg.mxu0
        %2606 = vmatprep.subr.bf16.mxu0 0
        %2607 = vmatpush1.bf16.msra.mxu0 %v1650
        %2608 = vmatprep.subr.bf16.mxu0 0
        %2609 = vmatpush1.bf16.msra.mxu0 %v1649
        %2610 = vmatprep.subr.bf16.mxu0 0
        %2611 = vmatpush1.bf16.msra.mxu0 %v1648
        %2612 = vmatprep.subr.bf16.mxu0 0
        %2613 = vmatpush1.bf16.msra.mxu0 %v1647
        %2614 = vmatprep.subr.bf16.mxu0 0
        %2615 = vmatpush1.bf16.msra.mxu0 %v1646
        %2616 = vmatprep.subr.bf16.mxu0 0
        %2617 = vmatpush1.bf16.msra.mxu0 %v1645
        %2618 = vmatprep.subr.bf16.mxu0 0
        %2619 = vmatpush1.bf16.msra.mxu0 %v1644
        %2620 = vmatprep.subr.bf16.mxu0 0
        %2621 = vmatpush1.bf16.msra.mxu0 %v1643
        %2622 = vmatprep.subr.bf16.mxu0 0
        %2623 = vmatpush2.bf16.msra.mxu0 %v1658
        %2624 = vmatprep.subr.bf16.mxu0 0
        %2625 = vmatpush2.bf16.msra.mxu0 %v1657
        %2626 = vmatprep.subr.bf16.mxu0 0
        %2627 = vmatpush2.bf16.msra.mxu0 %v1656
        %2628 = vmatprep.subr.bf16.mxu0 0
        %2629 = vmatpush2.bf16.msra.mxu0 %v1655
        %2630 = vmatprep.subr.bf16.mxu0 0
        %2631 = vmatpush2.bf16.msra.mxu0 %v1654
        %2632 = vmatprep.subr.bf16.mxu0 0
        %2633 = vmatpush2.bf16.msra.mxu0 %v1653
        %2634 = vmatprep.subr.bf16.mxu0 0
        %2635 = vmatpush2.bf16.msra.mxu0 %v1652
        %2636 = vmatprep.subr.bf16.mxu0 0
        %2637 = vmatpush2.bf16.msra.mxu0 %v1651
        %2638 = vmatprep.mubr.bf16.mxu0 %v661
        %2639 = vmatmul.mubr.bf16.gmra.mxu0 %v501
        %v2640 = vpop.f32.mrf.mxu0
        %v2641 = vadd.f32 %v2352, %v2640
        %v2642 = vpop.f32.mrf.mxu0
        %v2643 = vpop.f32.mrf.mxu0
        %v2644 = vadd.f32 %v2355, %v2643
        %v2645 = vpop.f32.mrf.mxu0
        %2646 = vmatprep.mubr.bf16.mxu0 %v669
        %2647 = vmatmul.mubr.bf16.gmra.mxu0 %v502
        %v2648 = vpop.f32.mrf.mxu0
        %v2649 = vadd.f32 %v2360, %v2648
        %v2650 = vpop.f32.mrf.mxu0
        %v2651 = vpop.f32.mrf.mxu0
        %v2652 = vadd.f32 %v2363, %v2651
        %v2653 = vpop.f32.mrf.mxu0
        %2654 = vmatprep.mubr.bf16.mxu0 %v681
        %2655 = vmatmul.mubr.bf16.gmra.mxu0 %v503
        %v2656 = vpop.f32.mrf.mxu0
        %v2657 = vadd.f32 %v2368, %v2656
        %v2658 = vpop.f32.mrf.mxu0
        %v2659 = vpop.f32.mrf.mxu0
        %v2660 = vadd.f32 %v2371, %v2659
        %v2661 = vpop.f32.mrf.mxu0
        %2662 = vmatprep.mubr.bf16.mxu0 %v689
        %2663 = vmatmul.mubr.bf16.gmra.mxu0 %v504
        %v2664 = vpop.f32.mrf.mxu0
        %v2665 = vadd.f32 %v2376, %v2664
        %v2666 = vpop.f32.mrf.mxu0
        %v2667 = vpop.f32.mrf.mxu0
        %v2668 = vadd.f32 %v2379, %v2667
        %v2669 = vpop.f32.mrf.mxu0
        %2670 = vmatprep.mubr.bf16.mxu0 %v701
        %2671 = vmatmul.mubr.bf16.gmra.mxu0 %v505
        %v2672 = vpop.f32.mrf.mxu0
        %v2673 = vadd.f32 %v2384, %v2672
        %v2674 = vpop.f32.mrf.mxu0
        %v2675 = vpop.f32.mrf.mxu0
        %v2676 = vadd.f32 %v2387, %v2675
        %v2677 = vpop.f32.mrf.mxu0
        %2678 = vmatprep.mubr.bf16.mxu0 %v709
        %2679 = vmatmul.mubr.bf16.gmra.mxu0 %v506
        %v2680 = vpop.f32.mrf.mxu0
        %v2681 = vadd.f32 %v2392, %v2680
        %v2682 = vpop.f32.mrf.mxu0
        %v2683 = vpop.f32.mrf.mxu0
        %v2684 = vadd.f32 %v2395, %v2683
        %v2685 = vpop.f32.mrf.mxu0
        %2686 = vmatprep.mubr.bf16.mxu0 %v721
        %2687 = vmatmul.mubr.bf16.gmra.mxu0 %v507
        %v2688 = vpop.f32.mrf.mxu0
        %v2689 = vadd.f32 %v2400, %v2688
        %v2690 = vpop.f32.mrf.mxu0
        %v2691 = vpop.f32.mrf.mxu0
        %v2692 = vadd.f32 %v2403, %v2691
        %v2693 = vpop.f32.mrf.mxu0
        %2694 = vmatprep.mubr.bf16.mxu0 %v729
        %2695 = vmatmul.mubr.bf16.gmra.mxu0 %v508
        %v2696 = vpop.f32.mrf.mxu0
        %v2697 = vadd.f32 %v2408, %v2696
        %v2698 = vpop.f32.mrf.mxu0
        %v2699 = vpop.f32.mrf.mxu0
        %v2700 = vadd.f32 %v2411, %v2699
        %v2701 = vpop.f32.mrf.mxu0
        %2702 = vmatprep.mubr.bf16.mxu0 %v741
        %2703 = vmatmul.mubr.bf16.gmra.mxu0 %v509
        %v2704 = vpop.f32.mrf.mxu0
        %v2705 = vadd.f32 %v2416, %v2704
        %v2706 = vpop.f32.mrf.mxu0
        %v2707 = vpop.f32.mrf.mxu0
        %v2708 = vadd.f32 %v2419, %v2707
        %v2709 = vpop.f32.mrf.mxu0
        %2710 = vmatprep.mubr.bf16.mxu0 %v749
        %2711 = vmatmul.mubr.bf16.gmra.mxu0 %v510
        %v2712 = vpop.f32.mrf.mxu0
        %v2713 = vadd.f32 %v2424, %v2712
        %v2714 = vpop.f32.mrf.mxu0
        %v2715 = vpop.f32.mrf.mxu0
        %v2716 = vadd.f32 %v2427, %v2715
        %v2717 = vpop.f32.mrf.mxu0
        %2718 = vmatprep.mubr.bf16.mxu0 %v761
        %2719 = vmatmul.mubr.bf16.gmra.mxu0 %v511
        %v2720 = vpop.f32.mrf.mxu0
        %v2721 = vadd.f32 %v2432, %v2720
        %v2722 = vpop.f32.mrf.mxu0
        %v2723 = vpop.f32.mrf.mxu0
        %v2724 = vadd.f32 %v2435, %v2723
        %v2725 = vpop.f32.mrf.mxu0
        %2726 = vmatprep.mubr.bf16.mxu0 %v769
        %2727 = vmatmul.mubr.bf16.gmra.mxu0 %v512
        %v2728 = vpop.f32.mrf.mxu0
        %v2729 = vadd.f32 %v2440, %v2728
        %v2730 = vpop.f32.mrf.mxu0
        %v2731 = vpop.f32.mrf.mxu0
        %v2732 = vadd.f32 %v2443, %v2731
        %v2733 = vpop.f32.mrf.mxu0
        %2734 = vmatprep.mubr.bf16.mxu0 %v781
        %2735 = vmatmul.mubr.bf16.gmra.mxu0 %v513
        %v2736 = vpop.f32.mrf.mxu0
        %v2737 = vadd.f32 %v2448, %v2736
        %v2738 = vpop.f32.mrf.mxu0
        %v2739 = vpop.f32.mrf.mxu0
        %v2740 = vadd.f32 %v2451, %v2739
        %v2741 = vpop.f32.mrf.mxu0
        %2742 = vmatprep.mubr.bf16.mxu0 %v789
        %2743 = vmatmul.mubr.bf16.gmra.mxu0 %v514
        %v2744 = vpop.f32.mrf.mxu0
        %v2745 = vadd.f32 %v2456, %v2744
        %v2746 = vpop.f32.mrf.mxu0
        %v2747 = vpop.f32.mrf.mxu0
        %v2748 = vadd.f32 %v2459, %v2747
        %v2749 = vpop.f32.mrf.mxu0
        %2750 = vmatprep.mubr.bf16.mxu0 %v801
        %2751 = vmatmul.mubr.bf16.gmra.mxu0 %v515
        %v2752 = vpop.f32.mrf.mxu0
        %v2753 = vadd.f32 %v2464, %v2752
        %v2754 = vpop.f32.mrf.mxu0
        %v2755 = vpop.f32.mrf.mxu0
        %v2756 = vadd.f32 %v2467, %v2755
        %v2757 = vpop.f32.mrf.mxu0
        %2758 = vmatprep.mubr.bf16.mxu0 %v809
        %2759 = vmatmul.mubr.bf16.gmra.mxu0 %v516
        %v2760 = vpop.f32.mrf.mxu0
        %v2761 = vadd.f32 %v2472, %v2760
        %v2762 = vpop.f32.mrf.mxu0
        %v2763 = vpop.f32.mrf.mxu0
        %v2764 = vadd.f32 %v2475, %v2763
        %v2765 = vpop.f32.mrf.mxu0
        %2766 = vmatprep.mubr.bf16.mxu0 %v821
        %2767 = vmatmul.mubr.bf16.gmra.mxu0 %v517
        %v2768 = vpop.f32.mrf.mxu0
        %v2769 = vadd.f32 %v2480, %v2768
        %v2770 = vpop.f32.mrf.mxu0
        %v2771 = vpop.f32.mrf.mxu0
        %v2772 = vadd.f32 %v2483, %v2771
        %v2773 = vpop.f32.mrf.mxu0
        %2774 = vmatprep.mubr.bf16.mxu0 %v829
        %2775 = vmatmul.mubr.bf16.gmra.mxu0 %v518
        %v2776 = vpop.f32.mrf.mxu0
        %v2777 = vadd.f32 %v2488, %v2776
        %v2778 = vpop.f32.mrf.mxu0
        %v2779 = vpop.f32.mrf.mxu0
        %v2780 = vadd.f32 %v2491, %v2779
        %v2781 = vpop.f32.mrf.mxu0
        %2782 = vmatprep.mubr.bf16.mxu0 %v841
        %2783 = vmatmul.mubr.bf16.gmra.mxu0 %v519
        %v2784 = vpop.f32.mrf.mxu0
        %v2785 = vadd.f32 %v2496, %v2784
        %v2786 = vpop.f32.mrf.mxu0
        %v2787 = vpop.f32.mrf.mxu0
        %v2788 = vadd.f32 %v2499, %v2787
        %v2789 = vpop.f32.mrf.mxu0
        %2790 = vmatprep.mubr.bf16.mxu0 %v849
        %2791 = vmatmul.mubr.bf16.gmra.mxu0 %v520
        %v2792 = vpop.f32.mrf.mxu0
        %v2793 = vadd.f32 %v2504, %v2792
        %v2794 = vpop.f32.mrf.mxu0
        %v2795 = vpop.f32.mrf.mxu0
        %v2796 = vadd.f32 %v2507, %v2795
        %v2797 = vpop.f32.mrf.mxu0
        %2798 = vmatprep.mubr.bf16.mxu0 %v861
        %2799 = vmatmul.mubr.bf16.gmra.mxu0 %v521
        %v2800 = vpop.f32.mrf.mxu0
        %v2801 = vadd.f32 %v2512, %v2800
        %v2802 = vpop.f32.mrf.mxu0
        %v2803 = vpop.f32.mrf.mxu0
        %v2804 = vadd.f32 %v2515, %v2803
        %v2805 = vpop.f32.mrf.mxu0
        %2806 = vmatprep.mubr.bf16.mxu0 %v869
        %2807 = vmatmul.mubr.bf16.gmra.mxu0 %v522
        %v2808 = vpop.f32.mrf.mxu0
        %v2809 = vadd.f32 %v2520, %v2808
        %v2810 = vpop.f32.mrf.mxu0
        %v2811 = vpop.f32.mrf.mxu0
        %v2812 = vadd.f32 %v2523, %v2811
        %v2813 = vpop.f32.mrf.mxu0
        %2814 = vmatprep.mubr.bf16.mxu0 %v881
        %2815 = vmatmul.mubr.bf16.gmra.mxu0 %v523
        %v2816 = vpop.f32.mrf.mxu0
        %v2817 = vadd.f32 %v2528, %v2816
        %v2818 = vpop.f32.mrf.mxu0
        %v2819 = vpop.f32.mrf.mxu0
        %v2820 = vadd.f32 %v2531, %v2819
        %v2821 = vpop.f32.mrf.mxu0
        %2822 = vmatprep.mubr.bf16.mxu0 %v889
        %2823 = vmatmul.mubr.bf16.gmra.mxu0 %v524
        %v2824 = vpop.f32.mrf.mxu0
        %v2825 = vadd.f32 %v2536, %v2824
        %v2826 = vpop.f32.mrf.mxu0
        %v2827 = vpop.f32.mrf.mxu0
        %v2828 = vadd.f32 %v2539, %v2827
        %v2829 = vpop.f32.mrf.mxu0
        %2830 = vmatprep.mubr.bf16.mxu0 %v901
        %2831 = vmatmul.mubr.bf16.gmra.mxu0 %v525
        %v2832 = vpop.f32.mrf.mxu0
        %v2833 = vadd.f32 %v2544, %v2832
        %v2834 = vpop.f32.mrf.mxu0
        %v2835 = vpop.f32.mrf.mxu0
        %v2836 = vadd.f32 %v2547, %v2835
        %v2837 = vpop.f32.mrf.mxu0
        %2838 = vmatprep.mubr.bf16.mxu0 %v909
        %2839 = vmatmul.mubr.bf16.gmra.mxu0 %v526
        %v2840 = vpop.f32.mrf.mxu0
        %v2841 = vadd.f32 %v2552, %v2840
        %v2842 = vpop.f32.mrf.mxu0
        %v2843 = vpop.f32.mrf.mxu0
        %v2844 = vadd.f32 %v2555, %v2843
        %v2845 = vpop.f32.mrf.mxu0
        %2846 = vmatprep.mubr.bf16.mxu0 %v921
        %2847 = vmatmul.mubr.bf16.gmra.mxu0 %v527
        %v2848 = vpop.f32.mrf.mxu0
        %v2849 = vadd.f32 %v2560, %v2848
        %v2850 = vpop.f32.mrf.mxu0
        %v2851 = vpop.f32.mrf.mxu0
        %v2852 = vadd.f32 %v2563, %v2851
        %v2853 = vpop.f32.mrf.mxu0
        %2854 = vmatprep.mubr.bf16.mxu0 %v929
        %2855 = vmatmul.mubr.bf16.gmra.mxu0 %v528
        %v2856 = vpop.f32.mrf.mxu0
        %v2857 = vadd.f32 %v2568, %v2856
        %v2858 = vpop.f32.mrf.mxu0
        %v2859 = vpop.f32.mrf.mxu0
        %v2860 = vadd.f32 %v2571, %v2859
        %v2861 = vpop.f32.mrf.mxu0
        %2862 = vmatprep.mubr.bf16.mxu0 %v1101
        %2863 = vmatmul.mubr.bf16.gmra.mxu0 %v1083
        %v2864 = vpop.f32.mrf.mxu0
        %v2865 = vadd.f32 %v2576, %v2864
        %v2866 = vpop.f32.mrf.mxu0
        %v2867 = vpop.f32.mrf.mxu0
        %v2868 = vadd.f32 %v2579, %v2867
        %v2869 = vpop.f32.mrf.mxu0
        %2870 = vmatprep.mubr.bf16.mxu0 %v1109
        %2871 = vmatmul.mubr.bf16.gmra.mxu0 %v1084
        %v2872 = vpop.f32.mrf.mxu0
        %v2873 = vadd.f32 %v2584, %v2872
        %v2874 = vpop.f32.mrf.mxu0
        %v2875 = vpop.f32.mrf.mxu0
        %v2876 = vadd.f32 %v2587, %v2875
        %v2877 = vpop.f32.mrf.mxu0
        %2878 = vmatprep.mubr.bf16.mxu0 %v1145
        %2879 = vmatmul.mubr.bf16.gmra.mxu0 %v1127
        %v2880 = vpop.f32.mrf.mxu0
        %v2881 = vadd.f32 %v2592, %v2880
        %v2882 = vpop.f32.mrf.mxu0
        %v2883 = vpop.f32.mrf.mxu0
        %v2884 = vadd.f32 %v2595, %v2883
        %v2885 = vpop.f32.mrf.mxu0
        %2886 = vmatprep.mubr.bf16.mxu0 %v1153
        %2887 = vmatmul.mubr.bf16.gmra.mxu0 %v1128
        %v2888 = vpop.f32.mrf.mxu0
        %v2889 = vadd.f32 %v2600, %v2888
        %v2890 = vpop.f32.mrf.mxu0
        %v2891 = vpop.f32.mrf.mxu0
        %v2892 = vadd.f32 %v2603, %v2891
        %v2893 = vpop.f32.mrf.mxu0
        %2894 = vdwg.mxu0
        %2895 = vmatprep.subr.bf16.mxu0 0
        %2896 = vmatpush1.bf16.msra.mxu0 %v1666
        %2897 = vmatprep.subr.bf16.mxu0 0
        %2898 = vmatpush1.bf16.msra.mxu0 %v1665
        %2899 = vmatprep.subr.bf16.mxu0 0
        %2900 = vmatpush1.bf16.msra.mxu0 %v1664
        %2901 = vmatprep.subr.bf16.mxu0 0
        %2902 = vmatpush1.bf16.msra.mxu0 %v1663
        %2903 = vmatprep.subr.bf16.mxu0 0
        %2904 = vmatpush1.bf16.msra.mxu0 %v1662
        %2905 = vmatprep.subr.bf16.mxu0 0
        %2906 = vmatpush1.bf16.msra.mxu0 %v1661
        %2907 = vmatprep.subr.bf16.mxu0 0
        %2908 = vmatpush1.bf16.msra.mxu0 %v1660
        %2909 = vmatprep.subr.bf16.mxu0 0
        %2910 = vmatpush1.bf16.msra.mxu0 %v1659
        %2911 = vmatprep.subr.bf16.mxu0 0
        %2912 = vmatpush2.bf16.msra.mxu0 0
        %2913 = vmatprep.subr.bf16.mxu0 0
        %2914 = vmatpush2.bf16.msra.mxu0 0
        %2915 = vmatprep.subr.bf16.mxu0 0
        %2916 = vmatpush2.bf16.msra.mxu0 0
        %2917 = vmatprep.subr.bf16.mxu0 0
        %2918 = vmatpush2.bf16.msra.mxu0 0
        %2919 = vmatprep.subr.bf16.mxu0 0
        %2920 = vmatpush2.bf16.msra.mxu0 0
        %2921 = vmatprep.subr.bf16.mxu0 0
        %2922 = vmatpush2.bf16.msra.mxu0 0
        %2923 = vmatprep.subr.bf16.mxu0 0
        %2924 = vmatpush2.bf16.msra.mxu0 0
        %2925 = vmatprep.subr.bf16.mxu0 0
        %2926 = vmatpush2.bf16.msra.mxu0 0
        %2927 = vmatprep.mubr.bf16.mxu0 0
        %2928 = vmatmul.mubr.bf16.gmra.mxu0 %v975
        %v2929 = vpop.f32.mrf.mxu0
        %v2930 = vadd.f32 %v2641, %v2929
        %v2931 = vpop.f32.mrf.mxu0
        %v2932 = vpop.f32.mrf.mxu0
        %v2933 = vadd.f32 %v2644, %v2932
        %v2934 = vpop.f32.mrf.mxu0
        %2935 = vmatprep.mubr.bf16.mxu0 0
        %2936 = vmatmul.mubr.bf16.gmra.mxu0 %v977
        %v2937 = vpop.f32.mrf.mxu0
        %v2938 = vadd.f32 %v2649, %v2937
        %v2939 = vpop.f32.mrf.mxu0
        %v2940 = vpop.f32.mrf.mxu0
        %v2941 = vadd.f32 %v2652, %v2940
        %v2942 = vpop.f32.mrf.mxu0
        %2943 = vmatprep.mubr.bf16.mxu0 0
        %2944 = vmatmul.mubr.bf16.gmra.mxu0 %v980
        %v2945 = vpop.f32.mrf.mxu0
        %v2946 = vadd.f32 %v2657, %v2945
        %v2947 = vpop.f32.mrf.mxu0
        %v2948 = vpop.f32.mrf.mxu0
        %v2949 = vadd.f32 %v2660, %v2948
        %v2950 = vpop.f32.mrf.mxu0
        %2951 = vmatprep.mubr.bf16.mxu0 0
        %2952 = vmatmul.mubr.bf16.gmra.mxu0 %v982
        %v2953 = vpop.f32.mrf.mxu0
        %v2954 = vadd.f32 %v2665, %v2953
        %v2955 = vpop.f32.mrf.mxu0
        %v2956 = vpop.f32.mrf.mxu0
        %v2957 = vadd.f32 %v2668, %v2956
        %v2958 = vpop.f32.mrf.mxu0
        %2959 = vmatprep.mubr.bf16.mxu0 0
        %2960 = vmatmul.mubr.bf16.gmra.mxu0 %v985
        %v2961 = vpop.f32.mrf.mxu0
        %v2962 = vadd.f32 %v2673, %v2961
        %v2963 = vpop.f32.mrf.mxu0
        %v2964 = vpop.f32.mrf.mxu0
        %v2965 = vadd.f32 %v2676, %v2964
        %v2966 = vpop.f32.mrf.mxu0
        %2967 = vmatprep.mubr.bf16.mxu0 0
        %2968 = vmatmul.mubr.bf16.gmra.mxu0 %v987
        %v2969 = vpop.f32.mrf.mxu0
        %v2970 = vadd.f32 %v2681, %v2969
        %v2971 = vpop.f32.mrf.mxu0
        %v2972 = vpop.f32.mrf.mxu0
        %v2973 = vadd.f32 %v2684, %v2972
        %v2974 = vpop.f32.mrf.mxu0
        %2975 = vmatprep.mubr.bf16.mxu0 0
        %2976 = vmatmul.mubr.bf16.gmra.mxu0 %v990
        %v2977 = vpop.f32.mrf.mxu0
        %v2978 = vadd.f32 %v2689, %v2977
        %v2979 = vpop.f32.mrf.mxu0
        %v2980 = vpop.f32.mrf.mxu0
        %v2981 = vadd.f32 %v2692, %v2980
        %v2982 = vpop.f32.mrf.mxu0
        %2983 = vmatprep.mubr.bf16.mxu0 0
        %2984 = vmatmul.mubr.bf16.gmra.mxu0 %v992
        %v2985 = vpop.f32.mrf.mxu0
        %v2986 = vadd.f32 %v2697, %v2985
        %v2987 = vpop.f32.mrf.mxu0
        %v2988 = vpop.f32.mrf.mxu0
        %v2989 = vadd.f32 %v2700, %v2988
        %v2990 = vpop.f32.mrf.mxu0
        %2991 = vmatprep.mubr.bf16.mxu0 0
        %2992 = vmatmul.mubr.bf16.gmra.mxu0 %v995
        %v2993 = vpop.f32.mrf.mxu0
        %v2994 = vadd.f32 %v2705, %v2993
        %v2995 = vpop.f32.mrf.mxu0
        %v2996 = vpop.f32.mrf.mxu0
        %v2997 = vadd.f32 %v2708, %v2996
        %v2998 = vpop.f32.mrf.mxu0
        %2999 = vmatprep.mubr.bf16.mxu0 0
        %3000 = vmatmul.mubr.bf16.gmra.mxu0 %v997
        %v3001 = vpop.f32.mrf.mxu0
        %v3002 = vadd.f32 %v2713, %v3001
        %v3003 = vpop.f32.mrf.mxu0
        %v3004 = vpop.f32.mrf.mxu0
        %v3005 = vadd.f32 %v2716, %v3004
        %v3006 = vpop.f32.mrf.mxu0
        %3007 = vmatprep.mubr.bf16.mxu0 0
        %3008 = vmatmul.mubr.bf16.gmra.mxu0 %v1000
        %v3009 = vpop.f32.mrf.mxu0
        %v3010 = vadd.f32 %v2721, %v3009
        %v3011 = vpop.f32.mrf.mxu0
        %v3012 = vpop.f32.mrf.mxu0
        %v3013 = vadd.f32 %v2724, %v3012
        %v3014 = vpop.f32.mrf.mxu0
        %3015 = vmatprep.mubr.bf16.mxu0 0
        %3016 = vmatmul.mubr.bf16.gmra.mxu0 %v1002
        %v3017 = vpop.f32.mrf.mxu0
        %v3018 = vadd.f32 %v2729, %v3017
        %v3019 = vpop.f32.mrf.mxu0
        %v3020 = vpop.f32.mrf.mxu0
        %v3021 = vadd.f32 %v2732, %v3020
        %v3022 = vpop.f32.mrf.mxu0
        %3023 = vmatprep.mubr.bf16.mxu0 0
        %3024 = vmatmul.mubr.bf16.gmra.mxu0 %v1005
        %v3025 = vpop.f32.mrf.mxu0
        %v3026 = vadd.f32 %v2737, %v3025
        %v3027 = vpop.f32.mrf.mxu0
        %v3028 = vpop.f32.mrf.mxu0
        %v3029 = vadd.f32 %v2740, %v3028
        %v3030 = vpop.f32.mrf.mxu0
        %3031 = vmatprep.mubr.bf16.mxu0 0
        %3032 = vmatmul.mubr.bf16.gmra.mxu0 %v1007
        %v3033 = vpop.f32.mrf.mxu0
        %v3034 = vadd.f32 %v2745, %v3033
        %v3035 = vpop.f32.mrf.mxu0
        %v3036 = vpop.f32.mrf.mxu0
        %v3037 = vadd.f32 %v2748, %v3036
        %v3038 = vpop.f32.mrf.mxu0
        %3039 = vmatprep.mubr.bf16.mxu0 0
        %3040 = vmatmul.mubr.bf16.gmra.mxu0 %v1010
        %v3041 = vpop.f32.mrf.mxu0
        %v3042 = vadd.f32 %v2753, %v3041
        %v3043 = vpop.f32.mrf.mxu0
        %v3044 = vpop.f32.mrf.mxu0
        %v3045 = vadd.f32 %v2756, %v3044
        %v3046 = vpop.f32.mrf.mxu0
        %3047 = vmatprep.mubr.bf16.mxu0 0
        %3048 = vmatmul.mubr.bf16.gmra.mxu0 %v1012
        %v3049 = vpop.f32.mrf.mxu0
        %v3050 = vadd.f32 %v2761, %v3049
        %v3051 = vpop.f32.mrf.mxu0
        %v3052 = vpop.f32.mrf.mxu0
        %v3053 = vadd.f32 %v2764, %v3052
        %v3054 = vpop.f32.mrf.mxu0
        %3055 = vmatprep.mubr.bf16.mxu0 0
        %3056 = vmatmul.mubr.bf16.gmra.mxu0 %v1015
        %v3057 = vpop.f32.mrf.mxu0
        %v3058 = vadd.f32 %v2769, %v3057
        %v3059 = vpop.f32.mrf.mxu0
        %v3060 = vpop.f32.mrf.mxu0
        %v3061 = vadd.f32 %v2772, %v3060
        %v3062 = vpop.f32.mrf.mxu0
        %3063 = vmatprep.mubr.bf16.mxu0 0
        %3064 = vmatmul.mubr.bf16.gmra.mxu0 %v1017
        %v3065 = vpop.f32.mrf.mxu0
        %v3066 = vadd.f32 %v2777, %v3065
        %v3067 = vpop.f32.mrf.mxu0
        %v3068 = vpop.f32.mrf.mxu0
        %v3069 = vadd.f32 %v2780, %v3068
        %v3070 = vpop.f32.mrf.mxu0
        %3071 = vmatprep.mubr.bf16.mxu0 0
        %3072 = vmatmul.mubr.bf16.gmra.mxu0 %v1020
        %v3073 = vpop.f32.mrf.mxu0
        %v3074 = vadd.f32 %v2785, %v3073
        %v3075 = vpop.f32.mrf.mxu0
        %v3076 = vpop.f32.mrf.mxu0
        %v3077 = vadd.f32 %v2788, %v3076
        %v3078 = vpop.f32.mrf.mxu0
        %3079 = vmatprep.mubr.bf16.mxu0 0
        %3080 = vmatmul.mubr.bf16.gmra.mxu0 %v1022
        %v3081 = vpop.f32.mrf.mxu0
        %v3082 = vadd.f32 %v2793, %v3081
        %v3083 = vpop.f32.mrf.mxu0
        %v3084 = vpop.f32.mrf.mxu0
        %v3085 = vadd.f32 %v2796, %v3084
        %v3086 = vpop.f32.mrf.mxu0
        %3087 = vmatprep.mubr.bf16.mxu0 0
        %3088 = vmatmul.mubr.bf16.gmra.mxu0 %v1025
        %v3089 = vpop.f32.mrf.mxu0
        %v3090 = vadd.f32 %v2801, %v3089
        %v3091 = vpop.f32.mrf.mxu0
        %v3092 = vpop.f32.mrf.mxu0
        %v3093 = vadd.f32 %v2804, %v3092
        %v3094 = vpop.f32.mrf.mxu0
        %3095 = vmatprep.mubr.bf16.mxu0 0
        %3096 = vmatmul.mubr.bf16.gmra.mxu0 %v1027
        %v3097 = vpop.f32.mrf.mxu0
        %v3098 = vadd.f32 %v2809, %v3097
        %v3099 = vpop.f32.mrf.mxu0
        %v3100 = vpop.f32.mrf.mxu0
        %v3101 = vadd.f32 %v2812, %v3100
        %v3102 = vpop.f32.mrf.mxu0
        %3103 = vmatprep.mubr.bf16.mxu0 0
        %3104 = vmatmul.mubr.bf16.gmra.mxu0 %v1030
        %v3105 = vpop.f32.mrf.mxu0
        %v3106 = vadd.f32 %v2817, %v3105
        %v3107 = vpop.f32.mrf.mxu0
        %v3108 = vpop.f32.mrf.mxu0
        %v3109 = vadd.f32 %v2820, %v3108
        %v3110 = vpop.f32.mrf.mxu0
        %3111 = vmatprep.mubr.bf16.mxu0 0
        %3112 = vmatmul.mubr.bf16.gmra.mxu0 %v1032
        %v3113 = vpop.f32.mrf.mxu0
        %v3114 = vadd.f32 %v2825, %v3113
        %v3115 = vpop.f32.mrf.mxu0
        %v3116 = vpop.f32.mrf.mxu0
        %v3117 = vadd.f32 %v2828, %v3116
        %v3118 = vpop.f32.mrf.mxu0
        %3119 = vmatprep.mubr.bf16.mxu0 0
        %3120 = vmatmul.mubr.bf16.gmra.mxu0 %v1035
        %v3121 = vpop.f32.mrf.mxu0
        %v3122 = vadd.f32 %v2833, %v3121
        %v3123 = vpop.f32.mrf.mxu0
        %v3124 = vpop.f32.mrf.mxu0
        %v3125 = vadd.f32 %v2836, %v3124
        %v3126 = vpop.f32.mrf.mxu0
        %3127 = vmatprep.mubr.bf16.mxu0 0
        %3128 = vmatmul.mubr.bf16.gmra.mxu0 %v1037
        %v3129 = vpop.f32.mrf.mxu0
        %v3130 = vadd.f32 %v2841, %v3129
        %v3131 = vpop.f32.mrf.mxu0
        %v3132 = vpop.f32.mrf.mxu0
        %v3133 = vadd.f32 %v2844, %v3132
        %v3134 = vpop.f32.mrf.mxu0
        %3135 = vmatprep.mubr.bf16.mxu0 0
        %3136 = vmatmul.mubr.bf16.gmra.mxu0 %v1040
        %v3137 = vpop.f32.mrf.mxu0
        %v3138 = vadd.f32 %v2849, %v3137
        %v3139 = vpop.f32.mrf.mxu0
        %v3140 = vpop.f32.mrf.mxu0
        %v3141 = vadd.f32 %v2852, %v3140
        %v3142 = vpop.f32.mrf.mxu0
        %3143 = vmatprep.mubr.bf16.mxu0 0
        %3144 = vmatmul.mubr.bf16.gmra.mxu0 %v1042
        %v3145 = vpop.f32.mrf.mxu0
        %v3146 = vadd.f32 %v2857, %v3145
        %v3147 = vpop.f32.mrf.mxu0
        %v3148 = vpop.f32.mrf.mxu0
        %v3149 = vadd.f32 %v2860, %v3148
        %v3150 = vpop.f32.mrf.mxu0
        %3151 = vmatprep.mubr.bf16.mxu0 0
        %3152 = vmatmul.mubr.bf16.gmra.mxu0 %v1114
        %v3153 = vpop.f32.mrf.mxu0
        %v3154 = vadd.f32 %v2865, %v3153
        %v3155 = vpop.f32.mrf.mxu0
        %v3156 = vpop.f32.mrf.mxu0
        %v3157 = vadd.f32 %v2868, %v3156
        %v3158 = vpop.f32.mrf.mxu0
        %3159 = vmatprep.mubr.bf16.mxu0 0
        %3160 = vmatmul.mubr.bf16.gmra.mxu0 %v1116
        %v3161 = vpop.f32.mrf.mxu0
        %v3162 = vadd.f32 %v2873, %v3161
        %v3163 = vpop.f32.mrf.mxu0
        %v3164 = vpop.f32.mrf.mxu0
        %v3165 = vadd.f32 %v2876, %v3164
        %v3166 = vpop.f32.mrf.mxu0
        %3167 = vmatprep.mubr.bf16.mxu0 0
        %3168 = vmatmul.mubr.bf16.gmra.mxu0 %v1158
        %v3169 = vpop.f32.mrf.mxu0
        %v3170 = vadd.f32 %v2881, %v3169
        %v3171 = vpop.f32.mrf.mxu0
        %v3172 = vpop.f32.mrf.mxu0
        %v3173 = vadd.f32 %v2884, %v3172
        %v3174 = vpop.f32.mrf.mxu0
        %3175 = vmatprep.mubr.bf16.mxu0 0
        %3176 = vmatmul.mubr.bf16.gmra.mxu0 %v1160
        %v3177 = vpop.f32.mrf.mxu0
        %v3178 = vadd.f32 %v2889, %v3177
        %v3179 = vpop.f32.mrf.mxu0
        %v3180 = vpop.f32.mrf.mxu0
        %v3181 = vadd.f32 %v2892, %v3180
        %v3182 = vpop.f32.mrf.mxu0
        %3183 = vdwg.mxu0
        %v3184 = vld [vmem:[%s2] sm:$0x1]
        %v3186 = vlaneseq
        %v3187 = vshrl.u32 %v3186, 7
        %v3188 = vsub.s32 0, %v3187
        %v3189 = vrot.slane %v3184, %v3188
        %v3191 = vmul.f32 %v2930, %v3189
        %v3192 = vmul.f32 %v2933, %v3189
        %v3193 = vmul.f32 %v2938, %v3189
        %v3194 = vmul.f32 %v2941, %v3189
        %v3195 = vmul.f32 %v2946, %v3189
        %v3196 = vmul.f32 %v2949, %v3189
        %v3197 = vmul.f32 %v2954, %v3189
        %v3198 = vmul.f32 %v2957, %v3189
        %v3199 = vmul.f32 %v2962, %v3189
        %v3200 = vmul.f32 %v2965, %v3189
        %v3201 = vmul.f32 %v2970, %v3189
        %v3202 = vmul.f32 %v2973, %v3189
        %v3203 = vmul.f32 %v2978, %v3189
        %v3204 = vmul.f32 %v2981, %v3189
        %v3205 = vmul.f32 %v2986, %v3189
        %v3206 = vmul.f32 %v2989, %v3189
        %v3207 = vmul.f32 %v2994, %v3189
        %v3208 = vmul.f32 %v2997, %v3189
        %v3209 = vmul.f32 %v3002, %v3189
        %v3210 = vmul.f32 %v3005, %v3189
        %v3211 = vmul.f32 %v3010, %v3189
        %v3212 = vmul.f32 %v3013, %v3189
        %v3213 = vmul.f32 %v3018, %v3189
        %v3214 = vmul.f32 %v3021, %v3189
        %v3215 = vmul.f32 %v3026, %v3189
        %v3216 = vmul.f32 %v3029, %v3189
        %v3217 = vmul.f32 %v3034, %v3189
        %v3218 = vmul.f32 %v3037, %v3189
        %v3219 = vmul.f32 %v3042, %v3189
        %v3220 = vmul.f32 %v3045, %v3189
        %v3221 = vmul.f32 %v3050, %v3189
        %v3222 = vmul.f32 %v3053, %v3189
        %v3223 = vmul.f32 %v3058, %v3189
        %v3224 = vmul.f32 %v3061, %v3189
        %v3225 = vmul.f32 %v3066, %v3189
        %v3226 = vmul.f32 %v3069, %v3189
        %v3227 = vmul.f32 %v3074, %v3189
        %v3228 = vmul.f32 %v3077, %v3189
        %v3229 = vmul.f32 %v3082, %v3189
        %v3230 = vmul.f32 %v3085, %v3189
        %v3231 = vmul.f32 %v3090, %v3189
        %v3232 = vmul.f32 %v3093, %v3189
        %v3233 = vmul.f32 %v3098, %v3189
        %v3234 = vmul.f32 %v3101, %v3189
        %v3235 = vmul.f32 %v3106, %v3189
        %v3236 = vmul.f32 %v3109, %v3189
        %v3237 = vmul.f32 %v3114, %v3189
        %v3238 = vmul.f32 %v3117, %v3189
        %v3239 = vmul.f32 %v3122, %v3189
        %v3240 = vmul.f32 %v3125, %v3189
        %v3241 = vmul.f32 %v3130, %v3189
        %v3242 = vmul.f32 %v3133, %v3189
        %v3243 = vmul.f32 %v3138, %v3189
        %v3244 = vmul.f32 %v3141, %v3189
        %v3245 = vmul.f32 %v3146, %v3189
        %v3246 = vmul.f32 %v3149, %v3189
        %v3247 = vmul.f32 %v3154, %v3189
        %v3248 = vmul.f32 %v3157, %v3189
        %v3249 = vmul.f32 %v3162, %v3189
        %v3250 = vmul.f32 %v3165, %v3189
        %v3251 = vmul.f32 %v3170, %v3189
        %v3252 = vmul.f32 %v3173, %v3189
        %v3253 = vmul.f32 %v3178, %v3189
        %v3254 = vmul.f32 %v3181, %v3189
        %v3255 = vld [vmem:[%s3] sm:$0x1]
        %v3257 = vlaneseq
        %v3258 = vshrl.u32 %v3257, 7
        %v3259 = vsub.s32 0, %v3258
        %v3260 = vrot.slane %v3255, %v3259
        %v3262 = vadd.f32 %v3191, %v3260
        %v3263 = vadd.f32 %v3192, %v3260
        %v3264 = vadd.f32 %v3193, %v3260
        %v3265 = vadd.f32 %v3194, %v3260
        %v3266 = vadd.f32 %v3195, %v3260
        %v3267 = vadd.f32 %v3196, %v3260
        %v3268 = vadd.f32 %v3197, %v3260
        %v3269 = vadd.f32 %v3198, %v3260
        %v3270 = vadd.f32 %v3199, %v3260
        %v3271 = vadd.f32 %v3200, %v3260
        %v3272 = vadd.f32 %v3201, %v3260
        %v3273 = vadd.f32 %v3202, %v3260
        %v3274 = vadd.f32 %v3203, %v3260
        %v3275 = vadd.f32 %v3204, %v3260
        %v3276 = vadd.f32 %v3205, %v3260
        %v3277 = vadd.f32 %v3206, %v3260
        %v3278 = vadd.f32 %v3207, %v3260
        %v3279 = vadd.f32 %v3208, %v3260
        %v3280 = vadd.f32 %v3209, %v3260
        %v3281 = vadd.f32 %v3210, %v3260
        %v3282 = vadd.f32 %v3211, %v3260
        %v3283 = vadd.f32 %v3212, %v3260
        %v3284 = vadd.f32 %v3213, %v3260
        %v3285 = vadd.f32 %v3214, %v3260
        %v3286 = vadd.f32 %v3215, %v3260
        %v3287 = vadd.f32 %v3216, %v3260
        %v3288 = vadd.f32 %v3217, %v3260
        %v3289 = vadd.f32 %v3218, %v3260
        %v3290 = vadd.f32 %v3219, %v3260
        %v3291 = vadd.f32 %v3220, %v3260
        %v3292 = vadd.f32 %v3221, %v3260
        %v3293 = vadd.f32 %v3222, %v3260
        %v3294 = vadd.f32 %v3223, %v3260
        %v3295 = vadd.f32 %v3224, %v3260
        %v3296 = vadd.f32 %v3225, %v3260
        %v3297 = vadd.f32 %v3226, %v3260
        %v3298 = vadd.f32 %v3227, %v3260
        %v3299 = vadd.f32 %v3228, %v3260
        %v3300 = vadd.f32 %v3229, %v3260
        %v3301 = vadd.f32 %v3230, %v3260
        %v3302 = vadd.f32 %v3231, %v3260
        %v3303 = vadd.f32 %v3232, %v3260
        %v3304 = vadd.f32 %v3233, %v3260
        %v3305 = vadd.f32 %v3234, %v3260
        %v3306 = vadd.f32 %v3235, %v3260
        %v3307 = vadd.f32 %v3236, %v3260
        %v3308 = vadd.f32 %v3237, %v3260
        %v3309 = vadd.f32 %v3238, %v3260
        %v3310 = vadd.f32 %v3239, %v3260
        %v3311 = vadd.f32 %v3240, %v3260
        %v3312 = vadd.f32 %v3241, %v3260
        %v3313 = vadd.f32 %v3242, %v3260
        %v3314 = vadd.f32 %v3243, %v3260
        %v3315 = vadd.f32 %v3244, %v3260
        %v3316 = vadd.f32 %v3245, %v3260
        %v3317 = vadd.f32 %v3246, %v3260
        %v3318 = vadd.f32 %v3247, %v3260
        %v3319 = vadd.f32 %v3248, %v3260
        %v3320 = vadd.f32 %v3249, %v3260
        %v3321 = vadd.f32 %v3250, %v3260
        %v3322 = vadd.f32 %v3251, %v3260
        %v3323 = vadd.f32 %v3252, %v3260
        %v3324 = vadd.f32 %v3253, %v3260
        %v3325 = vadd.f32 %v3254, %v3260
        %v3326 = vld [vmem:[%s271] sm:$0xf]
        %v3327 = vld [vmem:[%s271 + $0x4] sm:$0xf]
        %v3328 = vld [vmem:[%s271 + $0x8] sm:$0xf]
        %v3329 = vld [vmem:[%s271 + $0xc] sm:$0xf]
        %v3330 = vld [vmem:[%s271 + $0x10] sm:$0xf]
        %v3331 = vld [vmem:[%s271 + $0x14] sm:$0xf]
        %v3332 = vld [vmem:[%s271 + $0x18] sm:$0xf]
        %v3333 = vld [vmem:[%s271 + $0x1c] sm:$0xf]
        %v3334 = vld [vmem:[%s271 + $0x20] sm:$0xf]
        %v3335 = vld [vmem:[%s271 + $0x24] sm:$0xf]
        %v3336 = vld [vmem:[%s271 + $0x28] sm:$0xf]
        %v3337 = vld [vmem:[%s271 + $0x2c] sm:$0xf]
        %v3338 = vld [vmem:[%s271 + $0x30] sm:$0xf]
        %v3339 = vld [vmem:[%s271 + $0x34] sm:$0xf]
        %v3340 = vld [vmem:[%s271 + $0x38] sm:$0xf]
        %v3341 = vld [vmem:[%s271 + $0x3c] sm:$0xf]
        %v3342 = vld [vmem:[%s271 + $0x40] sm:$0xf]
        %v3343 = vld [vmem:[%s271 + $0x44] sm:$0xf]
        %v3344 = vld [vmem:[%s271 + $0x48] sm:$0xf]
        %v3345 = vld [vmem:[%s271 + $0x4c] sm:$0xf]
        %v3346 = vld [vmem:[%s271 + $0x50] sm:$0xf]
        %v3347 = vld [vmem:[%s271 + $0x54] sm:$0xf]
        %v3348 = vld [vmem:[%s271 + $0x58] sm:$0xf]
        %v3349 = vld [vmem:[%s271 + $0x5c] sm:$0xf]
        %v3350 = vld [vmem:[%s271 + $0x60] sm:$0xf]
        %v3351 = vld [vmem:[%s271 + $0x64] sm:$0xf]
        %v3352 = vld [vmem:[%s271 + $0x68] sm:$0xf]
        %v3353 = vld [vmem:[%s271 + $0x6c] sm:$0xf]
        %v3354 = vld [vmem:[%s271 + $0x70] sm:$0xf]
        %v3355 = vld [vmem:[%s271 + $0x74] sm:$0xf]
        %v3356 = vld [vmem:[%s271 + $0x78] sm:$0xf]
        %v3357 = vld [vmem:[%s271 + $0x7c] sm:$0xf]
        %v3358 = vld [vmem:[%s271 + $0x80] sm:$0xf]
        %v3359 = vld [vmem:[%s271 + $0x84] sm:$0xf]
        %v3360 = vld [vmem:[%s271 + $0x88] sm:$0xf]
        %v3361 = vld [vmem:[%s271 + $0x8c] sm:$0xf]
        %v3362 = vld [vmem:[%s271 + $0x90] sm:$0xf]
        %v3363 = vld [vmem:[%s271 + $0x94] sm:$0xf]
        %v3364 = vld [vmem:[%s271 + $0x98] sm:$0xf]
        %v3365 = vld [vmem:[%s271 + $0x9c] sm:$0xf]
        %v3366 = vld [vmem:[%s271 + $0xa0] sm:$0xf]
        %v3367 = vld [vmem:[%s271 + $0xa4] sm:$0xf]
        %v3368 = vld [vmem:[%s271 + $0xa8] sm:$0xf]
        %v3369 = vld [vmem:[%s271 + $0xac] sm:$0xf]
        %v3370 = vld [vmem:[%s271 + $0xb0] sm:$0xf]
        %v3371 = vld [vmem:[%s271 + $0xb4] sm:$0xf]
        %v3372 = vld [vmem:[%s271 + $0xb8] sm:$0xf]
        %v3373 = vld [vmem:[%s271 + $0xbc] sm:$0xf]
        %v3374 = vld [vmem:[%s271 + $0xc0] sm:$0xf]
        %v3375 = vld [vmem:[%s271 + $0xc4] sm:$0xf]
        %v3376 = vld [vmem:[%s271 + $0xc8] sm:$0xf]
        %v3377 = vld [vmem:[%s271 + $0xcc] sm:$0xf]
        %v3378 = vld [vmem:[%s271 + $0xd0] sm:$0xf]
        %v3379 = vld [vmem:[%s271 + $0xd4] sm:$0xf]
        %v3380 = vld [vmem:[%s271 + $0xd8] sm:$0xf]
        %v3381 = vld [vmem:[%s271 + $0xdc] sm:$0xf]
        %v3382 = vld [vmem:[%s271 + $0xe0] sm:$0xf]
        %v3383 = vld [vmem:[%s271 + $0xe4] sm:$0xf]
        %v3384 = vld [vmem:[%s271 + $0xe8] sm:$0xf]
        %v3385 = vld [vmem:[%s271 + $0xec] sm:$0xf]
        %v3386 = vld [vmem:[%s271 + $0xf0] sm:$0xf]
        %v3387 = vld [vmem:[%s271 + $0xf4] sm:$0xf]
        %v3388 = vld [vmem:[%s271 + $0xf8] sm:$0xf]
        %v3389 = vld [vmem:[%s271 + $0xfc] sm:$0xf]
        %v3390 = vunpack.c.l.bf16 %v3326
        %v3391 = vunpack.c.l.bf16 %v3327
        %v3392 = vunpack.c.l.bf16 %v3328
        %v3393 = vunpack.c.l.bf16 %v3329
        %v3394 = vunpack.c.l.bf16 %v3330
        %v3395 = vunpack.c.l.bf16 %v3331
        %v3396 = vunpack.c.l.bf16 %v3332
        %v3397 = vunpack.c.l.bf16 %v3333
        %v3398 = vunpack.c.l.bf16 %v3334
        %v3399 = vunpack.c.l.bf16 %v3335
        %v3400 = vunpack.c.l.bf16 %v3336
        %v3401 = vunpack.c.l.bf16 %v3337
        %v3402 = vunpack.c.l.bf16 %v3338
        %v3403 = vunpack.c.l.bf16 %v3339
        %v3404 = vunpack.c.l.bf16 %v3340
        %v3405 = vunpack.c.l.bf16 %v3341
        %v3406 = vunpack.c.l.bf16 %v3342
        %v3407 = vunpack.c.l.bf16 %v3343
        %v3408 = vunpack.c.l.bf16 %v3344
        %v3409 = vunpack.c.l.bf16 %v3345
        %v3410 = vunpack.c.l.bf16 %v3346
        %v3411 = vunpack.c.l.bf16 %v3347
        %v3412 = vunpack.c.l.bf16 %v3348
        %v3413 = vunpack.c.l.bf16 %v3349
        %v3414 = vunpack.c.l.bf16 %v3350
        %v3415 = vunpack.c.l.bf16 %v3351
        %v3416 = vunpack.c.l.bf16 %v3352
        %v3417 = vunpack.c.l.bf16 %v3353
        %v3418 = vunpack.c.l.bf16 %v3354
        %v3419 = vunpack.c.l.bf16 %v3355
        %v3420 = vunpack.c.l.bf16 %v3356
        %v3421 = vunpack.c.l.bf16 %v3357
        %v3422 = vunpack.c.l.bf16 %v3358
        %v3423 = vunpack.c.l.bf16 %v3359
        %v3424 = vunpack.c.l.bf16 %v3360
        %v3425 = vunpack.c.l.bf16 %v3361
        %v3426 = vunpack.c.l.bf16 %v3362
        %v3427 = vunpack.c.l.bf16 %v3363
        %v3428 = vunpack.c.l.bf16 %v3364
        %v3429 = vunpack.c.l.bf16 %v3365
        %v3430 = vunpack.c.l.bf16 %v3366
        %v3431 = vunpack.c.l.bf16 %v3367
        %v3432 = vunpack.c.l.bf16 %v3368
        %v3433 = vunpack.c.l.bf16 %v3369
        %v3434 = vunpack.c.l.bf16 %v3370
        %v3435 = vunpack.c.l.bf16 %v3371
        %v3436 = vunpack.c.l.bf16 %v3372
        %v3437 = vunpack.c.l.bf16 %v3373
        %v3438 = vunpack.c.l.bf16 %v3374
        %v3439 = vunpack.c.l.bf16 %v3375
        %v3440 = vunpack.c.l.bf16 %v3376
        %v3441 = vunpack.c.l.bf16 %v3377
        %v3442 = vunpack.c.l.bf16 %v3378
        %v3443 = vunpack.c.l.bf16 %v3379
        %v3444 = vunpack.c.l.bf16 %v3380
        %v3445 = vunpack.c.l.bf16 %v3381
        %v3446 = vunpack.c.l.bf16 %v3382
        %v3447 = vunpack.c.l.bf16 %v3383
        %v3448 = vunpack.c.l.bf16 %v3384
        %v3449 = vunpack.c.l.bf16 %v3385
        %v3450 = vunpack.c.l.bf16 %v3386
        %v3451 = vunpack.c.l.bf16 %v3387
        %v3452 = vunpack.c.l.bf16 %v3388
        %v3453 = vunpack.c.l.bf16 %v3389
        %v3454 = vadd.f32 %v3262, %v3390
        %v3455 = vadd.f32 %v3263, %v3391
        %v3456 = vadd.f32 %v3264, %v3392
        %v3457 = vadd.f32 %v3265, %v3393
        %v3458 = vadd.f32 %v3266, %v3394
        %v3459 = vadd.f32 %v3267, %v3395
        %v3460 = vadd.f32 %v3268, %v3396
        %v3461 = vadd.f32 %v3269, %v3397
        %v3462 = vadd.f32 %v3270, %v3398
        %v3463 = vadd.f32 %v3271, %v3399
        %v3464 = vadd.f32 %v3272, %v3400
        %v3465 = vadd.f32 %v3273, %v3401
        %v3466 = vadd.f32 %v3274, %v3402
        %v3467 = vadd.f32 %v3275, %v3403
        %v3468 = vadd.f32 %v3276, %v3404
        %v3469 = vadd.f32 %v3277, %v3405
        %v3470 = vadd.f32 %v3278, %v3406
        %v3471 = vadd.f32 %v3279, %v3407
        %v3472 = vadd.f32 %v3280, %v3408
        %v3473 = vadd.f32 %v3281, %v3409
        %v3474 = vadd.f32 %v3282, %v3410
        %v3475 = vadd.f32 %v3283, %v3411
        %v3476 = vadd.f32 %v3284, %v3412
        %v3477 = vadd.f32 %v3285, %v3413
        %v3478 = vadd.f32 %v3286, %v3414
        %v3479 = vadd.f32 %v3287, %v3415
        %v3480 = vadd.f32 %v3288, %v3416
        %v3481 = vadd.f32 %v3289, %v3417
        %v3482 = vadd.f32 %v3290, %v3418
        %v3483 = vadd.f32 %v3291, %v3419
        %v3484 = vadd.f32 %v3292, %v3420
        %v3485 = vadd.f32 %v3293, %v3421
        %v3486 = vadd.f32 %v3294, %v3422
        %v3487 = vadd.f32 %v3295, %v3423
        %v3488 = vadd.f32 %v3296, %v3424
        %v3489 = vadd.f32 %v3297, %v3425
        %v3490 = vadd.f32 %v3298, %v3426
        %v3491 = vadd.f32 %v3299, %v3427
        %v3492 = vadd.f32 %v3300, %v3428
        %v3493 = vadd.f32 %v3301, %v3429
        %v3494 = vadd.f32 %v3302, %v3430
        %v3495 = vadd.f32 %v3303, %v3431
        %v3496 = vadd.f32 %v3304, %v3432
        %v3497 = vadd.f32 %v3305, %v3433
        %v3498 = vadd.f32 %v3306, %v3434
        %v3499 = vadd.f32 %v3307, %v3435
        %v3500 = vadd.f32 %v3308, %v3436
        %v3501 = vadd.f32 %v3309, %v3437
        %v3502 = vadd.f32 %v3310, %v3438
        %v3503 = vadd.f32 %v3311, %v3439
        %v3504 = vadd.f32 %v3312, %v3440
        %v3505 = vadd.f32 %v3313, %v3441
        %v3506 = vadd.f32 %v3314, %v3442
        %v3507 = vadd.f32 %v3315, %v3443
        %v3508 = vadd.f32 %v3316, %v3444
        %v3509 = vadd.f32 %v3317, %v3445
        %v3510 = vadd.f32 %v3318, %v3446
        %v3511 = vadd.f32 %v3319, %v3447
        %v3512 = vadd.f32 %v3320, %v3448
        %v3513 = vadd.f32 %v3321, %v3449
        %v3514 = vadd.f32 %v3322, %v3450
        %v3515 = vadd.f32 %v3323, %v3451
        %v3516 = vadd.f32 %v3324, %v3452
        %v3517 = vadd.f32 %v3325, %v3453
        %v3518 = vmax.f32 %v3454, 0.0
        %v3519 = vmax.f32 %v3455, 0.0
        %v3520 = vmax.f32 %v3456, 0.0
        %v3521 = vmax.f32 %v3457, 0.0
        %v3522 = vmax.f32 %v3458, 0.0
        %v3523 = vmax.f32 %v3459, 0.0
        %v3524 = vmax.f32 %v3460, 0.0
        %v3525 = vmax.f32 %v3461, 0.0
        %v3526 = vmax.f32 %v3462, 0.0
        %v3527 = vmax.f32 %v3463, 0.0
        %v3528 = vmax.f32 %v3464, 0.0
        %v3529 = vmax.f32 %v3465, 0.0
        %v3530 = vmax.f32 %v3466, 0.0
        %v3531 = vmax.f32 %v3467, 0.0
        %v3532 = vmax.f32 %v3468, 0.0
        %v3533 = vmax.f32 %v3469, 0.0
        %v3534 = vmax.f32 %v3470, 0.0
        %v3535 = vmax.f32 %v3471, 0.0
        %v3536 = vmax.f32 %v3472, 0.0
        %v3537 = vmax.f32 %v3473, 0.0
        %v3538 = vmax.f32 %v3474, 0.0
        %v3539 = vmax.f32 %v3475, 0.0
        %v3540 = vmax.f32 %v3476, 0.0
        %v3541 = vmax.f32 %v3477, 0.0
        %v3542 = vmax.f32 %v3478, 0.0
        %v3543 = vmax.f32 %v3479, 0.0
        %v3544 = vmax.f32 %v3480, 0.0
        %v3545 = vmax.f32 %v3481, 0.0
        %v3546 = vmax.f32 %v3482, 0.0
        %v3547 = vmax.f32 %v3483, 0.0
        %v3548 = vmax.f32 %v3484, 0.0
        %v3549 = vmax.f32 %v3485, 0.0
        %v3550 = vmax.f32 %v3486, 0.0
        %v3551 = vmax.f32 %v3487, 0.0
        %v3552 = vmax.f32 %v3488, 0.0
        %v3553 = vmax.f32 %v3489, 0.0
        %v3554 = vmax.f32 %v3490, 0.0
        %v3555 = vmax.f32 %v3491, 0.0
        %v3556 = vmax.f32 %v3492, 0.0
        %v3557 = vmax.f32 %v3493, 0.0
        %v3558 = vmax.f32 %v3494, 0.0
        %v3559 = vmax.f32 %v3495, 0.0
        %v3560 = vmax.f32 %v3496, 0.0
        %v3561 = vmax.f32 %v3497, 0.0
        %v3562 = vmax.f32 %v3498, 0.0
        %v3563 = vmax.f32 %v3499, 0.0
        %v3564 = vmax.f32 %v3500, 0.0
        %v3565 = vmax.f32 %v3501, 0.0
        %v3566 = vmax.f32 %v3502, 0.0
        %v3567 = vmax.f32 %v3503, 0.0
        %v3568 = vmax.f32 %v3504, 0.0
        %v3569 = vmax.f32 %v3505, 0.0
        %v3570 = vmax.f32 %v3506, 0.0
        %v3571 = vmax.f32 %v3507, 0.0
        %v3572 = vmax.f32 %v3508, 0.0
        %v3573 = vmax.f32 %v3509, 0.0
        %v3574 = vmax.f32 %v3510, 0.0
        %v3575 = vmax.f32 %v3511, 0.0
        %v3576 = vmax.f32 %v3512, 0.0
        %v3577 = vmax.f32 %v3513, 0.0
        %v3578 = vmax.f32 %v3514, 0.0
        %v3579 = vmax.f32 %v3515, 0.0
        %v3580 = vmax.f32 %v3516, 0.0
        %v3581 = vmax.f32 %v3517, 0.0
        %3582 = vst [vmem:[%s257] sm:$0xff] %v3518
        %3583 = vst [vmem:[%s257 + $0x8] sm:$0xff] %v3519
        %3584 = vst [vmem:[%s257 + $0x10] sm:$0xff] %v3520
        %3585 = vst [vmem:[%s257 + $0x18] sm:$0xff] %v3521
        %3586 = vst [vmem:[%s257 + $0x20] sm:$0xff] %v3522
        %3587 = vst [vmem:[%s257 + $0x28] sm:$0xff] %v3523
        %3588 = vst [vmem:[%s257 + $0x30] sm:$0xff] %v3524
        %3589 = vst [vmem:[%s257 + $0x38] sm:$0xff] %v3525
        %3590 = vst [vmem:[%s257 + $0x40] sm:$0xff] %v3526
        %3591 = vst [vmem:[%s257 + $0x48] sm:$0xff] %v3527
        %3592 = vst [vmem:[%s257 + $0x50] sm:$0xff] %v3528
        %3593 = vst [vmem:[%s257 + $0x58] sm:$0xff] %v3529
        %3594 = vst [vmem:[%s257 + $0x60] sm:$0xff] %v3530
        %3595 = vst [vmem:[%s257 + $0x68] sm:$0xff] %v3531
        %3596 = vst [vmem:[%s257 + $0x70] sm:$0xff] %v3532
        %3597 = vst [vmem:[%s257 + $0x78] sm:$0xff] %v3533
        %3598 = vst [vmem:[%s257 + $0x80] sm:$0xff] %v3534
        %3599 = vst [vmem:[%s257 + $0x88] sm:$0xff] %v3535
        %3600 = vst [vmem:[%s257 + $0x90] sm:$0xff] %v3536
        %3601 = vst [vmem:[%s257 + $0x98] sm:$0xff] %v3537
        %3602 = vst [vmem:[%s257 + $0xa0] sm:$0xff] %v3538
        %3603 = vst [vmem:[%s257 + $0xa8] sm:$0xff] %v3539
        %3604 = vst [vmem:[%s257 + $0xb0] sm:$0xff] %v3540
        %3605 = vst [vmem:[%s257 + $0xb8] sm:$0xff] %v3541
        %3606 = vst [vmem:[%s257 + $0xc0] sm:$0xff] %v3542
        %3607 = vst [vmem:[%s257 + $0xc8] sm:$0xff] %v3543
        %3608 = vst [vmem:[%s257 + $0xd0] sm:$0xff] %v3544
        %3609 = vst [vmem:[%s257 + $0xd8] sm:$0xff] %v3545
        %3610 = vst [vmem:[%s257 + $0xe0] sm:$0xff] %v3546
        %3611 = vst [vmem:[%s257 + $0xe8] sm:$0xff] %v3547
        %3612 = vst [vmem:[%s257 + $0xf0] sm:$0xff] %v3548
        %3613 = vst [vmem:[%s257 + $0xf8] sm:$0xff] %v3549
        %3614 = vst [vmem:[%s257 + $0x100] sm:$0xff] %v3550
        %3615 = vst [vmem:[%s257 + $0x108] sm:$0xff] %v3551
        %3616 = vst [vmem:[%s257 + $0x110] sm:$0xff] %v3552
        %3617 = vst [vmem:[%s257 + $0x118] sm:$0xff] %v3553
        %3618 = vst [vmem:[%s257 + $0x120] sm:$0xff] %v3554
        %3619 = vst [vmem:[%s257 + $0x128] sm:$0xff] %v3555
        %3620 = vst [vmem:[%s257 + $0x130] sm:$0xff] %v3556
        %3621 = vst [vmem:[%s257 + $0x138] sm:$0xff] %v3557
        %3622 = vst [vmem:[%s257 + $0x140] sm:$0xff] %v3558
        %3623 = vst [vmem:[%s257 + $0x148] sm:$0xff] %v3559
        %3624 = vst [vmem:[%s257 + $0x150] sm:$0xff] %v3560
        %3625 = vst [vmem:[%s257 + $0x158] sm:$0xff] %v3561
        %3626 = vst [vmem:[%s257 + $0x160] sm:$0xff] %v3562
        %3627 = vst [vmem:[%s257 + $0x168] sm:$0xff] %v3563
        %3628 = vst [vmem:[%s257 + $0x170] sm:$0xff] %v3564
        %3629 = vst [vmem:[%s257 + $0x178] sm:$0xff] %v3565
        %3630 = vst [vmem:[%s257 + $0x180] sm:$0xff] %v3566
        %3631 = vst [vmem:[%s257 + $0x188] sm:$0xff] %v3567
        %3632 = vst [vmem:[%s257 + $0x190] sm:$0xff] %v3568
        %3633 = vst [vmem:[%s257 + $0x198] sm:$0xff] %v3569
        %3634 = vst [vmem:[%s257 + $0x1a0] sm:$0xff] %v3570
        %3635 = vst [vmem:[%s257 + $0x1a8] sm:$0xff] %v3571
        %3636 = vst [vmem:[%s257 + $0x1b0] sm:$0xff] %v3572
        %3637 = vst [vmem:[%s257 + $0x1b8] sm:$0xff] %v3573
        %3638 = vst [vmem:[%s257 + $0x1c0] sm:$0xff] %v3574
        %3639 = vst [vmem:[%s257 + $0x1c8] sm:$0xff] %v3575
        %3640 = vst [vmem:[%s257 + $0x1d0] sm:$0xff] %v3576
        %3641 = vst [vmem:[%s257 + $0x1d8] sm:$0xff] %v3577
        %3642 = vst [vmem:[%s257 + $0x1e0] sm:$0xff] %v3578
        %3643 = vst [vmem:[%s257 + $0x1e8] sm:$0xff] %v3579
        %3644 = vst [vmem:[%s257 + $0x1f0] sm:$0xff] %v3580
        %3645 = vst [vmem:[%s257 + $0x1f8] sm:$0xff] %v3581
        %s3646 = sand.u32 %s158, 1
        %s3647 = scalar_lea.sflag [#allocation3], %s3646
        %s3648 = sand.u32 %s158, 1
        %s3649 = smul.addr %s3648, 512
        %s3650 = scalar_lea.vmem [#allocation2], %s3649
        // Predicated region
        $region41: #{_lambda_.3} parent=39 // pred_check
          %p3651 = pneg %p168
        $region42: #{_lambda_.3} parent=39 // pred_check_branch
          %3653 = sbr.rel (%p3651) target = $region44
        $region43: #{_lambda_.3} parent=39 // pred_region
          %s3654 = smul.u32 64, %s24
          %s3656 = ssub.s32 8192, 8192
          %3657 = vsyncadd %s3647, %s3656
          %s3658 = smul.addr %s23, 128
          %s3659 = sadd.s32 %s3654, %s3658
          %s3660 = smul.addr %s3659, 128
          %s3661 = scalar_lea.hbm %s5, %s3660
          %s3662 = sshll.u32 %s3650, 4
          %s3663 = int_to_ptr.vmem [resolvable:$true] %s3662
          %3668 = dma.vmem_to_hbm [thread:$0]  %s3663, 8192, %s3661, %s3647, 128, 128, 8
        $region44: #{_lambda_.3} parent=39 // pred_fallthru
          _
      $region40: #{_lambda_.3} parent=5 // pred_fallthru
        _
      %p3669 = scmp.le.s32.totalorder 2, %s14
      // Predicated region
      $region45: #{_lambda_.3} parent=5 // pred_check
        %p3670 = pneg %p3669
      $region46: #{_lambda_.3} parent=5 // pred_check_branch
        %3672 = sbr.rel (%p3670) target = $region48
      $region47: #{_lambda_.3} parent=5 // pred_region
        %s3673 = ssub.s32 %s14, 2
        // Predicated region
        $region49: #{_lambda_.3} parent=47 // pred_check
          %p3674 = pneg %p174
        $region50: #{_lambda_.3} parent=47 // pred_check_branch
          %3676 = sbr.rel (%p3674) target = $region52
        $region51: #{_lambda_.3} parent=47 // pred_region
          %s3677 = sand.u32 %s159, 1
          %s3678 = scalar_lea.sflag [#allocation3], %s3677
          %s3679 = sand.u32 %s159, 1
          %s3680 = smul.addr %s3679, 512
          %s3681 = scalar_lea.vmem [#allocation2], %s3680
          %3682 = dma.done %s3678, 8192
        $region52: #{_lambda_.3} parent=47 // pred_fallthru
          _
      $region48: #{_lambda_.3} parent=5 // pred_fallthru
        _
    $region6: #{_lambda_.3} parent=1 // loop_footer
      %s18 = sadd.s32 1, %s14
    $region7: #{_lambda_.3} parent=1 // loop_footer_branch
      %13 = sbr.rel target = $region3
    $region8: #{_lambda_.3} parent=1 // loop_exit
      _
    %3683 = vsyncpa [#allocation3], 1
    %s3684 = scalar_lea.sflag [#allocation3], 1
    %3685 = vsyncpa %s3684, 1

</llo_original>
